<compile_context>
chip_gen: v7x
topology: tpu7x:2x2x1
jax: 0.10.0
libtpu: 0.0.40
codegen_flags: <defaults>
</compile_context>

<pallas_src>
import functools

import numpy as np

import jax
import jax.numpy as jnp
from jax.experimental import pallas as pl
from jax.experimental.pallas import tpu as pltpu

_GUARD = 128  # zero guard lanes on each side; interior starts 128-aligned


# ---------------------------------------------------------------------------
# In-kernel helpers
# ---------------------------------------------------------------------------
def _conv3x3_stack(src_ref, stack_ref, w_flat, *, cin, wp, lanes, guard):
    """3x3 conv (pad=1) as ONE matmul with K = 9*cin.

    src_ref  : (cin, guard + lanes + guard) bf16; zero guards; interior holds
               ring-padded, flattened (and possibly lane-packed) activations.
    stack_ref: (>=9*cin, >=lanes) bf16 scratch; rows [0, 9*cin) receive the 9
               lane-shifted copies of the interior.
    w_flat   : (cout, 9*cin) bf16, tap-major flattening  w[:, k*cin + ci].
    returns  : (cout, lanes) f32.  Ring / tail-pad lanes hold garbage (taps
               bleed there); callers mask afterwards.
    """
    for k in range(9):
        dh, dw = divmod(k, 3)
        shift = (dh - 1) * wp + (dw - 1)
        lo = guard + shift
        stack_ref[k * cin:(k + 1) * cin, 0:lanes] = src_ref[:, lo:lo + lanes]
    return jnp.dot(w_flat, stack_ref[0:9 * cin, 0:lanes],
                   preferred_element_type=jnp.float32)


def _zero_guards(ref, *, lanes, guard):
    c = ref.shape[0]
    zeros = jnp.zeros((c, guard), ref.dtype)
    ref[:, 0:guard] = zeros
    ref[:, guard + lanes:2 * guard + lanes] = zeros


def _residual_block(act_ref, tmp_ref, stack_ref, w1, w2, b1, b2, mask,
                    *, c, wp, lanes, guard):
    """One identity-shortcut BasicBlock; activation persists in act_ref."""
    h = _conv3x3_stack(act_ref, stack_ref, w1, cin=c, wp=wp, lanes=lanes,
                       guard=guard)
    h = jnp.maximum(h + b1, 0.0) * mask
    tmp_ref[:, guard:guard + lanes] = h.astype(tmp_ref.dtype)
    ident = act_ref[:, guard:guard + lanes].astype(jnp.float32)
    h2 = _conv3x3_stack(tmp_ref, stack_ref, w2, cin=c, wp=wp, lanes=lanes,
                        guard=guard)
    h2 = jnp.maximum(h2 + b2 + ident, 0.0) * mask
    act_ref[:, guard:guard + lanes] = h2.astype(act_ref.dtype)


def _transition_step(x_ref, tw1_ref, tw2_ref, tws_ref, tb_ref, sel_ref, mask,
                     act_ref, tmp_ref, stack_ref, *, cin, c, wp_in, wp_out,
                     lanes_in, lanes_out, guard):
    """Stride-2, channel-changing BasicBlock (first block of layer2/layer3)."""
    # Down-sampled persistent buffers must start with zero rings / tail pads.
    act_ref[...] = jnp.zeros_like(act_ref)
    tmp_ref[...] = jnp.zeros_like(tmp_ref)

    # conv1 (3x3 stride 2) + bn1 + relu: full-resolution conv, then an exact
    # stride-2 subsample realized as a 0/1 selection matmul (stays on the MXU).
    h = _conv3x3_stack(x_ref, stack_ref, tw1_ref[...], cin=cin, wp=wp_in,
                       lanes=lanes_in, guard=guard)
    h = jnp.maximum(h + tb_ref[:, 0:1], 0.0)
    a_ds = jnp.dot(h.astype(jnp.bfloat16), sel_ref[...],
                   preferred_element_type=jnp.float32)          # (c, lanes_out)
    tmp_ref[:, guard:guard + lanes_out] = a_ds.astype(tmp_ref.dtype)

    # 1x1 stride-2 shortcut conv (+ folded bnS): subsample x, then 1x1 matmul.
    xs = jnp.dot(x_ref[:, guard:guard + lanes_in], sel_ref[...],
                 preferred_element_type=jnp.float32)            # (cin, lanes_out)
    sc = jnp.dot(tws_ref[...], xs.astype(jnp.bfloat16),
                 preferred_element_type=jnp.float32)            # (c, lanes_out)

    # conv2 + bn2 + shortcut add + relu.
    a2 = _conv3x3_stack(tmp_ref, stack_ref, tw2_ref[...], cin=c, wp=wp_out,
                        lanes=lanes_out, guard=guard)
    out = jnp.maximum(a2 + tb_ref[:, 1:2] + sc, 0.0) * mask
    act_ref[:, guard:guard + lanes_out] = out.astype(act_ref.dtype)


# ---------------------------------------------------------------------------
# Kernels
# ---------------------------------------------------------------------------
def _stage1_kernel(x_ref, sw_ref, sb_ref, w1_ref, w2_ref, b_ref, mask_ref,
                   o_ref, act_ref, tmp_ref, stack_ref,
                   *, nblk, c, cin0, wp, lanes, guard):
    """Stem conv+bn+relu fused with layer1's 9 identity blocks."""
    i = pl.program_id(1)
    mask = mask_ref[...]

    @pl.when(i == 0)
    def _stem():
        # Once per image group: zero the guard columns of the persistent
        # buffers (interiors are fully overwritten every block).
        _zero_guards(act_ref, lanes=lanes, guard=guard)
        _zero_guards(tmp_ref, lanes=lanes, guard=guard)
        h = _conv3x3_stack(x_ref, stack_ref, sw_ref[...], cin=cin0, wp=wp,
                           lanes=lanes, guard=guard)
        h = jnp.maximum(h + sb_ref[...], 0.0) * mask
        act_ref[:, guard:guard + lanes] = h.astype(act_ref.dtype)

    @pl.when(i > 0)
    def _blocks():
        bi = jnp.maximum(i - 1, 0)
        w1 = w1_ref[bi]
        w2 = w2_ref[bi]
        bb = b_ref[bi]
        _residual_block(act_ref, tmp_ref, stack_ref, w1, w2,
                        bb[:, 0:1], bb[:, 1:2], mask,
                        c=c, wp=wp, lanes=lanes, guard=guard)

    @pl.when(i == nblk)
    def _out():
        o_ref[...] = act_ref[...]


def _stage_kernel(x_ref, tw1_ref, tw2_ref, tws_ref, tb_ref, sel_ref,
                  w1_ref, w2_ref, b_ref, mask_ref, o_ref,
                  act_ref, tmp_ref, stack_ref,
                  *, nblk, cin, c, wp_in, wp_out, lanes_in, lanes_out, guard):
    """Stride-2 transition block + the remaining identity blocks of a layer."""
    i = pl.program_id(1)
    mask = mask_ref[...]

    @pl.when(i == 0)
    def _trans():
        _transition_step(x_ref, tw1_ref, tw2_ref, tws_ref, tb_ref, sel_ref,
                         mask, act_ref, tmp_ref, stack_ref, cin=cin, c=c,
                         wp_in=wp_in, wp_out=wp_out,
                         lanes_in=lanes_in, lanes_out=lanes_out, guard=guard)

    @pl.when(i > 0)
    def _blocks():
        bi = jnp.maximum(i - 1, 0)
        w1 = w1_ref[bi]
        w2 = w2_ref[bi]
        bb = b_ref[bi]
        _residual_block(act_ref, tmp_ref, stack_ref, w1, w2,
                        bb[:, 0:1], bb[:, 1:2], mask,
                        c=c, wp=wp_out, lanes=lanes_out, guard=guard)

    @pl.when(i == nblk)
    def _out():
        o_ref[...] = act_ref[...]


def _stage_head_kernel(x_ref, tw1_ref, tw2_ref, tws_ref, tb_ref, sel_ref,
                       w1_ref, w2_ref, b_ref, mask_ref, pool_ref, fcw_ref,
                       fcb_ref, o_ref, act_ref, tmp_ref, stack_ref,
                       *, nblk, cin, c, wp_in, wp_out, lanes_in, lanes_out,
                       guard):
    """Like _stage_kernel but finishes with global-avg-pool + Linear(64, 1)."""
    i = pl.program_id(1)
    mask = mask_ref[...]

    @pl.when(i == 0)
    def _trans():
        _transition_step(x_ref, tw1_ref, tw2_ref, tws_ref, tb_ref, sel_ref,
                         mask, act_ref, tmp_ref, stack_ref, cin=cin, c=c,
                         wp_in=wp_in, wp_out=wp_out,
                         lanes_in=lanes_in, lanes_out=lanes_out, guard=guard)

    @pl.when(i > 0)
    def _blocks():
        bi = jnp.maximum(i - 1, 0)
        w1 = w1_ref[bi]
        w2 = w2_ref[bi]
        bb = b_ref[bi]
        _residual_block(act_ref, tmp_ref, stack_ref, w1, w2,
                        bb[:, 0:1], bb[:, 1:2], mask,
                        c=c, wp=wp_out, lanes=lanes_out, guard=guard)

    @pl.when(i == nblk)
    def _head():
        a = act_ref[:, guard:guard + lanes_out].astype(jnp.float32)  # (64, L3)
        # pool_ref columns are per-image mean-selection vectors (1/(h*w) at the
        # image's interior lanes), so this is avg-pool for every packed image.
        pooled = jnp.dot(a, pool_ref[...],
                         preferred_element_type=jnp.float32)         # (64, 128)
        logits = jnp.dot(fcw_ref[...], pooled,
                         preferred_element_type=jnp.float32) + fcb_ref[...]
        o_ref[...] = jnp.broadcast_to(logits, o_ref.shape)           # (8, 128)


# ---------------------------------------------------------------------------
# pallas_call wrappers
# ---------------------------------------------------------------------------
_COMPILER_PARAMS = pltpu.CompilerParams(
    dimension_semantics=("parallel", "arbitrary"),
    vmem_limit_bytes=32 * 1024 * 1024)


def _stage1_call(x, sw, sb, w1, w2, b, mask, *, wp, lanes):
    g, cin0, width = x.shape
    c = sw.shape[0]
    nblk = w1.shape[0]
    stack_rows = max(9 * c, 9 * cin0)
    kernel = functools.partial(_stage1_kernel, nblk=nblk, c=c, cin0=cin0,
                               wp=wp, lanes=lanes, guard=_GUARD)
    return pl.pallas_call(
        kernel,
        out_shape=jax.ShapeDtypeStruct((g, c, width), jnp.bfloat16),
        grid=(g, nblk + 1),
        in_specs=[
            pl.BlockSpec((None, cin0, width), lambda gi, i: (gi, 0, 0)),
            pl.BlockSpec(sw.shape, lambda gi, i: (0, 0)),
            pl.BlockSpec(sb.shape, lambda gi, i: (0, 0)),
            pl.BlockSpec(w1.shape, lambda gi, i: (0, 0, 0)),
            pl.BlockSpec(w2.shape, lambda gi, i: (0, 0, 0)),
            pl.BlockSpec(b.shape, lambda gi, i: (0, 0, 0)),
            pl.BlockSpec(mask.shape, lambda gi, i: (0, 0)),
        ],
        out_specs=pl.BlockSpec((None, c, width), lambda gi, i: (gi, 0, 0)),
        scratch_shapes=[pltpu.VMEM((c, width), jnp.bfloat16),
                        pltpu.VMEM((c, width), jnp.bfloat16),
                        pltpu.VMEM((stack_rows, lanes), jnp.bfloat16)],
        compiler_params=_COMPILER_PARAMS,
    )(x, sw, sb, w1, w2, b, mask)


def _stage_call(x, tp, w1, w2, b, sel, mask, *, cin, c, wp_in, wp_out,
                lanes_in, lanes_out):
    g, _, width_in = x.shape
    width_out = 2 * _GUARD + lanes_out
    nblk = w1.shape[0]
    stack_rows = max(9 * c, 9 * cin)
    kernel = functools.partial(_stage_kernel, nblk=nblk, cin=cin, c=c,
                               wp_in=wp_in, wp_out=wp_out,
                               lanes_in=lanes_in, lanes_out=lanes_out,
                               guard=_GUARD)
    return pl.pallas_call(
        kernel,
        out_shape=jax.ShapeDtypeStruct((g, c, width_out), jnp.bfloat16),
        grid=(g, nblk + 1),
        in_specs=[
            pl.BlockSpec((None, cin, width_in), lambda gi, i: (gi, 0, 0)),
            pl.BlockSpec(tp["w1"].shape, lambda gi, i: (0, 0)),
            pl.BlockSpec(tp["w2"].shape, lambda gi, i: (0, 0)),
            pl.BlockSpec(tp["ws"].shape, lambda gi, i: (0, 0)),
            pl.BlockSpec(tp["b"].shape, lambda gi, i: (0, 0)),
            pl.BlockSpec(sel.shape, lambda gi, i: (0, 0)),
            pl.BlockSpec(w1.shape, lambda gi, i: (0, 0, 0)),
            pl.BlockSpec(w2.shape, lambda gi, i: (0, 0, 0)),
            pl.BlockSpec(b.shape, lambda gi, i: (0, 0, 0)),
            pl.BlockSpec(mask.shape, lambda gi, i: (0, 0)),
        ],
        out_specs=pl.BlockSpec((None, c, width_out), lambda gi, i: (gi, 0, 0)),
        scratch_shapes=[pltpu.VMEM((c, width_out), jnp.bfloat16),
                        pltpu.VMEM((c, width_out), jnp.bfloat16),
                        pltpu.VMEM((stack_rows, lanes_in), jnp.bfloat16)],
        compiler_params=_COMPILER_PARAMS,
    )(x, tp["w1"], tp["w2"], tp["ws"], tp["b"], sel, w1, w2, b, mask)


def _stage_head_call(x, tp, w1, w2, b, sel, mask, pool, fc_w, fc_b,
                     *, cin, c, wp_in, wp_out, lanes_in, lanes_out):
    g, _, width_in = x.shape
    width_out = 2 * _GUARD + lanes_out
    nblk = w1.shape[0]
    stack_rows = max(9 * c, 9 * cin)
    kernel = functools.partial(_stage_head_kernel, nblk=nblk, cin=cin, c=c,
                               wp_in=wp_in, wp_out=wp_out,
                               lanes_in=lanes_in, lanes_out=lanes_out,
                               guard=_GUARD)
    return pl.pallas_call(
        kernel,
        out_shape=jax.ShapeDtypeStruct((g, 8, 128), jnp.float32),
        grid=(g, nblk + 1),
        in_specs=[
            pl.BlockSpec((None, cin, width_in), lambda gi, i: (gi, 0, 0)),
            pl.BlockSpec(tp["w1"].shape, lambda gi, i: (0, 0)),
            pl.BlockSpec(tp["w2"].shape, lambda gi, i: (0, 0)),
            pl.BlockSpec(tp["ws"].shape, lambda gi, i: (0, 0)),
            pl.BlockSpec(tp["b"].shape, lambda gi, i: (0, 0)),
            pl.BlockSpec(sel.shape, lambda gi, i: (0, 0)),
            pl.BlockSpec(w1.shape, lambda gi, i: (0, 0, 0)),
            pl.BlockSpec(w2.shape, lambda gi, i: (0, 0, 0)),
            pl.BlockSpec(b.shape, lambda gi, i: (0, 0, 0)),
            pl.BlockSpec(mask.shape, lambda gi, i: (0, 0)),
            pl.BlockSpec(pool.shape, lambda gi, i: (0, 0)),
            pl.BlockSpec(fc_w.shape, lambda gi, i: (0, 0)),
            pl.BlockSpec(fc_b.shape, lambda gi, i: (0, 0)),
        ],
        out_specs=pl.BlockSpec((None, 8, 128), lambda gi, i: (gi, 0, 0)),
        scratch_shapes=[pltpu.VMEM((c, width_out), jnp.bfloat16),
                        pltpu.VMEM((c, width_out), jnp.bfloat16),
                        pltpu.VMEM((stack_rows, lanes_in), jnp.bfloat16)],
        compiler_params=_COMPILER_PARAMS,
    )(x, tp["w1"], tp["w2"], tp["ws"], tp["b"], sel, w1, w2, b, mask,
      pool, fc_w, fc_b)


# ---------------------------------------------------------------------------
# Host-side layout helpers (tiny one-off tensors, no conv compute in XLA)
# ---------------------------------------------------------------------------
def _pad128(v):
    return ((v + 127) // 128) * 128


def _grouping(n, mp_pad):
    """Images per lane-packed group (T) and number of groups.

    Prefer lane widths >= 512 but keep >= 2 groups so v7x's two TensorCores
    both get work.
    """
    target = max(1, int(np.ceil(512.0 / mp_pad)))
    t = min(target, max(1, n // 2)) if n >= 2 else 1
    t = max(1, min(t, n, 128))
    groups = int(np.ceil(n / t))
    return t, groups


def _pack_input(x, mp, mp_pad, t, groups):
    """(N, C, H, W) -> (groups, C, GUARD + t*mp_pad + GUARD) bf16 packed layout."""
    n, c, _, _ = x.shape
    total = groups * t
    xp = jnp.pad(x, ((0, total - n), (0, 0), (1, 1), (1, 1)))
    flat = xp.reshape(total, c, mp)
    flat = jnp.pad(flat, ((0, 0), (0, 0), (0, mp_pad - mp)))
    packed = flat.reshape(groups, t, c, mp_pad).transpose(0, 2, 1, 3)
    packed = packed.reshape(groups, c, t * mp_pad)
    packed = jnp.pad(packed, ((0, 0), (0, 0), (_GUARD, _GUARD)))
    return packed.astype(jnp.bfloat16)


def _interior_mask(h, w, mp_pad, t):
    m = np.zeros((h + 2, w + 2), np.float32)
    m[1:h + 1, 1:w + 1] = 1.0
    seg = np.zeros((mp_pad,), np.float32)
    seg[:(h + 2) * (w + 2)] = m.reshape(-1)
    return jnp.asarray(np.tile(seg, t)[None, :])


def _selection_matrix(h_in, w_in, mp_in_pad, h_out, w_out, mp_out_pad, t):
    """0/1 matrix realizing the exact stride-2 subsample on the flat layout."""
    wpi, wpo = w_in + 2, w_out + 2
    seg = np.zeros((mp_in_pad, mp_out_pad), np.float32)
    for oh in range(h_out):
        for ow in range(w_out):
            seg[(1 + 2 * oh) * wpi + (1 + 2 * ow),
                (1 + oh) * wpo + (1 + ow)] = 1.0
    full = np.zeros((t * mp_in_pad, t * mp_out_pad), np.float32)
    for k in range(t):
        full[k * mp_in_pad:(k + 1) * mp_in_pad,
             k * mp_out_pad:(k + 1) * mp_out_pad] = seg
    return jnp.asarray(full, dtype=jnp.bfloat16)


def _pool_matrix(h, w, mp_pad, t):
    """Per-image mean-pool selection vectors: column j pools packed image j."""
    m = np.zeros((h + 2, w + 2), np.float32)
    m[1:h + 1, 1:w + 1] = 1.0 / float(h * w)
    seg = np.zeros((mp_pad,), np.float32)
    seg[:(h + 2) * (w + 2)] = m.reshape(-1)
    full = np.zeros((t * mp_pad, 128), np.float32)
    for k in range(t):
        full[k * mp_pad:(k + 1) * mp_pad, k] = seg
    return jnp.asarray(full)


# ---------------------------------------------------------------------------
# Parameters (inference-BN folded into bf16 conv weights; biases in f32)
# ---------------------------------------------------------------------------
CFG = ((16, 16, 9), (16, 32, 9), (32, 64, 9))  # (cin, cout, nblocks) per stage


def _rand_conv(key, taps, cout, cin):
    return 0.1 * jax.random.normal(key, (taps, cout, cin), jnp.float32)


def _rand_bn(key, c):
    k1, k2 = jax.random.split(key)
    gamma = 1.0 + 0.1 * jax.random.normal(k1, (c,), jnp.float32)
    beta = 0.1 * jax.random.normal(k2, (c,), jnp.float32)
    return gamma, beta, jnp.zeros((c,), jnp.float32), jnp.ones((c,), jnp.float32)


def _fold_flat(w_taps, bn, cin_pad=None, eps=1e-5):
    """Fold inference BN into the conv; flatten tap-major to (cout, taps*cin)."""
    gamma, beta, mean, var = bn
    scale = gamma / jnp.sqrt(var + eps)
    bias = (beta - mean * scale).astype(jnp.float32)
    w = w_taps * scale[None, :, None]
    taps, cout, cin = w.shape
    if cin_pad is not None and cin_pad > cin:
        w = jnp.pad(w, ((0, 0), (0, 0), (0, cin_pad - cin)))
        cin = cin_pad
    w_flat = jnp.transpose(w, (1, 0, 2)).reshape(cout, taps * cin)
    return w_flat.astype(jnp.bfloat16), bias


def init_params(key, in_channels=3):
    keys = iter(jax.random.split(key, 256))
    p = {}
    cin0p = max(8, ((in_channels + 7) // 8) * 8)

    sw, sb = _fold_flat(_rand_conv(next(keys), 9, 16, in_channels),
                        _rand_bn(next(keys), 16), cin_pad=cin0p)
    p["stem_w"], p["stem_b"] = sw, sb.reshape(16, 1)

    for si, (cin, cout, nblocks) in enumerate(CFG, start=1):
        nid = nblocks
        if cin != cout:  # first block is the stride-2 transition
            w1, b1 = _fold_flat(_rand_conv(next(keys), 9, cout, cin),
                                _rand_bn(next(keys), cout))
            w2, b2 = _fold_flat(_rand_conv(next(keys), 9, cout, cout),
                                _rand_bn(next(keys), cout))
            ws, bs = _fold_flat(_rand_conv(next(keys), 1, cout, cin),
                                _rand_bn(next(keys), cout))
            p[f"stage{si}_trans"] = dict(
                w1=w1, w2=w2, ws=ws,
                b=jnp.stack([b1, b2 + bs], axis=1))  # (cout, 2): [b1, b2+bS]
            nid = nblocks - 1

        w1s, w2s, bbs = [], [], []
        for _ in range(nid):
            w1, b1 = _fold_flat(_rand_conv(next(keys), 9, cout, cout),
                                _rand_bn(next(keys), cout))
            w2, b2 = _fold_flat(_rand_conv(next(keys), 9, cout, cout),
                                _rand_bn(next(keys), cout))
            w1s.append(w1)
            w2s.append(w2)
            bbs.append(jnp.stack([b1, b2], axis=1))  # (cout, 2)
        p[f"stage{si}"] = (jnp.stack(w1s), jnp.stack(w2s), jnp.stack(bbs))

    p["fc_w"] = 0.1 * jax.random.normal(next(keys), (1, 64), jnp.float32)
    p["fc_b"] = jnp.zeros((1, 1), jnp.float32)
    return p


# ---------------------------------------------------------------------------
# Forward pass
# ---------------------------------------------------------------------------
def resnet56_forward(params, x):
    # Mirror the torch layout heuristic: channels-last input -> NCHW.
    # (Heuristic is ambiguous for genuine NCHW inputs with C==32 or W==3.)
    if x.ndim == 4 and (x.shape[1] == 32 or x.shape[3] == 3):
        x = jnp.transpose(x, (0, 3, 1, 2))
    n, cin0, h1, w1 = x.shape
    cin0p = params["stem_w"].shape[1] // 9
    if cin0p > cin0:
        x = jnp.pad(x, ((0, 0), (0, cin0p - cin0), (0, 0), (0, 0)))

    h2, w2 = (h1 + 1) // 2, (w1 + 1) // 2
    h3, w3 = (h2 + 1) // 2, (w2 + 1) // 2
    mp1 = (h1 + 2) * (w1 + 2)
    mp1p, mp2p, mp3p = (_pad128((h1 + 2) * (w1 + 2)),
                        _pad128((h2 + 2) * (w2 + 2)),
                        _pad128((h3 + 2) * (w3 + 2)))
    t, groups = _grouping(n, mp1p)
    l1, l2, l3 = t * mp1p, t * mp2p, t * mp3p

    mask1 = _interior_mask(h1, w1, mp1p, t)
    mask2 = _interior_mask(h2, w2, mp2p, t)
    mask3 = _interior_mask(h3, w3, mp3p, t)
    sel12 = _selection_matrix(h1, w1, mp1p, h2, w2, mp2p, t)
    sel23 = _selection_matrix(h2, w2, mp2p, h3, w3, mp3p, t)
    pool3 = _pool_matrix(h3, w3, mp3p, t)

    a = _pack_input(x, mp1, mp1p, t, groups)

    # Stage 1: stem conv+bn+relu fused with layer1's 9 identity blocks (16 ch).
    a = _stage1_call(a, params["stem_w"], params["stem_b"], *params["stage1"],
                     mask1, wp=w1 + 2, lanes=l1)

    # Stage 2: stride-2 transition (16->32) + 8 identity blocks (32 ch).
    a = _stage_call(a, params["stage2_trans"], *params["stage2"], sel12, mask2,
                    cin=16, c=32, wp_in=w1 + 2, wp_out=w2 + 2,
                    lanes_in=l1, lanes_out=l2)

    # Stage 3: stride-2 transition (32->64) + 8 identity blocks (64 ch)
    # + global-avg-pool + fc(64->1), all inside one pallas_call.
    out = _stage_head_call(a, params["stage3_trans"], *params["stage3"],
                           sel23, mask3, pool3, params["fc_w"], params["fc_b"],
                           cin=32, c=64, wp_in=w2 + 2, wp_out=w3 + 2,
                           lanes_in=l2, lanes_out=l3)

    logits = out[:, 0, :t].reshape(groups * t, 1)[:n]
    return logits


if __name__ == "__main__":
    key = jax.random.PRNGKey(0)
    pkey, xkey = jax.random.split(key)
    params = init_params(pkey, in_channels=3)
    # Channels-last input (triggers the module's permute branch):
    # batch=2, spatial=16x16, channels=3.
    x = jax.random.normal(xkey, (2, 16, 16, 3), jnp.float32)

    fwd = jax.jit(resnet56_forward)
    y = jax.block_until_ready(fwd(params, x))
    assert y.shape == (2, 1), y.shape
    assert y.dtype == jnp.float32
    assert bool(jnp.all(jnp.isfinite(y)))
    print("KERNEL_OK")
</pallas_src>

<mosaic_0001>
module attributes {stable_mosaic.version = 11 : i64} {
  func.func @_stage1_kernel(%arg0: i32, %arg1: i32, %arg2: memref<1x8x640xbf16, #tpu.memory_space<vmem>>, %arg3: memref<16x72xbf16, #tpu.memory_space<vmem>>, %arg4: memref<16x1xf32, #tpu.memory_space<vmem>>, %arg5: memref<9x16x144xbf16, #tpu.memory_space<vmem>>, %arg6: memref<9x16x144xbf16, #tpu.memory_space<vmem>>, %arg7: memref<9x16x2xf32, #tpu.memory_space<vmem>>, %arg8: memref<1x384xf32, #tpu.memory_space<vmem>>, %arg9: memref<1x16x640xbf16, #tpu.memory_space<vmem>>, %arg10: memref<16x640xbf16, #tpu.memory_space<vmem>>, %arg11: memref<16x640xbf16, #tpu.memory_space<vmem>>, %arg12: memref<144x384xbf16, #tpu.memory_space<vmem>>) attributes {dimension_semantics = [#tpu.dimension_semantics<parallel>, #tpu.dimension_semantics<arbitrary>], iteration_bounds = array<i64: 2, 10>, scalar_prefetch = 0 : i64, scratch_operands = 3 : i64, tpu.core_type = #tpu.core_type<tc>, window_params = [{transform_indices = @transform_0, window_bounds = array<i64: 1, 8, 640>}, {pipeline_mode = #tpu.pipeline_mode<synchronous>, transform_indices = @transform_1, window_bounds = array<i64: 16, 72>}, {pipeline_mode = #tpu.pipeline_mode<synchronous>, transform_indices = @transform_2, window_bounds = array<i64: 16, 1>}, {pipeline_mode = #tpu.pipeline_mode<synchronous>, transform_indices = @transform_3, window_bounds = array<i64: 9, 16, 144>}, {pipeline_mode = #tpu.pipeline_mode<synchronous>, transform_indices = @transform_4, window_bounds = array<i64: 9, 16, 144>}, {pipeline_mode = #tpu.pipeline_mode<synchronous>, transform_indices = @transform_5, window_bounds = array<i64: 9, 16, 2>}, {pipeline_mode = #tpu.pipeline_mode<synchronous>, transform_indices = @transform_6, window_bounds = array<i64: 1, 384>}, {transform_indices = @transform_7, window_bounds = array<i64: 1, 16, 640>}]} {
    %c0 = arith.constant 0 : index
    %c0_0 = arith.constant 0 : index
    %0 = vector.load %arg8[%c0, %c0_0] : memref<1x384xf32, #tpu.memory_space<vmem>>, vector<1x384xf32>
    %c0_i32 = arith.constant 0 : i32
    %1 = arith.cmpi eq, %arg1, %c0_i32 : i32
    %2 = arith.extui %1 : i1 to i32
    %c0_i32_1 = arith.constant 0 : i32
    %3 = arith.cmpi ne, %2, %c0_i32_1 : i32
    scf.if %3 {
      %cst = arith.constant 0.000000e+00 : bf16
      %10 = vector.broadcast %cst : bf16 to vector<16x128xbf16>
      %c0_5 = arith.constant 0 : index
      %c0_6 = arith.constant 0 : index
      %11 = vector.load %arg10[%c0_5, %c0_6] : memref<16x640xbf16, #tpu.memory_space<vmem>>, vector<16x128xbf16>
      tpu.vector_store %arg10[%c0_5, %c0_6], %10 {strides = array<i32>} : memref<16x640xbf16, #tpu.memory_space<vmem>>, vector<16x128xbf16>,
      %c0_7 = arith.constant 0 : index
      %c512 = arith.constant 512 : index
      %12 = vector.load %arg10[%c0_7, %c512] : memref<16x640xbf16, #tpu.memory_space<vmem>>, vector<16x128xbf16>
      tpu.vector_store %arg10[%c0_7, %c512], %10 {strides = array<i32>} : memref<16x640xbf16, #tpu.memory_space<vmem>>, vector<16x128xbf16>,
      %cst_8 = arith.constant 0.000000e+00 : bf16
      %13 = vector.broadcast %cst_8 : bf16 to vector<16x128xbf16>
      %c0_9 = arith.constant 0 : index
      %c0_10 = arith.constant 0 : index
      %14 = vector.load %arg11[%c0_9, %c0_10] : memref<16x640xbf16, #tpu.memory_space<vmem>>, vector<16x128xbf16>
      tpu.vector_store %arg11[%c0_9, %c0_10], %13 {strides = array<i32>} : memref<16x640xbf16, #tpu.memory_space<vmem>>, vector<16x128xbf16>,
      %c0_11 = arith.constant 0 : index
      %c512_12 = arith.constant 512 : index
      %15 = vector.load %arg11[%c0_11, %c512_12] : memref<16x640xbf16, #tpu.memory_space<vmem>>, vector<16x128xbf16>
      tpu.vector_store %arg11[%c0_11, %c512_12], %13 {strides = array<i32>} : memref<16x640xbf16, #tpu.memory_space<vmem>>, vector<16x128xbf16>,
      %c0_13 = arith.constant 0 : index
      %c0_14 = arith.constant 0 : index
      %16 = vector.load %arg3[%c0_13, %c0_14] : memref<16x72xbf16, #tpu.memory_space<vmem>>, vector<16x72xbf16>
      %c0_15 = arith.constant 0 : index
      %c0_16 = arith.constant 0 : index
      %c109 = arith.constant 109 : index
      %17 = vector.load %arg2[%c0_15, %c0_16, %c109] : memref<1x8x640xbf16, #tpu.memory_space<vmem>>, vector<1x8x384xbf16>
      %18 = vector.shape_cast %17 : vector<1x8x384xbf16> to vector<8x384xbf16>
      %c0_17 = arith.constant 0 : index
      %c0_18 = arith.constant 0 : index
      %19 = vector.load %arg12[%c0_17, %c0_18] : memref<144x384xbf16, #tpu.memory_space<vmem>>, vector<8x384xbf16>
      tpu.vector_store %arg12[%c0_17, %c0_18], %18 {strides = array<i32>} : memref<144x384xbf16, #tpu.memory_space<vmem>>, vector<8x384xbf16>,
      %c0_19 = arith.constant 0 : index
      %c0_20 = arith.constant 0 : index
      %c110 = arith.constant 110 : index
      %20 = vector.load %arg2[%c0_19, %c0_20, %c110] : memref<1x8x640xbf16, #tpu.memory_space<vmem>>, vector<1x8x384xbf16>
      %21 = vector.shape_cast %20 : vector<1x8x384xbf16> to vector<8x384xbf16>
      %c8 = arith.constant 8 : index
      %c0_21 = arith.constant 0 : index
      %22 = vector.load %arg12[%c8, %c0_21] : memref<144x384xbf16, #tpu.memory_space<vmem>>, vector<8x384xbf16>
      tpu.vector_store %arg12[%c8, %c0_21], %21 {strides = array<i32>} : memref<144x384xbf16, #tpu.memory_space<vmem>>, vector<8x384xbf16>,
      %c0_22 = arith.constant 0 : index
      %c0_23 = arith.constant 0 : index
      %c111 = arith.constant 111 : index
      %23 = vector.load %arg2[%c0_22, %c0_23, %c111] : memref<1x8x640xbf16, #tpu.memory_space<vmem>>, vector<1x8x384xbf16>
      %24 = vector.shape_cast %23 : vector<1x8x384xbf16> to vector<8x384xbf16>
      %c16 = arith.constant 16 : index
      %c0_24 = arith.constant 0 : index
      %25 = vector.load %arg12[%c16, %c0_24] : memref<144x384xbf16, #tpu.memory_space<vmem>>, vector<8x384xbf16>
      tpu.vector_store %arg12[%c16, %c0_24], %24 {strides = array<i32>} : memref<144x384xbf16, #tpu.memory_space<vmem>>, vector<8x384xbf16>,
      %c0_25 = arith.constant 0 : index
      %c0_26 = arith.constant 0 : index
      %c127 = arith.constant 127 : index
      %26 = vector.load %arg2[%c0_25, %c0_26, %c127] : memref<1x8x640xbf16, #tpu.memory_space<vmem>>, vector<1x8x384xbf16>
      %27 = vector.shape_cast %26 : vector<1x8x384xbf16> to vector<8x384xbf16>
      %c24 = arith.constant 24 : index
      %c0_27 = arith.constant 0 : index
      %28 = vector.load %arg12[%c24, %c0_27] : memref<144x384xbf16, #tpu.memory_space<vmem>>, vector<8x384xbf16>
      tpu.vector_store %arg12[%c24, %c0_27], %27 {strides = array<i32>} : memref<144x384xbf16, #tpu.memory_space<vmem>>, vector<8x384xbf16>,
      %c0_28 = arith.constant 0 : index
      %c0_29 = arith.constant 0 : index
      %c128 = arith.constant 128 : index
      %29 = vector.load %arg2[%c0_28, %c0_29, %c128] : memref<1x8x640xbf16, #tpu.memory_space<vmem>>, vector<1x8x384xbf16>
      %30 = vector.shape_cast %29 : vector<1x8x384xbf16> to vector<8x384xbf16>
      %c32 = arith.constant 32 : index
      %c0_30 = arith.constant 0 : index
      %31 = vector.load %arg12[%c32, %c0_30] : memref<144x384xbf16, #tpu.memory_space<vmem>>, vector<8x384xbf16>
      tpu.vector_store %arg12[%c32, %c0_30], %30 {strides = array<i32>} : memref<144x384xbf16, #tpu.memory_space<vmem>>, vector<8x384xbf16>,
      %c0_31 = arith.constant 0 : index
      %c0_32 = arith.constant 0 : index
      %c129 = arith.constant 129 : index
      %32 = vector.load %arg2[%c0_31, %c0_32, %c129] : memref<1x8x640xbf16, #tpu.memory_space<vmem>>, vector<1x8x384xbf16>
      %33 = vector.shape_cast %32 : vector<1x8x384xbf16> to vector<8x384xbf16>
      %c40 = arith.constant 40 : index
      %c0_33 = arith.constant 0 : index
      %34 = vector.load %arg12[%c40, %c0_33] : memref<144x384xbf16, #tpu.memory_space<vmem>>, vector<8x384xbf16>
      tpu.vector_store %arg12[%c40, %c0_33], %33 {strides = array<i32>} : memref<144x384xbf16, #tpu.memory_space<vmem>>, vector<8x384xbf16>,
      %c0_34 = arith.constant 0 : index
      %c0_35 = arith.constant 0 : index
      %c145 = arith.constant 145 : index
      %35 = vector.load %arg2[%c0_34, %c0_35, %c145] : memref<1x8x640xbf16, #tpu.memory_space<vmem>>, vector<1x8x384xbf16>
      %36 = vector.shape_cast %35 : vector<1x8x384xbf16> to vector<8x384xbf16>
      %c48 = arith.constant 48 : index
      %c0_36 = arith.constant 0 : index
      %37 = vector.load %arg12[%c48, %c0_36] : memref<144x384xbf16, #tpu.memory_space<vmem>>, vector<8x384xbf16>
      tpu.vector_store %arg12[%c48, %c0_36], %36 {strides = array<i32>} : memref<144x384xbf16, #tpu.memory_space<vmem>>, vector<8x384xbf16>,
      %c0_37 = arith.constant 0 : index
      %c0_38 = arith.constant 0 : index
      %c146 = arith.constant 146 : index
      %38 = vector.load %arg2[%c0_37, %c0_38, %c146] : memref<1x8x640xbf16, #tpu.memory_space<vmem>>, vector<1x8x384xbf16>
      %39 = vector.shape_cast %38 : vector<1x8x384xbf16> to vector<8x384xbf16>
      %c56 = arith.constant 56 : index
      %c0_39 = arith.constant 0 : index
      %40 = vector.load %arg12[%c56, %c0_39] : memref<144x384xbf16, #tpu.memory_space<vmem>>, vector<8x384xbf16>
      tpu.vector_store %arg12[%c56, %c0_39], %39 {strides = array<i32>} : memref<144x384xbf16, #tpu.memory_space<vmem>>, vector<8x384xbf16>,
      %c0_40 = arith.constant 0 : index
      %c0_41 = arith.constant 0 : index
      %c147 = arith.constant 147 : index
      %41 = vector.load %arg2[%c0_40, %c0_41, %c147] : memref<1x8x640xbf16, #tpu.memory_space<vmem>>, vector<1x8x384xbf16>
      %42 = vector.shape_cast %41 : vector<1x8x384xbf16> to vector<8x384xbf16>
      %c64 = arith.constant 64 : index
      %c0_42 = arith.constant 0 : index
      %43 = vector.load %arg12[%c64, %c0_42] : memref<144x384xbf16, #tpu.memory_space<vmem>>, vector<8x384xbf16>
      tpu.vector_store %arg12[%c64, %c0_42], %42 {strides = array<i32>} : memref<144x384xbf16, #tpu.memory_space<vmem>>, vector<8x384xbf16>,
      %c0_43 = arith.constant 0 : index
      %c0_44 = arith.constant 0 : index
      %44 = vector.load %arg12[%c0_43, %c0_44] : memref<144x384xbf16, #tpu.memory_space<vmem>>, vector<72x384xbf16>
      %cst_45 = arith.constant dense<0.000000e+00> : vector<16x384xf32>
      %45 = tpu.matmul %16, %44, %cst_45 {dimension_numbers = #tpu.dot_dimension_numbers<[1], [0], [0], [1], [0, 0, 1, 1], [], []>} : vector<16x72xbf16>, vector<72x384xbf16>, vector<16x384xf32> -> vector<16x384xf32>
      %c0_46 = arith.constant 0 : index
      %c0_47 = arith.constant 0 : index
      %46 = vector.load %arg4[%c0_46, %c0_47] : memref<16x1xf32, #tpu.memory_space<vmem>>, vector<16x1xf32>
      %47 = vector.broadcast %46 : vector<16x1xf32> to vector<16x384xf32>
      %48 = arith.addf %45, %47 : vector<16x384xf32>
      %cst_48 = arith.constant 0.000000e+00 : f32
      %49 = vector.broadcast %cst_48 : f32 to vector<16x384xf32>
      %50 = arith.maximumf %48, %49 : vector<16x384xf32>
      %51 = vector.broadcast %0 : vector<1x384xf32> to vector<16x384xf32>
      %52 = arith.mulf %50, %51 : vector<16x384xf32>
      %53 = arith.truncf %52 : vector<16x384xf32> to vector<16x384xbf16>
      %c0_49 = arith.constant 0 : index
      %c128_50 = arith.constant 128 : index
      %54 = vector.load %arg10[%c0_49, %c128_50] : memref<16x640xbf16, #tpu.memory_space<vmem>>, vector<16x384xbf16>
      tpu.vector_store %arg10[%c0_49, %c128_50], %53 {strides = array<i32>} : memref<16x640xbf16, #tpu.memory_space<vmem>>, vector<16x384xbf16>,
    } else {
    }
    %c0_i32_2 = arith.constant 0 : i32
    %4 = arith.cmpi sgt, %arg1, %c0_i32_2 : i32
    %5 = arith.extui %4 : i1 to i32
    %c0_i32_3 = arith.constant 0 : i32
    %6 = arith.cmpi ne, %5, %c0_i32_3 : i32
    scf.if %6 {
      %c1_i32 = arith.constant 1 : i32
      %10 = arith.subi %arg1, %c1_i32 : i32
      %c0_i32_5 = arith.constant 0 : i32
      %11 = arith.maxsi %10, %c0_i32_5 : i32
      %12 = arith.index_cast %11 : i32 to index
      %c0_6 = arith.constant 0 : index
      %c0_7 = arith.constant 0 : index
      %13 = vector.load %arg5[%12, %c0_6, %c0_7] : memref<9x16x144xbf16, #tpu.memory_space<vmem>>, vector<1x16x144xbf16>
      %14 = vector.shape_cast %13 : vector<1x16x144xbf16> to vector<16x144xbf16>
      %15 = arith.index_cast %11 : i32 to index
      %c0_8 = arith.constant 0 : index
      %c0_9 = arith.constant 0 : index
      %16 = vector.load %arg6[%15, %c0_8, %c0_9] : memref<9x16x144xbf16, #tpu.memory_space<vmem>>, vector<1x16x144xbf16>
      %17 = vector.shape_cast %16 : vector<1x16x144xbf16> to vector<16x144xbf16>
      %18 = arith.index_cast %11 : i32 to index
      %c0_10 = arith.constant 0 : index
      %c0_11 = arith.constant 0 : index
      %19 = vector.load %arg7[%18, %c0_10, %c0_11] : memref<9x16x2xf32, #tpu.memory_space<vmem>>, vector<1x16x2xf32>
      %20 = vector.shape_cast %19 : vector<1x16x2xf32> to vector<16x2xf32>
      %21 = vector.extract_strided_slice %20 {offsets = [0, 0], sizes = [16, 1], strides = [1, 1]} : vector<16x2xf32> to vector<16x1xf32>
      %22 = vector.extract_strided_slice %20 {offsets = [0, 1], sizes = [16, 1], strides = [1, 1]} : vector<16x2xf32> to vector<16x1xf32>
      %c0_12 = arith.constant 0 : index
      %c109 = arith.constant 109 : index
      %23 = vector.load %arg10[%c0_12, %c109] : memref<16x640xbf16, #tpu.memory_space<vmem>>, vector<16x384xbf16>
      %c0_13 = arith.constant 0 : index
      %c0_14 = arith.constant 0 : index
      %24 = vector.load %arg12[%c0_13, %c0_14] : memref<144x384xbf16, #tpu.memory_space<vmem>>, vector<16x384xbf16>
      tpu.vector_store %arg12[%c0_13, %c0_14], %23 {strides = array<i32>} : memref<144x384xbf16, #tpu.memory_space<vmem>>, vector<16x384xbf16>,
      %c0_15 = arith.constant 0 : index
      %c110 = arith.constant 110 : index
      %25 = vector.load %arg10[%c0_15, %c110] : memref<16x640xbf16, #tpu.memory_space<vmem>>, vector<16x384xbf16>
      %c16 = arith.constant 16 : index
      %c0_16 = arith.constant 0 : index
      %26 = vector.load %arg12[%c16, %c0_16] : memref<144x384xbf16, #tpu.memory_space<vmem>>, vector<16x384xbf16>
      tpu.vector_store %arg12[%c16, %c0_16], %25 {strides = array<i32>} : memref<144x384xbf16, #tpu.memory_space<vmem>>, vector<16x384xbf16>,
      %c0_17 = arith.constant 0 : index
      %c111 = arith.constant 111 : index
      %27 = vector.load %arg10[%c0_17, %c111] : memref<16x640xbf16, #tpu.memory_space<vmem>>, vector<16x384xbf16>
      %c32 = arith.constant 32 : index
      %c0_18 = arith.constant 0 : index
      %28 = vector.load %arg12[%c32, %c0_18] : memref<144x384xbf16, #tpu.memory_space<vmem>>, vector<16x384xbf16>
      tpu.vector_store %arg12[%c32, %c0_18], %27 {strides = array<i32>} : memref<144x384xbf16, #tpu.memory_space<vmem>>, vector<16x384xbf16>,
      %c0_19 = arith.constant 0 : index
      %c127 = arith.constant 127 : index
      %29 = vector.load %arg10[%c0_19, %c127] : memref<16x640xbf16, #tpu.memory_space<vmem>>, vector<16x384xbf16>
      %c48 = arith.constant 48 : index
      %c0_20 = arith.constant 0 : index
      %30 = vector.load %arg12[%c48, %c0_20] : memref<144x384xbf16, #tpu.memory_space<vmem>>, vector<16x384xbf16>
      tpu.vector_store %arg12[%c48, %c0_20], %29 {strides = array<i32>} : memref<144x384xbf16, #tpu.memory_space<vmem>>, vector<16x384xbf16>,
      %c0_21 = arith.constant 0 : index
      %c128 = arith.constant 128 : index
      %31 = vector.load %arg10[%c0_21, %c128] : memref<16x640xbf16, #tpu.memory_space<vmem>>, vector<16x384xbf16>
      %c64 = arith.constant 64 : index
      %c0_22 = arith.constant 0 : index
      %32 = vector.load %arg12[%c64, %c0_22] : memref<144x384xbf16, #tpu.memory_space<vmem>>, vector<16x384xbf16>
      tpu.vector_store %arg12[%c64, %c0_22], %31 {strides = array<i32>} : memref<144x384xbf16, #tpu.memory_space<vmem>>, vector<16x384xbf16>,
      %c0_23 = arith.constant 0 : index
      %c129 = arith.constant 129 : index
      %33 = vector.load %arg10[%c0_23, %c129] : memref<16x640xbf16, #tpu.memory_space<vmem>>, vector<16x384xbf16>
      %c80 = arith.constant 80 : index
      %c0_24 = arith.constant 0 : index
      %34 = vector.load %arg12[%c80, %c0_24] : memref<144x384xbf16, #tpu.memory_space<vmem>>, vector<16x384xbf16>
      tpu.vector_store %arg12[%c80, %c0_24], %33 {strides = array<i32>} : memref<144x384xbf16, #tpu.memory_space<vmem>>, vector<16x384xbf16>,
      %c0_25 = arith.constant 0 : index
      %c145 = arith.constant 145 : index
      %35 = vector.load %arg10[%c0_25, %c145] : memref<16x640xbf16, #tpu.memory_space<vmem>>, vector<16x384xbf16>
      %c96 = arith.constant 96 : index
      %c0_26 = arith.constant 0 : index
      %36 = vector.load %arg12[%c96, %c0_26] : memref<144x384xbf16, #tpu.memory_space<vmem>>, vector<16x384xbf16>
      tpu.vector_store %arg12[%c96, %c0_26], %35 {strides = array<i32>} : memref<144x384xbf16, #tpu.memory_space<vmem>>, vector<16x384xbf16>,
      %c0_27 = arith.constant 0 : index
      %c146 = arith.constant 146 : index
      %37 = vector.load %arg10[%c0_27, %c146] : memref<16x640xbf16, #tpu.memory_space<vmem>>, vector<16x384xbf16>
      %c112 = arith.constant 112 : index
      %c0_28 = arith.constant 0 : index
      %38 = vector.load %arg12[%c112, %c0_28] : memref<144x384xbf16, #tpu.memory_space<vmem>>, vector<16x384xbf16>
      tpu.vector_store %arg12[%c112, %c0_28], %37 {strides = array<i32>} : memref<144x384xbf16, #tpu.memory_space<vmem>>, vector<16x384xbf16>,
      %c0_29 = arith.constant 0 : index
      %c147 = arith.constant 147 : index
      %39 = vector.load %arg10[%c0_29, %c147] : memref<16x640xbf16, #tpu.memory_space<vmem>>, vector<16x384xbf16>
      %c128_30 = arith.constant 128 : index
      %c0_31 = arith.constant 0 : index
      %40 = vector.load %arg12[%c128_30, %c0_31] : memref<144x384xbf16, #tpu.memory_space<vmem>>, vector<16x384xbf16>
      tpu.vector_store %arg12[%c128_30, %c0_31], %39 {strides = array<i32>} : memref<144x384xbf16, #tpu.memory_space<vmem>>, vector<16x384xbf16>,
      %c0_32 = arith.constant 0 : index
      %c0_33 = arith.constant 0 : index
      %41 = vector.load %arg12[%c0_32, %c0_33] : memref<144x384xbf16, #tpu.memory_space<vmem>>, vector<144x384xbf16>
      %cst = arith.constant dense<0.000000e+00> : vector<16x384xf32>
      %42 = tpu.matmul %14, %41, %cst {dimension_numbers = #tpu.dot_dimension_numbers<[1], [0], [0], [1], [0, 0, 1, 1], [], []>} : vector<16x144xbf16>, vector<144x384xbf16>, vector<16x384xf32> -> vector<16x384xf32>
      %43 = vector.broadcast %21 : vector<16x1xf32> to vector<16x384xf32>
      %44 = arith.addf %42, %43 : vector<16x384xf32>
      %cst_34 = arith.constant 0.000000e+00 : f32
      %45 = vector.broadcast %cst_34 : f32 to vector<16x384xf32>
      %46 = arith.maximumf %44, %45 : vector<16x384xf32>
      %47 = vector.broadcast %0 : vector<1x384xf32> to vector<16x384xf32>
      %48 = arith.mulf %46, %47 : vector<16x384xf32>
      %49 = arith.truncf %48 : vector<16x384xf32> to vector<16x384xbf16>
      %c0_35 = arith.constant 0 : index
      %c128_36 = arith.constant 128 : index
      %50 = vector.load %arg11[%c0_35, %c128_36] : memref<16x640xbf16, #tpu.memory_space<vmem>>, vector<16x384xbf16>
      tpu.vector_store %arg11[%c0_35, %c128_36], %49 {strides = array<i32>} : memref<16x640xbf16, #tpu.memory_space<vmem>>, vector<16x384xbf16>,
      %c0_37 = arith.constant 0 : index
      %c128_38 = arith.constant 128 : index
      %51 = vector.load %arg10[%c0_37, %c128_38] : memref<16x640xbf16, #tpu.memory_space<vmem>>, vector<16x384xbf16>
      %52 = arith.extf %51 : vector<16x384xbf16> to vector<16x384xf32>
      %c0_39 = arith.constant 0 : index
      %c109_40 = arith.constant 109 : index
      %53 = vector.load %arg11[%c0_39, %c109_40] : memref<16x640xbf16, #tpu.memory_space<vmem>>, vector<16x384xbf16>
      %c0_41 = arith.constant 0 : index
      %c0_42 = arith.constant 0 : index
      %54 = vector.load %arg12[%c0_41, %c0_42] : memref<144x384xbf16, #tpu.memory_space<vmem>>, vector<16x384xbf16>
      tpu.vector_store %arg12[%c0_41, %c0_42], %53 {strides = array<i32>} : memref<144x384xbf16, #tpu.memory_space<vmem>>, vector<16x384xbf16>,
      %c0_43 = arith.constant 0 : index
      %c110_44 = arith.constant 110 : index
      %55 = vector.load %arg11[%c0_43, %c110_44] : memref<16x640xbf16, #tpu.memory_space<vmem>>, vector<16x384xbf16>
      %c16_45 = arith.constant 16 : index
      %c0_46 = arith.constant 0 : index
      %56 = vector.load %arg12[%c16_45, %c0_46] : memref<144x384xbf16, #tpu.memory_space<vmem>>, vector<16x384xbf16>
      tpu.vector_store %arg12[%c16_45, %c0_46], %55 {strides = array<i32>} : memref<144x384xbf16, #tpu.memory_space<vmem>>, vector<16x384xbf16>,
      %c0_47 = arith.constant 0 : index
      %c111_48 = arith.constant 111 : index
      %57 = vector.load %arg11[%c0_47, %c111_48] : memref<16x640xbf16, #tpu.memory_space<vmem>>, vector<16x384xbf16>
      %c32_49 = arith.constant 32 : index
      %c0_50 = arith.constant 0 : index
      %58 = vector.load %arg12[%c32_49, %c0_50] : memref<144x384xbf16, #tpu.memory_space<vmem>>, vector<16x384xbf16>
      tpu.vector_store %arg12[%c32_49, %c0_50], %57 {strides = array<i32>} : memref<144x384xbf16, #tpu.memory_space<vmem>>, vector<16x384xbf16>,
      %c0_51 = arith.constant 0 : index
      %c127_52 = arith.constant 127 : index
      %59 = vector.load %arg11[%c0_51, %c127_52] : memref<16x640xbf16, #tpu.memory_space<vmem>>, vector<16x384xbf16>
      %c48_53 = arith.constant 48 : index
      %c0_54 = arith.constant 0 : index
      %60 = vector.load %arg12[%c48_53, %c0_54] : memref<144x384xbf16, #tpu.memory_space<vmem>>, vector<16x384xbf16>
      tpu.vector_store %arg12[%c48_53, %c0_54], %59 {strides = array<i32>} : memref<144x384xbf16, #tpu.memory_space<vmem>>, vector<16x384xbf16>,
      %c0_55 = arith.constant 0 : index
      %c128_56 = arith.constant 128 : index
      %61 = vector.load %arg11[%c0_55, %c128_56] : memref<16x640xbf16, #tpu.memory_space<vmem>>, vector<16x384xbf16>
      %c64_57 = arith.constant 64 : index
      %c0_58 = arith.constant 0 : index
      %62 = vector.load %arg12[%c64_57, %c0_58] : memref<144x384xbf16, #tpu.memory_space<vmem>>, vector<16x384xbf16>
      tpu.vector_store %arg12[%c64_57, %c0_58], %61 {strides = array<i32>} : memref<144x384xbf16, #tpu.memory_space<vmem>>, vector<16x384xbf16>,
      %c0_59 = arith.constant 0 : index
      %c129_60 = arith.constant 129 : index
      %63 = vector.load %arg11[%c0_59, %c129_60] : memref<16x640xbf16, #tpu.memory_space<vmem>>, vector<16x384xbf16>
      %c80_61 = arith.constant 80 : index
      %c0_62 = arith.constant 0 : index
      %64 = vector.load %arg12[%c80_61, %c0_62] : memref<144x384xbf16, #tpu.memory_space<vmem>>, vector<16x384xbf16>
      tpu.vector_store %arg12[%c80_61, %c0_62], %63 {strides = array<i32>} : memref<144x384xbf16, #tpu.memory_space<vmem>>, vector<16x384xbf16>,
      %c0_63 = arith.constant 0 : index
      %c145_64 = arith.constant 145 : index
      %65 = vector.load %arg11[%c0_63, %c145_64] : memref<16x640xbf16, #tpu.memory_space<vmem>>, vector<16x384xbf16>
      %c96_65 = arith.constant 96 : index
      %c0_66 = arith.constant 0 : index
      %66 = vector.load %arg12[%c96_65, %c0_66] : memref<144x384xbf16, #tpu.memory_space<vmem>>, vector<16x384xbf16>
      tpu.vector_store %arg12[%c96_65, %c0_66], %65 {strides = array<i32>} : memref<144x384xbf16, #tpu.memory_space<vmem>>, vector<16x384xbf16>,
      %c0_67 = arith.constant 0 : index
      %c146_68 = arith.constant 146 : index
      %67 = vector.load %arg11[%c0_67, %c146_68] : memref<16x640xbf16, #tpu.memory_space<vmem>>, vector<16x384xbf16>
      %c112_69 = arith.constant 112 : index
      %c0_70 = arith.constant 0 : index
      %68 = vector.load %arg12[%c112_69, %c0_70] : memref<144x384xbf16, #tpu.memory_space<vmem>>, vector<16x384xbf16>
      tpu.vector_store %arg12[%c112_69, %c0_70], %67 {strides = array<i32>} : memref<144x384xbf16, #tpu.memory_space<vmem>>, vector<16x384xbf16>,
      %c0_71 = arith.constant 0 : index
      %c147_72 = arith.constant 147 : index
      %69 = vector.load %arg11[%c0_71, %c147_72] : memref<16x640xbf16, #tpu.memory_space<vmem>>, vector<16x384xbf16>
      %c128_73 = arith.constant 128 : index
      %c0_74 = arith.constant 0 : index
      %70 = vector.load %arg12[%c128_73, %c0_74] : memref<144x384xbf16, #tpu.memory_space<vmem>>, vector<16x384xbf16>
      tpu.vector_store %arg12[%c128_73, %c0_74], %69 {strides = array<i32>} : memref<144x384xbf16, #tpu.memory_space<vmem>>, vector<16x384xbf16>,
      %c0_75 = arith.constant 0 : index
      %c0_76 = arith.constant 0 : index
      %71 = vector.load %arg12[%c0_75, %c0_76] : memref<144x384xbf16, #tpu.memory_space<vmem>>, vector<144x384xbf16>
      %cst_77 = arith.constant dense<0.000000e+00> : vector<16x384xf32>
      %72 = tpu.matmul %17, %71, %cst_77 {dimension_numbers = #tpu.dot_dimension_numbers<[1], [0], [0], [1], [0, 0, 1, 1], [], []>} : vector<16x144xbf16>, vector<144x384xbf16>, vector<16x384xf32> -> vector<16x384xf32>
      %73 = vector.broadcast %22 : vector<16x1xf32> to vector<16x384xf32>
      %74 = arith.addf %72, %73 : vector<16x384xf32>
      %75 = arith.addf %74, %52 : vector<16x384xf32>
      %cst_78 = arith.constant 0.000000e+00 : f32
      %76 = vector.broadcast %cst_78 : f32 to vector<16x384xf32>
      %77 = arith.maximumf %75, %76 : vector<16x384xf32>
      %78 = vector.broadcast %0 : vector<1x384xf32> to vector<16x384xf32>
      %79 = arith.mulf %77, %78 : vector<16x384xf32>
      %80 = arith.truncf %79 : vector<16x384xf32> to vector<16x384xbf16>
      %c0_79 = arith.constant 0 : index
      %c128_80 = arith.constant 128 : index
      %81 = vector.load %arg10[%c0_79, %c128_80] : memref<16x640xbf16, #tpu.memory_space<vmem>>, vector<16x384xbf16>
      tpu.vector_store %arg10[%c0_79, %c128_80], %80 {strides = array<i32>} : memref<16x640xbf16, #tpu.memory_space<vmem>>, vector<16x384xbf16>,
    } else {
    }
    %c9_i32 = arith.constant 9 : i32
    %7 = arith.cmpi eq, %arg1, %c9_i32 : i32
    %8 = arith.extui %7 : i1 to i32
    %c0_i32_4 = arith.constant 0 : i32
    %9 = arith.cmpi ne, %8, %c0_i32_4 : i32
    scf.if %9 {
      %c0_5 = arith.constant 0 : index
      %c0_6 = arith.constant 0 : index
      %10 = vector.load %arg10[%c0_5, %c0_6] : memref<16x640xbf16, #tpu.memory_space<vmem>>, vector<16x640xbf16>
      %c0_7 = arith.constant 0 : index
      %c0_8 = arith.constant 0 : index
      %c0_9 = arith.constant 0 : index
      %11 = vector.load %arg9[%c0_7, %c0_8, %c0_9] : memref<1x16x640xbf16, #tpu.memory_space<vmem>>, vector<1x16x640xbf16>
      %12 = vector.shape_cast %11 : vector<1x16x640xbf16> to vector<16x640xbf16>
      %13 = vector.shape_cast %10 : vector<16x640xbf16> to vector<1x16x640xbf16>
      tpu.vector_store %arg9[%c0_7, %c0_8, %c0_9], %13 {strides = array<i32>} : memref<1x16x640xbf16, #tpu.memory_space<vmem>>, vector<1x16x640xbf16>,
    } else {
    }
    return
  }
  func.func @transform_0(%arg0: i32, %arg1: i32) -> (i32, i32, i32) {
    %c0_i32 = arith.constant 0 : i32
    %c0_i32_0 = arith.constant 0 : i32
    %c0_i32_1 = arith.constant 0 : i32
    return %arg0, %c0_i32, %c0_i32_0 : i32, i32, i32
  }
  func.func @transform_1(%arg0: i32, %arg1: i32) -> (i32, i32) {
    %c0_i32 = arith.constant 0 : i32
    %c0_i32_0 = arith.constant 0 : i32
    %c0_i32_1 = arith.constant 0 : i32
    return %c0_i32, %c0_i32_0 : i32, i32
  }
  func.func @transform_2(%arg0: i32, %arg1: i32) -> (i32, i32) {
    %c0_i32 = arith.constant 0 : i32
    %c0_i32_0 = arith.constant 0 : i32
    %c0_i32_1 = arith.constant 0 : i32
    return %c0_i32, %c0_i32_0 : i32, i32
  }
  func.func @transform_3(%arg0: i32, %arg1: i32) -> (i32, i32, i32) {
    %c0_i32 = arith.constant 0 : i32
    %c0_i32_0 = arith.constant 0 : i32
    %c0_i32_1 = arith.constant 0 : i32
    %c0_i32_2 = arith.constant 0 : i32
    return %c0_i32, %c0_i32_0, %c0_i32_1 : i32, i32, i32
  }
  func.func @transform_4(%arg0: i32, %arg1: i32) -> (i32, i32, i32) {
    %c0_i32 = arith.constant 0 : i32
    %c0_i32_0 = arith.constant 0 : i32
    %c0_i32_1 = arith.constant 0 : i32
    %c0_i32_2 = arith.constant 0 : i32
    return %c0_i32, %c0_i32_0, %c0_i32_1 : i32, i32, i32
  }
  func.func @transform_5(%arg0: i32, %arg1: i32) -> (i32, i32, i32) {
    %c0_i32 = arith.constant 0 : i32
    %c0_i32_0 = arith.constant 0 : i32
    %c0_i32_1 = arith.constant 0 : i32
    %c0_i32_2 = arith.constant 0 : i32
    return %c0_i32, %c0_i32_0, %c0_i32_1 : i32, i32, i32
  }
  func.func @transform_6(%arg0: i32, %arg1: i32) -> (i32, i32) {
    %c0_i32 = arith.constant 0 : i32
    %c0_i32_0 = arith.constant 0 : i32
    %c0_i32_1 = arith.constant 0 : i32
    return %c0_i32, %c0_i32_0 : i32, i32
  }
  func.func @transform_7(%arg0: i32, %arg1: i32) -> (i32, i32, i32) {
    %c0_i32 = arith.constant 0 : i32
    %c0_i32_0 = arith.constant 0 : i32
    %c0_i32_1 = arith.constant 0 : i32
    return %arg0, %c0_i32, %c0_i32_0 : i32, i32, i32
  }
}

module attributes {stable_mosaic.version = 11 : i64} {
  func.func @_stage_kernel(%arg0: i32, %arg1: i32, %arg2: memref<1x16x640xbf16, #tpu.memory_space<vmem>>, %arg3: memref<32x144xbf16, #tpu.memory_space<vmem>>, %arg4: memref<32x288xbf16, #tpu.memory_space<vmem>>, %arg5: memref<32x16xbf16, #tpu.memory_space<vmem>>, %arg6: memref<32x2xf32, #tpu.memory_space<vmem>>, %arg7: memref<384x128xbf16, #tpu.memory_space<vmem>>, %arg8: memref<8x32x288xbf16, #tpu.memory_space<vmem>>, %arg9: memref<8x32x288xbf16, #tpu.memory_space<vmem>>, %arg10: memref<8x32x2xf32, #tpu.memory_space<vmem>>, %arg11: memref<1x128xf32, #tpu.memory_space<vmem>>, %arg12: memref<1x32x384xbf16, #tpu.memory_space<vmem>>, %arg13: memref<32x384xbf16, #tpu.memory_space<vmem>>, %arg14: memref<32x384xbf16, #tpu.memory_space<vmem>>, %arg15: memref<288x384xbf16, #tpu.memory_space<vmem>>) attributes {dimension_semantics = [#tpu.dimension_semantics<parallel>, #tpu.dimension_semantics<arbitrary>], iteration_bounds = array<i64: 2, 9>, scalar_prefetch = 0 : i64, scratch_operands = 3 : i64, tpu.core_type = #tpu.core_type<tc>, window_params = [{transform_indices = @transform_0, window_bounds = array<i64: 1, 16, 640>}, {pipeline_mode = #tpu.pipeline_mode<synchronous>, transform_indices = @transform_1, window_bounds = array<i64: 32, 144>}, {pipeline_mode = #tpu.pipeline_mode<synchronous>, transform_indices = @transform_2, window_bounds = array<i64: 32, 288>}, {pipeline_mode = #tpu.pipeline_mode<synchronous>, transform_indices = @transform_3, window_bounds = array<i64: 32, 16>}, {pipeline_mode = #tpu.pipeline_mode<synchronous>, transform_indices = @transform_4, window_bounds = array<i64: 32, 2>}, {pipeline_mode = #tpu.pipeline_mode<synchronous>, transform_indices = @transform_5, window_bounds = array<i64: 384, 128>}, {pipeline_mode = #tpu.pipeline_mode<synchronous>, transform_indices = @transform_6, window_bounds = array<i64: 8, 32, 288>}, {pipeline_mode = #tpu.pipeline_mode<synchronous>, transform_indices = @transform_7, window_bounds = array<i64: 8, 32, 288>}, {pipeline_mode = #tpu.pipeline_mode<synchronous>, transform_indices = @transform_8, window_bounds = array<i64: 8, 32, 2>}, {pipeline_mode = #tpu.pipeline_mode<synchronous>, transform_indices = @transform_9, window_bounds = array<i64: 1, 128>}, {transform_indices = @transform_10, window_bounds = array<i64: 1, 32, 384>}]} {
    %c0 = arith.constant 0 : index
    %c0_0 = arith.constant 0 : index
    %0 = vector.load %arg11[%c0, %c0_0] : memref<1x128xf32, #tpu.memory_space<vmem>>, vector<1x128xf32>
    %c0_i32 = arith.constant 0 : i32
    %1 = arith.cmpi eq, %arg1, %c0_i32 : i32
    %2 = arith.extui %1 : i1 to i32
    %c0_i32_1 = arith.constant 0 : i32
    %3 = arith.cmpi ne, %2, %c0_i32_1 : i32
    scf.if %3 {
      %cst = arith.constant 0.000000e+00 : bf16
      %10 = vector.broadcast %cst : bf16 to vector<32x384xbf16>
      %c0_5 = arith.constant 0 : index
      %c0_6 = arith.constant 0 : index
      %11 = vector.load %arg13[%c0_5, %c0_6] : memref<32x384xbf16, #tpu.memory_space<vmem>>, vector<32x384xbf16>
      tpu.vector_store %arg13[%c0_5, %c0_6], %10 {strides = array<i32>} : memref<32x384xbf16, #tpu.memory_space<vmem>>, vector<32x384xbf16>,
      %cst_7 = arith.constant 0.000000e+00 : bf16
      %12 = vector.broadcast %cst_7 : bf16 to vector<32x384xbf16>
      %c0_8 = arith.constant 0 : index
      %c0_9 = arith.constant 0 : index
      %13 = vector.load %arg14[%c0_8, %c0_9] : memref<32x384xbf16, #tpu.memory_space<vmem>>, vector<32x384xbf16>
      tpu.vector_store %arg14[%c0_8, %c0_9], %12 {strides = array<i32>} : memref<32x384xbf16, #tpu.memory_space<vmem>>, vector<32x384xbf16>,
      %c0_10 = arith.constant 0 : index
      %c0_11 = arith.constant 0 : index
      %14 = vector.load %arg3[%c0_10, %c0_11] : memref<32x144xbf16, #tpu.memory_space<vmem>>, vector<32x144xbf16>
      %c0_12 = arith.constant 0 : index
      %c0_13 = arith.constant 0 : index
      %c109 = arith.constant 109 : index
      %15 = vector.load %arg2[%c0_12, %c0_13, %c109] : memref<1x16x640xbf16, #tpu.memory_space<vmem>>, vector<1x16x384xbf16>
      %16 = vector.shape_cast %15 : vector<1x16x384xbf16> to vector<16x384xbf16>
      %c0_14 = arith.constant 0 : index
      %c0_15 = arith.constant 0 : index
      %17 = vector.load %arg15[%c0_14, %c0_15] : memref<288x384xbf16, #tpu.memory_space<vmem>>, vector<16x384xbf16>
      tpu.vector_store %arg15[%c0_14, %c0_15], %16 {strides = array<i32>} : memref<288x384xbf16, #tpu.memory_space<vmem>>, vector<16x384xbf16>,
      %c0_16 = arith.constant 0 : index
      %c0_17 = arith.constant 0 : index
      %c110 = arith.constant 110 : index
      %18 = vector.load %arg2[%c0_16, %c0_17, %c110] : memref<1x16x640xbf16, #tpu.memory_space<vmem>>, vector<1x16x384xbf16>
      %19 = vector.shape_cast %18 : vector<1x16x384xbf16> to vector<16x384xbf16>
      %c16 = arith.constant 16 : index
      %c0_18 = arith.constant 0 : index
      %20 = vector.load %arg15[%c16, %c0_18] : memref<288x384xbf16, #tpu.memory_space<vmem>>, vector<16x384xbf16>
      tpu.vector_store %arg15[%c16, %c0_18], %19 {strides = array<i32>} : memref<288x384xbf16, #tpu.memory_space<vmem>>, vector<16x384xbf16>,
      %c0_19 = arith.constant 0 : index
      %c0_20 = arith.constant 0 : index
      %c111 = arith.constant 111 : index
      %21 = vector.load %arg2[%c0_19, %c0_20, %c111] : memref<1x16x640xbf16, #tpu.memory_space<vmem>>, vector<1x16x384xbf16>
      %22 = vector.shape_cast %21 : vector<1x16x384xbf16> to vector<16x384xbf16>
      %c32 = arith.constant 32 : index
      %c0_21 = arith.constant 0 : index
      %23 = vector.load %arg15[%c32, %c0_21] : memref<288x384xbf16, #tpu.memory_space<vmem>>, vector<16x384xbf16>
      tpu.vector_store %arg15[%c32, %c0_21], %22 {strides = array<i32>} : memref<288x384xbf16, #tpu.memory_space<vmem>>, vector<16x384xbf16>,
      %c0_22 = arith.constant 0 : index
      %c0_23 = arith.constant 0 : index
      %c127 = arith.constant 127 : index
      %24 = vector.load %arg2[%c0_22, %c0_23, %c127] : memref<1x16x640xbf16, #tpu.memory_space<vmem>>, vector<1x16x384xbf16>
      %25 = vector.shape_cast %24 : vector<1x16x384xbf16> to vector<16x384xbf16>
      %c48 = arith.constant 48 : index
      %c0_24 = arith.constant 0 : index
      %26 = vector.load %arg15[%c48, %c0_24] : memref<288x384xbf16, #tpu.memory_space<vmem>>, vector<16x384xbf16>
      tpu.vector_store %arg15[%c48, %c0_24], %25 {strides = array<i32>} : memref<288x384xbf16, #tpu.memory_space<vmem>>, vector<16x384xbf16>,
      %c0_25 = arith.constant 0 : index
      %c0_26 = arith.constant 0 : index
      %c128 = arith.constant 128 : index
      %27 = vector.load %arg2[%c0_25, %c0_26, %c128] : memref<1x16x640xbf16, #tpu.memory_space<vmem>>, vector<1x16x384xbf16>
      %28 = vector.shape_cast %27 : vector<1x16x384xbf16> to vector<16x384xbf16>
      %c64 = arith.constant 64 : index
      %c0_27 = arith.constant 0 : index
      %29 = vector.load %arg15[%c64, %c0_27] : memref<288x384xbf16, #tpu.memory_space<vmem>>, vector<16x384xbf16>
      tpu.vector_store %arg15[%c64, %c0_27], %28 {strides = array<i32>} : memref<288x384xbf16, #tpu.memory_space<vmem>>, vector<16x384xbf16>,
      %c0_28 = arith.constant 0 : index
      %c0_29 = arith.constant 0 : index
      %c129 = arith.constant 129 : index
      %30 = vector.load %arg2[%c0_28, %c0_29, %c129] : memref<1x16x640xbf16, #tpu.memory_space<vmem>>, vector<1x16x384xbf16>
      %31 = vector.shape_cast %30 : vector<1x16x384xbf16> to vector<16x384xbf16>
      %c80 = arith.constant 80 : index
      %c0_30 = arith.constant 0 : index
      %32 = vector.load %arg15[%c80, %c0_30] : memref<288x384xbf16, #tpu.memory_space<vmem>>, vector<16x384xbf16>
      tpu.vector_store %arg15[%c80, %c0_30], %31 {strides = array<i32>} : memref<288x384xbf16, #tpu.memory_space<vmem>>, vector<16x384xbf16>,
      %c0_31 = arith.constant 0 : index
      %c0_32 = arith.constant 0 : index
      %c145 = arith.constant 145 : index
      %33 = vector.load %arg2[%c0_31, %c0_32, %c145] : memref<1x16x640xbf16, #tpu.memory_space<vmem>>, vector<1x16x384xbf16>
      %34 = vector.shape_cast %33 : vector<1x16x384xbf16> to vector<16x384xbf16>
      %c96 = arith.constant 96 : index
      %c0_33 = arith.constant 0 : index
      %35 = vector.load %arg15[%c96, %c0_33] : memref<288x384xbf16, #tpu.memory_space<vmem>>, vector<16x384xbf16>
      tpu.vector_store %arg15[%c96, %c0_33], %34 {strides = array<i32>} : memref<288x384xbf16, #tpu.memory_space<vmem>>, vector<16x384xbf16>,
      %c0_34 = arith.constant 0 : index
      %c0_35 = arith.constant 0 : index
      %c146 = arith.constant 146 : index
      %36 = vector.load %arg2[%c0_34, %c0_35, %c146] : memref<1x16x640xbf16, #tpu.memory_space<vmem>>, vector<1x16x384xbf16>
      %37 = vector.shape_cast %36 : vector<1x16x384xbf16> to vector<16x384xbf16>
      %c112 = arith.constant 112 : index
      %c0_36 = arith.constant 0 : index
      %38 = vector.load %arg15[%c112, %c0_36] : memref<288x384xbf16, #tpu.memory_space<vmem>>, vector<16x384xbf16>
      tpu.vector_store %arg15[%c112, %c0_36], %37 {strides = array<i32>} : memref<288x384xbf16, #tpu.memory_space<vmem>>, vector<16x384xbf16>,
      %c0_37 = arith.constant 0 : index
      %c0_38 = arith.constant 0 : index
      %c147 = arith.constant 147 : index
      %39 = vector.load %arg2[%c0_37, %c0_38, %c147] : memref<1x16x640xbf16, #tpu.memory_space<vmem>>, vector<1x16x384xbf16>
      %40 = vector.shape_cast %39 : vector<1x16x384xbf16> to vector<16x384xbf16>
      %c128_39 = arith.constant 128 : index
      %c0_40 = arith.constant 0 : index
      %41 = vector.load %arg15[%c128_39, %c0_40] : memref<288x384xbf16, #tpu.memory_space<vmem>>, vector<16x384xbf16>
      tpu.vector_store %arg15[%c128_39, %c0_40], %40 {strides = array<i32>} : memref<288x384xbf16, #tpu.memory_space<vmem>>, vector<16x384xbf16>,
      %c0_41 = arith.constant 0 : index
      %c0_42 = arith.constant 0 : index
      %42 = vector.load %arg15[%c0_41, %c0_42] : memref<288x384xbf16, #tpu.memory_space<vmem>>, vector<144x384xbf16>
      %cst_43 = arith.constant dense<0.000000e+00> : vector<32x384xf32>
      %43 = tpu.matmul %14, %42, %cst_43 {dimension_numbers = #tpu.dot_dimension_numbers<[1], [0], [0], [1], [0, 0, 1, 1], [], []>} : vector<32x144xbf16>, vector<144x384xbf16>, vector<32x384xf32> -> vector<32x384xf32>
      %c0_44 = arith.constant 0 : index
      %c0_45 = arith.constant 0 : index
      %44 = vector.load %arg6[%c0_44, %c0_45] : memref<32x2xf32, #tpu.memory_space<vmem>>, vector<32x1xf32>
      %45 = vector.broadcast %44 : vector<32x1xf32> to vector<32x384xf32>
      %46 = arith.addf %43, %45 : vector<32x384xf32>
      %cst_46 = arith.constant 0.000000e+00 : f32
      %47 = vector.broadcast %cst_46 : f32 to vector<32x384xf32>
      %48 = arith.maximumf %46, %47 : vector<32x384xf32>
      %49 = arith.truncf %48 : vector<32x384xf32> to vector<32x384xbf16>
      %c0_47 = arith.constant 0 : index
      %c0_48 = arith.constant 0 : index
      %50 = vector.load %arg7[%c0_47, %c0_48] : memref<384x128xbf16, #tpu.memory_space<vmem>>, vector<384x128xbf16>
      %cst_49 = arith.constant dense<0.000000e+00> : vector<32x128xf32>
      %51 = tpu.matmul %49, %50, %cst_49 {dimension_numbers = #tpu.dot_dimension_numbers<[1], [0], [0], [1], [0, 0, 1, 1], [], []>} : vector<32x384xbf16>, vector<384x128xbf16>, vector<32x128xf32> -> vector<32x128xf32>
      %52 = arith.truncf %51 : vector<32x128xf32> to vector<32x128xbf16>
      %c0_50 = arith.constant 0 : index
      %c128_51 = arith.constant 128 : index
      %53 = vector.load %arg14[%c0_50, %c128_51] : memref<32x384xbf16, #tpu.memory_space<vmem>>, vector<32x128xbf16>
      tpu.vector_store %arg14[%c0_50, %c128_51], %52 {strides = array<i32>} : memref<32x384xbf16, #tpu.memory_space<vmem>>, vector<32x128xbf16>,
      %c0_52 = arith.constant 0 : index
      %c0_53 = arith.constant 0 : index
      %c128_54 = arith.constant 128 : index
      %54 = vector.load %arg2[%c0_52, %c0_53, %c128_54] : memref<1x16x640xbf16, #tpu.memory_space<vmem>>, vector<1x16x384xbf16>
      %55 = vector.shape_cast %54 : vector<1x16x384xbf16> to vector<16x384xbf16>
      %c0_55 = arith.constant 0 : index
      %c0_56 = arith.constant 0 : index
      %56 = vector.load %arg7[%c0_55, %c0_56] : memref<384x128xbf16, #tpu.memory_space<vmem>>, vector<384x128xbf16>
      %cst_57 = arith.constant dense<0.000000e+00> : vector<16x128xf32>
      %57 = tpu.matmul %55, %56, %cst_57 {dimension_numbers = #tpu.dot_dimension_numbers<[1], [0], [0], [1], [0, 0, 1, 1], [], []>} : vector<16x384xbf16>, vector<384x128xbf16>, vector<16x128xf32> -> vector<16x128xf32>
      %c0_58 = arith.constant 0 : index
      %c0_59 = arith.constant 0 : index
      %58 = vector.load %arg5[%c0_58, %c0_59] : memref<32x16xbf16, #tpu.memory_space<vmem>>, vector<32x16xbf16>
      %59 = arith.truncf %57 : vector<16x128xf32> to vector<16x128xbf16>
      %cst_60 = arith.constant dense<0.000000e+00> : vector<32x128xf32>
      %60 = tpu.matmul %58, %59, %cst_60 {dimension_numbers = #tpu.dot_dimension_numbers<[1], [0], [0], [1], [0, 0, 1, 1], [], []>} : vector<32x16xbf16>, vector<16x128xbf16>, vector<32x128xf32> -> vector<32x128xf32>
      %c0_61 = arith.constant 0 : index
      %c0_62 = arith.constant 0 : index
      %61 = vector.load %arg4[%c0_61, %c0_62] : memref<32x288xbf16, #tpu.memory_space<vmem>>, vector<32x288xbf16>
      %c0_63 = arith.constant 0 : index
      %c117 = arith.constant 117 : index
      %62 = vector.load %arg14[%c0_63, %c117] : memref<32x384xbf16, #tpu.memory_space<vmem>>, vector<32x128xbf16>
      %c0_64 = arith.constant 0 : index
      %c0_65 = arith.constant 0 : index
      %63 = vector.load %arg15[%c0_64, %c0_65] : memref<288x384xbf16, #tpu.memory_space<vmem>>, vector<32x128xbf16>
      tpu.vector_store %arg15[%c0_64, %c0_65], %62 {strides = array<i32>} : memref<288x384xbf16, #tpu.memory_space<vmem>>, vector<32x128xbf16>,
      %c0_66 = arith.constant 0 : index
      %c118 = arith.constant 118 : index
      %64 = vector.load %arg14[%c0_66, %c118] : memref<32x384xbf16, #tpu.memory_space<vmem>>, vector<32x128xbf16>
      %c32_67 = arith.constant 32 : index
      %c0_68 = arith.constant 0 : index
      %65 = vector.load %arg15[%c32_67, %c0_68] : memref<288x384xbf16, #tpu.memory_space<vmem>>, vector<32x128xbf16>
      tpu.vector_store %arg15[%c32_67, %c0_68], %64 {strides = array<i32>} : memref<288x384xbf16, #tpu.memory_space<vmem>>, vector<32x128xbf16>,
      %c0_69 = arith.constant 0 : index
      %c119 = arith.constant 119 : index
      %66 = vector.load %arg14[%c0_69, %c119] : memref<32x384xbf16, #tpu.memory_space<vmem>>, vector<32x128xbf16>
      %c64_70 = arith.constant 64 : index
      %c0_71 = arith.constant 0 : index
      %67 = vector.load %arg15[%c64_70, %c0_71] : memref<288x384xbf16, #tpu.memory_space<vmem>>, vector<32x128xbf16>
      tpu.vector_store %arg15[%c64_70, %c0_71], %66 {strides = array<i32>} : memref<288x384xbf16, #tpu.memory_space<vmem>>, vector<32x128xbf16>,
      %c0_72 = arith.constant 0 : index
      %c127_73 = arith.constant 127 : index
      %68 = vector.load %arg14[%c0_72, %c127_73] : memref<32x384xbf16, #tpu.memory_space<vmem>>, vector<32x128xbf16>
      %c96_74 = arith.constant 96 : index
      %c0_75 = arith.constant 0 : index
      %69 = vector.load %arg15[%c96_74, %c0_75] : memref<288x384xbf16, #tpu.memory_space<vmem>>, vector<32x128xbf16>
      tpu.vector_store %arg15[%c96_74, %c0_75], %68 {strides = array<i32>} : memref<288x384xbf16, #tpu.memory_space<vmem>>, vector<32x128xbf16>,
      %c0_76 = arith.constant 0 : index
      %c128_77 = arith.constant 128 : index
      %70 = vector.load %arg14[%c0_76, %c128_77] : memref<32x384xbf16, #tpu.memory_space<vmem>>, vector<32x128xbf16>
      %c128_78 = arith.constant 128 : index
      %c0_79 = arith.constant 0 : index
      %71 = vector.load %arg15[%c128_78, %c0_79] : memref<288x384xbf16, #tpu.memory_space<vmem>>, vector<32x128xbf16>
      tpu.vector_store %arg15[%c128_78, %c0_79], %70 {strides = array<i32>} : memref<288x384xbf16, #tpu.memory_space<vmem>>, vector<32x128xbf16>,
      %c0_80 = arith.constant 0 : index
      %c129_81 = arith.constant 129 : index
      %72 = vector.load %arg14[%c0_80, %c129_81] : memref<32x384xbf16, #tpu.memory_space<vmem>>, vector<32x128xbf16>
      %c160 = arith.constant 160 : index
      %c0_82 = arith.constant 0 : index
      %73 = vector.load %arg15[%c160, %c0_82] : memref<288x384xbf16, #tpu.memory_space<vmem>>, vector<32x128xbf16>
      tpu.vector_store %arg15[%c160, %c0_82], %72 {strides = array<i32>} : memref<288x384xbf16, #tpu.memory_space<vmem>>, vector<32x128xbf16>,
      %c0_83 = arith.constant 0 : index
      %c137 = arith.constant 137 : index
      %74 = vector.load %arg14[%c0_83, %c137] : memref<32x384xbf16, #tpu.memory_space<vmem>>, vector<32x128xbf16>
      %c192 = arith.constant 192 : index
      %c0_84 = arith.constant 0 : index
      %75 = vector.load %arg15[%c192, %c0_84] : memref<288x384xbf16, #tpu.memory_space<vmem>>, vector<32x128xbf16>
      tpu.vector_store %arg15[%c192, %c0_84], %74 {strides = array<i32>} : memref<288x384xbf16, #tpu.memory_space<vmem>>, vector<32x128xbf16>,
      %c0_85 = arith.constant 0 : index
      %c138 = arith.constant 138 : index
      %76 = vector.load %arg14[%c0_85, %c138] : memref<32x384xbf16, #tpu.memory_space<vmem>>, vector<32x128xbf16>
      %c224 = arith.constant 224 : index
      %c0_86 = arith.constant 0 : index
      %77 = vector.load %arg15[%c224, %c0_86] : memref<288x384xbf16, #tpu.memory_space<vmem>>, vector<32x128xbf16>
      tpu.vector_store %arg15[%c224, %c0_86], %76 {strides = array<i32>} : memref<288x384xbf16, #tpu.memory_space<vmem>>, vector<32x128xbf16>,
      %c0_87 = arith.constant 0 : index
      %c139 = arith.constant 139 : index
      %78 = vector.load %arg14[%c0_87, %c139] : memref<32x384xbf16, #tpu.memory_space<vmem>>, vector<32x128xbf16>
      %c256 = arith.constant 256 : index
      %c0_88 = arith.constant 0 : index
      %79 = vector.load %arg15[%c256, %c0_88] : memref<288x384xbf16, #tpu.memory_space<vmem>>, vector<32x128xbf16>
      tpu.vector_store %arg15[%c256, %c0_88], %78 {strides = array<i32>} : memref<288x384xbf16, #tpu.memory_space<vmem>>, vector<32x128xbf16>,
      %c0_89 = arith.constant 0 : index
      %c0_90 = arith.constant 0 : index
      %80 = vector.load %arg15[%c0_89, %c0_90] : memref<288x384xbf16, #tpu.memory_space<vmem>>, vector<288x128xbf16>
      %cst_91 = arith.constant dense<0.000000e+00> : vector<32x128xf32>
      %81 = tpu.matmul %61, %80, %cst_91 {dimension_numbers = #tpu.dot_dimension_numbers<[1], [0], [0], [1], [0, 0, 1, 1], [], []>} : vector<32x288xbf16>, vector<288x128xbf16>, vector<32x128xf32> -> vector<32x128xf32>
      %c0_92 = arith.constant 0 : index
      %c1 = arith.constant 1 : index
      %82 = vector.load %arg6[%c0_92, %c1] : memref<32x2xf32, #tpu.memory_space<vmem>>, vector<32x1xf32>
      %83 = vector.broadcast %82 : vector<32x1xf32> to vector<32x128xf32>
      %84 = arith.addf %81, %83 : vector<32x128xf32>
      %85 = arith.addf %84, %60 : vector<32x128xf32>
      %cst_93 = arith.constant 0.000000e+00 : f32
      %86 = vector.broadcast %cst_93 : f32 to vector<32x128xf32>
      %87 = arith.maximumf %85, %86 : vector<32x128xf32>
      %88 = vector.broadcast %0 : vector<1x128xf32> to vector<32x128xf32>
      %89 = arith.mulf %87, %88 : vector<32x128xf32>
      %90 = arith.truncf %89 : vector<32x128xf32> to vector<32x128xbf16>
      %c0_94 = arith.constant 0 : index
      %c128_95 = arith.constant 128 : index
      %91 = vector.load %arg13[%c0_94, %c128_95] : memref<32x384xbf16, #tpu.memory_space<vmem>>, vector<32x128xbf16>
      tpu.vector_store %arg13[%c0_94, %c128_95], %90 {strides = array<i32>} : memref<32x384xbf16, #tpu.memory_space<vmem>>, vector<32x128xbf16>,
    } else {
    }
    %c0_i32_2 = arith.constant 0 : i32
    %4 = arith.cmpi sgt, %arg1, %c0_i32_2 : i32
    %5 = arith.extui %4 : i1 to i32
    %c0_i32_3 = arith.constant 0 : i32
    %6 = arith.cmpi ne, %5, %c0_i32_3 : i32
    scf.if %6 {
      %c1_i32 = arith.constant 1 : i32
      %10 = arith.subi %arg1, %c1_i32 : i32
      %c0_i32_5 = arith.constant 0 : i32
      %11 = arith.maxsi %10, %c0_i32_5 : i32
      %12 = arith.index_cast %11 : i32 to index
      %c0_6 = arith.constant 0 : index
      %c0_7 = arith.constant 0 : index
      %13 = vector.load %arg8[%12, %c0_6, %c0_7] : memref<8x32x288xbf16, #tpu.memory_space<vmem>>, vector<1x32x288xbf16>
      %14 = vector.shape_cast %13 : vector<1x32x288xbf16> to vector<32x288xbf16>
      %15 = arith.index_cast %11 : i32 to index
      %c0_8 = arith.constant 0 : index
      %c0_9 = arith.constant 0 : index
      %16 = vector.load %arg9[%15, %c0_8, %c0_9] : memref<8x32x288xbf16, #tpu.memory_space<vmem>>, vector<1x32x288xbf16>
      %17 = vector.shape_cast %16 : vector<1x32x288xbf16> to vector<32x288xbf16>
      %18 = arith.index_cast %11 : i32 to index
      %c0_10 = arith.constant 0 : index
      %c0_11 = arith.constant 0 : index
      %19 = vector.load %arg10[%18, %c0_10, %c0_11] : memref<8x32x2xf32, #tpu.memory_space<vmem>>, vector<1x32x2xf32>
      %20 = vector.shape_cast %19 : vector<1x32x2xf32> to vector<32x2xf32>
      %21 = vector.extract_strided_slice %20 {offsets = [0, 0], sizes = [32, 1], strides = [1, 1]} : vector<32x2xf32> to vector<32x1xf32>
      %22 = vector.extract_strided_slice %20 {offsets = [0, 1], sizes = [32, 1], strides = [1, 1]} : vector<32x2xf32> to vector<32x1xf32>
      %c0_12 = arith.constant 0 : index
      %c117 = arith.constant 117 : index
      %23 = vector.load %arg13[%c0_12, %c117] : memref<32x384xbf16, #tpu.memory_space<vmem>>, vector<32x128xbf16>
      %c0_13 = arith.constant 0 : index
      %c0_14 = arith.constant 0 : index
      %24 = vector.load %arg15[%c0_13, %c0_14] : memref<288x384xbf16, #tpu.memory_space<vmem>>, vector<32x128xbf16>
      tpu.vector_store %arg15[%c0_13, %c0_14], %23 {strides = array<i32>} : memref<288x384xbf16, #tpu.memory_space<vmem>>, vector<32x128xbf16>,
      %c0_15 = arith.constant 0 : index
      %c118 = arith.constant 118 : index
      %25 = vector.load %arg13[%c0_15, %c118] : memref<32x384xbf16, #tpu.memory_space<vmem>>, vector<32x128xbf16>
      %c32 = arith.constant 32 : index
      %c0_16 = arith.constant 0 : index
      %26 = vector.load %arg15[%c32, %c0_16] : memref<288x384xbf16, #tpu.memory_space<vmem>>, vector<32x128xbf16>
      tpu.vector_store %arg15[%c32, %c0_16], %25 {strides = array<i32>} : memref<288x384xbf16, #tpu.memory_space<vmem>>, vector<32x128xbf16>,
      %c0_17 = arith.constant 0 : index
      %c119 = arith.constant 119 : index
      %27 = vector.load %arg13[%c0_17, %c119] : memref<32x384xbf16, #tpu.memory_space<vmem>>, vector<32x128xbf16>
      %c64 = arith.constant 64 : index
      %c0_18 = arith.constant 0 : index
      %28 = vector.load %arg15[%c64, %c0_18] : memref<288x384xbf16, #tpu.memory_space<vmem>>, vector<32x128xbf16>
      tpu.vector_store %arg15[%c64, %c0_18], %27 {strides = array<i32>} : memref<288x384xbf16, #tpu.memory_space<vmem>>, vector<32x128xbf16>,
      %c0_19 = arith.constant 0 : index
      %c127 = arith.constant 127 : index
      %29 = vector.load %arg13[%c0_19, %c127] : memref<32x384xbf16, #tpu.memory_space<vmem>>, vector<32x128xbf16>
      %c96 = arith.constant 96 : index
      %c0_20 = arith.constant 0 : index
      %30 = vector.load %arg15[%c96, %c0_20] : memref<288x384xbf16, #tpu.memory_space<vmem>>, vector<32x128xbf16>
      tpu.vector_store %arg15[%c96, %c0_20], %29 {strides = array<i32>} : memref<288x384xbf16, #tpu.memory_space<vmem>>, vector<32x128xbf16>,
      %c0_21 = arith.constant 0 : index
      %c128 = arith.constant 128 : index
      %31 = vector.load %arg13[%c0_21, %c128] : memref<32x384xbf16, #tpu.memory_space<vmem>>, vector<32x128xbf16>
      %c128_22 = arith.constant 128 : index
      %c0_23 = arith.constant 0 : index
      %32 = vector.load %arg15[%c128_22, %c0_23] : memref<288x384xbf16, #tpu.memory_space<vmem>>, vector<32x128xbf16>
      tpu.vector_store %arg15[%c128_22, %c0_23], %31 {strides = array<i32>} : memref<288x384xbf16, #tpu.memory_space<vmem>>, vector<32x128xbf16>,
      %c0_24 = arith.constant 0 : index
      %c129 = arith.constant 129 : index
      %33 = vector.load %arg13[%c0_24, %c129] : memref<32x384xbf16, #tpu.memory_space<vmem>>, vector<32x128xbf16>
      %c160 = arith.constant 160 : index
      %c0_25 = arith.constant 0 : index
      %34 = vector.load %arg15[%c160, %c0_25] : memref<288x384xbf16, #tpu.memory_space<vmem>>, vector<32x128xbf16>
      tpu.vector_store %arg15[%c160, %c0_25], %33 {strides = array<i32>} : memref<288x384xbf16, #tpu.memory_space<vmem>>, vector<32x128xbf16>,
      %c0_26 = arith.constant 0 : index
      %c137 = arith.constant 137 : index
      %35 = vector.load %arg13[%c0_26, %c137] : memref<32x384xbf16, #tpu.memory_space<vmem>>, vector<32x128xbf16>
      %c192 = arith.constant 192 : index
      %c0_27 = arith.constant 0 : index
      %36 = vector.load %arg15[%c192, %c0_27] : memref<288x384xbf16, #tpu.memory_space<vmem>>, vector<32x128xbf16>
      tpu.vector_store %arg15[%c192, %c0_27], %35 {strides = array<i32>} : memref<288x384xbf16, #tpu.memory_space<vmem>>, vector<32x128xbf16>,
      %c0_28 = arith.constant 0 : index
      %c138 = arith.constant 138 : index
      %37 = vector.load %arg13[%c0_28, %c138] : memref<32x384xbf16, #tpu.memory_space<vmem>>, vector<32x128xbf16>
      %c224 = arith.constant 224 : index
      %c0_29 = arith.constant 0 : index
      %38 = vector.load %arg15[%c224, %c0_29] : memref<288x384xbf16, #tpu.memory_space<vmem>>, vector<32x128xbf16>
      tpu.vector_store %arg15[%c224, %c0_29], %37 {strides = array<i32>} : memref<288x384xbf16, #tpu.memory_space<vmem>>, vector<32x128xbf16>,
      %c0_30 = arith.constant 0 : index
      %c139 = arith.constant 139 : index
      %39 = vector.load %arg13[%c0_30, %c139] : memref<32x384xbf16, #tpu.memory_space<vmem>>, vector<32x128xbf16>
      %c256 = arith.constant 256 : index
      %c0_31 = arith.constant 0 : index
      %40 = vector.load %arg15[%c256, %c0_31] : memref<288x384xbf16, #tpu.memory_space<vmem>>, vector<32x128xbf16>
      tpu.vector_store %arg15[%c256, %c0_31], %39 {strides = array<i32>} : memref<288x384xbf16, #tpu.memory_space<vmem>>, vector<32x128xbf16>,
      %c0_32 = arith.constant 0 : index
      %c0_33 = arith.constant 0 : index
      %41 = vector.load %arg15[%c0_32, %c0_33] : memref<288x384xbf16, #tpu.memory_space<vmem>>, vector<288x128xbf16>
      %cst = arith.constant dense<0.000000e+00> : vector<32x128xf32>
      %42 = tpu.matmul %14, %41, %cst {dimension_numbers = #tpu.dot_dimension_numbers<[1], [0], [0], [1], [0, 0, 1, 1], [], []>} : vector<32x288xbf16>, vector<288x128xbf16>, vector<32x128xf32> -> vector<32x128xf32>
      %43 = vector.broadcast %21 : vector<32x1xf32> to vector<32x128xf32>
      %44 = arith.addf %42, %43 : vector<32x128xf32>
      %cst_34 = arith.constant 0.000000e+00 : f32
      %45 = vector.broadcast %cst_34 : f32 to vector<32x128xf32>
      %46 = arith.maximumf %44, %45 : vector<32x128xf32>
      %47 = vector.broadcast %0 : vector<1x128xf32> to vector<32x128xf32>
      %48 = arith.mulf %46, %47 : vector<32x128xf32>
      %49 = arith.truncf %48 : vector<32x128xf32> to vector<32x128xbf16>
      %c0_35 = arith.constant 0 : index
      %c128_36 = arith.constant 128 : index
      %50 = vector.load %arg14[%c0_35, %c128_36] : memref<32x384xbf16, #tpu.memory_space<vmem>>, vector<32x128xbf16>
      tpu.vector_store %arg14[%c0_35, %c128_36], %49 {strides = array<i32>} : memref<32x384xbf16, #tpu.memory_space<vmem>>, vector<32x128xbf16>,
      %c0_37 = arith.constant 0 : index
      %c128_38 = arith.constant 128 : index
      %51 = vector.load %arg13[%c0_37, %c128_38] : memref<32x384xbf16, #tpu.memory_space<vmem>>, vector<32x128xbf16>
      %52 = arith.extf %51 : vector<32x128xbf16> to vector<32x128xf32>
      %c0_39 = arith.constant 0 : index
      %c117_40 = arith.constant 117 : index
      %53 = vector.load %arg14[%c0_39, %c117_40] : memref<32x384xbf16, #tpu.memory_space<vmem>>, vector<32x128xbf16>
      %c0_41 = arith.constant 0 : index
      %c0_42 = arith.constant 0 : index
      %54 = vector.load %arg15[%c0_41, %c0_42] : memref<288x384xbf16, #tpu.memory_space<vmem>>, vector<32x128xbf16>
      tpu.vector_store %arg15[%c0_41, %c0_42], %53 {strides = array<i32>} : memref<288x384xbf16, #tpu.memory_space<vmem>>, vector<32x128xbf16>,
      %c0_43 = arith.constant 0 : index
      %c118_44 = arith.constant 118 : index
      %55 = vector.load %arg14[%c0_43, %c118_44] : memref<32x384xbf16, #tpu.memory_space<vmem>>, vector<32x128xbf16>
      %c32_45 = arith.constant 32 : index
      %c0_46 = arith.constant 0 : index
      %56 = vector.load %arg15[%c32_45, %c0_46] : memref<288x384xbf16, #tpu.memory_space<vmem>>, vector<32x128xbf16>
      tpu.vector_store %arg15[%c32_45, %c0_46], %55 {strides = array<i32>} : memref<288x384xbf16, #tpu.memory_space<vmem>>, vector<32x128xbf16>,
      %c0_47 = arith.constant 0 : index
      %c119_48 = arith.constant 119 : index
      %57 = vector.load %arg14[%c0_47, %c119_48] : memref<32x384xbf16, #tpu.memory_space<vmem>>, vector<32x128xbf16>
      %c64_49 = arith.constant 64 : index
      %c0_50 = arith.constant 0 : index
      %58 = vector.load %arg15[%c64_49, %c0_50] : memref<288x384xbf16, #tpu.memory_space<vmem>>, vector<32x128xbf16>
      tpu.vector_store %arg15[%c64_49, %c0_50], %57 {strides = array<i32>} : memref<288x384xbf16, #tpu.memory_space<vmem>>, vector<32x128xbf16>,
      %c0_51 = arith.constant 0 : index
      %c127_52 = arith.constant 127 : index
      %59 = vector.load %arg14[%c0_51, %c127_52] : memref<32x384xbf16, #tpu.memory_space<vmem>>, vector<32x128xbf16>
      %c96_53 = arith.constant 96 : index
      %c0_54 = arith.constant 0 : index
      %60 = vector.load %arg15[%c96_53, %c0_54] : memref<288x384xbf16, #tpu.memory_space<vmem>>, vector<32x128xbf16>
      tpu.vector_store %arg15[%c96_53, %c0_54], %59 {strides = array<i32>} : memref<288x384xbf16, #tpu.memory_space<vmem>>, vector<32x128xbf16>,
      %c0_55 = arith.constant 0 : index
      %c128_56 = arith.constant 128 : index
      %61 = vector.load %arg14[%c0_55, %c128_56] : memref<32x384xbf16, #tpu.memory_space<vmem>>, vector<32x128xbf16>
      %c128_57 = arith.constant 128 : index
      %c0_58 = arith.constant 0 : index
      %62 = vector.load %arg15[%c128_57, %c0_58] : memref<288x384xbf16, #tpu.memory_space<vmem>>, vector<32x128xbf16>
      tpu.vector_store %arg15[%c128_57, %c0_58], %61 {strides = array<i32>} : memref<288x384xbf16, #tpu.memory_space<vmem>>, vector<32x128xbf16>,
      %c0_59 = arith.constant 0 : index
      %c129_60 = arith.constant 129 : index
      %63 = vector.load %arg14[%c0_59, %c129_60] : memref<32x384xbf16, #tpu.memory_space<vmem>>, vector<32x128xbf16>
      %c160_61 = arith.constant 160 : index
      %c0_62 = arith.constant 0 : index
      %64 = vector.load %arg15[%c160_61, %c0_62] : memref<288x384xbf16, #tpu.memory_space<vmem>>, vector<32x128xbf16>
      tpu.vector_store %arg15[%c160_61, %c0_62], %63 {strides = array<i32>} : memref<288x384xbf16, #tpu.memory_space<vmem>>, vector<32x128xbf16>,
      %c0_63 = arith.constant 0 : index
      %c137_64 = arith.constant 137 : index
      %65 = vector.load %arg14[%c0_63, %c137_64] : memref<32x384xbf16, #tpu.memory_space<vmem>>, vector<32x128xbf16>
      %c192_65 = arith.constant 192 : index
      %c0_66 = arith.constant 0 : index
      %66 = vector.load %arg15[%c192_65, %c0_66] : memref<288x384xbf16, #tpu.memory_space<vmem>>, vector<32x128xbf16>
      tpu.vector_store %arg15[%c192_65, %c0_66], %65 {strides = array<i32>} : memref<288x384xbf16, #tpu.memory_space<vmem>>, vector<32x128xbf16>,
      %c0_67 = arith.constant 0 : index
      %c138_68 = arith.constant 138 : index
      %67 = vector.load %arg14[%c0_67, %c138_68] : memref<32x384xbf16, #tpu.memory_space<vmem>>, vector<32x128xbf16>
      %c224_69 = arith.constant 224 : index
      %c0_70 = arith.constant 0 : index
      %68 = vector.load %arg15[%c224_69, %c0_70] : memref<288x384xbf16, #tpu.memory_space<vmem>>, vector<32x128xbf16>
      tpu.vector_store %arg15[%c224_69, %c0_70], %67 {strides = array<i32>} : memref<288x384xbf16, #tpu.memory_space<vmem>>, vector<32x128xbf16>,
      %c0_71 = arith.constant 0 : index
      %c139_72 = arith.constant 139 : index
      %69 = vector.load %arg14[%c0_71, %c139_72] : memref<32x384xbf16, #tpu.memory_space<vmem>>, vector<32x128xbf16>
      %c256_73 = arith.constant 256 : index
      %c0_74 = arith.constant 0 : index
      %70 = vector.load %arg15[%c256_73, %c0_74] : memref<288x384xbf16, #tpu.memory_space<vmem>>, vector<32x128xbf16>
      tpu.vector_store %arg15[%c256_73, %c0_74], %69 {strides = array<i32>} : memref<288x384xbf16, #tpu.memory_space<vmem>>, vector<32x128xbf16>,
      %c0_75 = arith.constant 0 : index
      %c0_76 = arith.constant 0 : index
      %71 = vector.load %arg15[%c0_75, %c0_76] : memref<288x384xbf16, #tpu.memory_space<vmem>>, vector<288x128xbf16>
      %cst_77 = arith.constant dense<0.000000e+00> : vector<32x128xf32>
      %72 = tpu.matmul %17, %71, %cst_77 {dimension_numbers = #tpu.dot_dimension_numbers<[1], [0], [0], [1], [0, 0, 1, 1], [], []>} : vector<32x288xbf16>, vector<288x128xbf16>, vector<32x128xf32> -> vector<32x128xf32>
      %73 = vector.broadcast %22 : vector<32x1xf32> to vector<32x128xf32>
      %74 = arith.addf %72, %73 : vector<32x128xf32>
      %75 = arith.addf %74, %52 : vector<32x128xf32>
      %cst_78 = arith.constant 0.000000e+00 : f32
      %76 = vector.broadcast %cst_78 : f32 to vector<32x128xf32>
      %77 = arith.maximumf %75, %76 : vector<32x128xf32>
      %78 = vector.broadcast %0 : vector<1x128xf32> to vector<32x128xf32>
      %79 = arith.mulf %77, %78 : vector<32x128xf32>
      %80 = arith.truncf %79 : vector<32x128xf32> to vector<32x128xbf16>
      %c0_79 = arith.constant 0 : index
      %c128_80 = arith.constant 128 : index
      %81 = vector.load %arg13[%c0_79, %c128_80] : memref<32x384xbf16, #tpu.memory_space<vmem>>, vector<32x128xbf16>
      tpu.vector_store %arg13[%c0_79, %c128_80], %80 {strides = array<i32>} : memref<32x384xbf16, #tpu.memory_space<vmem>>, vector<32x128xbf16>,
    } else {
    }
    %c8_i32 = arith.constant 8 : i32
    %7 = arith.cmpi eq, %arg1, %c8_i32 : i32
    %8 = arith.extui %7 : i1 to i32
    %c0_i32_4 = arith.constant 0 : i32
    %9 = arith.cmpi ne, %8, %c0_i32_4 : i32
    scf.if %9 {
      %c0_5 = arith.constant 0 : index
      %c0_6 = arith.constant 0 : index
      %10 = vector.load %arg13[%c0_5, %c0_6] : memref<32x384xbf16, #tpu.memory_space<vmem>>, vector<32x384xbf16>
      %c0_7 = arith.constant 0 : index
      %c0_8 = arith.constant 0 : index
      %c0_9 = arith.constant 0 : index
      %11 = vector.load %arg12[%c0_7, %c0_8, %c0_9] : memref<1x32x384xbf16, #tpu.memory_space<vmem>>, vector<1x32x384xbf16>
      %12 = vector.shape_cast %11 : vector<1x32x384xbf16> to vector<32x384xbf16>
      %13 = vector.shape_cast %10 : vector<32x384xbf16> to vector<1x32x384xbf16>
      tpu.vector_store %arg12[%c0_7, %c0_8, %c0_9], %13 {strides = array<i32>} : memref<1x32x384xbf16, #tpu.memory_space<vmem>>, vector<1x32x384xbf16>,
    } else {
    }
    return
  }
  func.func @transform_0(%arg0: i32, %arg1: i32) -> (i32, i32, i32) {
    %c0_i32 = arith.constant 0 : i32
    %c0_i32_0 = arith.constant 0 : i32
    %c0_i32_1 = arith.constant 0 : i32
    return %arg0, %c0_i32, %c0_i32_0 : i32, i32, i32
  }
  func.func @transform_1(%arg0: i32, %arg1: i32) -> (i32, i32) {
    %c0_i32 = arith.constant 0 : i32
    %c0_i32_0 = arith.constant 0 : i32
    %c0_i32_1 = arith.constant 0 : i32
    return %c0_i32, %c0_i32_0 : i32, i32
  }
  func.func @transform_2(%arg0: i32, %arg1: i32) -> (i32, i32) {
    %c0_i32 = arith.constant 0 : i32
    %c0_i32_0 = arith.constant 0 : i32
    %c0_i32_1 = arith.constant 0 : i32
    return %c0_i32, %c0_i32_0 : i32, i32
  }
  func.func @transform_3(%arg0: i32, %arg1: i32) -> (i32, i32) {
    %c0_i32 = arith.constant 0 : i32
    %c0_i32_0 = arith.constant 0 : i32
    %c0_i32_1 = arith.constant 0 : i32
    return %c0_i32, %c0_i32_0 : i32, i32
  }
  func.func @transform_4(%arg0: i32, %arg1: i32) -> (i32, i32) {
    %c0_i32 = arith.constant 0 : i32
    %c0_i32_0 = arith.constant 0 : i32
    %c0_i32_1 = arith.constant 0 : i32
    return %c0_i32, %c0_i32_0 : i32, i32
  }
  func.func @transform_5(%arg0: i32, %arg1: i32) -> (i32, i32) {
    %c0_i32 = arith.constant 0 : i32
    %c0_i32_0 = arith.constant 0 : i32
    %c0_i32_1 = arith.constant 0 : i32
    return %c0_i32, %c0_i32_0 : i32, i32
  }
  func.func @transform_6(%arg0: i32, %arg1: i32) -> (i32, i32, i32) {
    %c0_i32 = arith.constant 0 : i32
    %c0_i32_0 = arith.constant 0 : i32
    %c0_i32_1 = arith.constant 0 : i32
    %c0_i32_2 = arith.constant 0 : i32
    return %c0_i32, %c0_i32_0, %c0_i32_1 : i32, i32, i32
  }
  func.func @transform_7(%arg0: i32, %arg1: i32) -> (i32, i32, i32) {
    %c0_i32 = arith.constant 0 : i32
    %c0_i32_0 = arith.constant 0 : i32
    %c0_i32_1 = arith.constant 0 : i32
    %c0_i32_2 = arith.constant 0 : i32
    return %c0_i32, %c0_i32_0, %c0_i32_1 : i32, i32, i32
  }
  func.func @transform_8(%arg0: i32, %arg1: i32) -> (i32, i32, i32) {
    %c0_i32 = arith.constant 0 : i32
    %c0_i32_0 = arith.constant 0 : i32
    %c0_i32_1 = arith.constant 0 : i32
    %c0_i32_2 = arith.constant 0 : i32
    return %c0_i32, %c0_i32_0, %c0_i32_1 : i32, i32, i32
  }
  func.func @transform_9(%arg0: i32, %arg1: i32) -> (i32, i32) {
    %c0_i32 = arith.constant 0 : i32
    %c0_i32_0 = arith.constant 0 : i32
    %c0_i32_1 = arith.constant 0 : i32
    return %c0_i32, %c0_i32_0 : i32, i32
  }
  func.func @transform_10(%arg0: i32, %arg1: i32) -> (i32, i32, i32) {
    %c0_i32 = arith.constant 0 : i32
    %c0_i32_0 = arith.constant 0 : i32
    %c0_i32_1 = arith.constant 0 : i32
    return %arg0, %c0_i32, %c0_i32_0 : i32, i32, i32
  }
}

module attributes {stable_mosaic.version = 11 : i64} {
  func.func @_stage_head_kernel(%arg0: i32, %arg1: i32, %arg2: memref<1x32x384xbf16, #tpu.memory_space<vmem>>, %arg3: memref<64x288xbf16, #tpu.memory_space<vmem>>, %arg4: memref<64x576xbf16, #tpu.memory_space<vmem>>, %arg5: memref<64x32xbf16, #tpu.memory_space<vmem>>, %arg6: memref<64x2xf32, #tpu.memory_space<vmem>>, %arg7: memref<128x128xbf16, #tpu.memory_space<vmem>>, %arg8: memref<8x64x576xbf16, #tpu.memory_space<vmem>>, %arg9: memref<8x64x576xbf16, #tpu.memory_space<vmem>>, %arg10: memref<8x64x2xf32, #tpu.memory_space<vmem>>, %arg11: memref<1x128xf32, #tpu.memory_space<vmem>>, %arg12: memref<128x128xf32, #tpu.memory_space<vmem>>, %arg13: memref<1x64xf32, #tpu.memory_space<vmem>>, %arg14: memref<1x1xf32, #tpu.memory_space<vmem>>, %arg15: memref<1x8x128xf32, #tpu.memory_space<vmem>>, %arg16: memref<64x384xbf16, #tpu.memory_space<vmem>>, %arg17: memref<64x384xbf16, #tpu.memory_space<vmem>>, %arg18: memref<576x128xbf16, #tpu.memory_space<vmem>>) attributes {dimension_semantics = [#tpu.dimension_semantics<parallel>, #tpu.dimension_semantics<arbitrary>], iteration_bounds = array<i64: 2, 9>, scalar_prefetch = 0 : i64, scratch_operands = 3 : i64, tpu.core_type = #tpu.core_type<tc>, window_params = [{transform_indices = @transform_0, window_bounds = array<i64: 1, 32, 384>}, {pipeline_mode = #tpu.pipeline_mode<synchronous>, transform_indices = @transform_1, window_bounds = array<i64: 64, 288>}, {pipeline_mode = #tpu.pipeline_mode<synchronous>, transform_indices = @transform_2, window_bounds = array<i64: 64, 576>}, {pipeline_mode = #tpu.pipeline_mode<synchronous>, transform_indices = @transform_3, window_bounds = array<i64: 64, 32>}, {pipeline_mode = #tpu.pipeline_mode<synchronous>, transform_indices = @transform_4, window_bounds = array<i64: 64, 2>}, {pipeline_mode = #tpu.pipeline_mode<synchronous>, transform_indices = @transform_5, window_bounds = array<i64: 128, 128>}, {pipeline_mode = #tpu.pipeline_mode<synchronous>, transform_indices = @transform_6, window_bounds = array<i64: 8, 64, 576>}, {pipeline_mode = #tpu.pipeline_mode<synchronous>, transform_indices = @transform_7, window_bounds = array<i64: 8, 64, 576>}, {pipeline_mode = #tpu.pipeline_mode<synchronous>, transform_indices = @transform_8, window_bounds = array<i64: 8, 64, 2>}, {pipeline_mode = #tpu.pipeline_mode<synchronous>, transform_indices = @transform_9, window_bounds = array<i64: 1, 128>}, {pipeline_mode = #tpu.pipeline_mode<synchronous>, transform_indices = @transform_10, window_bounds = array<i64: 128, 128>}, {pipeline_mode = #tpu.pipeline_mode<synchronous>, transform_indices = @transform_11, window_bounds = array<i64: 1, 64>}, {pipeline_mode = #tpu.pipeline_mode<synchronous>, transform_indices = @transform_12, window_bounds = array<i64: 1, 1>}, {transform_indices = @transform_13, window_bounds = array<i64: 1, 8, 128>}]} {
    %c0 = arith.constant 0 : index
    %c0_0 = arith.constant 0 : index
    %0 = vector.load %arg11[%c0, %c0_0] : memref<1x128xf32, #tpu.memory_space<vmem>>, vector<1x128xf32>
    %c0_i32 = arith.constant 0 : i32
    %1 = arith.cmpi eq, %arg1, %c0_i32 : i32
    %2 = arith.extui %1 : i1 to i32
    %c0_i32_1 = arith.constant 0 : i32
    %3 = arith.cmpi ne, %2, %c0_i32_1 : i32
    scf.if %3 {
      %cst = arith.constant 0.000000e+00 : bf16
      %10 = vector.broadcast %cst : bf16 to vector<64x384xbf16>
      %c0_5 = arith.constant 0 : index
      %c0_6 = arith.constant 0 : index
      %11 = vector.load %arg16[%c0_5, %c0_6] : memref<64x384xbf16, #tpu.memory_space<vmem>>, vector<64x384xbf16>
      tpu.vector_store %arg16[%c0_5, %c0_6], %10 {strides = array<i32>} : memref<64x384xbf16, #tpu.memory_space<vmem>>, vector<64x384xbf16>,
      %cst_7 = arith.constant 0.000000e+00 : bf16
      %12 = vector.broadcast %cst_7 : bf16 to vector<64x384xbf16>
      %c0_8 = arith.constant 0 : index
      %c0_9 = arith.constant 0 : index
      %13 = vector.load %arg17[%c0_8, %c0_9] : memref<64x384xbf16, #tpu.memory_space<vmem>>, vector<64x384xbf16>
      tpu.vector_store %arg17[%c0_8, %c0_9], %12 {strides = array<i32>} : memref<64x384xbf16, #tpu.memory_space<vmem>>, vector<64x384xbf16>,
      %c0_10 = arith.constant 0 : index
      %c0_11 = arith.constant 0 : index
      %14 = vector.load %arg3[%c0_10, %c0_11] : memref<64x288xbf16, #tpu.memory_space<vmem>>, vector<64x288xbf16>
      %c0_12 = arith.constant 0 : index
      %c0_13 = arith.constant 0 : index
      %c117 = arith.constant 117 : index
      %15 = vector.load %arg2[%c0_12, %c0_13, %c117] : memref<1x32x384xbf16, #tpu.memory_space<vmem>>, vector<1x32x128xbf16>
      %16 = vector.shape_cast %15 : vector<1x32x128xbf16> to vector<32x128xbf16>
      %c0_14 = arith.constant 0 : index
      %c0_15 = arith.constant 0 : index
      %17 = vector.load %arg18[%c0_14, %c0_15] : memref<576x128xbf16, #tpu.memory_space<vmem>>, vector<32x128xbf16>
      tpu.vector_store %arg18[%c0_14, %c0_15], %16 {strides = array<i32>} : memref<576x128xbf16, #tpu.memory_space<vmem>>, vector<32x128xbf16>,
      %c0_16 = arith.constant 0 : index
      %c0_17 = arith.constant 0 : index
      %c118 = arith.constant 118 : index
      %18 = vector.load %arg2[%c0_16, %c0_17, %c118] : memref<1x32x384xbf16, #tpu.memory_space<vmem>>, vector<1x32x128xbf16>
      %19 = vector.shape_cast %18 : vector<1x32x128xbf16> to vector<32x128xbf16>
      %c32 = arith.constant 32 : index
      %c0_18 = arith.constant 0 : index
      %20 = vector.load %arg18[%c32, %c0_18] : memref<576x128xbf16, #tpu.memory_space<vmem>>, vector<32x128xbf16>
      tpu.vector_store %arg18[%c32, %c0_18], %19 {strides = array<i32>} : memref<576x128xbf16, #tpu.memory_space<vmem>>, vector<32x128xbf16>,
      %c0_19 = arith.constant 0 : index
      %c0_20 = arith.constant 0 : index
      %c119 = arith.constant 119 : index
      %21 = vector.load %arg2[%c0_19, %c0_20, %c119] : memref<1x32x384xbf16, #tpu.memory_space<vmem>>, vector<1x32x128xbf16>
      %22 = vector.shape_cast %21 : vector<1x32x128xbf16> to vector<32x128xbf16>
      %c64 = arith.constant 64 : index
      %c0_21 = arith.constant 0 : index
      %23 = vector.load %arg18[%c64, %c0_21] : memref<576x128xbf16, #tpu.memory_space<vmem>>, vector<32x128xbf16>
      tpu.vector_store %arg18[%c64, %c0_21], %22 {strides = array<i32>} : memref<576x128xbf16, #tpu.memory_space<vmem>>, vector<32x128xbf16>,
      %c0_22 = arith.constant 0 : index
      %c0_23 = arith.constant 0 : index
      %c127 = arith.constant 127 : index
      %24 = vector.load %arg2[%c0_22, %c0_23, %c127] : memref<1x32x384xbf16, #tpu.memory_space<vmem>>, vector<1x32x128xbf16>
      %25 = vector.shape_cast %24 : vector<1x32x128xbf16> to vector<32x128xbf16>
      %c96 = arith.constant 96 : index
      %c0_24 = arith.constant 0 : index
      %26 = vector.load %arg18[%c96, %c0_24] : memref<576x128xbf16, #tpu.memory_space<vmem>>, vector<32x128xbf16>
      tpu.vector_store %arg18[%c96, %c0_24], %25 {strides = array<i32>} : memref<576x128xbf16, #tpu.memory_space<vmem>>, vector<32x128xbf16>,
      %c0_25 = arith.constant 0 : index
      %c0_26 = arith.constant 0 : index
      %c128 = arith.constant 128 : index
      %27 = vector.load %arg2[%c0_25, %c0_26, %c128] : memref<1x32x384xbf16, #tpu.memory_space<vmem>>, vector<1x32x128xbf16>
      %28 = vector.shape_cast %27 : vector<1x32x128xbf16> to vector<32x128xbf16>
      %c128_27 = arith.constant 128 : index
      %c0_28 = arith.constant 0 : index
      %29 = vector.load %arg18[%c128_27, %c0_28] : memref<576x128xbf16, #tpu.memory_space<vmem>>, vector<32x128xbf16>
      tpu.vector_store %arg18[%c128_27, %c0_28], %28 {strides = array<i32>} : memref<576x128xbf16, #tpu.memory_space<vmem>>, vector<32x128xbf16>,
      %c0_29 = arith.constant 0 : index
      %c0_30 = arith.constant 0 : index
      %c129 = arith.constant 129 : index
      %30 = vector.load %arg2[%c0_29, %c0_30, %c129] : memref<1x32x384xbf16, #tpu.memory_space<vmem>>, vector<1x32x128xbf16>
      %31 = vector.shape_cast %30 : vector<1x32x128xbf16> to vector<32x128xbf16>
      %c160 = arith.constant 160 : index
      %c0_31 = arith.constant 0 : index
      %32 = vector.load %arg18[%c160, %c0_31] : memref<576x128xbf16, #tpu.memory_space<vmem>>, vector<32x128xbf16>
      tpu.vector_store %arg18[%c160, %c0_31], %31 {strides = array<i32>} : memref<576x128xbf16, #tpu.memory_space<vmem>>, vector<32x128xbf16>,
      %c0_32 = arith.constant 0 : index
      %c0_33 = arith.constant 0 : index
      %c137 = arith.constant 137 : index
      %33 = vector.load %arg2[%c0_32, %c0_33, %c137] : memref<1x32x384xbf16, #tpu.memory_space<vmem>>, vector<1x32x128xbf16>
      %34 = vector.shape_cast %33 : vector<1x32x128xbf16> to vector<32x128xbf16>
      %c192 = arith.constant 192 : index
      %c0_34 = arith.constant 0 : index
      %35 = vector.load %arg18[%c192, %c0_34] : memref<576x128xbf16, #tpu.memory_space<vmem>>, vector<32x128xbf16>
      tpu.vector_store %arg18[%c192, %c0_34], %34 {strides = array<i32>} : memref<576x128xbf16, #tpu.memory_space<vmem>>, vector<32x128xbf16>,
      %c0_35 = arith.constant 0 : index
      %c0_36 = arith.constant 0 : index
      %c138 = arith.constant 138 : index
      %36 = vector.load %arg2[%c0_35, %c0_36, %c138] : memref<1x32x384xbf16, #tpu.memory_space<vmem>>, vector<1x32x128xbf16>
      %37 = vector.shape_cast %36 : vector<1x32x128xbf16> to vector<32x128xbf16>
      %c224 = arith.constant 224 : index
      %c0_37 = arith.constant 0 : index
      %38 = vector.load %arg18[%c224, %c0_37] : memref<576x128xbf16, #tpu.memory_space<vmem>>, vector<32x128xbf16>
      tpu.vector_store %arg18[%c224, %c0_37], %37 {strides = array<i32>} : memref<576x128xbf16, #tpu.memory_space<vmem>>, vector<32x128xbf16>,
      %c0_38 = arith.constant 0 : index
      %c0_39 = arith.constant 0 : index
      %c139 = arith.constant 139 : index
      %39 = vector.load %arg2[%c0_38, %c0_39, %c139] : memref<1x32x384xbf16, #tpu.memory_space<vmem>>, vector<1x32x128xbf16>
      %40 = vector.shape_cast %39 : vector<1x32x128xbf16> to vector<32x128xbf16>
      %c256 = arith.constant 256 : index
      %c0_40 = arith.constant 0 : index
      %41 = vector.load %arg18[%c256, %c0_40] : memref<576x128xbf16, #tpu.memory_space<vmem>>, vector<32x128xbf16>
      tpu.vector_store %arg18[%c256, %c0_40], %40 {strides = array<i32>} : memref<576x128xbf16, #tpu.memory_space<vmem>>, vector<32x128xbf16>,
      %c0_41 = arith.constant 0 : index
      %c0_42 = arith.constant 0 : index
      %42 = vector.load %arg18[%c0_41, %c0_42] : memref<576x128xbf16, #tpu.memory_space<vmem>>, vector<288x128xbf16>
      %cst_43 = arith.constant dense<0.000000e+00> : vector<64x128xf32>
      %43 = tpu.matmul %14, %42, %cst_43 {dimension_numbers = #tpu.dot_dimension_numbers<[1], [0], [0], [1], [0, 0, 1, 1], [], []>} : vector<64x288xbf16>, vector<288x128xbf16>, vector<64x128xf32> -> vector<64x128xf32>
      %c0_44 = arith.constant 0 : index
      %c0_45 = arith.constant 0 : index
      %44 = vector.load %arg6[%c0_44, %c0_45] : memref<64x2xf32, #tpu.memory_space<vmem>>, vector<64x1xf32>
      %45 = vector.broadcast %44 : vector<64x1xf32> to vector<64x128xf32>
      %46 = arith.addf %43, %45 : vector<64x128xf32>
      %cst_46 = arith.constant 0.000000e+00 : f32
      %47 = vector.broadcast %cst_46 : f32 to vector<64x128xf32>
      %48 = arith.maximumf %46, %47 : vector<64x128xf32>
      %49 = arith.truncf %48 : vector<64x128xf32> to vector<64x128xbf16>
      %c0_47 = arith.constant 0 : index
      %c0_48 = arith.constant 0 : index
      %50 = vector.load %arg7[%c0_47, %c0_48] : memref<128x128xbf16, #tpu.memory_space<vmem>>, vector<128x128xbf16>
      %cst_49 = arith.constant dense<0.000000e+00> : vector<64x128xf32>
      %51 = tpu.matmul %49, %50, %cst_49 {dimension_numbers = #tpu.dot_dimension_numbers<[1], [0], [0], [1], [0, 0, 1, 1], [], []>} : vector<64x128xbf16>, vector<128x128xbf16>, vector<64x128xf32> -> vector<64x128xf32>
      %52 = arith.truncf %51 : vector<64x128xf32> to vector<64x128xbf16>
      %c0_50 = arith.constant 0 : index
      %c128_51 = arith.constant 128 : index
      %53 = vector.load %arg17[%c0_50, %c128_51] : memref<64x384xbf16, #tpu.memory_space<vmem>>, vector<64x128xbf16>
      tpu.vector_store %arg17[%c0_50, %c128_51], %52 {strides = array<i32>} : memref<64x384xbf16, #tpu.memory_space<vmem>>, vector<64x128xbf16>,
      %c0_52 = arith.constant 0 : index
      %c0_53 = arith.constant 0 : index
      %c128_54 = arith.constant 128 : index
      %54 = vector.load %arg2[%c0_52, %c0_53, %c128_54] : memref<1x32x384xbf16, #tpu.memory_space<vmem>>, vector<1x32x128xbf16>
      %55 = vector.shape_cast %54 : vector<1x32x128xbf16> to vector<32x128xbf16>
      %c0_55 = arith.constant 0 : index
      %c0_56 = arith.constant 0 : index
      %56 = vector.load %arg7[%c0_55, %c0_56] : memref<128x128xbf16, #tpu.memory_space<vmem>>, vector<128x128xbf16>
      %cst_57 = arith.constant dense<0.000000e+00> : vector<32x128xf32>
      %57 = tpu.matmul %55, %56, %cst_57 {dimension_numbers = #tpu.dot_dimension_numbers<[1], [0], [0], [1], [0, 0, 1, 1], [], []>} : vector<32x128xbf16>, vector<128x128xbf16>, vector<32x128xf32> -> vector<32x128xf32>
      %c0_58 = arith.constant 0 : index
      %c0_59 = arith.constant 0 : index
      %58 = vector.load %arg5[%c0_58, %c0_59] : memref<64x32xbf16, #tpu.memory_space<vmem>>, vector<64x32xbf16>
      %59 = arith.truncf %57 : vector<32x128xf32> to vector<32x128xbf16>
      %cst_60 = arith.constant dense<0.000000e+00> : vector<64x128xf32>
      %60 = tpu.matmul %58, %59, %cst_60 {dimension_numbers = #tpu.dot_dimension_numbers<[1], [0], [0], [1], [0, 0, 1, 1], [], []>} : vector<64x32xbf16>, vector<32x128xbf16>, vector<64x128xf32> -> vector<64x128xf32>
      %c0_61 = arith.constant 0 : index
      %c0_62 = arith.constant 0 : index
      %61 = vector.load %arg4[%c0_61, %c0_62] : memref<64x576xbf16, #tpu.memory_space<vmem>>, vector<64x576xbf16>
      %c0_63 = arith.constant 0 : index
      %c121 = arith.constant 121 : index
      %62 = vector.load %arg17[%c0_63, %c121] : memref<64x384xbf16, #tpu.memory_space<vmem>>, vector<64x128xbf16>
      %c0_64 = arith.constant 0 : index
      %c0_65 = arith.constant 0 : index
      %63 = vector.load %arg18[%c0_64, %c0_65] : memref<576x128xbf16, #tpu.memory_space<vmem>>, vector<64x128xbf16>
      tpu.vector_store %arg18[%c0_64, %c0_65], %62 {strides = array<i32>} : memref<576x128xbf16, #tpu.memory_space<vmem>>, vector<64x128xbf16>,
      %c0_66 = arith.constant 0 : index
      %c122 = arith.constant 122 : index
      %64 = vector.load %arg17[%c0_66, %c122] : memref<64x384xbf16, #tpu.memory_space<vmem>>, vector<64x128xbf16>
      %c64_67 = arith.constant 64 : index
      %c0_68 = arith.constant 0 : index
      %65 = vector.load %arg18[%c64_67, %c0_68] : memref<576x128xbf16, #tpu.memory_space<vmem>>, vector<64x128xbf16>
      tpu.vector_store %arg18[%c64_67, %c0_68], %64 {strides = array<i32>} : memref<576x128xbf16, #tpu.memory_space<vmem>>, vector<64x128xbf16>,
      %c0_69 = arith.constant 0 : index
      %c123 = arith.constant 123 : index
      %66 = vector.load %arg17[%c0_69, %c123] : memref<64x384xbf16, #tpu.memory_space<vmem>>, vector<64x128xbf16>
      %c128_70 = arith.constant 128 : index
      %c0_71 = arith.constant 0 : index
      %67 = vector.load %arg18[%c128_70, %c0_71] : memref<576x128xbf16, #tpu.memory_space<vmem>>, vector<64x128xbf16>
      tpu.vector_store %arg18[%c128_70, %c0_71], %66 {strides = array<i32>} : memref<576x128xbf16, #tpu.memory_space<vmem>>, vector<64x128xbf16>,
      %c0_72 = arith.constant 0 : index
      %c127_73 = arith.constant 127 : index
      %68 = vector.load %arg17[%c0_72, %c127_73] : memref<64x384xbf16, #tpu.memory_space<vmem>>, vector<64x128xbf16>
      %c192_74 = arith.constant 192 : index
      %c0_75 = arith.constant 0 : index
      %69 = vector.load %arg18[%c192_74, %c0_75] : memref<576x128xbf16, #tpu.memory_space<vmem>>, vector<64x128xbf16>
      tpu.vector_store %arg18[%c192_74, %c0_75], %68 {strides = array<i32>} : memref<576x128xbf16, #tpu.memory_space<vmem>>, vector<64x128xbf16>,
      %c0_76 = arith.constant 0 : index
      %c128_77 = arith.constant 128 : index
      %70 = vector.load %arg17[%c0_76, %c128_77] : memref<64x384xbf16, #tpu.memory_space<vmem>>, vector<64x128xbf16>
      %c256_78 = arith.constant 256 : index
      %c0_79 = arith.constant 0 : index
      %71 = vector.load %arg18[%c256_78, %c0_79] : memref<576x128xbf16, #tpu.memory_space<vmem>>, vector<64x128xbf16>
      tpu.vector_store %arg18[%c256_78, %c0_79], %70 {strides = array<i32>} : memref<576x128xbf16, #tpu.memory_space<vmem>>, vector<64x128xbf16>,
      %c0_80 = arith.constant 0 : index
      %c129_81 = arith.constant 129 : index
      %72 = vector.load %arg17[%c0_80, %c129_81] : memref<64x384xbf16, #tpu.memory_space<vmem>>, vector<64x128xbf16>
      %c320 = arith.constant 320 : index
      %c0_82 = arith.constant 0 : index
      %73 = vector.load %arg18[%c320, %c0_82] : memref<576x128xbf16, #tpu.memory_space<vmem>>, vector<64x128xbf16>
      tpu.vector_store %arg18[%c320, %c0_82], %72 {strides = array<i32>} : memref<576x128xbf16, #tpu.memory_space<vmem>>, vector<64x128xbf16>,
      %c0_83 = arith.constant 0 : index
      %c133 = arith.constant 133 : index
      %74 = vector.load %arg17[%c0_83, %c133] : memref<64x384xbf16, #tpu.memory_space<vmem>>, vector<64x128xbf16>
      %c384 = arith.constant 384 : index
      %c0_84 = arith.constant 0 : index
      %75 = vector.load %arg18[%c384, %c0_84] : memref<576x128xbf16, #tpu.memory_space<vmem>>, vector<64x128xbf16>
      tpu.vector_store %arg18[%c384, %c0_84], %74 {strides = array<i32>} : memref<576x128xbf16, #tpu.memory_space<vmem>>, vector<64x128xbf16>,
      %c0_85 = arith.constant 0 : index
      %c134 = arith.constant 134 : index
      %76 = vector.load %arg17[%c0_85, %c134] : memref<64x384xbf16, #tpu.memory_space<vmem>>, vector<64x128xbf16>
      %c448 = arith.constant 448 : index
      %c0_86 = arith.constant 0 : index
      %77 = vector.load %arg18[%c448, %c0_86] : memref<576x128xbf16, #tpu.memory_space<vmem>>, vector<64x128xbf16>
      tpu.vector_store %arg18[%c448, %c0_86], %76 {strides = array<i32>} : memref<576x128xbf16, #tpu.memory_space<vmem>>, vector<64x128xbf16>,
      %c0_87 = arith.constant 0 : index
      %c135 = arith.constant 135 : index
      %78 = vector.load %arg17[%c0_87, %c135] : memref<64x384xbf16, #tpu.memory_space<vmem>>, vector<64x128xbf16>
      %c512 = arith.constant 512 : index
      %c0_88 = arith.constant 0 : index
      %79 = vector.load %arg18[%c512, %c0_88] : memref<576x128xbf16, #tpu.memory_space<vmem>>, vector<64x128xbf16>
      tpu.vector_store %arg18[%c512, %c0_88], %78 {strides = array<i32>} : memref<576x128xbf16, #tpu.memory_space<vmem>>, vector<64x128xbf16>,
      %c0_89 = arith.constant 0 : index
      %c0_90 = arith.constant 0 : index
      %80 = vector.load %arg18[%c0_89, %c0_90] : memref<576x128xbf16, #tpu.memory_space<vmem>>, vector<576x128xbf16>
      %cst_91 = arith.constant dense<0.000000e+00> : vector<64x128xf32>
      %81 = tpu.matmul %61, %80, %cst_91 {dimension_numbers = #tpu.dot_dimension_numbers<[1], [0], [0], [1], [0, 0, 1, 1], [], []>} : vector<64x576xbf16>, vector<576x128xbf16>, vector<64x128xf32> -> vector<64x128xf32>
      %c0_92 = arith.constant 0 : index
      %c1 = arith.constant 1 : index
      %82 = vector.load %arg6[%c0_92, %c1] : memref<64x2xf32, #tpu.memory_space<vmem>>, vector<64x1xf32>
      %83 = vector.broadcast %82 : vector<64x1xf32> to vector<64x128xf32>
      %84 = arith.addf %81, %83 : vector<64x128xf32>
      %85 = arith.addf %84, %60 : vector<64x128xf32>
      %cst_93 = arith.constant 0.000000e+00 : f32
      %86 = vector.broadcast %cst_93 : f32 to vector<64x128xf32>
      %87 = arith.maximumf %85, %86 : vector<64x128xf32>
      %88 = vector.broadcast %0 : vector<1x128xf32> to vector<64x128xf32>
      %89 = arith.mulf %87, %88 : vector<64x128xf32>
      %90 = arith.truncf %89 : vector<64x128xf32> to vector<64x128xbf16>
      %c0_94 = arith.constant 0 : index
      %c128_95 = arith.constant 128 : index
      %91 = vector.load %arg16[%c0_94, %c128_95] : memref<64x384xbf16, #tpu.memory_space<vmem>>, vector<64x128xbf16>
      tpu.vector_store %arg16[%c0_94, %c128_95], %90 {strides = array<i32>} : memref<64x384xbf16, #tpu.memory_space<vmem>>, vector<64x128xbf16>,
    } else {
    }
    %c0_i32_2 = arith.constant 0 : i32
    %4 = arith.cmpi sgt, %arg1, %c0_i32_2 : i32
    %5 = arith.extui %4 : i1 to i32
    %c0_i32_3 = arith.constant 0 : i32
    %6 = arith.cmpi ne, %5, %c0_i32_3 : i32
    scf.if %6 {
      %c1_i32 = arith.constant 1 : i32
      %10 = arith.subi %arg1, %c1_i32 : i32
      %c0_i32_5 = arith.constant 0 : i32
      %11 = arith.maxsi %10, %c0_i32_5 : i32
      %12 = arith.index_cast %11 : i32 to index
      %c0_6 = arith.constant 0 : index
      %c0_7 = arith.constant 0 : index
      %13 = vector.load %arg8[%12, %c0_6, %c0_7] : memref<8x64x576xbf16, #tpu.memory_space<vmem>>, vector<1x64x576xbf16>
      %14 = vector.shape_cast %13 : vector<1x64x576xbf16> to vector<64x576xbf16>
      %15 = arith.index_cast %11 : i32 to index
      %c0_8 = arith.constant 0 : index
      %c0_9 = arith.constant 0 : index
      %16 = vector.load %arg9[%15, %c0_8, %c0_9] : memref<8x64x576xbf16, #tpu.memory_space<vmem>>, vector<1x64x576xbf16>
      %17 = vector.shape_cast %16 : vector<1x64x576xbf16> to vector<64x576xbf16>
      %18 = arith.index_cast %11 : i32 to index
      %c0_10 = arith.constant 0 : index
      %c0_11 = arith.constant 0 : index
      %19 = vector.load %arg10[%18, %c0_10, %c0_11] : memref<8x64x2xf32, #tpu.memory_space<vmem>>, vector<1x64x2xf32>
      %20 = vector.shape_cast %19 : vector<1x64x2xf32> to vector<64x2xf32>
      %21 = vector.extract_strided_slice %20 {offsets = [0, 0], sizes = [64, 1], strides = [1, 1]} : vector<64x2xf32> to vector<64x1xf32>
      %22 = vector.extract_strided_slice %20 {offsets = [0, 1], sizes = [64, 1], strides = [1, 1]} : vector<64x2xf32> to vector<64x1xf32>
      %c0_12 = arith.constant 0 : index
      %c121 = arith.constant 121 : index
      %23 = vector.load %arg16[%c0_12, %c121] : memref<64x384xbf16, #tpu.memory_space<vmem>>, vector<64x128xbf16>
      %c0_13 = arith.constant 0 : index
      %c0_14 = arith.constant 0 : index
      %24 = vector.load %arg18[%c0_13, %c0_14] : memref<576x128xbf16, #tpu.memory_space<vmem>>, vector<64x128xbf16>
      tpu.vector_store %arg18[%c0_13, %c0_14], %23 {strides = array<i32>} : memref<576x128xbf16, #tpu.memory_space<vmem>>, vector<64x128xbf16>,
      %c0_15 = arith.constant 0 : index
      %c122 = arith.constant 122 : index
      %25 = vector.load %arg16[%c0_15, %c122] : memref<64x384xbf16, #tpu.memory_space<vmem>>, vector<64x128xbf16>
      %c64 = arith.constant 64 : index
      %c0_16 = arith.constant 0 : index
      %26 = vector.load %arg18[%c64, %c0_16] : memref<576x128xbf16, #tpu.memory_space<vmem>>, vector<64x128xbf16>
      tpu.vector_store %arg18[%c64, %c0_16], %25 {strides = array<i32>} : memref<576x128xbf16, #tpu.memory_space<vmem>>, vector<64x128xbf16>,
      %c0_17 = arith.constant 0 : index
      %c123 = arith.constant 123 : index
      %27 = vector.load %arg16[%c0_17, %c123] : memref<64x384xbf16, #tpu.memory_space<vmem>>, vector<64x128xbf16>
      %c128 = arith.constant 128 : index
      %c0_18 = arith.constant 0 : index
      %28 = vector.load %arg18[%c128, %c0_18] : memref<576x128xbf16, #tpu.memory_space<vmem>>, vector<64x128xbf16>
      tpu.vector_store %arg18[%c128, %c0_18], %27 {strides = array<i32>} : memref<576x128xbf16, #tpu.memory_space<vmem>>, vector<64x128xbf16>,
      %c0_19 = arith.constant 0 : index
      %c127 = arith.constant 127 : index
      %29 = vector.load %arg16[%c0_19, %c127] : memref<64x384xbf16, #tpu.memory_space<vmem>>, vector<64x128xbf16>
      %c192 = arith.constant 192 : index
      %c0_20 = arith.constant 0 : index
      %30 = vector.load %arg18[%c192, %c0_20] : memref<576x128xbf16, #tpu.memory_space<vmem>>, vector<64x128xbf16>
      tpu.vector_store %arg18[%c192, %c0_20], %29 {strides = array<i32>} : memref<576x128xbf16, #tpu.memory_space<vmem>>, vector<64x128xbf16>,
      %c0_21 = arith.constant 0 : index
      %c128_22 = arith.constant 128 : index
      %31 = vector.load %arg16[%c0_21, %c128_22] : memref<64x384xbf16, #tpu.memory_space<vmem>>, vector<64x128xbf16>
      %c256 = arith.constant 256 : index
      %c0_23 = arith.constant 0 : index
      %32 = vector.load %arg18[%c256, %c0_23] : memref<576x128xbf16, #tpu.memory_space<vmem>>, vector<64x128xbf16>
      tpu.vector_store %arg18[%c256, %c0_23], %31 {strides = array<i32>} : memref<576x128xbf16, #tpu.memory_space<vmem>>, vector<64x128xbf16>,
      %c0_24 = arith.constant 0 : index
      %c129 = arith.constant 129 : index
      %33 = vector.load %arg16[%c0_24, %c129] : memref<64x384xbf16, #tpu.memory_space<vmem>>, vector<64x128xbf16>
      %c320 = arith.constant 320 : index
      %c0_25 = arith.constant 0 : index
      %34 = vector.load %arg18[%c320, %c0_25] : memref<576x128xbf16, #tpu.memory_space<vmem>>, vector<64x128xbf16>
      tpu.vector_store %arg18[%c320, %c0_25], %33 {strides = array<i32>} : memref<576x128xbf16, #tpu.memory_space<vmem>>, vector<64x128xbf16>,
      %c0_26 = arith.constant 0 : index
      %c133 = arith.constant 133 : index
      %35 = vector.load %arg16[%c0_26, %c133] : memref<64x384xbf16, #tpu.memory_space<vmem>>, vector<64x128xbf16>
      %c384 = arith.constant 384 : index
      %c0_27 = arith.constant 0 : index
      %36 = vector.load %arg18[%c384, %c0_27] : memref<576x128xbf16, #tpu.memory_space<vmem>>, vector<64x128xbf16>
      tpu.vector_store %arg18[%c384, %c0_27], %35 {strides = array<i32>} : memref<576x128xbf16, #tpu.memory_space<vmem>>, vector<64x128xbf16>,
      %c0_28 = arith.constant 0 : index
      %c134 = arith.constant 134 : index
      %37 = vector.load %arg16[%c0_28, %c134] : memref<64x384xbf16, #tpu.memory_space<vmem>>, vector<64x128xbf16>
      %c448 = arith.constant 448 : index
      %c0_29 = arith.constant 0 : index
      %38 = vector.load %arg18[%c448, %c0_29] : memref<576x128xbf16, #tpu.memory_space<vmem>>, vector<64x128xbf16>
      tpu.vector_store %arg18[%c448, %c0_29], %37 {strides = array<i32>} : memref<576x128xbf16, #tpu.memory_space<vmem>>, vector<64x128xbf16>,
      %c0_30 = arith.constant 0 : index
      %c135 = arith.constant 135 : index
      %39 = vector.load %arg16[%c0_30, %c135] : memref<64x384xbf16, #tpu.memory_space<vmem>>, vector<64x128xbf16>
      %c512 = arith.constant 512 : index
      %c0_31 = arith.constant 0 : index
      %40 = vector.load %arg18[%c512, %c0_31] : memref<576x128xbf16, #tpu.memory_space<vmem>>, vector<64x128xbf16>
      tpu.vector_store %arg18[%c512, %c0_31], %39 {strides = array<i32>} : memref<576x128xbf16, #tpu.memory_space<vmem>>, vector<64x128xbf16>,
      %c0_32 = arith.constant 0 : index
      %c0_33 = arith.constant 0 : index
      %41 = vector.load %arg18[%c0_32, %c0_33] : memref<576x128xbf16, #tpu.memory_space<vmem>>, vector<576x128xbf16>
      %cst = arith.constant dense<0.000000e+00> : vector<64x128xf32>
      %42 = tpu.matmul %14, %41, %cst {dimension_numbers = #tpu.dot_dimension_numbers<[1], [0], [0], [1], [0, 0, 1, 1], [], []>} : vector<64x576xbf16>, vector<576x128xbf16>, vector<64x128xf32> -> vector<64x128xf32>
      %43 = vector.broadcast %21 : vector<64x1xf32> to vector<64x128xf32>
      %44 = arith.addf %42, %43 : vector<64x128xf32>
      %cst_34 = arith.constant 0.000000e+00 : f32
      %45 = vector.broadcast %cst_34 : f32 to vector<64x128xf32>
      %46 = arith.maximumf %44, %45 : vector<64x128xf32>
      %47 = vector.broadcast %0 : vector<1x128xf32> to vector<64x128xf32>
      %48 = arith.mulf %46, %47 : vector<64x128xf32>
      %49 = arith.truncf %48 : vector<64x128xf32> to vector<64x128xbf16>
      %c0_35 = arith.constant 0 : index
      %c128_36 = arith.constant 128 : index
      %50 = vector.load %arg17[%c0_35, %c128_36] : memref<64x384xbf16, #tpu.memory_space<vmem>>, vector<64x128xbf16>
      tpu.vector_store %arg17[%c0_35, %c128_36], %49 {strides = array<i32>} : memref<64x384xbf16, #tpu.memory_space<vmem>>, vector<64x128xbf16>,
      %c0_37 = arith.constant 0 : index
      %c128_38 = arith.constant 128 : index
      %51 = vector.load %arg16[%c0_37, %c128_38] : memref<64x384xbf16, #tpu.memory_space<vmem>>, vector<64x128xbf16>
      %52 = arith.extf %51 : vector<64x128xbf16> to vector<64x128xf32>
      %c0_39 = arith.constant 0 : index
      %c121_40 = arith.constant 121 : index
      %53 = vector.load %arg17[%c0_39, %c121_40] : memref<64x384xbf16, #tpu.memory_space<vmem>>, vector<64x128xbf16>
      %c0_41 = arith.constant 0 : index
      %c0_42 = arith.constant 0 : index
      %54 = vector.load %arg18[%c0_41, %c0_42] : memref<576x128xbf16, #tpu.memory_space<vmem>>, vector<64x128xbf16>
      tpu.vector_store %arg18[%c0_41, %c0_42], %53 {strides = array<i32>} : memref<576x128xbf16, #tpu.memory_space<vmem>>, vector<64x128xbf16>,
      %c0_43 = arith.constant 0 : index
      %c122_44 = arith.constant 122 : index
      %55 = vector.load %arg17[%c0_43, %c122_44] : memref<64x384xbf16, #tpu.memory_space<vmem>>, vector<64x128xbf16>
      %c64_45 = arith.constant 64 : index
      %c0_46 = arith.constant 0 : index
      %56 = vector.load %arg18[%c64_45, %c0_46] : memref<576x128xbf16, #tpu.memory_space<vmem>>, vector<64x128xbf16>
      tpu.vector_store %arg18[%c64_45, %c0_46], %55 {strides = array<i32>} : memref<576x128xbf16, #tpu.memory_space<vmem>>, vector<64x128xbf16>,
      %c0_47 = arith.constant 0 : index
      %c123_48 = arith.constant 123 : index
      %57 = vector.load %arg17[%c0_47, %c123_48] : memref<64x384xbf16, #tpu.memory_space<vmem>>, vector<64x128xbf16>
      %c128_49 = arith.constant 128 : index
      %c0_50 = arith.constant 0 : index
      %58 = vector.load %arg18[%c128_49, %c0_50] : memref<576x128xbf16, #tpu.memory_space<vmem>>, vector<64x128xbf16>
      tpu.vector_store %arg18[%c128_49, %c0_50], %57 {strides = array<i32>} : memref<576x128xbf16, #tpu.memory_space<vmem>>, vector<64x128xbf16>,
      %c0_51 = arith.constant 0 : index
      %c127_52 = arith.constant 127 : index
      %59 = vector.load %arg17[%c0_51, %c127_52] : memref<64x384xbf16, #tpu.memory_space<vmem>>, vector<64x128xbf16>
      %c192_53 = arith.constant 192 : index
      %c0_54 = arith.constant 0 : index
      %60 = vector.load %arg18[%c192_53, %c0_54] : memref<576x128xbf16, #tpu.memory_space<vmem>>, vector<64x128xbf16>
      tpu.vector_store %arg18[%c192_53, %c0_54], %59 {strides = array<i32>} : memref<576x128xbf16, #tpu.memory_space<vmem>>, vector<64x128xbf16>,
      %c0_55 = arith.constant 0 : index
      %c128_56 = arith.constant 128 : index
      %61 = vector.load %arg17[%c0_55, %c128_56] : memref<64x384xbf16, #tpu.memory_space<vmem>>, vector<64x128xbf16>
      %c256_57 = arith.constant 256 : index
      %c0_58 = arith.constant 0 : index
      %62 = vector.load %arg18[%c256_57, %c0_58] : memref<576x128xbf16, #tpu.memory_space<vmem>>, vector<64x128xbf16>
      tpu.vector_store %arg18[%c256_57, %c0_58], %61 {strides = array<i32>} : memref<576x128xbf16, #tpu.memory_space<vmem>>, vector<64x128xbf16>,
      %c0_59 = arith.constant 0 : index
      %c129_60 = arith.constant 129 : index
      %63 = vector.load %arg17[%c0_59, %c129_60] : memref<64x384xbf16, #tpu.memory_space<vmem>>, vector<64x128xbf16>
      %c320_61 = arith.constant 320 : index
      %c0_62 = arith.constant 0 : index
      %64 = vector.load %arg18[%c320_61, %c0_62] : memref<576x128xbf16, #tpu.memory_space<vmem>>, vector<64x128xbf16>
      tpu.vector_store %arg18[%c320_61, %c0_62], %63 {strides = array<i32>} : memref<576x128xbf16, #tpu.memory_space<vmem>>, vector<64x128xbf16>,
      %c0_63 = arith.constant 0 : index
      %c133_64 = arith.constant 133 : index
      %65 = vector.load %arg17[%c0_63, %c133_64] : memref<64x384xbf16, #tpu.memory_space<vmem>>, vector<64x128xbf16>
      %c384_65 = arith.constant 384 : index
      %c0_66 = arith.constant 0 : index
      %66 = vector.load %arg18[%c384_65, %c0_66] : memref<576x128xbf16, #tpu.memory_space<vmem>>, vector<64x128xbf16>
      tpu.vector_store %arg18[%c384_65, %c0_66], %65 {strides = array<i32>} : memref<576x128xbf16, #tpu.memory_space<vmem>>, vector<64x128xbf16>,
      %c0_67 = arith.constant 0 : index
      %c134_68 = arith.constant 134 : index
      %67 = vector.load %arg17[%c0_67, %c134_68] : memref<64x384xbf16, #tpu.memory_space<vmem>>, vector<64x128xbf16>
      %c448_69 = arith.constant 448 : index
      %c0_70 = arith.constant 0 : index
      %68 = vector.load %arg18[%c448_69, %c0_70] : memref<576x128xbf16, #tpu.memory_space<vmem>>, vector<64x128xbf16>
      tpu.vector_store %arg18[%c448_69, %c0_70], %67 {strides = array<i32>} : memref<576x128xbf16, #tpu.memory_space<vmem>>, vector<64x128xbf16>,
      %c0_71 = arith.constant 0 : index
      %c135_72 = arith.constant 135 : index
      %69 = vector.load %arg17[%c0_71, %c135_72] : memref<64x384xbf16, #tpu.memory_space<vmem>>, vector<64x128xbf16>
      %c512_73 = arith.constant 512 : index
      %c0_74 = arith.constant 0 : index
      %70 = vector.load %arg18[%c512_73, %c0_74] : memref<576x128xbf16, #tpu.memory_space<vmem>>, vector<64x128xbf16>
      tpu.vector_store %arg18[%c512_73, %c0_74], %69 {strides = array<i32>} : memref<576x128xbf16, #tpu.memory_space<vmem>>, vector<64x128xbf16>,
      %c0_75 = arith.constant 0 : index
      %c0_76 = arith.constant 0 : index
      %71 = vector.load %arg18[%c0_75, %c0_76] : memref<576x128xbf16, #tpu.memory_space<vmem>>, vector<576x128xbf16>
      %cst_77 = arith.constant dense<0.000000e+00> : vector<64x128xf32>
      %72 = tpu.matmul %17, %71, %cst_77 {dimension_numbers = #tpu.dot_dimension_numbers<[1], [0], [0], [1], [0, 0, 1, 1], [], []>} : vector<64x576xbf16>, vector<576x128xbf16>, vector<64x128xf32> -> vector<64x128xf32>
      %73 = vector.broadcast %22 : vector<64x1xf32> to vector<64x128xf32>
      %74 = arith.addf %72, %73 : vector<64x128xf32>
      %75 = arith.addf %74, %52 : vector<64x128xf32>
      %cst_78 = arith.constant 0.000000e+00 : f32
      %76 = vector.broadcast %cst_78 : f32 to vector<64x128xf32>
      %77 = arith.maximumf %75, %76 : vector<64x128xf32>
      %78 = vector.broadcast %0 : vector<1x128xf32> to vector<64x128xf32>
      %79 = arith.mulf %77, %78 : vector<64x128xf32>
      %80 = arith.truncf %79 : vector<64x128xf32> to vector<64x128xbf16>
      %c0_79 = arith.constant 0 : index
      %c128_80 = arith.constant 128 : index
      %81 = vector.load %arg16[%c0_79, %c128_80] : memref<64x384xbf16, #tpu.memory_space<vmem>>, vector<64x128xbf16>
      tpu.vector_store %arg16[%c0_79, %c128_80], %80 {strides = array<i32>} : memref<64x384xbf16, #tpu.memory_space<vmem>>, vector<64x128xbf16>,
    } else {
    }
    %c8_i32 = arith.constant 8 : i32
    %7 = arith.cmpi eq, %arg1, %c8_i32 : i32
    %8 = arith.extui %7 : i1 to i32
    %c0_i32_4 = arith.constant 0 : i32
    %9 = arith.cmpi ne, %8, %c0_i32_4 : i32
    scf.if %9 {
      %c0_5 = arith.constant 0 : index
      %c128 = arith.constant 128 : index
      %10 = vector.load %arg16[%c0_5, %c128] : memref<64x384xbf16, #tpu.memory_space<vmem>>, vector<64x128xbf16>
      %11 = arith.extf %10 : vector<64x128xbf16> to vector<64x128xf32>
      %c0_6 = arith.constant 0 : index
      %c0_7 = arith.constant 0 : index
      %12 = vector.load %arg12[%c0_6, %c0_7] : memref<128x128xf32, #tpu.memory_space<vmem>>, vector<128x128xf32>
      %cst = arith.constant dense<0.000000e+00> : vector<64x128xf32>
      %13 = tpu.matmul %11, %12, %cst {dimension_numbers = #tpu.dot_dimension_numbers<[1], [0], [0], [1], [0, 0, 1, 1], [], []>} : vector<64x128xf32>, vector<128x128xf32>, vector<64x128xf32> -> vector<64x128xf32>
      %c0_8 = arith.constant 0 : index
      %c0_9 = arith.constant 0 : index
      %14 = vector.load %arg13[%c0_8, %c0_9] : memref<1x64xf32, #tpu.memory_space<vmem>>, vector<1x64xf32>
      %cst_10 = arith.constant dense<0.000000e+00> : vector<1x128xf32>
      %15 = tpu.matmul %14, %13, %cst_10 {dimension_numbers = #tpu.dot_dimension_numbers<[1], [0], [0], [1], [0, 0, 1, 1], [], []>} : vector<1x64xf32>, vector<64x128xf32>, vector<1x128xf32> -> vector<1x128xf32>
      %c0_11 = arith.constant 0 : index
      %c0_12 = arith.constant 0 : index
      %16 = vector.load %arg14[%c0_11, %c0_12] : memref<1x1xf32, #tpu.memory_space<vmem>>, vector<1x1xf32>
      %17 = vector.broadcast %16 : vector<1x1xf32> to vector<1x128xf32>
      %18 = arith.addf %15, %17 : vector<1x128xf32>
      %19 = vector.shape_cast %18 : vector<1x128xf32> to vector<1x128xf32>
      %20 = vector.broadcast %19 : vector<1x128xf32> to vector<8x128xf32>
      %c0_13 = arith.constant 0 : index
      %c0_14 = arith.constant 0 : index
      %c0_15 = arith.constant 0 : index
      %21 = vector.load %arg15[%c0_13, %c0_14, %c0_15] : memref<1x8x128xf32, #tpu.memory_space<vmem>>, vector<1x8x128xf32>
      %22 = vector.shape_cast %21 : vector<1x8x128xf32> to vector<8x128xf32>
      %23 = vector.shape_cast %20 : vector<8x128xf32> to vector<1x8x128xf32>
      tpu.vector_store %arg15[%c0_13, %c0_14, %c0_15], %23 {strides = array<i32>} : memref<1x8x128xf32, #tpu.memory_space<vmem>>, vector<1x8x128xf32>,
    } else {
    }
    return
  }
  func.func @transform_0(%arg0: i32, %arg1: i32) -> (i32, i32, i32) {
    %c0_i32 = arith.constant 0 : i32
    %c0_i32_0 = arith.constant 0 : i32
    %c0_i32_1 = arith.constant 0 : i32
    return %arg0, %c0_i32, %c0_i32_0 : i32, i32, i32
  }
  func.func @transform_1(%arg0: i32, %arg1: i32) -> (i32, i32) {
    %c0_i32 = arith.constant 0 : i32
    %c0_i32_0 = arith.constant 0 : i32
    %c0_i32_1 = arith.constant 0 : i32
    return %c0_i32, %c0_i32_0 : i32, i32
  }
  func.func @transform_2(%arg0: i32, %arg1: i32) -> (i32, i32) {
    %c0_i32 = arith.constant 0 : i32
    %c0_i32_0 = arith.constant 0 : i32
    %c0_i32_1 = arith.constant 0 : i32
    return %c0_i32, %c0_i32_0 : i32, i32
  }
  func.func @transform_3(%arg0: i32, %arg1: i32) -> (i32, i32) {
    %c0_i32 = arith.constant 0 : i32
    %c0_i32_0 = arith.constant 0 : i32
    %c0_i32_1 = arith.constant 0 : i32
    return %c0_i32, %c0_i32_0 : i32, i32
  }
  func.func @transform_4(%arg0: i32, %arg1: i32) -> (i32, i32) {
    %c0_i32 = arith.constant 0 : i32
    %c0_i32_0 = arith.constant 0 : i32
    %c0_i32_1 = arith.constant 0 : i32
    return %c0_i32, %c0_i32_0 : i32, i32
  }
  func.func @transform_5(%arg0: i32, %arg1: i32) -> (i32, i32) {
    %c0_i32 = arith.constant 0 : i32
    %c0_i32_0 = arith.constant 0 : i32
    %c0_i32_1 = arith.constant 0 : i32
    return %c0_i32, %c0_i32_0 : i32, i32
  }
  func.func @transform_6(%arg0: i32, %arg1: i32) -> (i32, i32, i32) {
    %c0_i32 = arith.constant 0 : i32
    %c0_i32_0 = arith.constant 0 : i32
    %c0_i32_1 = arith.constant 0 : i32
    %c0_i32_2 = arith.constant 0 : i32
    return %c0_i32, %c0_i32_0, %c0_i32_1 : i32, i32, i32
  }
  func.func @transform_7(%arg0: i32, %arg1: i32) -> (i32, i32, i32) {
    %c0_i32 = arith.constant 0 : i32
    %c0_i32_0 = arith.constant 0 : i32
    %c0_i32_1 = arith.constant 0 : i32
    %c0_i32_2 = arith.constant 0 : i32
    return %c0_i32, %c0_i32_0, %c0_i32_1 : i32, i32, i32
  }
  func.func @transform_8(%arg0: i32, %arg1: i32) -> (i32, i32, i32) {
    %c0_i32 = arith.constant 0 : i32
    %c0_i32_0 = arith.constant 0 : i32
    %c0_i32_1 = arith.constant 0 : i32
    %c0_i32_2 = arith.constant 0 : i32
    return %c0_i32, %c0_i32_0, %c0_i32_1 : i32, i32, i32
  }
  func.func @transform_9(%arg0: i32, %arg1: i32) -> (i32, i32) {
    %c0_i32 = arith.constant 0 : i32
    %c0_i32_0 = arith.constant 0 : i32
    %c0_i32_1 = arith.constant 0 : i32
    return %c0_i32, %c0_i32_0 : i32, i32
  }
  func.func @transform_10(%arg0: i32, %arg1: i32) -> (i32, i32) {
    %c0_i32 = arith.constant 0 : i32
    %c0_i32_0 = arith.constant 0 : i32
    %c0_i32_1 = arith.constant 0 : i32
    return %c0_i32, %c0_i32_0 : i32, i32
  }
  func.func @transform_11(%arg0: i32, %arg1: i32) -> (i32, i32) {
    %c0_i32 = arith.constant 0 : i32
    %c0_i32_0 = arith.constant 0 : i32
    %c0_i32_1 = arith.constant 0 : i32
    return %c0_i32, %c0_i32_0 : i32, i32
  }
  func.func @transform_12(%arg0: i32, %arg1: i32) -> (i32, i32) {
    %c0_i32 = arith.constant 0 : i32
    %c0_i32_0 = arith.constant 0 : i32
    %c0_i32_1 = arith.constant 0 : i32
    return %c0_i32, %c0_i32_0 : i32, i32
  }
  func.func @transform_13(%arg0: i32, %arg1: i32) -> (i32, i32, i32) {
    %c0_i32 = arith.constant 0 : i32
    %c0_i32_0 = arith.constant 0 : i32
    %c0_i32_1 = arith.constant 0 : i32
    return %arg0, %c0_i32, %c0_i32_0 : i32, i32, i32
  }
}

</mosaic_0001>

<llo_original>
// kernel: resnet56_forward.3
$region0: #{resnet56_forward.3}
  #allocation0 [shape = 'u32[]', space=smem, size = 0x4, offset = 0x4, fixed_abs, tag = 'smem constant byte address 0x4 - core index']
  #allocation1 [shape = 'u32[144,128]{1,0:T(1,128)}', space=vmem, size = 0x12000, scoped, tag = 'internal scratch']
  #allocation2 [shape = 'bf16[16,640]{1,0:T(16,128)(2,1)}', space=vmem, size = 0x5000, scoped, tag = 'scratch operand']
  #allocation3 [shape = 'bf16[16,640]{1,0:T(16,128)(2,1)}', space=vmem, size = 0x5000, scoped, tag = 'scratch operand']
  #allocation4 [shape = 'bf16[144,384]{1,0:T(16,128)(2,1)}', space=vmem, size = 0x1b000, scoped, tag = 'scratch operand']
  %s0 = inlined_call_operand.vmem [shape: bf16[2,8,640], index: 0, kind: input, shape index: {}]
  %s1 = inlined_call_operand.hbm [shape: bf16[16,72], index: 1, kind: input, shape index: {}]
  %s2 = inlined_call_operand.vmem [shape: f32[16,1], index: 2, kind: input, shape index: {}]
  %s3 = inlined_call_operand.vmem [shape: bf16[9,16,144], index: 3, kind: input, shape index: {}]
  %s4 = inlined_call_operand.hbm [shape: bf16[9,16,144], index: 4, kind: input, shape index: {}]
  %s5 = inlined_call_operand.vmem [shape: f32[9,16,2], index: 5, kind: input, shape index: {}]
  %s6 = inlined_call_operand.vmem [shape: f32[1,384], index: 6, kind: input, shape index: {}]
  %s7 = inlined_call_operand.vmem [shape: bf16[2,16,640], index: 7, kind: output, shape index: {}]
  %s8 = sld [smem:[#allocation0]]
  $region81: #{resnet56_forward.3} parent=0
    _
  %s10 = ssub.s32 1, %s8
  %s11 = scalar_select 0, %s10, %s8
  $region1: #{resnet56_forward.3} parent=0
    #allocation5 [shape = 'u8[4096]{0}', space=vmem, size = 0x1000, scoped, tag = 'input window, operand 1, single buffered']
    #allocation6 [shape = 's32[2]{0}', space=sflag, size = 0x8, scoped, tag = 'scoped memory for resnet56_forward.3']
    #allocation7 [shape = 'u8[73728]{0}', space=vmem, size = 0x12000, scoped, tag = 'input window, operand 4, single buffered']
    #allocation8 [shape = 's32[1]{0}', space=sflag, size = 0x4, scoped, tag = 'scoped memory for resnet56_forward.3']
    %12 = vsyncpa [#allocation6], 0
    %13 = vsyncpa [#allocation8], 0
    loop: start=0, step=1, limit=22
    $region2: #{resnet56_forward.3} parent=1 // loop_pre_header
      _
    $region3: #{resnet56_forward.3} parent=1 // loop_header
      %s15 = sphi 0, %s19
      %p16 = scmp.ge.s32.totalorder %s15, 22
      %s22 = sphi 0, %s34
      %s23 = sphi 0, %s30
      %s24 = sphi 0, %s22
      %s25 = sphi 0, %s23
      %s26 = sphi 0, %s24
      %s27 = sphi 0, %s25
      %s37 = sphi 0, %s39
      %s40 = sphi 0, %s37
      %s41 = sphi 0, %s40
      %s57 = sphi 0, %s41
      %s61 = sphi 0, %s61
      %s63 = sphi 0, %s61
      %s64 = sphi 0, %s63
      %s78 = sphi 0, %s64
      %s82 = sphi 0, %s82
      %s84 = sphi 0, %s82
      %s85 = sphi 0, %s84
      %s99 = sphi 0, %s85
      %s103 = sphi 0, %s103
      %s105 = sphi 0, %s103
      %s106 = sphi 0, %s105
      %s120 = sphi 0, %s106
      %s124 = sphi 0, %s124
      %s126 = sphi 0, %s124
      %s127 = sphi 0, %s126
      %s141 = sphi 0, %s127
      %s145 = sphi 0, %s145
      %s147 = sphi 0, %s145
      %s148 = sphi 0, %s147
      %s162 = sphi 0, %s148
      %s166 = sphi 0, %s166
      %s168 = sphi 0, %s166
      %s169 = sphi 0, %s168
      %s183 = sphi 0, %s169
      %s189 = sphi 0, %s191
      %s192 = sphi 0, %s189
      %s193 = sphi 0, %s192
      %s209 = sphi 0, %s193
    $region4: #{resnet56_forward.3} parent=1 // loop_header_branch
      %18 = sbr.rel (%p16) target = $region8
    $region5: #{resnet56_forward.3} parent=1 // loop_body
      %s20 = ssub.s32 %s15, 1
      %s21 = ssub.s32 %s15, 2
      %s28 = sadd.s32 1, %s23
      %p29 = scmp.ge.s32.totalorder %s28, 10
      %s30 = scalar_select %p29, 0, %s28
      %s31 = sadd.s32 1, %s22
      %s32 = scalar_select %p29, %s31, %s22
      %p33 = scmp.ge.s32.totalorder %s32, 2
      %s34 = scalar_select %p33, 0, %s32
      %s35 = ssub.s32 %s22, %s34
      %p36 = scmp.eq.s32.totalorder %s35, 0
      %s38 = sadd.s32 %s37, 1
      %s39 = scalar_select %p36, %s37, %s38
      %p42 = pneg %p36
      %p43 = scmp.eq.s32.totalorder %s15, 19
      %p44 = por %p42, %p43
      %p45 = scmp.ne.s32.totalorder %s37, %s40
      %p46 = scmp.eq.s32.totalorder %s15, 0
      %p47 = por %p45, %p46
      %p48 = scmp.ne.s32.totalorder %s37, %s40
      %p49 = scmp.eq.s32.totalorder %s20, 19
      %p50 = por %p48, %p49
      %p51 = scmp.ne.s32.totalorder %s40, %s41
      %p52 = scmp.eq.s32.totalorder %s20, 0
      %p53 = por %p51, %p52
      %p54 = scmp.ne.s32.totalorder %s40, %s41
      %p55 = scmp.eq.s32.totalorder %s21, 19
      %p56 = por %p54, %p55
      %p58 = scmp.ne.s32.totalorder %s41, %s57
      %p59 = scmp.eq.s32.totalorder %s21, 0
      %p60 = por %p58, %p59
      %s62 = sadd.s32 %s61, 1
      %p65 = scmp.eq.s32.totalorder %s15, 19
      %p66 = scmp.ne.s32.totalorder %s61, %s63
      %p67 = scmp.eq.s32.totalorder %s15, 0
      %p68 = por %p66, %p67
      %p69 = scmp.ne.s32.totalorder %s61, %s63
      %p70 = scmp.eq.s32.totalorder %s20, 19
      %p71 = por %p69, %p70
      %p72 = scmp.ne.s32.totalorder %s63, %s64
      %p73 = scmp.eq.s32.totalorder %s20, 0
      %p74 = por %p72, %p73
      %p75 = scmp.ne.s32.totalorder %s63, %s64
      %p76 = scmp.eq.s32.totalorder %s21, 19
      %p77 = por %p75, %p76
      %p79 = scmp.ne.s32.totalorder %s64, %s78
      %p80 = scmp.eq.s32.totalorder %s21, 0
      %p81 = por %p79, %p80
      %s83 = sadd.s32 %s82, 1
      %p86 = scmp.eq.s32.totalorder %s15, 19
      %p87 = scmp.ne.s32.totalorder %s82, %s84
      %p88 = scmp.eq.s32.totalorder %s15, 0
      %p89 = por %p87, %p88
      %p90 = scmp.ne.s32.totalorder %s82, %s84
      %p91 = scmp.eq.s32.totalorder %s20, 19
      %p92 = por %p90, %p91
      %p93 = scmp.ne.s32.totalorder %s84, %s85
      %p94 = scmp.eq.s32.totalorder %s20, 0
      %p95 = por %p93, %p94
      %p96 = scmp.ne.s32.totalorder %s84, %s85
      %p97 = scmp.eq.s32.totalorder %s21, 19
      %p98 = por %p96, %p97
      %p100 = scmp.ne.s32.totalorder %s85, %s99
      %p101 = scmp.eq.s32.totalorder %s21, 0
      %p102 = por %p100, %p101
      %s104 = sadd.s32 %s103, 1
      %p107 = scmp.eq.s32.totalorder %s15, 19
      %p108 = scmp.ne.s32.totalorder %s103, %s105
      %p109 = scmp.eq.s32.totalorder %s15, 0
      %p110 = por %p108, %p109
      %p111 = scmp.ne.s32.totalorder %s103, %s105
      %p112 = scmp.eq.s32.totalorder %s20, 19
      %p113 = por %p111, %p112
      %p114 = scmp.ne.s32.totalorder %s105, %s106
      %p115 = scmp.eq.s32.totalorder %s20, 0
      %p116 = por %p114, %p115
      %p117 = scmp.ne.s32.totalorder %s105, %s106
      %p118 = scmp.eq.s32.totalorder %s21, 19
      %p119 = por %p117, %p118
      %p121 = scmp.ne.s32.totalorder %s106, %s120
      %p122 = scmp.eq.s32.totalorder %s21, 0
      %p123 = por %p121, %p122
      %s125 = sadd.s32 %s124, 1
      %p128 = scmp.eq.s32.totalorder %s15, 19
      %p129 = scmp.ne.s32.totalorder %s124, %s126
      %p130 = scmp.eq.s32.totalorder %s15, 0
      %p131 = por %p129, %p130
      %p132 = scmp.ne.s32.totalorder %s124, %s126
      %p133 = scmp.eq.s32.totalorder %s20, 19
      %p134 = por %p132, %p133
      %p135 = scmp.ne.s32.totalorder %s126, %s127
      %p136 = scmp.eq.s32.totalorder %s20, 0
      %p137 = por %p135, %p136
      %p138 = scmp.ne.s32.totalorder %s126, %s127
      %p139 = scmp.eq.s32.totalorder %s21, 19
      %p140 = por %p138, %p139
      %p142 = scmp.ne.s32.totalorder %s127, %s141
      %p143 = scmp.eq.s32.totalorder %s21, 0
      %p144 = por %p142, %p143
      %s146 = sadd.s32 %s145, 1
      %p149 = scmp.eq.s32.totalorder %s15, 19
      %p150 = scmp.ne.s32.totalorder %s145, %s147
      %p151 = scmp.eq.s32.totalorder %s15, 0
      %p152 = por %p150, %p151
      %p153 = scmp.ne.s32.totalorder %s145, %s147
      %p154 = scmp.eq.s32.totalorder %s20, 19
      %p155 = por %p153, %p154
      %p156 = scmp.ne.s32.totalorder %s147, %s148
      %p157 = scmp.eq.s32.totalorder %s20, 0
      %p158 = por %p156, %p157
      %p159 = scmp.ne.s32.totalorder %s147, %s148
      %p160 = scmp.eq.s32.totalorder %s21, 19
      %p161 = por %p159, %p160
      %p163 = scmp.ne.s32.totalorder %s148, %s162
      %p164 = scmp.eq.s32.totalorder %s21, 0
      %p165 = por %p163, %p164
      %s167 = sadd.s32 %s166, 1
      %p170 = scmp.eq.s32.totalorder %s15, 19
      %p171 = scmp.ne.s32.totalorder %s166, %s168
      %p172 = scmp.eq.s32.totalorder %s15, 0
      %p173 = por %p171, %p172
      %p174 = scmp.ne.s32.totalorder %s166, %s168
      %p175 = scmp.eq.s32.totalorder %s20, 19
      %p176 = por %p174, %p175
      %p177 = scmp.ne.s32.totalorder %s168, %s169
      %p178 = scmp.eq.s32.totalorder %s20, 0
      %p179 = por %p177, %p178
      %p180 = scmp.ne.s32.totalorder %s168, %s169
      %p181 = scmp.eq.s32.totalorder %s21, 19
      %p182 = por %p180, %p181
      %p184 = scmp.ne.s32.totalorder %s169, %s183
      %p185 = scmp.eq.s32.totalorder %s21, 0
      %p186 = por %p184, %p185
      %s187 = ssub.s32 %s22, %s34
      %p188 = scmp.eq.s32.totalorder %s187, 0
      %s190 = sadd.s32 %s189, 1
      %s191 = scalar_select %p188, %s189, %s190
      %p194 = pneg %p188
      %p195 = scmp.eq.s32.totalorder %s15, 19
      %p196 = por %p194, %p195
      %p197 = scmp.ne.s32.totalorder %s189, %s192
      %p198 = scmp.eq.s32.totalorder %s15, 0
      %p199 = por %p197, %p198
      %p200 = scmp.ne.s32.totalorder %s189, %s192
      %p201 = scmp.eq.s32.totalorder %s20, 19
      %p202 = por %p200, %p201
      %p203 = scmp.ne.s32.totalorder %s192, %s193
      %p204 = scmp.eq.s32.totalorder %s20, 0
      %p205 = por %p203, %p204
      %p206 = scmp.ne.s32.totalorder %s192, %s193
      %p207 = scmp.eq.s32.totalorder %s21, 19
      %p208 = por %p206, %p207
      %p210 = scmp.ne.s32.totalorder %s193, %s209
      %p211 = scmp.eq.s32.totalorder %s21, 0
      %p212 = por %p210, %p211
      %p213 = scmp.le.s32.totalorder 1, %s15
      %p214 = scmp.lt.s32.totalorder %s15, 21
      %p215 = pnand %p213, %p214
      %p216 = pneg %p215
      // Predicated region
      $region9: #{resnet56_forward.3} parent=5 // pred_check
        _
      $region10: #{resnet56_forward.3} parent=5 // pred_check_branch
        %218 = sbr.rel (%p215) target = $region12
      $region11: #{resnet56_forward.3} parent=5 // pred_region
        %s219 = ssub.s32 %s15, 1
        // Predicated region
        $region13: #{resnet56_forward.3} parent=11 // pred_check
          %p220 = pneg %p74
        $region14: #{resnet56_forward.3} parent=11 // pred_check_branch
          %222 = sbr.rel (%p220) target = $region16
        $region15: #{resnet56_forward.3} parent=11 // pred_region
          %s224 = ssub.s32 128, 128
          %225 = vsyncadd [#allocation6], %s224
          %s226 = sshll.u32 [#allocation5], 4
          %s227 = int_to_ptr.vmem [resolvable:$true] %s226
          %232 = dma.hbm_to_vmem [thread:$0]  %s1, 128, %s227, [#allocation6], 64, 64, 4
        $region16: #{resnet56_forward.3} parent=11 // pred_fallthru
          _
        // Predicated region
        $region17: #{resnet56_forward.3} parent=11 // pred_check
          %p233 = pneg %p95
        $region18: #{resnet56_forward.3} parent=11 // pred_check_branch
          %235 = sbr.rel (%p233) target = $region20
        $region19: #{resnet56_forward.3} parent=11 // pred_region
          _
        $region20: #{resnet56_forward.3} parent=11 // pred_fallthru
          _
        // Predicated region
        $region21: #{resnet56_forward.3} parent=11 // pred_check
          %p236 = pneg %p116
        $region22: #{resnet56_forward.3} parent=11 // pred_check_branch
          %238 = sbr.rel (%p236) target = $region24
        $region23: #{resnet56_forward.3} parent=11 // pred_region
          _
        $region24: #{resnet56_forward.3} parent=11 // pred_fallthru
          _
        // Predicated region
        $region25: #{resnet56_forward.3} parent=11 // pred_check
          %p239 = pneg %p137
        $region26: #{resnet56_forward.3} parent=11 // pred_check_branch
          %241 = sbr.rel (%p239) target = $region28
        $region27: #{resnet56_forward.3} parent=11 // pred_region
          %s243 = ssub.s32 2304, 2304
          %244 = vsyncadd [#allocation8], %s243
          %s245 = sshll.u32 [#allocation7], 4
          %s246 = int_to_ptr.vmem [resolvable:$true] %s245
          %251 = dma.hbm_to_vmem [thread:$0]  %s4, 2304, %s246, [#allocation8], 128, 128, 8
        $region28: #{resnet56_forward.3} parent=11 // pred_fallthru
          _
        // Predicated region
        $region29: #{resnet56_forward.3} parent=11 // pred_check
          %p252 = pneg %p158
        $region30: #{resnet56_forward.3} parent=11 // pred_check_branch
          %254 = sbr.rel (%p252) target = $region32
        $region31: #{resnet56_forward.3} parent=11 // pred_region
          _
        $region32: #{resnet56_forward.3} parent=11 // pred_fallthru
          _
        // Predicated region
        $region33: #{resnet56_forward.3} parent=11 // pred_check
          %p255 = pneg %p179
        $region34: #{resnet56_forward.3} parent=11 // pred_check_branch
          %257 = sbr.rel (%p255) target = $region36
        $region35: #{resnet56_forward.3} parent=11 // pred_region
          _
        $region36: #{resnet56_forward.3} parent=11 // pred_fallthru
          _
      $region12: #{resnet56_forward.3} parent=5 // pred_fallthru
        _
      %p258 = scmp.lt.s32.totalorder %s15, 20
      // Predicated region
      $region37: #{resnet56_forward.3} parent=5 // pred_check
        %p259 = pneg %p258
      $region38: #{resnet56_forward.3} parent=5 // pred_check_branch
        %261 = sbr.rel (%p259) target = $region40
      $region39: #{resnet56_forward.3} parent=5 // pred_region
        // Predicated region
        $region41: #{resnet56_forward.3} parent=39 // pred_check
          %p262 = pneg %p47
        $region42: #{resnet56_forward.3} parent=39 // pred_check_branch
          %264 = sbr.rel (%p262) target = $region44
        $region43: #{resnet56_forward.3} parent=39 // pred_region
          %p265 = scmp.lt.s32.totalorder %s22, 1
          %s266 = scalar_select %p265, %s22, 1
          %s267 = smul.addr %s266, 5
          %s268 = smul.addr %s267, 4
          %s269 = scalar_lea.vmem %s0, %s268
        $region44: #{resnet56_forward.3} parent=39 // pred_fallthru
          _
      $region40: #{resnet56_forward.3} parent=5 // pred_fallthru
        _
      %p270 = scmp.le.s32.totalorder 1, %s15
      %p271 = scmp.lt.s32.totalorder %s15, 21
      %p272 = pnand %p270, %p271
      %p273 = pneg %p272
      // Predicated region
      $region45: #{resnet56_forward.3} parent=5 // pred_check
        _
      $region46: #{resnet56_forward.3} parent=5 // pred_check_branch
        %275 = sbr.rel (%p272) target = $region48
      $region47: #{resnet56_forward.3} parent=5 // pred_region
        %s276 = ssub.s32 %s15, 1
        // Predicated region
        $region49: #{resnet56_forward.3} parent=47 // pred_check
          %p277 = pneg %p74
        $region50: #{resnet56_forward.3} parent=47 // pred_check_branch
          %279 = sbr.rel (%p277) target = $region52
        $region51: #{resnet56_forward.3} parent=47 // pred_region
          %280 = dma.done [#allocation6], 128
        $region52: #{resnet56_forward.3} parent=47 // pred_fallthru
          _
        // Predicated region
        $region53: #{resnet56_forward.3} parent=47 // pred_check
          %p281 = pneg %p137
        $region54: #{resnet56_forward.3} parent=47 // pred_check_branch
          %283 = sbr.rel (%p281) target = $region56
        $region55: #{resnet56_forward.3} parent=47 // pred_region
          %284 = dma.done [#allocation8], 2304
        $region56: #{resnet56_forward.3} parent=47 // pred_fallthru
          _
        %p285 = scmp.lt.s32.totalorder %s24, 1
        %s286 = scalar_select %p285, %s24, 1
        %s287 = smul.addr %s286, 5
        %s288 = smul.addr %s287, 4
        %s289 = scalar_lea.vmem %s0, %s288
        %p290 = pneg %p53
        %p291 = pneg %p50
        %p292 = pneg %p74
        %p293 = pneg %p71
        %p294 = pneg %p95
        %p295 = pneg %p92
        %p296 = pneg %p116
        %p297 = pneg %p113
        %p298 = pneg %p137
        %p299 = pneg %p134
        %p300 = pneg %p158
        %p301 = pneg %p155
        %p302 = pneg %p179
        %p303 = pneg %p176
        %p304 = pneg %p205
        %p305 = pneg %p202
        %p306 = scmp.lt.s32.totalorder %s24, 1
        %s307 = scalar_select %p306, %s24, 1
        %s308 = smul.addr %s307, 10
        %s309 = smul.addr %s308, 4
        %s310 = scalar_lea.vmem %s7, %s309
        %p311 = scmp.lt.s32.totalorder %s24, 1
        %s312 = scalar_select %p311, %s24, 1
        %s313 = smul.addr %s312, 5
        %s314 = smul.addr %s313, 4
        %s315 = scalar_lea.vmem %s0, %s314
        %p316 = scmp.lt.s32.totalorder %s24, 1
        %s317 = scalar_select %p316, %s24, 1
        %s318 = smul.addr %s317, 10
        %s319 = smul.addr %s318, 4
        %s320 = scalar_lea.vmem %s7, %s319
        %v322 = vld [vmem:[%s6] sm:$0x7]
        %p323 = scmp.eq.s32.totalorder %s25, 0
        // Predicated region
        $region57: #{resnet56_forward.3} parent=47 // pred_check
          %p324 = pneg %p323
        $region58: #{resnet56_forward.3} parent=47 // pred_check_branch
          %326 = sbr.rel (%p324) target = $region60
        $region59: #{resnet56_forward.3} parent=47 // pred_region
          %327 = vst [vmem:[#allocation2] sm:$0xff] 0
          %328 = vst [vmem:[#allocation2 + $0x20] sm:$0xff] 0
          %329 = vst [vmem:[#allocation3] sm:$0xff] 0
          %330 = vst [vmem:[#allocation3 + $0x20] sm:$0xff] 0
          %v331 = vld [vmem:[#allocation5] sm:$0xf]
          %v332 = vld [vmem:[#allocation5 + $0x4] sm:$0xf]
          %v333 = vld [vmem:[%s315] sm:$0xff]
          %v334 = vld [vmem:[%s315 + $0x8] sm:$0xff]
          %v337 = vunpack.c.l.b16 %v333
          %v338 = vunpack.c.h.b16 %v333
          %v339 = vunpack.c.l.b16 %v334
          %v340 = vunpack.c.h.b16 %v334
          %v341 = vpack.c.b16 %v337, %v337
          %v342 = vpack.c.b16 %v338, %v338
          %v343 = vpack.c.b16 %v339, %v339
          %v344 = vpack.c.b16 %v340, %v340
          %345 = vrot.lane.b32.xlu0 %v341, 19
          %v346 = vpop.permute.xlu0 %345
          %347 = vrot.lane.b32.xlu0 %v342, 19
          %v348 = vpop.permute.xlu0 %347
          %349 = vrot.lane.b32.xlu0 %v343, 19
          %v350 = vpop.permute.xlu0 %349
          %351 = vrot.lane.b32.xlu0 %v344, 19
          %v352 = vpop.permute.xlu0 %351
          %vm353 = vcmask 154624
          %v354 = vsel %vm353, %v346, %v348
          %v355 = vsel %vm353, %v348, %v350
          %v356 = vsel %vm353, %v350, %v352
          %360 = vst [vmem:[#allocation4] sm:$0xf] %v354
          %361 = vst [vmem:[#allocation4 + $0x8] sm:$0xf] %v355
          %362 = vst [vmem:[#allocation4 + $0x10] sm:$0xf] %v356
          %v363 = vld [vmem:[%s315] sm:$0xff]
          %v364 = vld [vmem:[%s315 + $0x8] sm:$0xff]
          %v367 = vunpack.c.l.b16 %v363
          %v368 = vunpack.c.h.b16 %v363
          %v369 = vunpack.c.l.b16 %v364
          %v370 = vunpack.c.h.b16 %v364
          %v371 = vpack.c.b16 %v367, %v367
          %v372 = vpack.c.b16 %v368, %v368
          %v373 = vpack.c.b16 %v369, %v369
          %v374 = vpack.c.b16 %v370, %v370
          %375 = vrot.lane.b32.xlu0 %v371, 18
          %v376 = vpop.permute.xlu0 %375
          %377 = vrot.lane.b32.xlu0 %v372, 18
          %v378 = vpop.permute.xlu0 %377
          %379 = vrot.lane.b32.xlu0 %v373, 18
          %v380 = vpop.permute.xlu0 %379
          %381 = vrot.lane.b32.xlu0 %v374, 18
          %v382 = vpop.permute.xlu0 %381
          %vm383 = vcmask 146432
          %v384 = vsel %vm383, %v376, %v378
          %v385 = vsel %vm383, %v378, %v380
          %v386 = vsel %vm383, %v380, %v382
          %390 = vst [vmem:[#allocation4] sm:$0xf0] %v384
          %391 = vst [vmem:[#allocation4 + $0x8] sm:$0xf0] %v385
          %392 = vst [vmem:[#allocation4 + $0x10] sm:$0xf0] %v386
          %v393 = vld [vmem:[%s315] sm:$0xff]
          %v394 = vld [vmem:[%s315 + $0x8] sm:$0xff]
          %v397 = vunpack.c.l.b16 %v393
          %v398 = vunpack.c.h.b16 %v393
          %v399 = vunpack.c.l.b16 %v394
          %v400 = vunpack.c.h.b16 %v394
          %v401 = vpack.c.b16 %v397, %v397
          %v402 = vpack.c.b16 %v398, %v398
          %v403 = vpack.c.b16 %v399, %v399
          %v404 = vpack.c.b16 %v400, %v400
          %405 = vrot.lane.b32.xlu0 %v401, 17
          %v406 = vpop.permute.xlu0 %405
          %407 = vrot.lane.b32.xlu0 %v402, 17
          %v408 = vpop.permute.xlu0 %407
          %409 = vrot.lane.b32.xlu0 %v403, 17
          %v410 = vpop.permute.xlu0 %409
          %411 = vrot.lane.b32.xlu0 %v404, 17
          %v412 = vpop.permute.xlu0 %411
          %vm413 = vcmask 138240
          %v414 = vsel %vm413, %v406, %v408
          %v415 = vsel %vm413, %v408, %v410
          %v416 = vsel %vm413, %v410, %v412
          %420 = vst [vmem:[#allocation4 + $0x18] sm:$0xf] %v414
          %421 = vst [vmem:[#allocation4 + $0x20] sm:$0xf] %v415
          %422 = vst [vmem:[#allocation4 + $0x28] sm:$0xf] %v416
          %v423 = vld [vmem:[%s315] sm:$0xff]
          %v424 = vld [vmem:[%s315 + $0x8] sm:$0xff]
          %v427 = vunpack.c.l.b16 %v423
          %v428 = vunpack.c.h.b16 %v423
          %v429 = vunpack.c.l.b16 %v424
          %v430 = vunpack.c.h.b16 %v424
          %v431 = vpack.c.b16 %v427, %v427
          %v432 = vpack.c.b16 %v428, %v428
          %v433 = vpack.c.b16 %v429, %v429
          %v434 = vpack.c.b16 %v430, %v430
          %435 = vrot.lane.b32.xlu0 %v431, 1
          %v436 = vpop.permute.xlu0 %435
          %437 = vrot.lane.b32.xlu0 %v432, 1
          %v438 = vpop.permute.xlu0 %437
          %439 = vrot.lane.b32.xlu0 %v433, 1
          %v440 = vpop.permute.xlu0 %439
          %441 = vrot.lane.b32.xlu0 %v434, 1
          %v442 = vpop.permute.xlu0 %441
          %vm443 = vcmask 7168
          %v444 = vsel %vm443, %v436, %v438
          %v445 = vsel %vm443, %v438, %v440
          %v446 = vsel %vm443, %v440, %v442
          %450 = vst [vmem:[#allocation4 + $0x18] sm:$0xf0] %v444
          %451 = vst [vmem:[#allocation4 + $0x20] sm:$0xf0] %v445
          %452 = vst [vmem:[#allocation4 + $0x28] sm:$0xf0] %v446
          %v453 = vld [vmem:[%s315 + $0x4] sm:$0xff]
          %v454 = vld [vmem:[%s315 + $0xc] sm:$0xf]
          %v457 = vunpack.c.l.b16 %v453
          %v458 = vunpack.c.h.b16 %v453
          %v459 = vunpack.c.l.b16 %v454
          %v460 = vpack.c.b16 %v457, %v457
          %v461 = vpack.c.b16 %v458, %v458
          %v462 = vpack.c.b16 %v459, %v459
          %466 = vst [vmem:[#allocation4 + $0x30] sm:$0xf] %v460
          %467 = vst [vmem:[#allocation4 + $0x38] sm:$0xf] %v461
          %468 = vst [vmem:[#allocation4 + $0x40] sm:$0xf] %v462
          %v469 = vld [vmem:[%s315 + $0x4] sm:$0xff]
          %v470 = vld [vmem:[%s315 + $0xc] sm:$0xff]
          %v473 = vunpack.c.l.b16 %v469
          %v474 = vunpack.c.h.b16 %v469
          %v475 = vunpack.c.l.b16 %v470
          %v476 = vunpack.c.h.b16 %v470
          %v477 = vpack.c.b16 %v473, %v473
          %v478 = vpack.c.b16 %v474, %v474
          %v479 = vpack.c.b16 %v475, %v475
          %v480 = vpack.c.b16 %v476, %v476
          %481 = vrot.lane.b32.xlu0 %v477, 127
          %v482 = vpop.permute.xlu0 %481
          %483 = vrot.lane.b32.xlu0 %v478, 127
          %v484 = vpop.permute.xlu0 %483
          %485 = vrot.lane.b32.xlu0 %v479, 127
          %v486 = vpop.permute.xlu0 %485
          %487 = vrot.lane.b32.xlu0 %v480, 127
          %v488 = vpop.permute.xlu0 %487
          %vm489 = vcmask 1039360
          %v490 = vsel %vm489, %v482, %v484
          %v491 = vsel %vm489, %v484, %v486
          %v492 = vsel %vm489, %v486, %v488
          %496 = vst [vmem:[#allocation4 + $0x30] sm:$0xf0] %v490
          %497 = vst [vmem:[#allocation4 + $0x38] sm:$0xf0] %v491
          %498 = vst [vmem:[#allocation4 + $0x40] sm:$0xf0] %v492
          %v499 = vld [vmem:[%s315 + $0x4] sm:$0xff]
          %v500 = vld [vmem:[%s315 + $0xc] sm:$0xff]
          %v503 = vunpack.c.l.b16 %v499
          %v504 = vunpack.c.h.b16 %v499
          %v505 = vunpack.c.l.b16 %v500
          %v506 = vunpack.c.h.b16 %v500
          %v507 = vpack.c.b16 %v503, %v503
          %v508 = vpack.c.b16 %v504, %v504
          %v509 = vpack.c.b16 %v505, %v505
          %v510 = vpack.c.b16 %v506, %v506
          %511 = vrot.lane.b32.xlu0 %v507, 111
          %v512 = vpop.permute.xlu0 %511
          %513 = vrot.lane.b32.xlu0 %v508, 111
          %v514 = vpop.permute.xlu0 %513
          %515 = vrot.lane.b32.xlu0 %v509, 111
          %v516 = vpop.permute.xlu0 %515
          %517 = vrot.lane.b32.xlu0 %v510, 111
          %v518 = vpop.permute.xlu0 %517
          %vm519 = vcmask 908288
          %v520 = vsel %vm519, %v512, %v514
          %v521 = vsel %vm519, %v514, %v516
          %v522 = vsel %vm519, %v516, %v518
          %526 = vst [vmem:[#allocation4 + $0x48] sm:$0xf] %v520
          %527 = vst [vmem:[#allocation4 + $0x50] sm:$0xf] %v521
          %528 = vst [vmem:[#allocation4 + $0x58] sm:$0xf] %v522
          %v529 = vld [vmem:[%s315 + $0x4] sm:$0xff]
          %v530 = vld [vmem:[%s315 + $0xc] sm:$0xff]
          %v533 = vunpack.c.l.b16 %v529
          %v534 = vunpack.c.h.b16 %v529
          %v535 = vunpack.c.l.b16 %v530
          %v536 = vunpack.c.h.b16 %v530
          %v537 = vpack.c.b16 %v533, %v533
          %v538 = vpack.c.b16 %v534, %v534
          %v539 = vpack.c.b16 %v535, %v535
          %v540 = vpack.c.b16 %v536, %v536
          %541 = vrot.lane.b32.xlu0 %v537, 110
          %v542 = vpop.permute.xlu0 %541
          %543 = vrot.lane.b32.xlu0 %v538, 110
          %v544 = vpop.permute.xlu0 %543
          %545 = vrot.lane.b32.xlu0 %v539, 110
          %v546 = vpop.permute.xlu0 %545
          %547 = vrot.lane.b32.xlu0 %v540, 110
          %v548 = vpop.permute.xlu0 %547
          %vm549 = vcmask 900096
          %v550 = vsel %vm549, %v542, %v544
          %v551 = vsel %vm549, %v544, %v546
          %v552 = vsel %vm549, %v546, %v548
          %556 = vst [vmem:[#allocation4 + $0x48] sm:$0xf0] %v550
          %557 = vst [vmem:[#allocation4 + $0x50] sm:$0xf0] %v551
          %558 = vst [vmem:[#allocation4 + $0x58] sm:$0xf0] %v552
          %v559 = vld [vmem:[%s315 + $0x4] sm:$0xff]
          %v560 = vld [vmem:[%s315 + $0xc] sm:$0xff]
          %v563 = vunpack.c.l.b16 %v559
          %v564 = vunpack.c.h.b16 %v559
          %v565 = vunpack.c.l.b16 %v560
          %v566 = vunpack.c.h.b16 %v560
          %v567 = vpack.c.b16 %v563, %v563
          %v568 = vpack.c.b16 %v564, %v564
          %v569 = vpack.c.b16 %v565, %v565
          %v570 = vpack.c.b16 %v566, %v566
          %571 = vrot.lane.b32.xlu0 %v567, 109
          %v572 = vpop.permute.xlu0 %571
          %573 = vrot.lane.b32.xlu0 %v568, 109
          %v574 = vpop.permute.xlu0 %573
          %575 = vrot.lane.b32.xlu0 %v569, 109
          %v576 = vpop.permute.xlu0 %575
          %577 = vrot.lane.b32.xlu0 %v570, 109
          %v578 = vpop.permute.xlu0 %577
          %vm579 = vcmask 891904
          %v580 = vsel %vm579, %v572, %v574
          %v581 = vsel %vm579, %v574, %v576
          %v582 = vsel %vm579, %v576, %v578
          %586 = vst [vmem:[#allocation4 + $0x60] sm:$0xf] %v580
          %587 = vst [vmem:[#allocation4 + $0x68] sm:$0xf] %v581
          %588 = vst [vmem:[#allocation4 + $0x70] sm:$0xf] %v582
          %v589 = vld [vmem:[#allocation4] sm:$0xff]
          %v590 = vld [vmem:[#allocation4 + $0x8] sm:$0xff]
          %v591 = vld [vmem:[#allocation4 + $0x10] sm:$0xff]
          %v592 = vld [vmem:[#allocation4 + $0x18] sm:$0xff]
          %v593 = vld [vmem:[#allocation4 + $0x20] sm:$0xff]
          %v594 = vld [vmem:[#allocation4 + $0x28] sm:$0xff]
          %v595 = vld [vmem:[#allocation4 + $0x30] sm:$0xff]
          %v596 = vld [vmem:[#allocation4 + $0x38] sm:$0xff]
          %v597 = vld [vmem:[#allocation4 + $0x40] sm:$0xff]
          %v598 = vld [vmem:[#allocation4 + $0x48] sm:$0xff]
          %v599 = vld [vmem:[#allocation4 + $0x50] sm:$0xff]
          %v600 = vld [vmem:[#allocation4 + $0x58] sm:$0xff]
          %v601 = vld [vmem:[#allocation4 + $0x60] sm:$0xf]
          %v602 = vld [vmem:[#allocation4 + $0x68] sm:$0xf]
          %v603 = vld [vmem:[#allocation4 + $0x70] sm:$0xf]
          %v604 = vld [vmem:[%s2] sm:$0xff]
          %v605 = vld [vmem:[%s2 + $0x8] sm:$0xff]
          %607 = vset.pattern.permute.xlu0 0
          %608 = vperm.xlu0 %607, %v604
          %v609 = vpop.permute.xlu0 %608
          %612 = vset.pattern.permute.xlu0 0
          %613 = vperm.xlu0 %612, %v605
          %v614 = vpop.permute.xlu0 %613
          %v618 = vunpack.c.l.b16 %v331
          %v619 = vunpack.c.l.b16 %v332
          %v620 = vpack.c.b16 %v619, %v618
          %vm621 = vcmask 588800
          %v623 = vsel %vm621, %v620, 0
          %vm625 = vcmask 1043456
          %v627 = vsel %vm625, %v601, 0
          %v630 = vsel %vm625, %v602, 0
          %v633 = vsel %vm625, %v603, 0
          %635 = vmatprep.subr.bf16.mxu0 %v590
          %636 = vmatpush1.bf16.msra.mxu0 %v589
          %637 = vmatprep.subr.bf16.mxu0 %v593
          %638 = vmatpush1.bf16.msra.mxu0 %v592
          %639 = vmatprep.subr.bf16.mxu0 %v596
          %640 = vmatpush1.bf16.msra.mxu0 %v595
          %641 = vmatprep.subr.bf16.mxu0 %v599
          %642 = vmatpush1.bf16.msra.mxu0 %v598
          %643 = vmatprep.subr.bf16.mxu0 %v630
          %644 = vmatpush1.bf16.msra.mxu0 %v627
          %645 = vmatprep.subr.bf16.mxu0 0
          %646 = vmatpush1.bf16.msra.mxu0 0
          %647 = vmatprep.subr.bf16.mxu0 0
          %648 = vmatpush1.bf16.msra.mxu0 0
          %649 = vmatprep.subr.bf16.mxu0 0
          %650 = vmatpush1.bf16.msra.mxu0 0
          %651 = vmatprep.subr.bf16.mxu0 0
          %652 = vmatpush1.bf16.msra.mxu0 0
          %653 = vmatprep.subr.bf16.mxu0 0
          %654 = vmatpush1.bf16.msra.mxu0 0
          %655 = vmatprep.subr.bf16.mxu0 0
          %656 = vmatpush1.bf16.msra.mxu0 0
          %657 = vmatprep.subr.bf16.mxu0 0
          %658 = vmatpush1.bf16.msra.mxu0 0
          %659 = vmatprep.subr.bf16.mxu0 0
          %660 = vmatpush1.bf16.msra.mxu0 0
          %661 = vmatprep.subr.bf16.mxu0 0
          %662 = vmatpush1.bf16.msra.mxu0 0
          %663 = vmatprep.subr.bf16.mxu0 0
          %664 = vmatpush1.bf16.msra.mxu0 0
          %665 = vmatprep.subr.bf16.mxu0 0
          %666 = vmatpush1.bf16.msra.mxu0 0
          %667 = vmatprep.mubr.bf16.mxu0 0
          %668 = vmatmul.mubr.bf16.gmra.mrb[0].mxu0 %v623
          %v669 = vpop.f32.mrb[0].mxu0
          %v670 = vadd.f32 %v609, %v669
          %v671 = vpop.f32.mrb[0].mxu0
          %v672 = vadd.f32 %v609, %v671
          %v673 = vpop.f32.mrb[0].mxu0
          %v674 = vadd.f32 %v614, %v673
          %v675 = vpop.f32.mrb[0].mxu0
          %v676 = vadd.f32 %v614, %v675
          %677 = vdwg.mxu0
          %678 = vmatprep.subr.bf16.mxu0 0
          %679 = vmatpush1.bf16.msra.mxu0 %v591
          %680 = vmatprep.subr.bf16.mxu0 0
          %681 = vmatpush1.bf16.msra.mxu0 %v594
          %682 = vmatprep.subr.bf16.mxu0 0
          %683 = vmatpush1.bf16.msra.mxu0 %v597
          %684 = vmatprep.subr.bf16.mxu0 0
          %685 = vmatpush1.bf16.msra.mxu0 %v600
          %686 = vmatprep.subr.bf16.mxu0 0
          %687 = vmatpush1.bf16.msra.mxu0 %v633
          %688 = vmatprep.subr.bf16.mxu0 0
          %689 = vmatpush1.bf16.msra.mxu0 0
          %690 = vmatprep.subr.bf16.mxu0 0
          %691 = vmatpush1.bf16.msra.mxu0 0
          %692 = vmatprep.subr.bf16.mxu0 0
          %693 = vmatpush1.bf16.msra.mxu0 0
          %694 = vmatprep.subr.bf16.mxu0 0
          %695 = vmatpush1.bf16.msra.mxu0 0
          %696 = vmatprep.subr.bf16.mxu0 0
          %697 = vmatpush1.bf16.msra.mxu0 0
          %698 = vmatprep.subr.bf16.mxu0 0
          %699 = vmatpush1.bf16.msra.mxu0 0
          %700 = vmatprep.subr.bf16.mxu0 0
          %701 = vmatpush1.bf16.msra.mxu0 0
          %702 = vmatprep.subr.bf16.mxu0 0
          %703 = vmatpush1.bf16.msra.mxu0 0
          %704 = vmatprep.subr.bf16.mxu0 0
          %705 = vmatpush1.bf16.msra.mxu0 0
          %706 = vmatprep.subr.bf16.mxu0 0
          %707 = vmatpush1.bf16.msra.mxu0 0
          %708 = vmatprep.subr.bf16.mxu0 0
          %709 = vmatpush1.bf16.msra.mxu0 0
          %710 = vmatprep.mubr.bf16.mxu0 0
          %711 = vmatmul.mubr.bf16.gmra.mrb[0].mxu0 %v623
          %v712 = vpop.f32.mrb[0].mxu0
          %v713 = vadd.f32 %v609, %v712
          %v714 = vpop.f32.mrb[0].mxu0
          %v715 = vpop.f32.mrb[0].mxu0
          %v716 = vadd.f32 %v614, %v715
          %v717 = vpop.f32.mrb[0].mxu0
          %718 = vdwg.mxu0
          %v719 = vmax.f32 %v670, 0.0
          %v720 = vmax.f32 %v672, 0.0
          %v721 = vmax.f32 %v713, 0.0
          %v722 = vmax.f32 %v674, 0.0
          %v723 = vmax.f32 %v676, 0.0
          %v724 = vmax.f32 %v716, 0.0
          %v726 = vlaneseq
          %v727 = vshrl.u32 %v726, 7
          %v728 = vsub.s32 0, %v727
          %v729 = vrot.slane %v322, %v728
          %v730 = vlaneseq
          %v731 = vshrl.u32 %v730, 7
          %v732 = vsub.s32 1, %v731
          %v733 = vrot.slane %v322, %v732
          %v734 = vlaneseq
          %v735 = vshrl.u32 %v734, 7
          %v736 = vsub.s32 2, %v735
          %v737 = vrot.slane %v322, %v736
          %v741 = vmul.f32 %v719, %v729
          %v742 = vmul.f32 %v720, %v733
          %v743 = vmul.f32 %v721, %v737
          %v744 = vmul.f32 %v722, %v729
          %v745 = vmul.f32 %v723, %v733
          %v746 = vmul.f32 %v724, %v737
          %v747 = vpack.c.bf16 %v744, %v741
          %v748 = vpack.c.bf16 %v745, %v742
          %v749 = vpack.c.bf16 %v746, %v743
          %750 = vst [vmem:[#allocation2 + $0x8] sm:$0xff] %v747
          %751 = vst [vmem:[#allocation2 + $0x10] sm:$0xff] %v748
          %752 = vst [vmem:[#allocation2 + $0x18] sm:$0xff] %v749
        $region60: #{resnet56_forward.3} parent=47 // pred_fallthru
          _
        %p753 = scmp.gt.s32.totalorder %s25, 0
        // Predicated region
        $region61: #{resnet56_forward.3} parent=47 // pred_check
          %p754 = pneg %p753
        $region62: #{resnet56_forward.3} parent=47 // pred_check_branch
          %756 = sbr.rel (%p754) target = $region64
        $region63: #{resnet56_forward.3} parent=47 // pred_region
          %s757 = ssub.s32 %s25, 1
          %p758 = scmp.gt.s32.totalorder %s757, 0
          %s759 = scalar_select %p758, %s757, 0
          %s760 = smul.u32 %s759, 4
          %s761 = smul.addr %s760, 4
          %s762 = scalar_lea.vmem %s3, %s761
          %v763 = vld [vmem:[%s762] sm:$0xff]
          %v764 = vld [vmem:[%s762 + $0x8] sm:$0xff]
          %s765 = smul.addr %s760, 4
          %s766 = scalar_lea.vmem [#allocation7], %s765
          %v767 = vld [vmem:[%s766] sm:$0xff]
          %v768 = vld [vmem:[%s766 + $0x8] sm:$0xff]
          %s769 = smul.u32 %s759, 16
          %s770 = scalar_lea.vmem %s5, %s769
          %v771 = vld [vmem:[%s770] sm:$0xff]
          %v772 = vld [vmem:[%s770 + $0x8] sm:$0xff]
          %v773 = vld [vmem:[#allocation2] sm:$0xff]
          %v774 = vld [vmem:[#allocation2 + $0x8] sm:$0xff]
          %v775 = vld [vmem:[#allocation2 + $0x10] sm:$0xff]
          %v776 = vld [vmem:[#allocation2 + $0x18] sm:$0xff]
          %781 = vrot.lane.b32.xlu0 %v773, 19
          %v782 = vpop.permute.xlu0 %781
          %783 = vrot.lane.b32.xlu0 %v774, 19
          %v784 = vpop.permute.xlu0 %783
          %785 = vrot.lane.b32.xlu0 %v775, 19
          %v786 = vpop.permute.xlu0 %785
          %787 = vrot.lane.b32.xlu0 %v776, 19
          %v788 = vpop.permute.xlu0 %787
          %vm789 = vcmask 154624
          %v790 = vsel %vm789, %v782, %v784
          %v791 = vsel %vm789, %v784, %v786
          %v792 = vsel %vm789, %v786, %v788
          %796 = vst [vmem:[#allocation4] sm:$0xff] %v790
          %797 = vst [vmem:[#allocation4 + $0x8] sm:$0xff] %v791
          %798 = vst [vmem:[#allocation4 + $0x10] sm:$0xff] %v792
          %v799 = vld [vmem:[#allocation2] sm:$0xff]
          %v800 = vld [vmem:[#allocation2 + $0x8] sm:$0xff]
          %v801 = vld [vmem:[#allocation2 + $0x10] sm:$0xff]
          %v802 = vld [vmem:[#allocation2 + $0x18] sm:$0xff]
          %807 = vrot.lane.b32.xlu0 %v799, 18
          %v808 = vpop.permute.xlu0 %807
          %809 = vrot.lane.b32.xlu0 %v800, 18
          %v810 = vpop.permute.xlu0 %809
          %811 = vrot.lane.b32.xlu0 %v801, 18
          %v812 = vpop.permute.xlu0 %811
          %813 = vrot.lane.b32.xlu0 %v802, 18
          %v814 = vpop.permute.xlu0 %813
          %vm815 = vcmask 146432
          %v816 = vsel %vm815, %v808, %v810
          %v817 = vsel %vm815, %v810, %v812
          %v818 = vsel %vm815, %v812, %v814
          %822 = vst [vmem:[#allocation4 + $0x18] sm:$0xff] %v816
          %823 = vst [vmem:[#allocation4 + $0x20] sm:$0xff] %v817
          %824 = vst [vmem:[#allocation4 + $0x28] sm:$0xff] %v818
          %v825 = vld [vmem:[#allocation2] sm:$0xff]
          %v826 = vld [vmem:[#allocation2 + $0x8] sm:$0xff]
          %v827 = vld [vmem:[#allocation2 + $0x10] sm:$0xff]
          %v828 = vld [vmem:[#allocation2 + $0x18] sm:$0xff]
          %833 = vrot.lane.b32.xlu0 %v825, 17
          %v834 = vpop.permute.xlu0 %833
          %835 = vrot.lane.b32.xlu0 %v826, 17
          %v836 = vpop.permute.xlu0 %835
          %837 = vrot.lane.b32.xlu0 %v827, 17
          %v838 = vpop.permute.xlu0 %837
          %839 = vrot.lane.b32.xlu0 %v828, 17
          %v840 = vpop.permute.xlu0 %839
          %vm841 = vcmask 138240
          %v842 = vsel %vm841, %v834, %v836
          %v843 = vsel %vm841, %v836, %v838
          %v844 = vsel %vm841, %v838, %v840
          %848 = vst [vmem:[#allocation4 + $0x30] sm:$0xff] %v842
          %849 = vst [vmem:[#allocation4 + $0x38] sm:$0xff] %v843
          %850 = vst [vmem:[#allocation4 + $0x40] sm:$0xff] %v844
          %v851 = vld [vmem:[#allocation2] sm:$0xff]
          %v852 = vld [vmem:[#allocation2 + $0x8] sm:$0xff]
          %v853 = vld [vmem:[#allocation2 + $0x10] sm:$0xff]
          %v854 = vld [vmem:[#allocation2 + $0x18] sm:$0xff]
          %859 = vrot.lane.b32.xlu0 %v851, 1
          %v860 = vpop.permute.xlu0 %859
          %861 = vrot.lane.b32.xlu0 %v852, 1
          %v862 = vpop.permute.xlu0 %861
          %863 = vrot.lane.b32.xlu0 %v853, 1
          %v864 = vpop.permute.xlu0 %863
          %865 = vrot.lane.b32.xlu0 %v854, 1
          %v866 = vpop.permute.xlu0 %865
          %vm867 = vcmask 7168
          %v868 = vsel %vm867, %v860, %v862
          %v869 = vsel %vm867, %v862, %v864
          %v870 = vsel %vm867, %v864, %v866
          %874 = vst [vmem:[#allocation4 + $0x48] sm:$0xff] %v868
          %875 = vst [vmem:[#allocation4 + $0x50] sm:$0xff] %v869
          %876 = vst [vmem:[#allocation4 + $0x58] sm:$0xff] %v870
          %v877 = vld [vmem:[#allocation2 + $0x8] sm:$0xff]
          %v878 = vld [vmem:[#allocation2 + $0x10] sm:$0xff]
          %v879 = vld [vmem:[#allocation2 + $0x18] sm:$0xff]
          %880 = vst [vmem:[#allocation4 + $0x60] sm:$0xff] %v877
          %881 = vst [vmem:[#allocation4 + $0x68] sm:$0xff] %v878
          %882 = vst [vmem:[#allocation4 + $0x70] sm:$0xff] %v879
          %v883 = vld [vmem:[#allocation2 + $0x8] sm:$0xff]
          %v884 = vld [vmem:[#allocation2 + $0x10] sm:$0xff]
          %v885 = vld [vmem:[#allocation2 + $0x18] sm:$0xff]
          %v886 = vld [vmem:[#allocation2 + $0x20] sm:$0xff]
          %891 = vrot.lane.b32.xlu0 %v883, 127
          %v892 = vpop.permute.xlu0 %891
          %893 = vrot.lane.b32.xlu0 %v884, 127
          %v894 = vpop.permute.xlu0 %893
          %895 = vrot.lane.b32.xlu0 %v885, 127
          %v896 = vpop.permute.xlu0 %895
          %897 = vrot.lane.b32.xlu0 %v886, 127
          %v898 = vpop.permute.xlu0 %897
          %vm899 = vcmask 1039360
          %v900 = vsel %vm899, %v892, %v894
          %v901 = vsel %vm899, %v894, %v896
          %v902 = vsel %vm899, %v896, %v898
          %906 = vst [vmem:[#allocation4 + $0x78] sm:$0xff] %v900
          %907 = vst [vmem:[#allocation4 + $0x80] sm:$0xff] %v901
          %908 = vst [vmem:[#allocation4 + $0x88] sm:$0xff] %v902
          %v909 = vld [vmem:[#allocation2 + $0x8] sm:$0xff]
          %v910 = vld [vmem:[#allocation2 + $0x10] sm:$0xff]
          %v911 = vld [vmem:[#allocation2 + $0x18] sm:$0xff]
          %v912 = vld [vmem:[#allocation2 + $0x20] sm:$0xff]
          %917 = vrot.lane.b32.xlu0 %v909, 111
          %v918 = vpop.permute.xlu0 %917
          %919 = vrot.lane.b32.xlu0 %v910, 111
          %v920 = vpop.permute.xlu0 %919
          %921 = vrot.lane.b32.xlu0 %v911, 111
          %v922 = vpop.permute.xlu0 %921
          %923 = vrot.lane.b32.xlu0 %v912, 111
          %v924 = vpop.permute.xlu0 %923
          %vm925 = vcmask 908288
          %v926 = vsel %vm925, %v918, %v920
          %v927 = vsel %vm925, %v920, %v922
          %v928 = vsel %vm925, %v922, %v924
          %932 = vst [vmem:[#allocation4 + $0x90] sm:$0xff] %v926
          %933 = vst [vmem:[#allocation4 + $0x98] sm:$0xff] %v927
          %934 = vst [vmem:[#allocation4 + $0xa0] sm:$0xff] %v928
          %v935 = vld [vmem:[#allocation2 + $0x8] sm:$0xff]
          %v936 = vld [vmem:[#allocation2 + $0x10] sm:$0xff]
          %v937 = vld [vmem:[#allocation2 + $0x18] sm:$0xff]
          %v938 = vld [vmem:[#allocation2 + $0x20] sm:$0xff]
          %943 = vrot.lane.b32.xlu0 %v935, 110
          %v944 = vpop.permute.xlu0 %943
          %945 = vrot.lane.b32.xlu0 %v936, 110
          %v946 = vpop.permute.xlu0 %945
          %947 = vrot.lane.b32.xlu0 %v937, 110
          %v948 = vpop.permute.xlu0 %947
          %949 = vrot.lane.b32.xlu0 %v938, 110
          %v950 = vpop.permute.xlu0 %949
          %vm951 = vcmask 900096
          %v952 = vsel %vm951, %v944, %v946
          %v953 = vsel %vm951, %v946, %v948
          %v954 = vsel %vm951, %v948, %v950
          %958 = vst [vmem:[#allocation4 + $0xa8] sm:$0xff] %v952
          %959 = vst [vmem:[#allocation4 + $0xb0] sm:$0xff] %v953
          %960 = vst [vmem:[#allocation4 + $0xb8] sm:$0xff] %v954
          %v961 = vld [vmem:[#allocation2 + $0x8] sm:$0xff]
          %v962 = vld [vmem:[#allocation2 + $0x10] sm:$0xff]
          %v963 = vld [vmem:[#allocation2 + $0x18] sm:$0xff]
          %v964 = vld [vmem:[#allocation2 + $0x20] sm:$0xff]
          %969 = vrot.lane.b32.xlu0 %v961, 109
          %v970 = vpop.permute.xlu0 %969
          %971 = vrot.lane.b32.xlu0 %v962, 109
          %v972 = vpop.permute.xlu0 %971
          %973 = vrot.lane.b32.xlu0 %v963, 109
          %v974 = vpop.permute.xlu0 %973
          %975 = vrot.lane.b32.xlu0 %v964, 109
          %v976 = vpop.permute.xlu0 %975
          %vm977 = vcmask 891904
          %v978 = vsel %vm977, %v970, %v972
          %v979 = vsel %vm977, %v972, %v974
          %v980 = vsel %vm977, %v974, %v976
          %984 = vst [vmem:[#allocation4 + $0xc0] sm:$0xff] %v978
          %985 = vst [vmem:[#allocation4 + $0xc8] sm:$0xff] %v979
          %986 = vst [vmem:[#allocation4 + $0xd0] sm:$0xff] %v980
          %v987 = vld [vmem:[#allocation4] sm:$0xff]
          %v988 = vld [vmem:[#allocation4 + $0x8] sm:$0xff]
          %v989 = vld [vmem:[#allocation4 + $0x10] sm:$0xff]
          %v990 = vld [vmem:[#allocation4 + $0x18] sm:$0xff]
          %v991 = vld [vmem:[#allocation4 + $0x20] sm:$0xff]
          %v992 = vld [vmem:[#allocation4 + $0x28] sm:$0xff]
          %v993 = vld [vmem:[#allocation4 + $0x30] sm:$0xff]
          %v994 = vld [vmem:[#allocation4 + $0x38] sm:$0xff]
          %v995 = vld [vmem:[#allocation4 + $0x40] sm:$0xff]
          %v996 = vld [vmem:[#allocation4 + $0x48] sm:$0xff]
          %v997 = vld [vmem:[#allocation4 + $0x50] sm:$0xff]
          %v998 = vld [vmem:[#allocation4 + $0x58] sm:$0xff]
          %v999 = vld [vmem:[#allocation4 + $0x60] sm:$0xff]
          %v1000 = vld [vmem:[#allocation4 + $0x68] sm:$0xff]
          %v1001 = vld [vmem:[#allocation4 + $0x70] sm:$0xff]
          %v1002 = vld [vmem:[#allocation4 + $0x78] sm:$0xff]
          %v1003 = vld [vmem:[#allocation4 + $0x80] sm:$0xff]
          %v1004 = vld [vmem:[#allocation4 + $0x88] sm:$0xff]
          %v1005 = vld [vmem:[#allocation4 + $0x90] sm:$0xff]
          %v1006 = vld [vmem:[#allocation4 + $0x98] sm:$0xff]
          %v1007 = vld [vmem:[#allocation4 + $0xa0] sm:$0xff]
          %v1008 = vld [vmem:[#allocation4 + $0xa8] sm:$0xff]
          %v1009 = vld [vmem:[#allocation4 + $0xb0] sm:$0xff]
          %v1010 = vld [vmem:[#allocation4 + $0xb8] sm:$0xff]
          %v1011 = vld [vmem:[#allocation4 + $0xc0] sm:$0xff]
          %v1012 = vld [vmem:[#allocation4 + $0xc8] sm:$0xff]
          %v1013 = vld [vmem:[#allocation4 + $0xd0] sm:$0xff]
          %1015 = vset.pattern.permute.xlu0 0
          %1016 = vperm.xlu0 %1015, %v771
          %v1017 = vpop.permute.xlu0 %1016
          %1020 = vset.pattern.permute.xlu0 0
          %1021 = vperm.xlu0 %1020, %v772
          %v1022 = vpop.permute.xlu0 %1021
          %v1026 = vunpack.c.l.b16 %v763
          %v1027 = vunpack.c.h.b16 %v763
          %v1028 = vunpack.c.l.b16 %v764
          %v1029 = vunpack.c.h.b16 %v764
          %v1030 = vpack.c.b16 %v1028, %v1026
          %v1031 = vpack.c.b16 %v1029, %v1027
          %vm1033 = vcmask 130048
          %v1035 = vsel %vm1033, %v1031, 0
          %1037 = vmatprep.subr.bf16.mxu0 %v988
          %1038 = vmatpush1.bf16.msra.mxu0 %v987
          %1039 = vmatprep.subr.bf16.mxu0 %v991
          %1040 = vmatpush1.bf16.msra.mxu0 %v990
          %1041 = vmatprep.subr.bf16.mxu0 %v994
          %1042 = vmatpush1.bf16.msra.mxu0 %v993
          %1043 = vmatprep.subr.bf16.mxu0 %v997
          %1044 = vmatpush1.bf16.msra.mxu0 %v996
          %1045 = vmatprep.subr.bf16.mxu0 %v1000
          %1046 = vmatpush1.bf16.msra.mxu0 %v999
          %1047 = vmatprep.subr.bf16.mxu0 %v1003
          %1048 = vmatpush1.bf16.msra.mxu0 %v1002
          %1049 = vmatprep.subr.bf16.mxu0 %v1006
          %1050 = vmatpush1.bf16.msra.mxu0 %v1005
          %1051 = vmatprep.subr.bf16.mxu0 %v1009
          %1052 = vmatpush1.bf16.msra.mxu0 %v1008
          %1053 = vmatprep.subr.bf16.mxu0 %v1012
          %1054 = vmatpush1.bf16.msra.mxu0 %v1011
          %1055 = vmatprep.subr.bf16.mxu0 0
          %1056 = vmatpush1.bf16.msra.mxu0 0
          %1057 = vmatprep.subr.bf16.mxu0 0
          %1058 = vmatpush1.bf16.msra.mxu0 0
          %1059 = vmatprep.subr.bf16.mxu0 0
          %1060 = vmatpush1.bf16.msra.mxu0 0
          %1061 = vmatprep.subr.bf16.mxu0 0
          %1062 = vmatpush1.bf16.msra.mxu0 0
          %1063 = vmatprep.subr.bf16.mxu0 0
          %1064 = vmatpush1.bf16.msra.mxu0 0
          %1065 = vmatprep.subr.bf16.mxu0 0
          %1066 = vmatpush1.bf16.msra.mxu0 0
          %1067 = vmatprep.subr.bf16.mxu0 0
          %1068 = vmatpush1.bf16.msra.mxu0 0
          %1069 = vmatprep.mubr.bf16.mxu0 %v1035
          %1070 = vmatmul.mubr.bf16.gmra.mrb[0].mxu0 %v1030
          %v1071 = vpop.f32.mrb[0].mxu0
          %v1072 = vadd.f32 %v1017, %v1071
          %v1073 = vpop.f32.mrb[0].mxu0
          %v1074 = vadd.f32 %v1017, %v1073
          %v1075 = vpop.f32.mrb[0].mxu0
          %v1076 = vadd.f32 %v1022, %v1075
          %v1077 = vpop.f32.mrb[0].mxu0
          %v1078 = vadd.f32 %v1022, %v1077
          %1079 = vdwg.mxu0
          %1080 = vmatprep.subr.bf16.mxu0 0
          %1081 = vmatpush1.bf16.msra.mxu0 %v989
          %1082 = vmatprep.subr.bf16.mxu0 0
          %1083 = vmatpush1.bf16.msra.mxu0 %v992
          %1084 = vmatprep.subr.bf16.mxu0 0
          %1085 = vmatpush1.bf16.msra.mxu0 %v995
          %1086 = vmatprep.subr.bf16.mxu0 0
          %1087 = vmatpush1.bf16.msra.mxu0 %v998
          %1088 = vmatprep.subr.bf16.mxu0 0
          %1089 = vmatpush1.bf16.msra.mxu0 %v1001
          %1090 = vmatprep.subr.bf16.mxu0 0
          %1091 = vmatpush1.bf16.msra.mxu0 %v1004
          %1092 = vmatprep.subr.bf16.mxu0 0
          %1093 = vmatpush1.bf16.msra.mxu0 %v1007
          %1094 = vmatprep.subr.bf16.mxu0 0
          %1095 = vmatpush1.bf16.msra.mxu0 %v1010
          %1096 = vmatprep.subr.bf16.mxu0 0
          %1097 = vmatpush1.bf16.msra.mxu0 %v1013
          %1098 = vmatprep.subr.bf16.mxu0 0
          %1099 = vmatpush1.bf16.msra.mxu0 0
          %1100 = vmatprep.subr.bf16.mxu0 0
          %1101 = vmatpush1.bf16.msra.mxu0 0
          %1102 = vmatprep.subr.bf16.mxu0 0
          %1103 = vmatpush1.bf16.msra.mxu0 0
          %1104 = vmatprep.subr.bf16.mxu0 0
          %1105 = vmatpush1.bf16.msra.mxu0 0
          %1106 = vmatprep.subr.bf16.mxu0 0
          %1107 = vmatpush1.bf16.msra.mxu0 0
          %1108 = vmatprep.subr.bf16.mxu0 0
          %1109 = vmatpush1.bf16.msra.mxu0 0
          %1110 = vmatprep.subr.bf16.mxu0 0
          %1111 = vmatpush1.bf16.msra.mxu0 0
          %1112 = vmatprep.mubr.bf16.mxu0 %v1035
          %1113 = vmatmul.mubr.bf16.gmra.mrb[0].mxu0 %v1030
          %v1114 = vpop.f32.mrb[0].mxu0
          %v1115 = vadd.f32 %v1017, %v1114
          %v1116 = vpop.f32.mrb[0].mxu0
          %v1117 = vpop.f32.mrb[0].mxu0
          %v1118 = vadd.f32 %v1022, %v1117
          %v1119 = vpop.f32.mrb[0].mxu0
          %1120 = vdwg.mxu0
          %v1121 = vmax.f32 %v1072, 0.0
          %v1122 = vmax.f32 %v1074, 0.0
          %v1123 = vmax.f32 %v1115, 0.0
          %v1124 = vmax.f32 %v1076, 0.0
          %v1125 = vmax.f32 %v1078, 0.0
          %v1126 = vmax.f32 %v1118, 0.0
          %v1128 = vlaneseq
          %v1129 = vshrl.u32 %v1128, 7
          %v1130 = vsub.s32 0, %v1129
          %v1131 = vrot.slane %v322, %v1130
          %v1132 = vlaneseq
          %v1133 = vshrl.u32 %v1132, 7
          %v1134 = vsub.s32 1, %v1133
          %v1135 = vrot.slane %v322, %v1134
          %v1136 = vlaneseq
          %v1137 = vshrl.u32 %v1136, 7
          %v1138 = vsub.s32 2, %v1137
          %v1139 = vrot.slane %v322, %v1138
          %v1143 = vmul.f32 %v1121, %v1131
          %v1144 = vmul.f32 %v1122, %v1135
          %v1145 = vmul.f32 %v1123, %v1139
          %v1146 = vmul.f32 %v1124, %v1131
          %v1147 = vmul.f32 %v1125, %v1135
          %v1148 = vmul.f32 %v1126, %v1139
          %v1149 = vpack.c.bf16 %v1146, %v1143
          %v1150 = vpack.c.bf16 %v1147, %v1144
          %v1151 = vpack.c.bf16 %v1148, %v1145
          %1152 = vst [vmem:[#allocation3 + $0x8] sm:$0xff] %v1149
          %1153 = vst [vmem:[#allocation3 + $0x10] sm:$0xff] %v1150
          %1154 = vst [vmem:[#allocation3 + $0x18] sm:$0xff] %v1151
          %v1155 = vld [vmem:[#allocation2 + $0x8] sm:$0xff]
          %v1156 = vld [vmem:[#allocation2 + $0x10] sm:$0xff]
          %v1157 = vld [vmem:[#allocation2 + $0x18] sm:$0xff]
          %v1158 = vunpack.c.l.bf16 %v1155
          %v1159 = vunpack.c.l.bf16 %v1156
          %v1160 = vunpack.c.l.bf16 %v1157
          %v1161 = vunpack.c.h.bf16 %v1155
          %v1162 = vunpack.c.h.bf16 %v1156
          %v1163 = vunpack.c.h.bf16 %v1157
          %v1164 = vld [vmem:[#allocation3] sm:$0xff]
          %v1165 = vld [vmem:[#allocation3 + $0x8] sm:$0xff]
          %v1166 = vld [vmem:[#allocation3 + $0x10] sm:$0xff]
          %v1167 = vld [vmem:[#allocation3 + $0x18] sm:$0xff]
          %1172 = vrot.lane.b32.xlu0 %v1164, 19
          %v1173 = vpop.permute.xlu0 %1172
          %1174 = vrot.lane.b32.xlu0 %v1165, 19
          %v1175 = vpop.permute.xlu0 %1174
          %1176 = vrot.lane.b32.xlu0 %v1166, 19
          %v1177 = vpop.permute.xlu0 %1176
          %1178 = vrot.lane.b32.xlu0 %v1167, 19
          %v1179 = vpop.permute.xlu0 %1178
          %v1180 = vsel %vm789, %v1173, %v1175
          %v1181 = vsel %vm789, %v1175, %v1177
          %v1182 = vsel %vm789, %v1177, %v1179
          %1186 = vst [vmem:[#allocation4] sm:$0xff] %v1180
          %1187 = vst [vmem:[#allocation4 + $0x8] sm:$0xff] %v1181
          %1188 = vst [vmem:[#allocation4 + $0x10] sm:$0xff] %v1182
          %v1189 = vld [vmem:[#allocation3] sm:$0xff]
          %v1190 = vld [vmem:[#allocation3 + $0x8] sm:$0xff]
          %v1191 = vld [vmem:[#allocation3 + $0x10] sm:$0xff]
          %v1192 = vld [vmem:[#allocation3 + $0x18] sm:$0xff]
          %1197 = vrot.lane.b32.xlu0 %v1189, 18
          %v1198 = vpop.permute.xlu0 %1197
          %1199 = vrot.lane.b32.xlu0 %v1190, 18
          %v1200 = vpop.permute.xlu0 %1199
          %1201 = vrot.lane.b32.xlu0 %v1191, 18
          %v1202 = vpop.permute.xlu0 %1201
          %1203 = vrot.lane.b32.xlu0 %v1192, 18
          %v1204 = vpop.permute.xlu0 %1203
          %v1205 = vsel %vm815, %v1198, %v1200
          %v1206 = vsel %vm815, %v1200, %v1202
          %v1207 = vsel %vm815, %v1202, %v1204
          %1211 = vst [vmem:[#allocation4 + $0x18] sm:$0xff] %v1205
          %1212 = vst [vmem:[#allocation4 + $0x20] sm:$0xff] %v1206
          %1213 = vst [vmem:[#allocation4 + $0x28] sm:$0xff] %v1207
          %v1214 = vld [vmem:[#allocation3] sm:$0xff]
          %v1215 = vld [vmem:[#allocation3 + $0x8] sm:$0xff]
          %v1216 = vld [vmem:[#allocation3 + $0x10] sm:$0xff]
          %v1217 = vld [vmem:[#allocation3 + $0x18] sm:$0xff]
          %1222 = vrot.lane.b32.xlu0 %v1214, 17
          %v1223 = vpop.permute.xlu0 %1222
          %1224 = vrot.lane.b32.xlu0 %v1215, 17
          %v1225 = vpop.permute.xlu0 %1224
          %1226 = vrot.lane.b32.xlu0 %v1216, 17
          %v1227 = vpop.permute.xlu0 %1226
          %1228 = vrot.lane.b32.xlu0 %v1217, 17
          %v1229 = vpop.permute.xlu0 %1228
          %v1230 = vsel %vm841, %v1223, %v1225
          %v1231 = vsel %vm841, %v1225, %v1227
          %v1232 = vsel %vm841, %v1227, %v1229
          %1236 = vst [vmem:[#allocation4 + $0x30] sm:$0xff] %v1230
          %1237 = vst [vmem:[#allocation4 + $0x38] sm:$0xff] %v1231
          %1238 = vst [vmem:[#allocation4 + $0x40] sm:$0xff] %v1232
          %v1239 = vld [vmem:[#allocation3] sm:$0xff]
          %v1240 = vld [vmem:[#allocation3 + $0x8] sm:$0xff]
          %v1241 = vld [vmem:[#allocation3 + $0x10] sm:$0xff]
          %v1242 = vld [vmem:[#allocation3 + $0x18] sm:$0xff]
          %1247 = vrot.lane.b32.xlu0 %v1239, 1
          %v1248 = vpop.permute.xlu0 %1247
          %1249 = vrot.lane.b32.xlu0 %v1240, 1
          %v1250 = vpop.permute.xlu0 %1249
          %1251 = vrot.lane.b32.xlu0 %v1241, 1
          %v1252 = vpop.permute.xlu0 %1251
          %1253 = vrot.lane.b32.xlu0 %v1242, 1
          %v1254 = vpop.permute.xlu0 %1253
          %v1255 = vsel %vm867, %v1248, %v1250
          %v1256 = vsel %vm867, %v1250, %v1252
          %v1257 = vsel %vm867, %v1252, %v1254
          %1261 = vst [vmem:[#allocation4 + $0x48] sm:$0xff] %v1255
          %1262 = vst [vmem:[#allocation4 + $0x50] sm:$0xff] %v1256
          %1263 = vst [vmem:[#allocation4 + $0x58] sm:$0xff] %v1257
          %v1264 = vld [vmem:[#allocation3 + $0x8] sm:$0xff]
          %v1265 = vld [vmem:[#allocation3 + $0x10] sm:$0xff]
          %v1266 = vld [vmem:[#allocation3 + $0x18] sm:$0xff]
          %1267 = vst [vmem:[#allocation4 + $0x60] sm:$0xff] %v1264
          %1268 = vst [vmem:[#allocation4 + $0x68] sm:$0xff] %v1265
          %1269 = vst [vmem:[#allocation4 + $0x70] sm:$0xff] %v1266
          %v1270 = vld [vmem:[#allocation3 + $0x8] sm:$0xff]
          %v1271 = vld [vmem:[#allocation3 + $0x10] sm:$0xff]
          %v1272 = vld [vmem:[#allocation3 + $0x18] sm:$0xff]
          %v1273 = vld [vmem:[#allocation3 + $0x20] sm:$0xff]
          %1278 = vrot.lane.b32.xlu0 %v1270, 127
          %v1279 = vpop.permute.xlu0 %1278
          %1280 = vrot.lane.b32.xlu0 %v1271, 127
          %v1281 = vpop.permute.xlu0 %1280
          %1282 = vrot.lane.b32.xlu0 %v1272, 127
          %v1283 = vpop.permute.xlu0 %1282
          %1284 = vrot.lane.b32.xlu0 %v1273, 127
          %v1285 = vpop.permute.xlu0 %1284
          %v1286 = vsel %vm899, %v1279, %v1281
          %v1287 = vsel %vm899, %v1281, %v1283
          %v1288 = vsel %vm899, %v1283, %v1285
          %1292 = vst [vmem:[#allocation4 + $0x78] sm:$0xff] %v1286
          %1293 = vst [vmem:[#allocation4 + $0x80] sm:$0xff] %v1287
          %1294 = vst [vmem:[#allocation4 + $0x88] sm:$0xff] %v1288
          %v1295 = vld [vmem:[#allocation3 + $0x8] sm:$0xff]
          %v1296 = vld [vmem:[#allocation3 + $0x10] sm:$0xff]
          %v1297 = vld [vmem:[#allocation3 + $0x18] sm:$0xff]
          %v1298 = vld [vmem:[#allocation3 + $0x20] sm:$0xff]
          %1303 = vrot.lane.b32.xlu0 %v1295, 111
          %v1304 = vpop.permute.xlu0 %1303
          %1305 = vrot.lane.b32.xlu0 %v1296, 111
          %v1306 = vpop.permute.xlu0 %1305
          %1307 = vrot.lane.b32.xlu0 %v1297, 111
          %v1308 = vpop.permute.xlu0 %1307
          %1309 = vrot.lane.b32.xlu0 %v1298, 111
          %v1310 = vpop.permute.xlu0 %1309
          %v1311 = vsel %vm925, %v1304, %v1306
          %v1312 = vsel %vm925, %v1306, %v1308
          %v1313 = vsel %vm925, %v1308, %v1310
          %1317 = vst [vmem:[#allocation4 + $0x90] sm:$0xff] %v1311
          %1318 = vst [vmem:[#allocation4 + $0x98] sm:$0xff] %v1312
          %1319 = vst [vmem:[#allocation4 + $0xa0] sm:$0xff] %v1313
          %v1320 = vld [vmem:[#allocation3 + $0x8] sm:$0xff]
          %v1321 = vld [vmem:[#allocation3 + $0x10] sm:$0xff]
          %v1322 = vld [vmem:[#allocation3 + $0x18] sm:$0xff]
          %v1323 = vld [vmem:[#allocation3 + $0x20] sm:$0xff]
          %1328 = vrot.lane.b32.xlu0 %v1320, 110
          %v1329 = vpop.permute.xlu0 %1328
          %1330 = vrot.lane.b32.xlu0 %v1321, 110
          %v1331 = vpop.permute.xlu0 %1330
          %1332 = vrot.lane.b32.xlu0 %v1322, 110
          %v1333 = vpop.permute.xlu0 %1332
          %1334 = vrot.lane.b32.xlu0 %v1323, 110
          %v1335 = vpop.permute.xlu0 %1334
          %v1336 = vsel %vm951, %v1329, %v1331
          %v1337 = vsel %vm951, %v1331, %v1333
          %v1338 = vsel %vm951, %v1333, %v1335
          %1342 = vst [vmem:[#allocation4 + $0xa8] sm:$0xff] %v1336
          %1343 = vst [vmem:[#allocation4 + $0xb0] sm:$0xff] %v1337
          %1344 = vst [vmem:[#allocation4 + $0xb8] sm:$0xff] %v1338
          %v1345 = vld [vmem:[#allocation3 + $0x8] sm:$0xff]
          %v1346 = vld [vmem:[#allocation3 + $0x10] sm:$0xff]
          %v1347 = vld [vmem:[#allocation3 + $0x18] sm:$0xff]
          %v1348 = vld [vmem:[#allocation3 + $0x20] sm:$0xff]
          %1353 = vrot.lane.b32.xlu0 %v1345, 109
          %v1354 = vpop.permute.xlu0 %1353
          %1355 = vrot.lane.b32.xlu0 %v1346, 109
          %v1356 = vpop.permute.xlu0 %1355
          %1357 = vrot.lane.b32.xlu0 %v1347, 109
          %v1358 = vpop.permute.xlu0 %1357
          %1359 = vrot.lane.b32.xlu0 %v1348, 109
          %v1360 = vpop.permute.xlu0 %1359
          %v1361 = vsel %vm977, %v1354, %v1356
          %v1362 = vsel %vm977, %v1356, %v1358
          %v1363 = vsel %vm977, %v1358, %v1360
          %1367 = vst [vmem:[#allocation4 + $0xc0] sm:$0xff] %v1361
          %1368 = vst [vmem:[#allocation4 + $0xc8] sm:$0xff] %v1362
          %1369 = vst [vmem:[#allocation4 + $0xd0] sm:$0xff] %v1363
          %v1370 = vld [vmem:[#allocation4] sm:$0xff]
          %v1371 = vld [vmem:[#allocation4 + $0x8] sm:$0xff]
          %v1372 = vld [vmem:[#allocation4 + $0x10] sm:$0xff]
          %v1373 = vld [vmem:[#allocation4 + $0x18] sm:$0xff]
          %v1374 = vld [vmem:[#allocation4 + $0x20] sm:$0xff]
          %v1375 = vld [vmem:[#allocation4 + $0x28] sm:$0xff]
          %v1376 = vld [vmem:[#allocation4 + $0x30] sm:$0xff]
          %v1377 = vld [vmem:[#allocation4 + $0x38] sm:$0xff]
          %v1378 = vld [vmem:[#allocation4 + $0x40] sm:$0xff]
          %v1379 = vld [vmem:[#allocation4 + $0x48] sm:$0xff]
          %v1380 = vld [vmem:[#allocation4 + $0x50] sm:$0xff]
          %v1381 = vld [vmem:[#allocation4 + $0x58] sm:$0xff]
          %v1382 = vld [vmem:[#allocation4 + $0x60] sm:$0xff]
          %v1383 = vld [vmem:[#allocation4 + $0x68] sm:$0xff]
          %v1384 = vld [vmem:[#allocation4 + $0x70] sm:$0xff]
          %v1385 = vld [vmem:[#allocation4 + $0x78] sm:$0xff]
          %v1386 = vld [vmem:[#allocation4 + $0x80] sm:$0xff]
          %v1387 = vld [vmem:[#allocation4 + $0x88] sm:$0xff]
          %v1388 = vld [vmem:[#allocation4 + $0x90] sm:$0xff]
          %v1389 = vld [vmem:[#allocation4 + $0x98] sm:$0xff]
          %v1390 = vld [vmem:[#allocation4 + $0xa0] sm:$0xff]
          %v1391 = vld [vmem:[#allocation4 + $0xa8] sm:$0xff]
          %v1392 = vld [vmem:[#allocation4 + $0xb0] sm:$0xff]
          %v1393 = vld [vmem:[#allocation4 + $0xb8] sm:$0xff]
          %v1394 = vld [vmem:[#allocation4 + $0xc0] sm:$0xff]
          %v1395 = vld [vmem:[#allocation4 + $0xc8] sm:$0xff]
          %v1396 = vld [vmem:[#allocation4 + $0xd0] sm:$0xff]
          %1397 = vset.pattern.permute.xlu0 1
          %1398 = vperm.xlu0 %1397, %v771
          %v1399 = vpop.permute.xlu0 %1398
          %1401 = vset.pattern.permute.xlu0 1
          %1402 = vperm.xlu0 %1401, %v772
          %v1403 = vpop.permute.xlu0 %1402
          %v1407 = vunpack.c.l.b16 %v767
          %v1408 = vunpack.c.h.b16 %v767
          %v1409 = vunpack.c.l.b16 %v768
          %v1410 = vunpack.c.h.b16 %v768
          %v1411 = vpack.c.b16 %v1409, %v1407
          %v1412 = vpack.c.b16 %v1410, %v1408
          %v1415 = vsel %vm1033, %v1412, 0
          %1417 = vmatprep.subr.bf16.mxu0 %v1371
          %1418 = vmatpush1.bf16.msra.mxu0 %v1370
          %1419 = vmatprep.subr.bf16.mxu0 %v1374
          %1420 = vmatpush1.bf16.msra.mxu0 %v1373
          %1421 = vmatprep.subr.bf16.mxu0 %v1377
          %1422 = vmatpush1.bf16.msra.mxu0 %v1376
          %1423 = vmatprep.subr.bf16.mxu0 %v1380
          %1424 = vmatpush1.bf16.msra.mxu0 %v1379
          %1425 = vmatprep.subr.bf16.mxu0 %v1383
          %1426 = vmatpush1.bf16.msra.mxu0 %v1382
          %1427 = vmatprep.subr.bf16.mxu0 %v1386
          %1428 = vmatpush1.bf16.msra.mxu0 %v1385
          %1429 = vmatprep.subr.bf16.mxu0 %v1389
          %1430 = vmatpush1.bf16.msra.mxu0 %v1388
          %1431 = vmatprep.subr.bf16.mxu0 %v1392
          %1432 = vmatpush1.bf16.msra.mxu0 %v1391
          %1433 = vmatprep.subr.bf16.mxu0 %v1395
          %1434 = vmatpush1.bf16.msra.mxu0 %v1394
          %1435 = vmatprep.subr.bf16.mxu0 0
          %1436 = vmatpush1.bf16.msra.mxu0 0
          %1437 = vmatprep.subr.bf16.mxu0 0
          %1438 = vmatpush1.bf16.msra.mxu0 0
          %1439 = vmatprep.subr.bf16.mxu0 0
          %1440 = vmatpush1.bf16.msra.mxu0 0
          %1441 = vmatprep.subr.bf16.mxu0 0
          %1442 = vmatpush1.bf16.msra.mxu0 0
          %1443 = vmatprep.subr.bf16.mxu0 0
          %1444 = vmatpush1.bf16.msra.mxu0 0
          %1445 = vmatprep.subr.bf16.mxu0 0
          %1446 = vmatpush1.bf16.msra.mxu0 0
          %1447 = vmatprep.subr.bf16.mxu0 0
          %1448 = vmatpush1.bf16.msra.mxu0 0
          %1449 = vmatprep.mubr.bf16.mxu0 %v1415
          %1450 = vmatmul.mubr.bf16.gmra.mrb[0].mxu0 %v1411
          %v1451 = vpop.f32.mrb[0].mxu0
          %v1452 = vadd.f32 %v1399, %v1451
          %v1453 = vpop.f32.mrb[0].mxu0
          %v1454 = vadd.f32 %v1399, %v1453
          %v1455 = vpop.f32.mrb[0].mxu0
          %v1456 = vadd.f32 %v1403, %v1455
          %v1457 = vpop.f32.mrb[0].mxu0
          %v1458 = vadd.f32 %v1403, %v1457
          %1459 = vdwg.mxu0
          %1460 = vmatprep.subr.bf16.mxu0 0
          %1461 = vmatpush1.bf16.msra.mxu0 %v1372
          %1462 = vmatprep.subr.bf16.mxu0 0
          %1463 = vmatpush1.bf16.msra.mxu0 %v1375
          %1464 = vmatprep.subr.bf16.mxu0 0
          %1465 = vmatpush1.bf16.msra.mxu0 %v1378
          %1466 = vmatprep.subr.bf16.mxu0 0
          %1467 = vmatpush1.bf16.msra.mxu0 %v1381
          %1468 = vmatprep.subr.bf16.mxu0 0
          %1469 = vmatpush1.bf16.msra.mxu0 %v1384
          %1470 = vmatprep.subr.bf16.mxu0 0
          %1471 = vmatpush1.bf16.msra.mxu0 %v1387
          %1472 = vmatprep.subr.bf16.mxu0 0
          %1473 = vmatpush1.bf16.msra.mxu0 %v1390
          %1474 = vmatprep.subr.bf16.mxu0 0
          %1475 = vmatpush1.bf16.msra.mxu0 %v1393
          %1476 = vmatprep.subr.bf16.mxu0 0
          %1477 = vmatpush1.bf16.msra.mxu0 %v1396
          %1478 = vmatprep.subr.bf16.mxu0 0
          %1479 = vmatpush1.bf16.msra.mxu0 0
          %1480 = vmatprep.subr.bf16.mxu0 0
          %1481 = vmatpush1.bf16.msra.mxu0 0
          %1482 = vmatprep.subr.bf16.mxu0 0
          %1483 = vmatpush1.bf16.msra.mxu0 0
          %1484 = vmatprep.subr.bf16.mxu0 0
          %1485 = vmatpush1.bf16.msra.mxu0 0
          %1486 = vmatprep.subr.bf16.mxu0 0
          %1487 = vmatpush1.bf16.msra.mxu0 0
          %1488 = vmatprep.subr.bf16.mxu0 0
          %1489 = vmatpush1.bf16.msra.mxu0 0
          %1490 = vmatprep.subr.bf16.mxu0 0
          %1491 = vmatpush1.bf16.msra.mxu0 0
          %1492 = vmatprep.mubr.bf16.mxu0 %v1415
          %1493 = vmatmul.mubr.bf16.gmra.mrb[0].mxu0 %v1411
          %v1494 = vpop.f32.mrb[0].mxu0
          %v1495 = vadd.f32 %v1399, %v1494
          %v1496 = vpop.f32.mrb[0].mxu0
          %v1497 = vpop.f32.mrb[0].mxu0
          %v1498 = vadd.f32 %v1403, %v1497
          %v1499 = vpop.f32.mrb[0].mxu0
          %1500 = vdwg.mxu0
          %v1501 = vadd.f32 %v1452, %v1158
          %v1502 = vadd.f32 %v1454, %v1159
          %v1503 = vadd.f32 %v1495, %v1160
          %v1504 = vadd.f32 %v1456, %v1161
          %v1505 = vadd.f32 %v1458, %v1162
          %v1506 = vadd.f32 %v1498, %v1163
          %v1507 = vmax.f32 %v1501, 0.0
          %v1508 = vmax.f32 %v1502, 0.0
          %v1509 = vmax.f32 %v1503, 0.0
          %v1510 = vmax.f32 %v1504, 0.0
          %v1511 = vmax.f32 %v1505, 0.0
          %v1512 = vmax.f32 %v1506, 0.0
          %v1513 = vmul.f32 %v1507, %v1131
          %v1514 = vmul.f32 %v1508, %v1135
          %v1515 = vmul.f32 %v1509, %v1139
          %v1516 = vmul.f32 %v1510, %v1131
          %v1517 = vmul.f32 %v1511, %v1135
          %v1518 = vmul.f32 %v1512, %v1139
          %v1519 = vpack.c.bf16 %v1516, %v1513
          %v1520 = vpack.c.bf16 %v1517, %v1514
          %v1521 = vpack.c.bf16 %v1518, %v1515
          %1522 = vst [vmem:[#allocation2 + $0x8] sm:$0xff] %v1519
          %1523 = vst [vmem:[#allocation2 + $0x10] sm:$0xff] %v1520
          %1524 = vst [vmem:[#allocation2 + $0x18] sm:$0xff] %v1521
        $region64: #{resnet56_forward.3} parent=47 // pred_fallthru
          _
        %p1525 = scmp.eq.s32.totalorder %s25, 9
        // Predicated region
        $region65: #{resnet56_forward.3} parent=47 // pred_check
          %p1526 = pneg %p1525
        $region66: #{resnet56_forward.3} parent=47 // pred_check_branch
          %1528 = sbr.rel (%p1526) target = $region68
        $region67: #{resnet56_forward.3} parent=47 // pred_region
          %v1529 = vld [vmem:[#allocation2] sm:$0xff]
          %v1530 = vld [vmem:[#allocation2 + $0x8] sm:$0xff]
          %v1531 = vld [vmem:[#allocation2 + $0x10] sm:$0xff]
          %v1532 = vld [vmem:[#allocation2 + $0x18] sm:$0xff]
          %v1533 = vld [vmem:[#allocation2 + $0x20] sm:$0xff]
          %v1539 = vunpack.c.l.b16 %v1529
          %v1540 = vunpack.c.l.b16 %v1530
          %v1541 = vunpack.c.l.b16 %v1531
          %v1542 = vunpack.c.l.b16 %v1532
          %v1543 = vunpack.c.l.b16 %v1533
          %v1544 = vunpack.c.h.b16 %v1529
          %v1545 = vunpack.c.h.b16 %v1530
          %v1546 = vunpack.c.h.b16 %v1531
          %v1547 = vunpack.c.h.b16 %v1532
          %v1548 = vunpack.c.h.b16 %v1533
          %v1549 = vpack.c.b16 %v1540, %v1539
          %v1550 = vpack.c.b16 %v1542, %v1541
          %v1551 = vpack.c.b16 %v1543, %v1543
          %v1552 = vpack.c.b16 %v1545, %v1544
          %v1553 = vpack.c.b16 %v1547, %v1546
          %v1554 = vpack.c.b16 %v1548, %v1548
          %1561 = vst [vmem:[%s320] sm:$0xff] %v1549
          %1562 = vst [vmem:[%s320 + $0x8] sm:$0xff] %v1550
          %1563 = vst [vmem:[%s320 + $0x10] sm:$0xf] %v1551
          %1564 = vst [vmem:[%s320 + $0x14] sm:$0xff] %v1552
          %1565 = vst [vmem:[%s320 + $0x1c] sm:$0xff] %v1553
          %1566 = vst [vmem:[%s320 + $0x24] sm:$0xf] %v1554
        $region68: #{resnet56_forward.3} parent=47 // pred_fallthru
          _
        %p1567 = scmp.lt.s32.totalorder %s24, 1
        %s1568 = scalar_select %p1567, %s24, 1
        %s1569 = smul.addr %s1568, 10
        %s1570 = smul.addr %s1569, 4
        %s1571 = scalar_lea.vmem %s7, %s1570
        // Predicated region
        $region69: #{resnet56_forward.3} parent=47 // pred_check
          %p1572 = pneg %p202
        $region70: #{resnet56_forward.3} parent=47 // pred_check_branch
          %1574 = sbr.rel (%p1572) target = $region72
        $region71: #{resnet56_forward.3} parent=47 // pred_region
          _
        $region72: #{resnet56_forward.3} parent=47 // pred_fallthru
          _
      $region48: #{resnet56_forward.3} parent=5 // pred_fallthru
        _
      %p1575 = scmp.le.s32.totalorder 2, %s15
      // Predicated region
      $region73: #{resnet56_forward.3} parent=5 // pred_check
        %p1576 = pneg %p1575
      $region74: #{resnet56_forward.3} parent=5 // pred_check_branch
        %1578 = sbr.rel (%p1576) target = $region76
      $region75: #{resnet56_forward.3} parent=5 // pred_region
        %s1579 = ssub.s32 %s15, 2
        // Predicated region
        $region77: #{resnet56_forward.3} parent=75 // pred_check
          %p1580 = pneg %p208
        $region78: #{resnet56_forward.3} parent=75 // pred_check_branch
          %1582 = sbr.rel (%p1580) target = $region80
        $region79: #{resnet56_forward.3} parent=75 // pred_region
          %p1583 = scmp.lt.s32.totalorder %s26, 1
          %s1584 = scalar_select %p1583, %s26, 1
          %s1585 = smul.addr %s1584, 10
          %s1586 = smul.addr %s1585, 4
          %s1587 = scalar_lea.vmem %s7, %s1586
        $region80: #{resnet56_forward.3} parent=75 // pred_fallthru
          _
      $region76: #{resnet56_forward.3} parent=5 // pred_fallthru
        _
    $region6: #{resnet56_forward.3} parent=1 // loop_footer
      %s19 = sadd.s32 1, %s15
    $region7: #{resnet56_forward.3} parent=1 // loop_footer_branch
      %14 = sbr.rel target = $region3
    $region8: #{resnet56_forward.3} parent=1 // loop_exit
      _
    %1588 = vsyncpa [#allocation6], 1
    %s1589 = scalar_lea.sflag [#allocation6], 1
    %1590 = vsyncpa %s1589, 1
    %1591 = vsyncpa [#allocation8], 1

// kernel: resnet56_forward.4
$region0: #{resnet56_forward.4}
  #allocation0 [shape = 'u32[]', space=smem, size = 0x4, offset = 0x4, fixed_abs, tag = 'smem constant byte address 0x4 - core index']
  #allocation1 [shape = 'u32[144,128]{1,0:T(1,128)}', space=vmem, size = 0x12000, scoped, tag = 'internal scratch']
  #allocation2 [shape = 'bf16[32,384]{1,0:T(16,128)(2,1)}', space=vmem, size = 0x6000, scoped, tag = 'scratch operand']
  #allocation3 [shape = 'bf16[32,384]{1,0:T(16,128)(2,1)}', space=vmem, size = 0x6000, scoped, tag = 'scratch operand']
  #allocation4 [shape = 'bf16[288,384]{1,0:T(16,128)(2,1)}', space=vmem, size = 0x36000, scoped, tag = 'scratch operand']
  %s0 = inlined_call_operand.vmem [shape: bf16[2,16,640], index: 0, kind: input, shape index: {}]
  %s1 = inlined_call_operand.hbm [shape: bf16[32,144], index: 1, kind: input, shape index: {}]
  %s2 = inlined_call_operand.hbm [shape: bf16[32,288], index: 2, kind: input, shape index: {}]
  %s3 = inlined_call_operand.vmem [shape: bf16[32,16], index: 3, kind: input, shape index: {}]
  %s4 = inlined_call_operand.vmem [shape: f32[32,2], index: 4, kind: input, shape index: {}]
  %s5 = inlined_call_operand.vmem [shape: bf16[384,128], index: 5, kind: input, shape index: {}]
  %s6 = inlined_call_operand.vmem [shape: bf16[8,32,288], index: 6, kind: input, shape index: {}]
  %s7 = inlined_call_operand.vmem [shape: bf16[8,32,288], index: 7, kind: input, shape index: {}]
  %s8 = inlined_call_operand.vmem [shape: f32[8,32,2], index: 8, kind: input, shape index: {}]
  %s9 = inlined_call_operand.hbm [shape: f32[1,128], index: 9, kind: input, shape index: {}]
  %s10 = inlined_call_operand.vmem [shape: bf16[2,32,384], index: 10, kind: output, shape index: {}]
  %s11 = sld [smem:[#allocation0]]
  $region97: #{resnet56_forward.4} parent=0
    _
  %s13 = ssub.s32 1, %s11
  %s14 = scalar_select 0, %s13, %s11
  $region1: #{resnet56_forward.4} parent=0
    #allocation5 [shape = 'u8[16384]{0}', space=vmem, size = 0x4000, scoped, tag = 'input window, operand 1, single buffered']
    #allocation6 [shape = 's32[2]{0}', space=sflag, size = 0x8, scoped, tag = 'scoped memory for resnet56_forward.4']
    #allocation7 [shape = 'u8[24576]{0}', space=vmem, size = 0x6000, scoped, tag = 'input window, operand 2, single buffered']
    #allocation8 [shape = 's32[1]{0}', space=sflag, size = 0x4, scoped, tag = 'scoped memory for resnet56_forward.4']
    #allocation9 [shape = 'u8[512]{0}', space=vmem, size = 0x400, scoped, tag = 'input window, operand 9, single buffered']
    %15 = vsyncpa [#allocation6], 0
    %16 = vsyncpa [#allocation8], 0
    loop: start=0, step=1, limit=20
    $region2: #{resnet56_forward.4} parent=1 // loop_pre_header
      _
    $region3: #{resnet56_forward.4} parent=1 // loop_header
      %s18 = sphi 0, %s22
      %p19 = scmp.ge.s32.totalorder %s18, 20
      %s25 = sphi 0, %s37
      %s26 = sphi 0, %s33
      %s27 = sphi 0, %s25
      %s28 = sphi 0, %s26
      %s29 = sphi 0, %s27
      %s30 = sphi 0, %s28
      %s40 = sphi 0, %s42
      %s43 = sphi 0, %s40
      %s44 = sphi 0, %s43
      %s60 = sphi 0, %s44
      %s64 = sphi 0, %s64
      %s66 = sphi 0, %s64
      %s67 = sphi 0, %s66
      %s81 = sphi 0, %s67
      %s85 = sphi 0, %s85
      %s87 = sphi 0, %s85
      %s88 = sphi 0, %s87
      %s102 = sphi 0, %s88
      %s106 = sphi 0, %s106
      %s108 = sphi 0, %s106
      %s109 = sphi 0, %s108
      %s123 = sphi 0, %s109
      %s127 = sphi 0, %s127
      %s129 = sphi 0, %s127
      %s130 = sphi 0, %s129
      %s144 = sphi 0, %s130
      %s148 = sphi 0, %s148
      %s150 = sphi 0, %s148
      %s151 = sphi 0, %s150
      %s165 = sphi 0, %s151
      %s169 = sphi 0, %s169
      %s171 = sphi 0, %s169
      %s172 = sphi 0, %s171
      %s186 = sphi 0, %s172
      %s190 = sphi 0, %s190
      %s192 = sphi 0, %s190
      %s193 = sphi 0, %s192
      %s207 = sphi 0, %s193
      %s211 = sphi 0, %s211
      %s213 = sphi 0, %s211
      %s214 = sphi 0, %s213
      %s228 = sphi 0, %s214
      %s232 = sphi 0, %s232
      %s234 = sphi 0, %s232
      %s235 = sphi 0, %s234
      %s249 = sphi 0, %s235
      %s255 = sphi 0, %s257
      %s258 = sphi 0, %s255
      %s259 = sphi 0, %s258
      %s275 = sphi 0, %s259
    $region4: #{resnet56_forward.4} parent=1 // loop_header_branch
      %21 = sbr.rel (%p19) target = $region8
    $region5: #{resnet56_forward.4} parent=1 // loop_body
      %s23 = ssub.s32 %s18, 1
      %s24 = ssub.s32 %s18, 2
      %s31 = sadd.s32 1, %s26
      %p32 = scmp.ge.s32.totalorder %s31, 9
      %s33 = scalar_select %p32, 0, %s31
      %s34 = sadd.s32 1, %s25
      %s35 = scalar_select %p32, %s34, %s25
      %p36 = scmp.ge.s32.totalorder %s35, 2
      %s37 = scalar_select %p36, 0, %s35
      %s38 = ssub.s32 %s25, %s37
      %p39 = scmp.eq.s32.totalorder %s38, 0
      %s41 = sadd.s32 %s40, 1
      %s42 = scalar_select %p39, %s40, %s41
      %p45 = pneg %p39
      %p46 = scmp.eq.s32.totalorder %s18, 17
      %p47 = por %p45, %p46
      %p48 = scmp.ne.s32.totalorder %s40, %s43
      %p49 = scmp.eq.s32.totalorder %s18, 0
      %p50 = por %p48, %p49
      %p51 = scmp.ne.s32.totalorder %s40, %s43
      %p52 = scmp.eq.s32.totalorder %s23, 17
      %p53 = por %p51, %p52
      %p54 = scmp.ne.s32.totalorder %s43, %s44
      %p55 = scmp.eq.s32.totalorder %s23, 0
      %p56 = por %p54, %p55
      %p57 = scmp.ne.s32.totalorder %s43, %s44
      %p58 = scmp.eq.s32.totalorder %s24, 17
      %p59 = por %p57, %p58
      %p61 = scmp.ne.s32.totalorder %s44, %s60
      %p62 = scmp.eq.s32.totalorder %s24, 0
      %p63 = por %p61, %p62
      %s65 = sadd.s32 %s64, 1
      %p68 = scmp.eq.s32.totalorder %s18, 17
      %p69 = scmp.ne.s32.totalorder %s64, %s66
      %p70 = scmp.eq.s32.totalorder %s18, 0
      %p71 = por %p69, %p70
      %p72 = scmp.ne.s32.totalorder %s64, %s66
      %p73 = scmp.eq.s32.totalorder %s23, 17
      %p74 = por %p72, %p73
      %p75 = scmp.ne.s32.totalorder %s66, %s67
      %p76 = scmp.eq.s32.totalorder %s23, 0
      %p77 = por %p75, %p76
      %p78 = scmp.ne.s32.totalorder %s66, %s67
      %p79 = scmp.eq.s32.totalorder %s24, 17
      %p80 = por %p78, %p79
      %p82 = scmp.ne.s32.totalorder %s67, %s81
      %p83 = scmp.eq.s32.totalorder %s24, 0
      %p84 = por %p82, %p83
      %s86 = sadd.s32 %s85, 1
      %p89 = scmp.eq.s32.totalorder %s18, 17
      %p90 = scmp.ne.s32.totalorder %s85, %s87
      %p91 = scmp.eq.s32.totalorder %s18, 0
      %p92 = por %p90, %p91
      %p93 = scmp.ne.s32.totalorder %s85, %s87
      %p94 = scmp.eq.s32.totalorder %s23, 17
      %p95 = por %p93, %p94
      %p96 = scmp.ne.s32.totalorder %s87, %s88
      %p97 = scmp.eq.s32.totalorder %s23, 0
      %p98 = por %p96, %p97
      %p99 = scmp.ne.s32.totalorder %s87, %s88
      %p100 = scmp.eq.s32.totalorder %s24, 17
      %p101 = por %p99, %p100
      %p103 = scmp.ne.s32.totalorder %s88, %s102
      %p104 = scmp.eq.s32.totalorder %s24, 0
      %p105 = por %p103, %p104
      %s107 = sadd.s32 %s106, 1
      %p110 = scmp.eq.s32.totalorder %s18, 17
      %p111 = scmp.ne.s32.totalorder %s106, %s108
      %p112 = scmp.eq.s32.totalorder %s18, 0
      %p113 = por %p111, %p112
      %p114 = scmp.ne.s32.totalorder %s106, %s108
      %p115 = scmp.eq.s32.totalorder %s23, 17
      %p116 = por %p114, %p115
      %p117 = scmp.ne.s32.totalorder %s108, %s109
      %p118 = scmp.eq.s32.totalorder %s23, 0
      %p119 = por %p117, %p118
      %p120 = scmp.ne.s32.totalorder %s108, %s109
      %p121 = scmp.eq.s32.totalorder %s24, 17
      %p122 = por %p120, %p121
      %p124 = scmp.ne.s32.totalorder %s109, %s123
      %p125 = scmp.eq.s32.totalorder %s24, 0
      %p126 = por %p124, %p125
      %s128 = sadd.s32 %s127, 1
      %p131 = scmp.eq.s32.totalorder %s18, 17
      %p132 = scmp.ne.s32.totalorder %s127, %s129
      %p133 = scmp.eq.s32.totalorder %s18, 0
      %p134 = por %p132, %p133
      %p135 = scmp.ne.s32.totalorder %s127, %s129
      %p136 = scmp.eq.s32.totalorder %s23, 17
      %p137 = por %p135, %p136
      %p138 = scmp.ne.s32.totalorder %s129, %s130
      %p139 = scmp.eq.s32.totalorder %s23, 0
      %p140 = por %p138, %p139
      %p141 = scmp.ne.s32.totalorder %s129, %s130
      %p142 = scmp.eq.s32.totalorder %s24, 17
      %p143 = por %p141, %p142
      %p145 = scmp.ne.s32.totalorder %s130, %s144
      %p146 = scmp.eq.s32.totalorder %s24, 0
      %p147 = por %p145, %p146
      %s149 = sadd.s32 %s148, 1
      %p152 = scmp.eq.s32.totalorder %s18, 17
      %p153 = scmp.ne.s32.totalorder %s148, %s150
      %p154 = scmp.eq.s32.totalorder %s18, 0
      %p155 = por %p153, %p154
      %p156 = scmp.ne.s32.totalorder %s148, %s150
      %p157 = scmp.eq.s32.totalorder %s23, 17
      %p158 = por %p156, %p157
      %p159 = scmp.ne.s32.totalorder %s150, %s151
      %p160 = scmp.eq.s32.totalorder %s23, 0
      %p161 = por %p159, %p160
      %p162 = scmp.ne.s32.totalorder %s150, %s151
      %p163 = scmp.eq.s32.totalorder %s24, 17
      %p164 = por %p162, %p163
      %p166 = scmp.ne.s32.totalorder %s151, %s165
      %p167 = scmp.eq.s32.totalorder %s24, 0
      %p168 = por %p166, %p167
      %s170 = sadd.s32 %s169, 1
      %p173 = scmp.eq.s32.totalorder %s18, 17
      %p174 = scmp.ne.s32.totalorder %s169, %s171
      %p175 = scmp.eq.s32.totalorder %s18, 0
      %p176 = por %p174, %p175
      %p177 = scmp.ne.s32.totalorder %s169, %s171
      %p178 = scmp.eq.s32.totalorder %s23, 17
      %p179 = por %p177, %p178
      %p180 = scmp.ne.s32.totalorder %s171, %s172
      %p181 = scmp.eq.s32.totalorder %s23, 0
      %p182 = por %p180, %p181
      %p183 = scmp.ne.s32.totalorder %s171, %s172
      %p184 = scmp.eq.s32.totalorder %s24, 17
      %p185 = por %p183, %p184
      %p187 = scmp.ne.s32.totalorder %s172, %s186
      %p188 = scmp.eq.s32.totalorder %s24, 0
      %p189 = por %p187, %p188
      %s191 = sadd.s32 %s190, 1
      %p194 = scmp.eq.s32.totalorder %s18, 17
      %p195 = scmp.ne.s32.totalorder %s190, %s192
      %p196 = scmp.eq.s32.totalorder %s18, 0
      %p197 = por %p195, %p196
      %p198 = scmp.ne.s32.totalorder %s190, %s192
      %p199 = scmp.eq.s32.totalorder %s23, 17
      %p200 = por %p198, %p199
      %p201 = scmp.ne.s32.totalorder %s192, %s193
      %p202 = scmp.eq.s32.totalorder %s23, 0
      %p203 = por %p201, %p202
      %p204 = scmp.ne.s32.totalorder %s192, %s193
      %p205 = scmp.eq.s32.totalorder %s24, 17
      %p206 = por %p204, %p205
      %p208 = scmp.ne.s32.totalorder %s193, %s207
      %p209 = scmp.eq.s32.totalorder %s24, 0
      %p210 = por %p208, %p209
      %s212 = sadd.s32 %s211, 1
      %p215 = scmp.eq.s32.totalorder %s18, 17
      %p216 = scmp.ne.s32.totalorder %s211, %s213
      %p217 = scmp.eq.s32.totalorder %s18, 0
      %p218 = por %p216, %p217
      %p219 = scmp.ne.s32.totalorder %s211, %s213
      %p220 = scmp.eq.s32.totalorder %s23, 17
      %p221 = por %p219, %p220
      %p222 = scmp.ne.s32.totalorder %s213, %s214
      %p223 = scmp.eq.s32.totalorder %s23, 0
      %p224 = por %p222, %p223
      %p225 = scmp.ne.s32.totalorder %s213, %s214
      %p226 = scmp.eq.s32.totalorder %s24, 17
      %p227 = por %p225, %p226
      %p229 = scmp.ne.s32.totalorder %s214, %s228
      %p230 = scmp.eq.s32.totalorder %s24, 0
      %p231 = por %p229, %p230
      %s233 = sadd.s32 %s232, 1
      %p236 = scmp.eq.s32.totalorder %s18, 17
      %p237 = scmp.ne.s32.totalorder %s232, %s234
      %p238 = scmp.eq.s32.totalorder %s18, 0
      %p239 = por %p237, %p238
      %p240 = scmp.ne.s32.totalorder %s232, %s234
      %p241 = scmp.eq.s32.totalorder %s23, 17
      %p242 = por %p240, %p241
      %p243 = scmp.ne.s32.totalorder %s234, %s235
      %p244 = scmp.eq.s32.totalorder %s23, 0
      %p245 = por %p243, %p244
      %p246 = scmp.ne.s32.totalorder %s234, %s235
      %p247 = scmp.eq.s32.totalorder %s24, 17
      %p248 = por %p246, %p247
      %p250 = scmp.ne.s32.totalorder %s235, %s249
      %p251 = scmp.eq.s32.totalorder %s24, 0
      %p252 = por %p250, %p251
      %s253 = ssub.s32 %s25, %s37
      %p254 = scmp.eq.s32.totalorder %s253, 0
      %s256 = sadd.s32 %s255, 1
      %s257 = scalar_select %p254, %s255, %s256
      %p260 = pneg %p254
      %p261 = scmp.eq.s32.totalorder %s18, 17
      %p262 = por %p260, %p261
      %p263 = scmp.ne.s32.totalorder %s255, %s258
      %p264 = scmp.eq.s32.totalorder %s18, 0
      %p265 = por %p263, %p264
      %p266 = scmp.ne.s32.totalorder %s255, %s258
      %p267 = scmp.eq.s32.totalorder %s23, 17
      %p268 = por %p266, %p267
      %p269 = scmp.ne.s32.totalorder %s258, %s259
      %p270 = scmp.eq.s32.totalorder %s23, 0
      %p271 = por %p269, %p270
      %p272 = scmp.ne.s32.totalorder %s258, %s259
      %p273 = scmp.eq.s32.totalorder %s24, 17
      %p274 = por %p272, %p273
      %p276 = scmp.ne.s32.totalorder %s259, %s275
      %p277 = scmp.eq.s32.totalorder %s24, 0
      %p278 = por %p276, %p277
      %p279 = scmp.le.s32.totalorder 1, %s18
      %p280 = scmp.lt.s32.totalorder %s18, 19
      %p281 = pnand %p279, %p280
      %p282 = pneg %p281
      // Predicated region
      $region9: #{resnet56_forward.4} parent=5 // pred_check
        _
      $region10: #{resnet56_forward.4} parent=5 // pred_check_branch
        %284 = sbr.rel (%p281) target = $region12
      $region11: #{resnet56_forward.4} parent=5 // pred_region
        %s285 = ssub.s32 %s18, 1
        // Predicated region
        $region13: #{resnet56_forward.4} parent=11 // pred_check
          %p286 = pneg %p77
        $region14: #{resnet56_forward.4} parent=11 // pred_check_branch
          %288 = sbr.rel (%p286) target = $region16
        $region15: #{resnet56_forward.4} parent=11 // pred_region
          %s290 = ssub.s32 512, 512
          %291 = vsyncadd [#allocation6], %s290
          %s292 = sshll.u32 [#allocation5], 4
          %s293 = int_to_ptr.vmem [resolvable:$true] %s292
          %298 = dma.hbm_to_vmem [thread:$0]  %s1, 512, %s293, [#allocation6], 128, 128, 8
        $region16: #{resnet56_forward.4} parent=11 // pred_fallthru
          _
        // Predicated region
        $region17: #{resnet56_forward.4} parent=11 // pred_check
          %p299 = pneg %p98
        $region18: #{resnet56_forward.4} parent=11 // pred_check_branch
          %301 = sbr.rel (%p299) target = $region20
        $region19: #{resnet56_forward.4} parent=11 // pred_region
          %s303 = ssub.s32 768, 768
          %304 = vsyncadd [#allocation8], %s303
          %s305 = sshll.u32 [#allocation7], 4
          %s306 = int_to_ptr.vmem [resolvable:$true] %s305
          %311 = dma.hbm_to_vmem [thread:$0]  %s2, 768, %s306, [#allocation8], 192, 192, 12
        $region20: #{resnet56_forward.4} parent=11 // pred_fallthru
          _
        // Predicated region
        $region21: #{resnet56_forward.4} parent=11 // pred_check
          %p312 = pneg %p119
        $region22: #{resnet56_forward.4} parent=11 // pred_check_branch
          %314 = sbr.rel (%p312) target = $region24
        $region23: #{resnet56_forward.4} parent=11 // pred_region
          _
        $region24: #{resnet56_forward.4} parent=11 // pred_fallthru
          _
        // Predicated region
        $region25: #{resnet56_forward.4} parent=11 // pred_check
          %p315 = pneg %p140
        $region26: #{resnet56_forward.4} parent=11 // pred_check_branch
          %317 = sbr.rel (%p315) target = $region28
        $region27: #{resnet56_forward.4} parent=11 // pred_region
          _
        $region28: #{resnet56_forward.4} parent=11 // pred_fallthru
          _
        // Predicated region
        $region29: #{resnet56_forward.4} parent=11 // pred_check
          %p318 = pneg %p161
        $region30: #{resnet56_forward.4} parent=11 // pred_check_branch
          %320 = sbr.rel (%p318) target = $region32
        $region31: #{resnet56_forward.4} parent=11 // pred_region
          _
        $region32: #{resnet56_forward.4} parent=11 // pred_fallthru
          _
        // Predicated region
        $region33: #{resnet56_forward.4} parent=11 // pred_check
          %p321 = pneg %p182
        $region34: #{resnet56_forward.4} parent=11 // pred_check_branch
          %323 = sbr.rel (%p321) target = $region36
        $region35: #{resnet56_forward.4} parent=11 // pred_region
          _
        $region36: #{resnet56_forward.4} parent=11 // pred_fallthru
          _
        // Predicated region
        $region37: #{resnet56_forward.4} parent=11 // pred_check
          %p324 = pneg %p203
        $region38: #{resnet56_forward.4} parent=11 // pred_check_branch
          %326 = sbr.rel (%p324) target = $region40
        $region39: #{resnet56_forward.4} parent=11 // pred_region
          _
        $region40: #{resnet56_forward.4} parent=11 // pred_fallthru
          _
        // Predicated region
        $region41: #{resnet56_forward.4} parent=11 // pred_check
          %p327 = pneg %p224
        $region42: #{resnet56_forward.4} parent=11 // pred_check_branch
          %329 = sbr.rel (%p327) target = $region44
        $region43: #{resnet56_forward.4} parent=11 // pred_region
          _
        $region44: #{resnet56_forward.4} parent=11 // pred_fallthru
          _
        // Predicated region
        $region45: #{resnet56_forward.4} parent=11 // pred_check
          %p330 = pneg %p245
        $region46: #{resnet56_forward.4} parent=11 // pred_check_branch
          %332 = sbr.rel (%p330) target = $region48
        $region47: #{resnet56_forward.4} parent=11 // pred_region
          %s334 = ssub.s32 16, 16
          %335 = vsyncadd [#allocation8], %s334
          %s337 = sshll.u32 [#allocation9], 4
          %s338 = int_to_ptr.vmem [resolvable:$true] %s337
          %340 = dma.hbm_to_vmem [thread:$0]  %s9, 16, %s338, [#allocation8]
        $region48: #{resnet56_forward.4} parent=11 // pred_fallthru
          _
      $region12: #{resnet56_forward.4} parent=5 // pred_fallthru
        _
      %p341 = scmp.lt.s32.totalorder %s18, 18
      // Predicated region
      $region49: #{resnet56_forward.4} parent=5 // pred_check
        %p342 = pneg %p341
      $region50: #{resnet56_forward.4} parent=5 // pred_check_branch
        %344 = sbr.rel (%p342) target = $region52
      $region51: #{resnet56_forward.4} parent=5 // pred_region
        // Predicated region
        $region53: #{resnet56_forward.4} parent=51 // pred_check
          %p345 = pneg %p50
        $region54: #{resnet56_forward.4} parent=51 // pred_check_branch
          %347 = sbr.rel (%p345) target = $region56
        $region55: #{resnet56_forward.4} parent=51 // pred_region
          %p348 = scmp.lt.s32.totalorder %s25, 1
          %s349 = scalar_select %p348, %s25, 1
          %s350 = smul.addr %s349, 10
          %s351 = smul.addr %s350, 4
          %s352 = scalar_lea.vmem %s0, %s351
        $region56: #{resnet56_forward.4} parent=51 // pred_fallthru
          _
      $region52: #{resnet56_forward.4} parent=5 // pred_fallthru
        _
      %p353 = scmp.le.s32.totalorder 1, %s18
      %p354 = scmp.lt.s32.totalorder %s18, 19
      %p355 = pnand %p353, %p354
      %p356 = pneg %p355
      // Predicated region
      $region57: #{resnet56_forward.4} parent=5 // pred_check
        _
      $region58: #{resnet56_forward.4} parent=5 // pred_check_branch
        %358 = sbr.rel (%p355) target = $region60
      $region59: #{resnet56_forward.4} parent=5 // pred_region
        %s359 = ssub.s32 %s18, 1
        // Predicated region
        $region61: #{resnet56_forward.4} parent=59 // pred_check
          %p360 = pneg %p77
        $region62: #{resnet56_forward.4} parent=59 // pred_check_branch
          %362 = sbr.rel (%p360) target = $region64
        $region63: #{resnet56_forward.4} parent=59 // pred_region
          %363 = dma.done [#allocation6], 512
        $region64: #{resnet56_forward.4} parent=59 // pred_fallthru
          _
        // Predicated region
        $region65: #{resnet56_forward.4} parent=59 // pred_check
          %p364 = pneg %p98
        $region66: #{resnet56_forward.4} parent=59 // pred_check_branch
          %366 = sbr.rel (%p364) target = $region68
        $region67: #{resnet56_forward.4} parent=59 // pred_region
          %367 = dma.done [#allocation8], 768
        $region68: #{resnet56_forward.4} parent=59 // pred_fallthru
          _
        // Predicated region
        $region69: #{resnet56_forward.4} parent=59 // pred_check
          %p368 = pneg %p245
        $region70: #{resnet56_forward.4} parent=59 // pred_check_branch
          %370 = sbr.rel (%p368) target = $region72
        $region71: #{resnet56_forward.4} parent=59 // pred_region
          %371 = dma.done [#allocation8], 16
        $region72: #{resnet56_forward.4} parent=59 // pred_fallthru
          _
        %p372 = scmp.lt.s32.totalorder %s27, 1
        %s373 = scalar_select %p372, %s27, 1
        %s374 = smul.addr %s373, 10
        %s375 = smul.addr %s374, 4
        %s376 = scalar_lea.vmem %s0, %s375
        %p377 = pneg %p56
        %p378 = pneg %p53
        %p379 = pneg %p77
        %p380 = pneg %p74
        %p381 = pneg %p98
        %p382 = pneg %p95
        %p383 = pneg %p119
        %p384 = pneg %p116
        %p385 = pneg %p140
        %p386 = pneg %p137
        %p387 = pneg %p161
        %p388 = pneg %p158
        %p389 = pneg %p182
        %p390 = pneg %p179
        %p391 = pneg %p203
        %p392 = pneg %p200
        %p393 = pneg %p224
        %p394 = pneg %p221
        %p395 = pneg %p245
        %p396 = pneg %p242
        %p397 = pneg %p271
        %p398 = pneg %p268
        %p399 = scmp.lt.s32.totalorder %s27, 1
        %s400 = scalar_select %p399, %s27, 1
        %s401 = smul.addr %s400, 12
        %s402 = smul.addr %s401, 4
        %s403 = scalar_lea.vmem %s10, %s402
        %p404 = scmp.lt.s32.totalorder %s27, 1
        %s405 = scalar_select %p404, %s27, 1
        %s406 = smul.addr %s405, 10
        %s407 = smul.addr %s406, 4
        %s408 = scalar_lea.vmem %s0, %s407
        %p409 = scmp.lt.s32.totalorder %s27, 1
        %s410 = scalar_select %p409, %s27, 1
        %s411 = smul.addr %s410, 12
        %s412 = smul.addr %s411, 4
        %s413 = scalar_lea.vmem %s10, %s412
        %v415 = vld [vmem:[#allocation9] sm:$0x1]
        %p416 = scmp.eq.s32.totalorder %s28, 0
        // Predicated region
        $region73: #{resnet56_forward.4} parent=59 // pred_check
          %p417 = pneg %p416
        $region74: #{resnet56_forward.4} parent=59 // pred_check_branch
          %419 = sbr.rel (%p417) target = $region76
        $region75: #{resnet56_forward.4} parent=59 // pred_region
          %420 = vst [vmem:[#allocation2] sm:$0xff] 0
          %421 = vst [vmem:[#allocation2 + $0x8] sm:$0xff] 0
          %422 = vst [vmem:[#allocation2 + $0x10] sm:$0xff] 0
          %423 = vst [vmem:[#allocation2 + $0x18] sm:$0xff] 0
          %424 = vst [vmem:[#allocation2 + $0x20] sm:$0xff] 0
          %425 = vst [vmem:[#allocation2 + $0x28] sm:$0xff] 0
          %426 = vst [vmem:[#allocation3] sm:$0xff] 0
          %427 = vst [vmem:[#allocation3 + $0x8] sm:$0xff] 0
          %428 = vst [vmem:[#allocation3 + $0x10] sm:$0xff] 0
          %429 = vst [vmem:[#allocation3 + $0x18] sm:$0xff] 0
          %430 = vst [vmem:[#allocation3 + $0x20] sm:$0xff] 0
          %431 = vst [vmem:[#allocation3 + $0x28] sm:$0xff] 0
          %v432 = vld [vmem:[#allocation5] sm:$0xff]
          %v433 = vld [vmem:[#allocation5 + $0x8] sm:$0xff]
          %v434 = vld [vmem:[#allocation5 + $0x10] sm:$0xff]
          %v435 = vld [vmem:[#allocation5 + $0x18] sm:$0xff]
          %v436 = vld [vmem:[%s408] sm:$0xff]
          %v437 = vld [vmem:[%s408 + $0x8] sm:$0xff]
          %v438 = vld [vmem:[%s408 + $0x14] sm:$0xff]
          %v439 = vld [vmem:[%s408 + $0x1c] sm:$0xff]
          %v444 = vunpack.c.l.b16 %v436
          %v445 = vunpack.c.h.b16 %v436
          %v446 = vunpack.c.l.b16 %v437
          %v447 = vunpack.c.h.b16 %v437
          %v448 = vunpack.c.l.b16 %v438
          %v449 = vunpack.c.h.b16 %v438
          %v450 = vunpack.c.l.b16 %v439
          %v451 = vunpack.c.h.b16 %v439
          %v452 = vpack.c.b16 %v448, %v444
          %v453 = vpack.c.b16 %v449, %v445
          %v454 = vpack.c.b16 %v450, %v446
          %v455 = vpack.c.b16 %v451, %v447
          %456 = vrot.lane.b32.xlu0 %v452, 19
          %v457 = vpop.permute.xlu0 %456
          %458 = vrot.lane.b32.xlu0 %v453, 19
          %v459 = vpop.permute.xlu0 %458
          %460 = vrot.lane.b32.xlu0 %v454, 19
          %v461 = vpop.permute.xlu0 %460
          %462 = vrot.lane.b32.xlu0 %v455, 19
          %v463 = vpop.permute.xlu0 %462
          %vm464 = vcmask 154624
          %v465 = vsel %vm464, %v457, %v459
          %v466 = vsel %vm464, %v459, %v461
          %v467 = vsel %vm464, %v461, %v463
          %471 = vst [vmem:[#allocation4] sm:$0xff] %v465
          %472 = vst [vmem:[#allocation4 + $0x8] sm:$0xff] %v466
          %473 = vst [vmem:[#allocation4 + $0x10] sm:$0xff] %v467
          %v474 = vld [vmem:[%s408] sm:$0xff]
          %v475 = vld [vmem:[%s408 + $0x8] sm:$0xff]
          %v476 = vld [vmem:[%s408 + $0x14] sm:$0xff]
          %v477 = vld [vmem:[%s408 + $0x1c] sm:$0xff]
          %v482 = vunpack.c.l.b16 %v474
          %v483 = vunpack.c.h.b16 %v474
          %v484 = vunpack.c.l.b16 %v475
          %v485 = vunpack.c.h.b16 %v475
          %v486 = vunpack.c.l.b16 %v476
          %v487 = vunpack.c.h.b16 %v476
          %v488 = vunpack.c.l.b16 %v477
          %v489 = vunpack.c.h.b16 %v477
          %v490 = vpack.c.b16 %v486, %v482
          %v491 = vpack.c.b16 %v487, %v483
          %v492 = vpack.c.b16 %v488, %v484
          %v493 = vpack.c.b16 %v489, %v485
          %494 = vrot.lane.b32.xlu0 %v490, 18
          %v495 = vpop.permute.xlu0 %494
          %496 = vrot.lane.b32.xlu0 %v491, 18
          %v497 = vpop.permute.xlu0 %496
          %498 = vrot.lane.b32.xlu0 %v492, 18
          %v499 = vpop.permute.xlu0 %498
          %500 = vrot.lane.b32.xlu0 %v493, 18
          %v501 = vpop.permute.xlu0 %500
          %vm502 = vcmask 146432
          %v503 = vsel %vm502, %v495, %v497
          %v504 = vsel %vm502, %v497, %v499
          %v505 = vsel %vm502, %v499, %v501
          %509 = vst [vmem:[#allocation4 + $0x18] sm:$0xff] %v503
          %510 = vst [vmem:[#allocation4 + $0x20] sm:$0xff] %v504
          %511 = vst [vmem:[#allocation4 + $0x28] sm:$0xff] %v505
          %v512 = vld [vmem:[%s408] sm:$0xff]
          %v513 = vld [vmem:[%s408 + $0x8] sm:$0xff]
          %v514 = vld [vmem:[%s408 + $0x14] sm:$0xff]
          %v515 = vld [vmem:[%s408 + $0x1c] sm:$0xff]
          %v520 = vunpack.c.l.b16 %v512
          %v521 = vunpack.c.h.b16 %v512
          %v522 = vunpack.c.l.b16 %v513
          %v523 = vunpack.c.h.b16 %v513
          %v524 = vunpack.c.l.b16 %v514
          %v525 = vunpack.c.h.b16 %v514
          %v526 = vunpack.c.l.b16 %v515
          %v527 = vunpack.c.h.b16 %v515
          %v528 = vpack.c.b16 %v524, %v520
          %v529 = vpack.c.b16 %v525, %v521
          %v530 = vpack.c.b16 %v526, %v522
          %v531 = vpack.c.b16 %v527, %v523
          %532 = vrot.lane.b32.xlu0 %v528, 17
          %v533 = vpop.permute.xlu0 %532
          %534 = vrot.lane.b32.xlu0 %v529, 17
          %v535 = vpop.permute.xlu0 %534
          %536 = vrot.lane.b32.xlu0 %v530, 17
          %v537 = vpop.permute.xlu0 %536
          %538 = vrot.lane.b32.xlu0 %v531, 17
          %v539 = vpop.permute.xlu0 %538
          %vm540 = vcmask 138240
          %v541 = vsel %vm540, %v533, %v535
          %v542 = vsel %vm540, %v535, %v537
          %v543 = vsel %vm540, %v537, %v539
          %547 = vst [vmem:[#allocation4 + $0x30] sm:$0xff] %v541
          %548 = vst [vmem:[#allocation4 + $0x38] sm:$0xff] %v542
          %549 = vst [vmem:[#allocation4 + $0x40] sm:$0xff] %v543
          %v550 = vld [vmem:[%s408] sm:$0xff]
          %v551 = vld [vmem:[%s408 + $0x8] sm:$0xff]
          %v552 = vld [vmem:[%s408 + $0x14] sm:$0xff]
          %v553 = vld [vmem:[%s408 + $0x1c] sm:$0xff]
          %v558 = vunpack.c.l.b16 %v550
          %v559 = vunpack.c.h.b16 %v550
          %v560 = vunpack.c.l.b16 %v551
          %v561 = vunpack.c.h.b16 %v551
          %v562 = vunpack.c.l.b16 %v552
          %v563 = vunpack.c.h.b16 %v552
          %v564 = vunpack.c.l.b16 %v553
          %v565 = vunpack.c.h.b16 %v553
          %v566 = vpack.c.b16 %v562, %v558
          %v567 = vpack.c.b16 %v563, %v559
          %v568 = vpack.c.b16 %v564, %v560
          %v569 = vpack.c.b16 %v565, %v561
          %570 = vrot.lane.b32.xlu0 %v566, 1
          %v571 = vpop.permute.xlu0 %570
          %572 = vrot.lane.b32.xlu0 %v567, 1
          %v573 = vpop.permute.xlu0 %572
          %574 = vrot.lane.b32.xlu0 %v568, 1
          %v575 = vpop.permute.xlu0 %574
          %576 = vrot.lane.b32.xlu0 %v569, 1
          %v577 = vpop.permute.xlu0 %576
          %vm578 = vcmask 7168
          %v579 = vsel %vm578, %v571, %v573
          %v580 = vsel %vm578, %v573, %v575
          %v581 = vsel %vm578, %v575, %v577
          %585 = vst [vmem:[#allocation4 + $0x48] sm:$0xff] %v579
          %586 = vst [vmem:[#allocation4 + $0x50] sm:$0xff] %v580
          %587 = vst [vmem:[#allocation4 + $0x58] sm:$0xff] %v581
          %v588 = vld [vmem:[%s408 + $0x4] sm:$0xff]
          %v589 = vld [vmem:[%s408 + $0xc] sm:$0xf]
          %v590 = vld [vmem:[%s408 + $0x18] sm:$0xff]
          %v591 = vld [vmem:[%s408 + $0x20] sm:$0xf]
          %v596 = vunpack.c.l.b16 %v588
          %v597 = vunpack.c.h.b16 %v588
          %v598 = vunpack.c.l.b16 %v589
          %v599 = vunpack.c.l.b16 %v590
          %v600 = vunpack.c.h.b16 %v590
          %v601 = vunpack.c.l.b16 %v591
          %v602 = vpack.c.b16 %v599, %v596
          %v603 = vpack.c.b16 %v600, %v597
          %v604 = vpack.c.b16 %v601, %v598
          %608 = vst [vmem:[#allocation4 + $0x60] sm:$0xff] %v602
          %609 = vst [vmem:[#allocation4 + $0x68] sm:$0xff] %v603
          %610 = vst [vmem:[#allocation4 + $0x70] sm:$0xff] %v604
          %v611 = vld [vmem:[%s408 + $0x4] sm:$0xff]
          %v612 = vld [vmem:[%s408 + $0xc] sm:$0xff]
          %v613 = vld [vmem:[%s408 + $0x18] sm:$0xff]
          %v614 = vld [vmem:[%s408 + $0x20] sm:$0xff]
          %v619 = vunpack.c.l.b16 %v611
          %v620 = vunpack.c.h.b16 %v611
          %v621 = vunpack.c.l.b16 %v612
          %v622 = vunpack.c.h.b16 %v612
          %v623 = vunpack.c.l.b16 %v613
          %v624 = vunpack.c.h.b16 %v613
          %v625 = vunpack.c.l.b16 %v614
          %v626 = vunpack.c.h.b16 %v614
          %v627 = vpack.c.b16 %v623, %v619
          %v628 = vpack.c.b16 %v624, %v620
          %v629 = vpack.c.b16 %v625, %v621
          %v630 = vpack.c.b16 %v626, %v622
          %631 = vrot.lane.b32.xlu0 %v627, 127
          %v632 = vpop.permute.xlu0 %631
          %633 = vrot.lane.b32.xlu0 %v628, 127
          %v634 = vpop.permute.xlu0 %633
          %635 = vrot.lane.b32.xlu0 %v629, 127
          %v636 = vpop.permute.xlu0 %635
          %637 = vrot.lane.b32.xlu0 %v630, 127
          %v638 = vpop.permute.xlu0 %637
          %vm639 = vcmask 1039360
          %v640 = vsel %vm639, %v632, %v634
          %v641 = vsel %vm639, %v634, %v636
          %v642 = vsel %vm639, %v636, %v638
          %646 = vst [vmem:[#allocation4 + $0x78] sm:$0xff] %v640
          %647 = vst [vmem:[#allocation4 + $0x80] sm:$0xff] %v641
          %648 = vst [vmem:[#allocation4 + $0x88] sm:$0xff] %v642
          %v649 = vld [vmem:[%s408 + $0x4] sm:$0xff]
          %v650 = vld [vmem:[%s408 + $0xc] sm:$0xff]
          %v651 = vld [vmem:[%s408 + $0x18] sm:$0xff]
          %v652 = vld [vmem:[%s408 + $0x20] sm:$0xff]
          %v657 = vunpack.c.l.b16 %v649
          %v658 = vunpack.c.h.b16 %v649
          %v659 = vunpack.c.l.b16 %v650
          %v660 = vunpack.c.h.b16 %v650
          %v661 = vunpack.c.l.b16 %v651
          %v662 = vunpack.c.h.b16 %v651
          %v663 = vunpack.c.l.b16 %v652
          %v664 = vunpack.c.h.b16 %v652
          %v665 = vpack.c.b16 %v661, %v657
          %v666 = vpack.c.b16 %v662, %v658
          %v667 = vpack.c.b16 %v663, %v659
          %v668 = vpack.c.b16 %v664, %v660
          %669 = vrot.lane.b32.xlu0 %v665, 111
          %v670 = vpop.permute.xlu0 %669
          %671 = vrot.lane.b32.xlu0 %v666, 111
          %v672 = vpop.permute.xlu0 %671
          %673 = vrot.lane.b32.xlu0 %v667, 111
          %v674 = vpop.permute.xlu0 %673
          %675 = vrot.lane.b32.xlu0 %v668, 111
          %v676 = vpop.permute.xlu0 %675
          %vm677 = vcmask 908288
          %v678 = vsel %vm677, %v670, %v672
          %v679 = vsel %vm677, %v672, %v674
          %v680 = vsel %vm677, %v674, %v676
          %684 = vst [vmem:[#allocation4 + $0x90] sm:$0xff] %v678
          %685 = vst [vmem:[#allocation4 + $0x98] sm:$0xff] %v679
          %686 = vst [vmem:[#allocation4 + $0xa0] sm:$0xff] %v680
          %v687 = vld [vmem:[%s408 + $0x4] sm:$0xff]
          %v688 = vld [vmem:[%s408 + $0xc] sm:$0xff]
          %v689 = vld [vmem:[%s408 + $0x18] sm:$0xff]
          %v690 = vld [vmem:[%s408 + $0x20] sm:$0xff]
          %v695 = vunpack.c.l.b16 %v687
          %v696 = vunpack.c.h.b16 %v687
          %v697 = vunpack.c.l.b16 %v688
          %v698 = vunpack.c.h.b16 %v688
          %v699 = vunpack.c.l.b16 %v689
          %v700 = vunpack.c.h.b16 %v689
          %v701 = vunpack.c.l.b16 %v690
          %v702 = vunpack.c.h.b16 %v690
          %v703 = vpack.c.b16 %v699, %v695
          %v704 = vpack.c.b16 %v700, %v696
          %v705 = vpack.c.b16 %v701, %v697
          %v706 = vpack.c.b16 %v702, %v698
          %707 = vrot.lane.b32.xlu0 %v703, 110
          %v708 = vpop.permute.xlu0 %707
          %709 = vrot.lane.b32.xlu0 %v704, 110
          %v710 = vpop.permute.xlu0 %709
          %711 = vrot.lane.b32.xlu0 %v705, 110
          %v712 = vpop.permute.xlu0 %711
          %713 = vrot.lane.b32.xlu0 %v706, 110
          %v714 = vpop.permute.xlu0 %713
          %vm715 = vcmask 900096
          %v716 = vsel %vm715, %v708, %v710
          %v717 = vsel %vm715, %v710, %v712
          %v718 = vsel %vm715, %v712, %v714
          %722 = vst [vmem:[#allocation4 + $0xa8] sm:$0xff] %v716
          %723 = vst [vmem:[#allocation4 + $0xb0] sm:$0xff] %v717
          %724 = vst [vmem:[#allocation4 + $0xb8] sm:$0xff] %v718
          %v725 = vld [vmem:[%s408 + $0x4] sm:$0xff]
          %v726 = vld [vmem:[%s408 + $0xc] sm:$0xff]
          %v727 = vld [vmem:[%s408 + $0x18] sm:$0xff]
          %v728 = vld [vmem:[%s408 + $0x20] sm:$0xff]
          %v733 = vunpack.c.l.b16 %v725
          %v734 = vunpack.c.h.b16 %v725
          %v735 = vunpack.c.l.b16 %v726
          %v736 = vunpack.c.h.b16 %v726
          %v737 = vunpack.c.l.b16 %v727
          %v738 = vunpack.c.h.b16 %v727
          %v739 = vunpack.c.l.b16 %v728
          %v740 = vunpack.c.h.b16 %v728
          %v741 = vpack.c.b16 %v737, %v733
          %v742 = vpack.c.b16 %v738, %v734
          %v743 = vpack.c.b16 %v739, %v735
          %v744 = vpack.c.b16 %v740, %v736
          %745 = vrot.lane.b32.xlu0 %v741, 109
          %v746 = vpop.permute.xlu0 %745
          %747 = vrot.lane.b32.xlu0 %v742, 109
          %v748 = vpop.permute.xlu0 %747
          %749 = vrot.lane.b32.xlu0 %v743, 109
          %v750 = vpop.permute.xlu0 %749
          %751 = vrot.lane.b32.xlu0 %v744, 109
          %v752 = vpop.permute.xlu0 %751
          %vm753 = vcmask 891904
          %v754 = vsel %vm753, %v746, %v748
          %v755 = vsel %vm753, %v748, %v750
          %v756 = vsel %vm753, %v750, %v752
          %760 = vst [vmem:[#allocation4 + $0xc0] sm:$0xff] %v754
          %761 = vst [vmem:[#allocation4 + $0xc8] sm:$0xff] %v755
          %762 = vst [vmem:[#allocation4 + $0xd0] sm:$0xff] %v756
          %v763 = vld [vmem:[#allocation4] sm:$0xff]
          %v764 = vld [vmem:[#allocation4 + $0x8] sm:$0xff]
          %v765 = vld [vmem:[#allocation4 + $0x10] sm:$0xff]
          %v766 = vld [vmem:[#allocation4 + $0x18] sm:$0xff]
          %v767 = vld [vmem:[#allocation4 + $0x20] sm:$0xff]
          %v768 = vld [vmem:[#allocation4 + $0x28] sm:$0xff]
          %v769 = vld [vmem:[#allocation4 + $0x30] sm:$0xff]
          %v770 = vld [vmem:[#allocation4 + $0x38] sm:$0xff]
          %v771 = vld [vmem:[#allocation4 + $0x40] sm:$0xff]
          %v772 = vld [vmem:[#allocation4 + $0x48] sm:$0xff]
          %v773 = vld [vmem:[#allocation4 + $0x50] sm:$0xff]
          %v774 = vld [vmem:[#allocation4 + $0x58] sm:$0xff]
          %v775 = vld [vmem:[#allocation4 + $0x60] sm:$0xff]
          %v776 = vld [vmem:[#allocation4 + $0x68] sm:$0xff]
          %v777 = vld [vmem:[#allocation4 + $0x70] sm:$0xff]
          %v778 = vld [vmem:[#allocation4 + $0x78] sm:$0xff]
          %v779 = vld [vmem:[#allocation4 + $0x80] sm:$0xff]
          %v780 = vld [vmem:[#allocation4 + $0x88] sm:$0xff]
          %v781 = vld [vmem:[#allocation4 + $0x90] sm:$0xff]
          %v782 = vld [vmem:[#allocation4 + $0x98] sm:$0xff]
          %v783 = vld [vmem:[#allocation4 + $0xa0] sm:$0xff]
          %v784 = vld [vmem:[#allocation4 + $0xa8] sm:$0xff]
          %v785 = vld [vmem:[#allocation4 + $0xb0] sm:$0xff]
          %v786 = vld [vmem:[#allocation4 + $0xb8] sm:$0xff]
          %v787 = vld [vmem:[#allocation4 + $0xc0] sm:$0xff]
          %v788 = vld [vmem:[#allocation4 + $0xc8] sm:$0xff]
          %v789 = vld [vmem:[#allocation4 + $0xd0] sm:$0xff]
          %v790 = vld [vmem:[%s4] sm:$0xff]
          %v791 = vld [vmem:[%s4 + $0x8] sm:$0xff]
          %v792 = vld [vmem:[%s4 + $0x10] sm:$0xff]
          %v793 = vld [vmem:[%s4 + $0x18] sm:$0xff]
          %795 = vset.pattern.permute.xlu0 0
          %796 = vperm.xlu0 %795, %v790
          %v797 = vpop.permute.xlu0 %796
          %800 = vset.pattern.permute.xlu0 0
          %801 = vperm.xlu0 %800, %v791
          %v802 = vpop.permute.xlu0 %801
          %805 = vset.pattern.permute.xlu0 0
          %806 = vperm.xlu0 %805, %v792
          %v807 = vpop.permute.xlu0 %806
          %810 = vset.pattern.permute.xlu0 0
          %811 = vperm.xlu0 %810, %v793
          %v812 = vpop.permute.xlu0 %811
          %v818 = vunpack.c.l.b16 %v432
          %v819 = vunpack.c.h.b16 %v432
          %v820 = vunpack.c.l.b16 %v433
          %v821 = vunpack.c.h.b16 %v433
          %v822 = vunpack.c.l.b16 %v434
          %v823 = vunpack.c.h.b16 %v434
          %v824 = vunpack.c.l.b16 %v435
          %v825 = vunpack.c.h.b16 %v435
          %v826 = vpack.c.b16 %v820, %v818
          %v827 = vpack.c.b16 %v821, %v819
          %v828 = vpack.c.b16 %v824, %v822
          %v829 = vpack.c.b16 %v825, %v823
          %vm832 = vcmask 130048
          %v834 = vsel %vm832, %v827, 0
          %v837 = vsel %vm832, %v829, 0
          %839 = vmatprep.subr.bf16.mxu0 %v764
          %840 = vmatpush1.bf16.msra.mxu0 %v763
          %841 = vmatprep.subr.bf16.mxu0 %v767
          %842 = vmatpush1.bf16.msra.mxu0 %v766
          %843 = vmatprep.subr.bf16.mxu0 %v770
          %844 = vmatpush1.bf16.msra.mxu0 %v769
          %845 = vmatprep.subr.bf16.mxu0 %v773
          %846 = vmatpush1.bf16.msra.mxu0 %v772
          %847 = vmatprep.subr.bf16.mxu0 %v776
          %848 = vmatpush1.bf16.msra.mxu0 %v775
          %849 = vmatprep.subr.bf16.mxu0 %v779
          %850 = vmatpush1.bf16.msra.mxu0 %v778
          %851 = vmatprep.subr.bf16.mxu0 %v782
          %852 = vmatpush1.bf16.msra.mxu0 %v781
          %853 = vmatprep.subr.bf16.mxu0 %v785
          %854 = vmatpush1.bf16.msra.mxu0 %v784
          %855 = vmatprep.subr.bf16.mxu0 %v788
          %856 = vmatpush1.bf16.msra.mxu0 %v787
          %857 = vmatprep.subr.bf16.mxu0 0
          %858 = vmatpush1.bf16.msra.mxu0 0
          %859 = vmatprep.subr.bf16.mxu0 0
          %860 = vmatpush1.bf16.msra.mxu0 0
          %861 = vmatprep.subr.bf16.mxu0 0
          %862 = vmatpush1.bf16.msra.mxu0 0
          %863 = vmatprep.subr.bf16.mxu0 0
          %864 = vmatpush1.bf16.msra.mxu0 0
          %865 = vmatprep.subr.bf16.mxu0 0
          %866 = vmatpush1.bf16.msra.mxu0 0
          %867 = vmatprep.subr.bf16.mxu0 0
          %868 = vmatpush1.bf16.msra.mxu0 0
          %869 = vmatprep.subr.bf16.mxu0 0
          %870 = vmatpush1.bf16.msra.mxu0 0
          %871 = vmatprep.mubr.bf16.mxu0 %v834
          %872 = vmatmul.mubr.bf16.gmra.mrb[0].mxu0 %v826
          %v873 = vpop.f32.mrb[0].mxu0
          %v874 = vadd.f32 %v797, %v873
          %v875 = vpop.f32.mrb[0].mxu0
          %v876 = vadd.f32 %v797, %v875
          %v877 = vpop.f32.mrb[0].mxu0
          %v878 = vadd.f32 %v802, %v877
          %v879 = vpop.f32.mrb[0].mxu0
          %v880 = vadd.f32 %v802, %v879
          %881 = vmatprep.mubr.bf16.mxu0 %v837
          %882 = vmatmul.mubr.bf16.gmra.mrb[0].mxu0 %v828
          %v883 = vpop.f32.mrb[0].mxu0
          %v884 = vadd.f32 %v807, %v883
          %v885 = vpop.f32.mrb[0].mxu0
          %v886 = vadd.f32 %v807, %v885
          %v887 = vpop.f32.mrb[0].mxu0
          %v888 = vadd.f32 %v812, %v887
          %v889 = vpop.f32.mrb[0].mxu0
          %v890 = vadd.f32 %v812, %v889
          %891 = vdwg.mxu0
          %892 = vmatprep.subr.bf16.mxu0 0
          %893 = vmatpush1.bf16.msra.mxu0 %v765
          %894 = vmatprep.subr.bf16.mxu0 0
          %895 = vmatpush1.bf16.msra.mxu0 %v768
          %896 = vmatprep.subr.bf16.mxu0 0
          %897 = vmatpush1.bf16.msra.mxu0 %v771
          %898 = vmatprep.subr.bf16.mxu0 0
          %899 = vmatpush1.bf16.msra.mxu0 %v774
          %900 = vmatprep.subr.bf16.mxu0 0
          %901 = vmatpush1.bf16.msra.mxu0 %v777
          %902 = vmatprep.subr.bf16.mxu0 0
          %903 = vmatpush1.bf16.msra.mxu0 %v780
          %904 = vmatprep.subr.bf16.mxu0 0
          %905 = vmatpush1.bf16.msra.mxu0 %v783
          %906 = vmatprep.subr.bf16.mxu0 0
          %907 = vmatpush1.bf16.msra.mxu0 %v786
          %908 = vmatprep.subr.bf16.mxu0 0
          %909 = vmatpush1.bf16.msra.mxu0 %v789
          %910 = vmatprep.subr.bf16.mxu0 0
          %911 = vmatpush1.bf16.msra.mxu0 0
          %912 = vmatprep.subr.bf16.mxu0 0
          %913 = vmatpush1.bf16.msra.mxu0 0
          %914 = vmatprep.subr.bf16.mxu0 0
          %915 = vmatpush1.bf16.msra.mxu0 0
          %916 = vmatprep.subr.bf16.mxu0 0
          %917 = vmatpush1.bf16.msra.mxu0 0
          %918 = vmatprep.subr.bf16.mxu0 0
          %919 = vmatpush1.bf16.msra.mxu0 0
          %920 = vmatprep.subr.bf16.mxu0 0
          %921 = vmatpush1.bf16.msra.mxu0 0
          %922 = vmatprep.subr.bf16.mxu0 0
          %923 = vmatpush1.bf16.msra.mxu0 0
          %924 = vmatprep.mubr.bf16.mxu0 %v834
          %925 = vmatmul.mubr.bf16.gmra.mrb[0].mxu0 %v826
          %v926 = vpop.f32.mrb[0].mxu0
          %v927 = vadd.f32 %v797, %v926
          %v928 = vpop.f32.mrb[0].mxu0
          %v929 = vpop.f32.mrb[0].mxu0
          %v930 = vadd.f32 %v802, %v929
          %v931 = vpop.f32.mrb[0].mxu0
          %932 = vmatprep.mubr.bf16.mxu0 %v837
          %933 = vmatmul.mubr.bf16.gmra.mrb[0].mxu0 %v828
          %v934 = vpop.f32.mrb[0].mxu0
          %v935 = vadd.f32 %v807, %v934
          %v936 = vpop.f32.mrb[0].mxu0
          %v937 = vpop.f32.mrb[0].mxu0
          %v938 = vadd.f32 %v812, %v937
          %v939 = vpop.f32.mrb[0].mxu0
          %940 = vdwg.mxu0
          %v941 = vmax.f32 %v874, 0.0
          %v942 = vmax.f32 %v876, 0.0
          %v943 = vmax.f32 %v927, 0.0
          %v944 = vmax.f32 %v878, 0.0
          %v945 = vmax.f32 %v880, 0.0
          %v946 = vmax.f32 %v930, 0.0
          %v947 = vmax.f32 %v884, 0.0
          %v948 = vmax.f32 %v886, 0.0
          %v949 = vmax.f32 %v935, 0.0
          %v950 = vmax.f32 %v888, 0.0
          %v951 = vmax.f32 %v890, 0.0
          %v952 = vmax.f32 %v938, 0.0
          %v953 = vpack.c.bf16 %v944, %v941
          %v954 = vpack.c.bf16 %v945, %v942
          %v955 = vpack.c.bf16 %v946, %v943
          %v956 = vpack.c.bf16 %v950, %v947
          %v957 = vpack.c.bf16 %v951, %v948
          %v958 = vpack.c.bf16 %v952, %v949
          %v959 = vld [vmem:[%s5] sm:$0xf]
          %v960 = vld [vmem:[%s5 + $0x4] sm:$0xf]
          %v961 = vld [vmem:[%s5 + $0x8] sm:$0xf]
          %v962 = vld [vmem:[%s5 + $0xc] sm:$0xf]
          %v963 = vld [vmem:[%s5 + $0x10] sm:$0xf]
          %v964 = vld [vmem:[%s5 + $0x14] sm:$0xf]
          %v965 = vld [vmem:[%s5 + $0x18] sm:$0xf]
          %v966 = vld [vmem:[%s5 + $0x1c] sm:$0xf]
          %v967 = vld [vmem:[%s5 + $0x20] sm:$0xf]
          %v968 = vld [vmem:[%s5 + $0x24] sm:$0xf]
          %v969 = vld [vmem:[%s5 + $0x28] sm:$0xf]
          %v970 = vld [vmem:[%s5 + $0x2c] sm:$0xf]
          %v971 = vld [vmem:[%s5 + $0x30] sm:$0xf]
          %v972 = vld [vmem:[%s5 + $0x34] sm:$0xf]
          %v973 = vld [vmem:[%s5 + $0x38] sm:$0xf]
          %v974 = vld [vmem:[%s5 + $0x3c] sm:$0xf]
          %v975 = vld [vmem:[%s5 + $0x40] sm:$0xf]
          %v976 = vld [vmem:[%s5 + $0x44] sm:$0xf]
          %v977 = vld [vmem:[%s5 + $0x48] sm:$0xf]
          %v978 = vld [vmem:[%s5 + $0x4c] sm:$0xf]
          %v979 = vld [vmem:[%s5 + $0x50] sm:$0xf]
          %v980 = vld [vmem:[%s5 + $0x54] sm:$0xf]
          %v981 = vld [vmem:[%s5 + $0x58] sm:$0xf]
          %v982 = vld [vmem:[%s5 + $0x5c] sm:$0xf]
          %v983 = vld [vmem:[%s5 + $0x60] sm:$0xf]
          %v984 = vld [vmem:[%s5 + $0x64] sm:$0xf]
          %v985 = vld [vmem:[%s5 + $0x68] sm:$0xf]
          %v986 = vld [vmem:[%s5 + $0x6c] sm:$0xf]
          %v987 = vld [vmem:[%s5 + $0x70] sm:$0xf]
          %v988 = vld [vmem:[%s5 + $0x74] sm:$0xf]
          %v989 = vld [vmem:[%s5 + $0x78] sm:$0xf]
          %v990 = vld [vmem:[%s5 + $0x7c] sm:$0xf]
          %v991 = vld [vmem:[%s5 + $0x80] sm:$0xf]
          %v992 = vld [vmem:[%s5 + $0x84] sm:$0xf]
          %v993 = vld [vmem:[%s5 + $0x88] sm:$0xf]
          %v994 = vld [vmem:[%s5 + $0x8c] sm:$0xf]
          %v995 = vld [vmem:[%s5 + $0x90] sm:$0xf]
          %v996 = vld [vmem:[%s5 + $0x94] sm:$0xf]
          %v997 = vld [vmem:[%s5 + $0x98] sm:$0xf]
          %v998 = vld [vmem:[%s5 + $0x9c] sm:$0xf]
          %v999 = vld [vmem:[%s5 + $0xa0] sm:$0xf]
          %v1000 = vld [vmem:[%s5 + $0xa4] sm:$0xf]
          %v1001 = vld [vmem:[%s5 + $0xa8] sm:$0xf]
          %v1002 = vld [vmem:[%s5 + $0xac] sm:$0xf]
          %v1003 = vld [vmem:[%s5 + $0xb0] sm:$0xf]
          %v1004 = vld [vmem:[%s5 + $0xb4] sm:$0xf]
          %v1005 = vld [vmem:[%s5 + $0xb8] sm:$0xf]
          %v1006 = vld [vmem:[%s5 + $0xbc] sm:$0xf]
          %v1055 = vunpack.c.l.b16 %v959
          %v1056 = vunpack.c.l.b16 %v960
          %v1057 = vunpack.c.l.b16 %v961
          %v1058 = vunpack.c.l.b16 %v962
          %v1059 = vunpack.c.l.b16 %v963
          %v1060 = vunpack.c.l.b16 %v964
          %v1061 = vunpack.c.l.b16 %v965
          %v1062 = vunpack.c.l.b16 %v966
          %v1063 = vunpack.c.l.b16 %v967
          %v1064 = vunpack.c.l.b16 %v968
          %v1065 = vunpack.c.l.b16 %v969
          %v1066 = vunpack.c.l.b16 %v970
          %v1067 = vunpack.c.l.b16 %v971
          %v1068 = vunpack.c.l.b16 %v972
          %v1069 = vunpack.c.l.b16 %v973
          %v1070 = vunpack.c.l.b16 %v974
          %v1071 = vunpack.c.l.b16 %v975
          %v1072 = vunpack.c.l.b16 %v976
          %v1073 = vunpack.c.l.b16 %v977
          %v1074 = vunpack.c.l.b16 %v978
          %v1075 = vunpack.c.l.b16 %v979
          %v1076 = vunpack.c.l.b16 %v980
          %v1077 = vunpack.c.l.b16 %v981
          %v1078 = vunpack.c.l.b16 %v982
          %v1079 = vunpack.c.l.b16 %v983
          %v1080 = vunpack.c.l.b16 %v984
          %v1081 = vunpack.c.l.b16 %v985
          %v1082 = vunpack.c.l.b16 %v986
          %v1083 = vunpack.c.l.b16 %v987
          %v1084 = vunpack.c.l.b16 %v988
          %v1085 = vunpack.c.l.b16 %v989
          %v1086 = vunpack.c.l.b16 %v990
          %v1087 = vunpack.c.l.b16 %v991
          %v1088 = vunpack.c.l.b16 %v992
          %v1089 = vunpack.c.l.b16 %v993
          %v1090 = vunpack.c.l.b16 %v994
          %v1091 = vunpack.c.l.b16 %v995
          %v1092 = vunpack.c.l.b16 %v996
          %v1093 = vunpack.c.l.b16 %v997
          %v1094 = vunpack.c.l.b16 %v998
          %v1095 = vunpack.c.l.b16 %v999
          %v1096 = vunpack.c.l.b16 %v1000
          %v1097 = vunpack.c.l.b16 %v1001
          %v1098 = vunpack.c.l.b16 %v1002
          %v1099 = vunpack.c.l.b16 %v1003
          %v1100 = vunpack.c.l.b16 %v1004
          %v1101 = vunpack.c.l.b16 %v1005
          %v1102 = vunpack.c.l.b16 %v1006
          %v1103 = vpack.c.b16 %v1056, %v1055
          %v1104 = vpack.c.b16 %v1058, %v1057
          %v1105 = vpack.c.b16 %v1060, %v1059
          %v1106 = vpack.c.b16 %v1062, %v1061
          %v1107 = vpack.c.b16 %v1064, %v1063
          %v1108 = vpack.c.b16 %v1066, %v1065
          %v1109 = vpack.c.b16 %v1068, %v1067
          %v1110 = vpack.c.b16 %v1070, %v1069
          %v1111 = vpack.c.b16 %v1072, %v1071
          %v1112 = vpack.c.b16 %v1074, %v1073
          %v1113 = vpack.c.b16 %v1076, %v1075
          %v1114 = vpack.c.b16 %v1078, %v1077
          %v1115 = vpack.c.b16 %v1080, %v1079
          %v1116 = vpack.c.b16 %v1082, %v1081
          %v1117 = vpack.c.b16 %v1084, %v1083
          %v1118 = vpack.c.b16 %v1086, %v1085
          %v1119 = vpack.c.b16 %v1088, %v1087
          %v1120 = vpack.c.b16 %v1090, %v1089
          %v1121 = vpack.c.b16 %v1092, %v1091
          %v1122 = vpack.c.b16 %v1094, %v1093
          %v1123 = vpack.c.b16 %v1096, %v1095
          %v1124 = vpack.c.b16 %v1098, %v1097
          %v1125 = vpack.c.b16 %v1100, %v1099
          %v1126 = vpack.c.b16 %v1102, %v1101
          %1151 = vmatprep.subr.bf16.mxu0 0
          %1152 = vmatpush1.bf16.msra.mxu0 %v1103
          %1153 = vmatprep.subr.bf16.mxu0 0
          %1154 = vmatpush1.bf16.msra.mxu0 %v1104
          %1155 = vmatprep.subr.bf16.mxu0 0
          %1156 = vmatpush1.bf16.msra.mxu0 %v1105
          %1157 = vmatprep.subr.bf16.mxu0 0
          %1158 = vmatpush1.bf16.msra.mxu0 %v1106
          %1159 = vmatprep.subr.bf16.mxu0 0
          %1160 = vmatpush1.bf16.msra.mxu0 %v1107
          %1161 = vmatprep.subr.bf16.mxu0 0
          %1162 = vmatpush1.bf16.msra.mxu0 %v1108
          %1163 = vmatprep.subr.bf16.mxu0 0
          %1164 = vmatpush1.bf16.msra.mxu0 %v1109
          %1165 = vmatprep.subr.bf16.mxu0 0
          %1166 = vmatpush1.bf16.msra.mxu0 %v1110
          %1167 = vmatprep.subr.bf16.mxu0 0
          %1168 = vmatpush1.bf16.msra.mxu0 %v1111
          %1169 = vmatprep.subr.bf16.mxu0 0
          %1170 = vmatpush1.bf16.msra.mxu0 %v1112
          %1171 = vmatprep.subr.bf16.mxu0 0
          %1172 = vmatpush1.bf16.msra.mxu0 %v1113
          %1173 = vmatprep.subr.bf16.mxu0 0
          %1174 = vmatpush1.bf16.msra.mxu0 %v1114
          %1175 = vmatprep.subr.bf16.mxu0 0
          %1176 = vmatpush1.bf16.msra.mxu0 %v1115
          %1177 = vmatprep.subr.bf16.mxu0 0
          %1178 = vmatpush1.bf16.msra.mxu0 %v1116
          %1179 = vmatprep.subr.bf16.mxu0 0
          %1180 = vmatpush1.bf16.msra.mxu0 %v1117
          %1181 = vmatprep.subr.bf16.mxu0 0
          %1182 = vmatpush1.bf16.msra.mxu0 %v1118
          %1183 = vmatprep.mubr.bf16.mxu0 %v954
          %1184 = vmatmul.mubr.bf16.gmra.mrb[0].mxu0 %v953
          %v1185 = vpop.f32.mrb[0].mxu0
          %v1186 = vadd.f32 0.0, %v1185
          %v1187 = vpop.f32.mrb[0].mxu0
          %v1188 = vpop.f32.mrb[0].mxu0
          %v1189 = vadd.f32 0.0, %v1188
          %v1190 = vpop.f32.mrb[0].mxu0
          %1191 = vmatprep.mubr.bf16.mxu0 %v957
          %1192 = vmatmul.mubr.bf16.gmra.mrb[0].mxu0 %v956
          %v1193 = vpop.f32.mrb[0].mxu0
          %v1194 = vadd.f32 0.0, %v1193
          %v1195 = vpop.f32.mrb[0].mxu0
          %v1196 = vpop.f32.mrb[0].mxu0
          %v1197 = vadd.f32 0.0, %v1196
          %v1198 = vpop.f32.mrb[0].mxu0
          %1199 = vdwg.mxu0
          %1200 = vmatprep.subr.bf16.mxu0 0
          %1201 = vmatpush1.bf16.msra.mxu0 %v1119
          %1202 = vmatprep.subr.bf16.mxu0 0
          %1203 = vmatpush1.bf16.msra.mxu0 %v1120
          %1204 = vmatprep.subr.bf16.mxu0 0
          %1205 = vmatpush1.bf16.msra.mxu0 %v1121
          %1206 = vmatprep.subr.bf16.mxu0 0
          %1207 = vmatpush1.bf16.msra.mxu0 %v1122
          %1208 = vmatprep.subr.bf16.mxu0 0
          %1209 = vmatpush1.bf16.msra.mxu0 %v1123
          %1210 = vmatprep.subr.bf16.mxu0 0
          %1211 = vmatpush1.bf16.msra.mxu0 %v1124
          %1212 = vmatprep.subr.bf16.mxu0 0
          %1213 = vmatpush1.bf16.msra.mxu0 %v1125
          %1214 = vmatprep.subr.bf16.mxu0 0
          %1215 = vmatpush1.bf16.msra.mxu0 %v1126
          %1216 = vmatprep.subr.bf16.mxu0 0
          %1217 = vmatpush1.bf16.msra.mxu0 0
          %1218 = vmatprep.subr.bf16.mxu0 0
          %1219 = vmatpush1.bf16.msra.mxu0 0
          %1220 = vmatprep.subr.bf16.mxu0 0
          %1221 = vmatpush1.bf16.msra.mxu0 0
          %1222 = vmatprep.subr.bf16.mxu0 0
          %1223 = vmatpush1.bf16.msra.mxu0 0
          %1224 = vmatprep.subr.bf16.mxu0 0
          %1225 = vmatpush1.bf16.msra.mxu0 0
          %1226 = vmatprep.subr.bf16.mxu0 0
          %1227 = vmatpush1.bf16.msra.mxu0 0
          %1228 = vmatprep.subr.bf16.mxu0 0
          %1229 = vmatpush1.bf16.msra.mxu0 0
          %1230 = vmatprep.subr.bf16.mxu0 0
          %1231 = vmatpush1.bf16.msra.mxu0 0
          %1232 = vmatprep.mubr.bf16.mxu0 0
          %1233 = vmatmul.mubr.bf16.gmra.mrb[0].mxu0 %v955
          %v1234 = vpop.f32.mrb[0].mxu0
          %v1235 = vadd.f32 %v1186, %v1234
          %v1236 = vpop.f32.mrb[0].mxu0
          %v1237 = vpop.f32.mrb[0].mxu0
          %v1238 = vadd.f32 %v1189, %v1237
          %v1239 = vpop.f32.mrb[0].mxu0
          %1240 = vmatprep.mubr.bf16.mxu0 0
          %1241 = vmatmul.mubr.bf16.gmra.mrb[0].mxu0 %v958
          %v1242 = vpop.f32.mrb[0].mxu0
          %v1243 = vadd.f32 %v1194, %v1242
          %v1244 = vpop.f32.mrb[0].mxu0
          %v1245 = vpop.f32.mrb[0].mxu0
          %v1246 = vadd.f32 %v1197, %v1245
          %v1247 = vpop.f32.mrb[0].mxu0
          %1248 = vdwg.mxu0
          %v1249 = vpack.c.bf16 %v1238, %v1235
          %v1250 = vpack.c.bf16 %v1246, %v1243
          %1251 = vst [vmem:[#allocation3 + $0x8] sm:$0xff] %v1249
          %1252 = vst [vmem:[#allocation3 + $0x20] sm:$0xff] %v1250
          %v1253 = vld [vmem:[%s408 + $0x4] sm:$0xff]
          %v1254 = vld [vmem:[%s408 + $0xc] sm:$0xf]
          %v1255 = vld [vmem:[%s408 + $0x18] sm:$0xff]
          %v1256 = vld [vmem:[%s408 + $0x20] sm:$0xf]
          %v1257 = vld [vmem:[%s5] sm:$0xf]
          %v1258 = vld [vmem:[%s5 + $0x4] sm:$0xf]
          %v1259 = vld [vmem:[%s5 + $0x8] sm:$0xf]
          %v1260 = vld [vmem:[%s5 + $0xc] sm:$0xf]
          %v1261 = vld [vmem:[%s5 + $0x10] sm:$0xf]
          %v1262 = vld [vmem:[%s5 + $0x14] sm:$0xf]
          %v1263 = vld [vmem:[%s5 + $0x18] sm:$0xf]
          %v1264 = vld [vmem:[%s5 + $0x1c] sm:$0xf]
          %v1265 = vld [vmem:[%s5 + $0x20] sm:$0xf]
          %v1266 = vld [vmem:[%s5 + $0x24] sm:$0xf]
          %v1267 = vld [vmem:[%s5 + $0x28] sm:$0xf]
          %v1268 = vld [vmem:[%s5 + $0x2c] sm:$0xf]
          %v1269 = vld [vmem:[%s5 + $0x30] sm:$0xf]
          %v1270 = vld [vmem:[%s5 + $0x34] sm:$0xf]
          %v1271 = vld [vmem:[%s5 + $0x38] sm:$0xf]
          %v1272 = vld [vmem:[%s5 + $0x3c] sm:$0xf]
          %v1273 = vld [vmem:[%s5 + $0x40] sm:$0xf]
          %v1274 = vld [vmem:[%s5 + $0x44] sm:$0xf]
          %v1275 = vld [vmem:[%s5 + $0x48] sm:$0xf]
          %v1276 = vld [vmem:[%s5 + $0x4c] sm:$0xf]
          %v1277 = vld [vmem:[%s5 + $0x50] sm:$0xf]
          %v1278 = vld [vmem:[%s5 + $0x54] sm:$0xf]
          %v1279 = vld [vmem:[%s5 + $0x58] sm:$0xf]
          %v1280 = vld [vmem:[%s5 + $0x5c] sm:$0xf]
          %v1281 = vld [vmem:[%s5 + $0x60] sm:$0xf]
          %v1282 = vld [vmem:[%s5 + $0x64] sm:$0xf]
          %v1283 = vld [vmem:[%s5 + $0x68] sm:$0xf]
          %v1284 = vld [vmem:[%s5 + $0x6c] sm:$0xf]
          %v1285 = vld [vmem:[%s5 + $0x70] sm:$0xf]
          %v1286 = vld [vmem:[%s5 + $0x74] sm:$0xf]
          %v1287 = vld [vmem:[%s5 + $0x78] sm:$0xf]
          %v1288 = vld [vmem:[%s5 + $0x7c] sm:$0xf]
          %v1289 = vld [vmem:[%s5 + $0x80] sm:$0xf]
          %v1290 = vld [vmem:[%s5 + $0x84] sm:$0xf]
          %v1291 = vld [vmem:[%s5 + $0x88] sm:$0xf]
          %v1292 = vld [vmem:[%s5 + $0x8c] sm:$0xf]
          %v1293 = vld [vmem:[%s5 + $0x90] sm:$0xf]
          %v1294 = vld [vmem:[%s5 + $0x94] sm:$0xf]
          %v1295 = vld [vmem:[%s5 + $0x98] sm:$0xf]
          %v1296 = vld [vmem:[%s5 + $0x9c] sm:$0xf]
          %v1297 = vld [vmem:[%s5 + $0xa0] sm:$0xf]
          %v1298 = vld [vmem:[%s5 + $0xa4] sm:$0xf]
          %v1299 = vld [vmem:[%s5 + $0xa8] sm:$0xf]
          %v1300 = vld [vmem:[%s5 + $0xac] sm:$0xf]
          %v1301 = vld [vmem:[%s5 + $0xb0] sm:$0xf]
          %v1302 = vld [vmem:[%s5 + $0xb4] sm:$0xf]
          %v1303 = vld [vmem:[%s5 + $0xb8] sm:$0xf]
          %v1304 = vld [vmem:[%s5 + $0xbc] sm:$0xf]
          %v1309 = vunpack.c.l.b16 %v1253
          %v1310 = vunpack.c.h.b16 %v1253
          %v1311 = vunpack.c.l.b16 %v1254
          %v1312 = vunpack.c.l.b16 %v1255
          %v1313 = vunpack.c.h.b16 %v1255
          %v1314 = vunpack.c.l.b16 %v1256
          %v1315 = vpack.c.b16 %v1312, %v1309
          %v1316 = vpack.c.b16 %v1313, %v1310
          %v1317 = vpack.c.b16 %v1314, %v1311
          %v1369 = vunpack.c.l.b16 %v1257
          %v1370 = vunpack.c.l.b16 %v1258
          %v1371 = vunpack.c.l.b16 %v1259
          %v1372 = vunpack.c.l.b16 %v1260
          %v1373 = vunpack.c.l.b16 %v1261
          %v1374 = vunpack.c.l.b16 %v1262
          %v1375 = vunpack.c.l.b16 %v1263
          %v1376 = vunpack.c.l.b16 %v1264
          %v1377 = vunpack.c.l.b16 %v1265
          %v1378 = vunpack.c.l.b16 %v1266
          %v1379 = vunpack.c.l.b16 %v1267
          %v1380 = vunpack.c.l.b16 %v1268
          %v1381 = vunpack.c.l.b16 %v1269
          %v1382 = vunpack.c.l.b16 %v1270
          %v1383 = vunpack.c.l.b16 %v1271
          %v1384 = vunpack.c.l.b16 %v1272
          %v1385 = vunpack.c.l.b16 %v1273
          %v1386 = vunpack.c.l.b16 %v1274
          %v1387 = vunpack.c.l.b16 %v1275
          %v1388 = vunpack.c.l.b16 %v1276
          %v1389 = vunpack.c.l.b16 %v1277
          %v1390 = vunpack.c.l.b16 %v1278
          %v1391 = vunpack.c.l.b16 %v1279
          %v1392 = vunpack.c.l.b16 %v1280
          %v1393 = vunpack.c.l.b16 %v1281
          %v1394 = vunpack.c.l.b16 %v1282
          %v1395 = vunpack.c.l.b16 %v1283
          %v1396 = vunpack.c.l.b16 %v1284
          %v1397 = vunpack.c.l.b16 %v1285
          %v1398 = vunpack.c.l.b16 %v1286
          %v1399 = vunpack.c.l.b16 %v1287
          %v1400 = vunpack.c.l.b16 %v1288
          %v1401 = vunpack.c.l.b16 %v1289
          %v1402 = vunpack.c.l.b16 %v1290
          %v1403 = vunpack.c.l.b16 %v1291
          %v1404 = vunpack.c.l.b16 %v1292
          %v1405 = vunpack.c.l.b16 %v1293
          %v1406 = vunpack.c.l.b16 %v1294
          %v1407 = vunpack.c.l.b16 %v1295
          %v1408 = vunpack.c.l.b16 %v1296
          %v1409 = vunpack.c.l.b16 %v1297
          %v1410 = vunpack.c.l.b16 %v1298
          %v1411 = vunpack.c.l.b16 %v1299
          %v1412 = vunpack.c.l.b16 %v1300
          %v1413 = vunpack.c.l.b16 %v1301
          %v1414 = vunpack.c.l.b16 %v1302
          %v1415 = vunpack.c.l.b16 %v1303
          %v1416 = vunpack.c.l.b16 %v1304
          %v1417 = vpack.c.b16 %v1370, %v1369
          %v1418 = vpack.c.b16 %v1372, %v1371
          %v1419 = vpack.c.b16 %v1374, %v1373
          %v1420 = vpack.c.b16 %v1376, %v1375
          %v1421 = vpack.c.b16 %v1378, %v1377
          %v1422 = vpack.c.b16 %v1380, %v1379
          %v1423 = vpack.c.b16 %v1382, %v1381
          %v1424 = vpack.c.b16 %v1384, %v1383
          %v1425 = vpack.c.b16 %v1386, %v1385
          %v1426 = vpack.c.b16 %v1388, %v1387
          %v1427 = vpack.c.b16 %v1390, %v1389
          %v1428 = vpack.c.b16 %v1392, %v1391
          %v1429 = vpack.c.b16 %v1394, %v1393
          %v1430 = vpack.c.b16 %v1396, %v1395
          %v1431 = vpack.c.b16 %v1398, %v1397
          %v1432 = vpack.c.b16 %v1400, %v1399
          %v1433 = vpack.c.b16 %v1402, %v1401
          %v1434 = vpack.c.b16 %v1404, %v1403
          %v1435 = vpack.c.b16 %v1406, %v1405
          %v1436 = vpack.c.b16 %v1408, %v1407
          %v1437 = vpack.c.b16 %v1410, %v1409
          %v1438 = vpack.c.b16 %v1412, %v1411
          %v1439 = vpack.c.b16 %v1414, %v1413
          %v1440 = vpack.c.b16 %v1416, %v1415
          %1465 = vmatprep.subr.bf16.mxu0 0
          %1466 = vmatpush1.bf16.msra.mxu0 %v1417
          %1467 = vmatprep.subr.bf16.mxu0 0
          %1468 = vmatpush1.bf16.msra.mxu0 %v1418
          %1469 = vmatprep.subr.bf16.mxu0 0
          %1470 = vmatpush1.bf16.msra.mxu0 %v1419
          %1471 = vmatprep.subr.bf16.mxu0 0
          %1472 = vmatpush1.bf16.msra.mxu0 %v1420
          %1473 = vmatprep.subr.bf16.mxu0 0
          %1474 = vmatpush1.bf16.msra.mxu0 %v1421
          %1475 = vmatprep.subr.bf16.mxu0 0
          %1476 = vmatpush1.bf16.msra.mxu0 %v1422
          %1477 = vmatprep.subr.bf16.mxu0 0
          %1478 = vmatpush1.bf16.msra.mxu0 %v1423
          %1479 = vmatprep.subr.bf16.mxu0 0
          %1480 = vmatpush1.bf16.msra.mxu0 %v1424
          %1481 = vmatprep.subr.bf16.mxu0 0
          %1482 = vmatpush1.bf16.msra.mxu0 %v1425
          %1483 = vmatprep.subr.bf16.mxu0 0
          %1484 = vmatpush1.bf16.msra.mxu0 %v1426
          %1485 = vmatprep.subr.bf16.mxu0 0
          %1486 = vmatpush1.bf16.msra.mxu0 %v1427
          %1487 = vmatprep.subr.bf16.mxu0 0
          %1488 = vmatpush1.bf16.msra.mxu0 %v1428
          %1489 = vmatprep.subr.bf16.mxu0 0
          %1490 = vmatpush1.bf16.msra.mxu0 %v1429
          %1491 = vmatprep.subr.bf16.mxu0 0
          %1492 = vmatpush1.bf16.msra.mxu0 %v1430
          %1493 = vmatprep.subr.bf16.mxu0 0
          %1494 = vmatpush1.bf16.msra.mxu0 %v1431
          %1495 = vmatprep.subr.bf16.mxu0 0
          %1496 = vmatpush1.bf16.msra.mxu0 %v1432
          %1497 = vmatprep.mubr.bf16.mxu0 %v1316
          %1498 = vmatmul.mubr.bf16.gmra.mrb[0].mxu0 %v1315
          %v1499 = vpop.f32.mrb[0].mxu0
          %v1500 = vadd.f32 0.0, %v1499
          %v1501 = vpop.f32.mrb[0].mxu0
          %v1502 = vpop.f32.mrb[0].mxu0
          %v1503 = vadd.f32 0.0, %v1502
          %v1504 = vpop.f32.mrb[0].mxu0
          %1505 = vdwg.mxu0
          %1506 = vmatprep.subr.bf16.mxu0 0
          %1507 = vmatpush1.bf16.msra.mxu0 %v1433
          %1508 = vmatprep.subr.bf16.mxu0 0
          %1509 = vmatpush1.bf16.msra.mxu0 %v1434
          %1510 = vmatprep.subr.bf16.mxu0 0
          %1511 = vmatpush1.bf16.msra.mxu0 %v1435
          %1512 = vmatprep.subr.bf16.mxu0 0
          %1513 = vmatpush1.bf16.msra.mxu0 %v1436
          %1514 = vmatprep.subr.bf16.mxu0 0
          %1515 = vmatpush1.bf16.msra.mxu0 %v1437
          %1516 = vmatprep.subr.bf16.mxu0 0
          %1517 = vmatpush1.bf16.msra.mxu0 %v1438
          %1518 = vmatprep.subr.bf16.mxu0 0
          %1519 = vmatpush1.bf16.msra.mxu0 %v1439
          %1520 = vmatprep.subr.bf16.mxu0 0
          %1521 = vmatpush1.bf16.msra.mxu0 %v1440
          %1522 = vmatprep.subr.bf16.mxu0 0
          %1523 = vmatpush1.bf16.msra.mxu0 0
          %1524 = vmatprep.subr.bf16.mxu0 0
          %1525 = vmatpush1.bf16.msra.mxu0 0
          %1526 = vmatprep.subr.bf16.mxu0 0
          %1527 = vmatpush1.bf16.msra.mxu0 0
          %1528 = vmatprep.subr.bf16.mxu0 0
          %1529 = vmatpush1.bf16.msra.mxu0 0
          %1530 = vmatprep.subr.bf16.mxu0 0
          %1531 = vmatpush1.bf16.msra.mxu0 0
          %1532 = vmatprep.subr.bf16.mxu0 0
          %1533 = vmatpush1.bf16.msra.mxu0 0
          %1534 = vmatprep.subr.bf16.mxu0 0
          %1535 = vmatpush1.bf16.msra.mxu0 0
          %1536 = vmatprep.subr.bf16.mxu0 0
          %1537 = vmatpush1.bf16.msra.mxu0 0
          %1538 = vmatprep.mubr.bf16.mxu0 0
          %1539 = vmatmul.mubr.bf16.gmra.mrb[0].mxu0 %v1317
          %v1540 = vpop.f32.mrb[0].mxu0
          %v1541 = vadd.f32 %v1500, %v1540
          %v1542 = vpop.f32.mrb[0].mxu0
          %v1543 = vpop.f32.mrb[0].mxu0
          %v1544 = vadd.f32 %v1503, %v1543
          %v1545 = vpop.f32.mrb[0].mxu0
          %1546 = vdwg.mxu0
          %v1547 = vld [vmem:[%s3] sm:$0xf]
          %v1548 = vld [vmem:[%s3 + $0x4] sm:$0xf]
          %v1549 = vld [vmem:[%s3 + $0x8] sm:$0xf]
          %v1550 = vld [vmem:[%s3 + $0xc] sm:$0xf]
          %v1551 = vpack.c.bf16 %v1544, %v1541
          %v1556 = vunpack.c.l.b16 %v1547
          %v1557 = vunpack.c.l.b16 %v1548
          %v1558 = vunpack.c.l.b16 %v1549
          %v1559 = vunpack.c.l.b16 %v1550
          %v1560 = vpack.c.b16 %v1557, %v1556
          %v1561 = vpack.c.b16 %v1559, %v1558
          %v1563 = vsel %vm832, %v1560, 0
          %v1566 = vsel %vm832, %v1561, 0
          %1568 = vmatprep.subr.bf16.mxu0 0
          %1569 = vmatpush1.bf16.msra.mxu0 %v1551
          %1570 = vmatprep.subr.bf16.mxu0 0
          %1571 = vmatpush1.bf16.msra.mxu0 0
          %1572 = vmatprep.subr.bf16.mxu0 0
          %1573 = vmatpush1.bf16.msra.mxu0 0
          %1574 = vmatprep.subr.bf16.mxu0 0
          %1575 = vmatpush1.bf16.msra.mxu0 0
          %1576 = vmatprep.subr.bf16.mxu0 0
          %1577 = vmatpush1.bf16.msra.mxu0 0
          %1578 = vmatprep.subr.bf16.mxu0 0
          %1579 = vmatpush1.bf16.msra.mxu0 0
          %1580 = vmatprep.subr.bf16.mxu0 0
          %1581 = vmatpush1.bf16.msra.mxu0 0
          %1582 = vmatprep.subr.bf16.mxu0 0
          %1583 = vmatpush1.bf16.msra.mxu0 0
          %1584 = vmatprep.subr.bf16.mxu0 0
          %1585 = vmatpush1.bf16.msra.mxu0 0
          %1586 = vmatprep.subr.bf16.mxu0 0
          %1587 = vmatpush1.bf16.msra.mxu0 0
          %1588 = vmatprep.subr.bf16.mxu0 0
          %1589 = vmatpush1.bf16.msra.mxu0 0
          %1590 = vmatprep.subr.bf16.mxu0 0
          %1591 = vmatpush1.bf16.msra.mxu0 0
          %1592 = vmatprep.subr.bf16.mxu0 0
          %1593 = vmatpush1.bf16.msra.mxu0 0
          %1594 = vmatprep.subr.bf16.mxu0 0
          %1595 = vmatpush1.bf16.msra.mxu0 0
          %1596 = vmatprep.subr.bf16.mxu0 0
          %1597 = vmatpush1.bf16.msra.mxu0 0
          %1598 = vmatprep.subr.bf16.mxu0 0
          %1599 = vmatpush1.bf16.msra.mxu0 0
          %1600 = vmatprep.mubr.bf16.mxu0 0
          %1601 = vmatmul.mubr.bf16.gmra.mrb[0].mxu0 %v1563
          %v1602 = vpop.f32.mrb[0].mxu0
          %v1603 = vadd.f32 0.0, %v1602
          %v1604 = vpop.f32.mrb[0].mxu0
          %v1605 = vpop.f32.mrb[0].mxu0
          %v1606 = vadd.f32 0.0, %v1605
          %v1607 = vpop.f32.mrb[0].mxu0
          %1608 = vmatprep.mubr.bf16.mxu0 0
          %1609 = vmatmul.mubr.bf16.gmra.mrb[0].mxu0 %v1566
          %v1610 = vpop.f32.mrb[0].mxu0
          %v1611 = vadd.f32 0.0, %v1610
          %v1612 = vpop.f32.mrb[0].mxu0
          %v1613 = vpop.f32.mrb[0].mxu0
          %v1614 = vadd.f32 0.0, %v1613
          %v1615 = vpop.f32.mrb[0].mxu0
          %1616 = vdwg.mxu0
          %v1617 = vld [vmem:[#allocation7] sm:$0xff]
          %v1618 = vld [vmem:[#allocation7 + $0x8] sm:$0xf]
          %v1619 = vld [vmem:[#allocation7 + $0xc] sm:$0xff]
          %v1620 = vld [vmem:[#allocation7 + $0x14] sm:$0xf]
          %v1621 = vld [vmem:[#allocation7 + $0x18] sm:$0xff]
          %v1622 = vld [vmem:[#allocation7 + $0x20] sm:$0xf]
          %v1623 = vld [vmem:[#allocation7 + $0x24] sm:$0xff]
          %v1624 = vld [vmem:[#allocation7 + $0x2c] sm:$0xf]
          %v1625 = vld [vmem:[#allocation3] sm:$0xff]
          %v1626 = vld [vmem:[#allocation3 + $0x8] sm:$0xff]
          %v1627 = vld [vmem:[#allocation3 + $0x18] sm:$0xff]
          %v1628 = vld [vmem:[#allocation3 + $0x20] sm:$0xff]
          %1633 = vrot.lane.b32.xlu0 %v1625, 11
          %v1634 = vpop.permute.xlu0 %1633
          %1635 = vrot.lane.b32.xlu0 %v1626, 11
          %v1636 = vpop.permute.xlu0 %1635
          %1637 = vrot.lane.b32.xlu0 %v1627, 11
          %v1638 = vpop.permute.xlu0 %1637
          %1639 = vrot.lane.b32.xlu0 %v1628, 11
          %v1640 = vpop.permute.xlu0 %1639
          %vm1641 = vcmask 89088
          %v1642 = vsel %vm1641, %v1634, %v1636
          %v1643 = vsel %vm1641, %v1638, %v1640
          %1646 = vst [vmem:[#allocation4] sm:$0xff] %v1642
          %1647 = vst [vmem:[#allocation4 + $0x18] sm:$0xff] %v1643
          %v1648 = vld [vmem:[#allocation3] sm:$0xff]
          %v1649 = vld [vmem:[#allocation3 + $0x8] sm:$0xff]
          %v1650 = vld [vmem:[#allocation3 + $0x18] sm:$0xff]
          %v1651 = vld [vmem:[#allocation3 + $0x20] sm:$0xff]
          %1656 = vrot.lane.b32.xlu0 %v1648, 10
          %v1657 = vpop.permute.xlu0 %1656
          %1658 = vrot.lane.b32.xlu0 %v1649, 10
          %v1659 = vpop.permute.xlu0 %1658
          %1660 = vrot.lane.b32.xlu0 %v1650, 10
          %v1661 = vpop.permute.xlu0 %1660
          %1662 = vrot.lane.b32.xlu0 %v1651, 10
          %v1663 = vpop.permute.xlu0 %1662
          %vm1664 = vcmask 80896
          %v1665 = vsel %vm1664, %v1657, %v1659
          %v1666 = vsel %vm1664, %v1661, %v1663
          %1669 = vst [vmem:[#allocation4 + $0x30] sm:$0xff] %v1665
          %1670 = vst [vmem:[#allocation4 + $0x48] sm:$0xff] %v1666
          %v1671 = vld [vmem:[#allocation3] sm:$0xff]
          %v1672 = vld [vmem:[#allocation3 + $0x8] sm:$0xff]
          %v1673 = vld [vmem:[#allocation3 + $0x18] sm:$0xff]
          %v1674 = vld [vmem:[#allocation3 + $0x20] sm:$0xff]
          %1679 = vrot.lane.b32.xlu0 %v1671, 9
          %v1680 = vpop.permute.xlu0 %1679
          %1681 = vrot.lane.b32.xlu0 %v1672, 9
          %v1682 = vpop.permute.xlu0 %1681
          %1683 = vrot.lane.b32.xlu0 %v1673, 9
          %v1684 = vpop.permute.xlu0 %1683
          %1685 = vrot.lane.b32.xlu0 %v1674, 9
          %v1686 = vpop.permute.xlu0 %1685
          %vm1687 = vcmask 72704
          %v1688 = vsel %vm1687, %v1680, %v1682
          %v1689 = vsel %vm1687, %v1684, %v1686
          %1692 = vst [vmem:[#allocation4 + $0x60] sm:$0xff] %v1688
          %1693 = vst [vmem:[#allocation4 + $0x78] sm:$0xff] %v1689
          %v1694 = vld [vmem:[#allocation3] sm:$0xff]
          %v1695 = vld [vmem:[#allocation3 + $0x8] sm:$0xff]
          %v1696 = vld [vmem:[#allocation3 + $0x18] sm:$0xff]
          %v1697 = vld [vmem:[#allocation3 + $0x20] sm:$0xff]
          %1702 = vrot.lane.b32.xlu0 %v1694, 1
          %v1703 = vpop.permute.xlu0 %1702
          %1704 = vrot.lane.b32.xlu0 %v1695, 1
          %v1705 = vpop.permute.xlu0 %1704
          %1706 = vrot.lane.b32.xlu0 %v1696, 1
          %v1707 = vpop.permute.xlu0 %1706
          %1708 = vrot.lane.b32.xlu0 %v1697, 1
          %v1709 = vpop.permute.xlu0 %1708
          %v1710 = vsel %vm578, %v1703, %v1705
          %v1711 = vsel %vm578, %v1707, %v1709
          %1714 = vst [vmem:[#allocation4 + $0x90] sm:$0xff] %v1710
          %1715 = vst [vmem:[#allocation4 + $0xa8] sm:$0xff] %v1711
          %v1716 = vld [vmem:[#allocation3 + $0x8] sm:$0xff]
          %v1717 = vld [vmem:[#allocation3 + $0x20] sm:$0xff]
          %1718 = vst [vmem:[#allocation4 + $0xc0] sm:$0xff] %v1716
          %1719 = vst [vmem:[#allocation4 + $0xd8] sm:$0xff] %v1717
          %v1720 = vld [vmem:[#allocation3 + $0x8] sm:$0xff]
          %v1721 = vld [vmem:[#allocation3 + $0x10] sm:$0xff]
          %v1722 = vld [vmem:[#allocation3 + $0x20] sm:$0xff]
          %v1723 = vld [vmem:[#allocation3 + $0x28] sm:$0xff]
          %1728 = vrot.lane.b32.xlu0 %v1720, 127
          %v1729 = vpop.permute.xlu0 %1728
          %1730 = vrot.lane.b32.xlu0 %v1721, 127
          %v1731 = vpop.permute.xlu0 %1730
          %1732 = vrot.lane.b32.xlu0 %v1722, 127
          %v1733 = vpop.permute.xlu0 %1732
          %1734 = vrot.lane.b32.xlu0 %v1723, 127
          %v1735 = vpop.permute.xlu0 %1734
          %v1736 = vsel %vm639, %v1729, %v1731
          %v1737 = vsel %vm639, %v1733, %v1735
          %1740 = vst [vmem:[#allocation4 + $0xf0] sm:$0xff] %v1736
          %1741 = vst [vmem:[#allocation4 + $0x108] sm:$0xff] %v1737
          %v1742 = vld [vmem:[#allocation3 + $0x8] sm:$0xff]
          %v1743 = vld [vmem:[#allocation3 + $0x10] sm:$0xff]
          %v1744 = vld [vmem:[#allocation3 + $0x20] sm:$0xff]
          %v1745 = vld [vmem:[#allocation3 + $0x28] sm:$0xff]
          %1750 = vrot.lane.b32.xlu0 %v1742, 119
          %v1751 = vpop.permute.xlu0 %1750
          %1752 = vrot.lane.b32.xlu0 %v1743, 119
          %v1753 = vpop.permute.xlu0 %1752
          %1754 = vrot.lane.b32.xlu0 %v1744, 119
          %v1755 = vpop.permute.xlu0 %1754
          %1756 = vrot.lane.b32.xlu0 %v1745, 119
          %v1757 = vpop.permute.xlu0 %1756
          %vm1758 = vcmask 973824
          %v1759 = vsel %vm1758, %v1751, %v1753
          %v1760 = vsel %vm1758, %v1755, %v1757
          %1763 = vst [vmem:[#allocation4 + $0x120] sm:$0xff] %v1759
          %1764 = vst [vmem:[#allocation4 + $0x138] sm:$0xff] %v1760
          %v1765 = vld [vmem:[#allocation3 + $0x8] sm:$0xff]
          %v1766 = vld [vmem:[#allocation3 + $0x10] sm:$0xff]
          %v1767 = vld [vmem:[#allocation3 + $0x20] sm:$0xff]
          %v1768 = vld [vmem:[#allocation3 + $0x28] sm:$0xff]
          %1773 = vrot.lane.b32.xlu0 %v1765, 118
          %v1774 = vpop.permute.xlu0 %1773
          %1775 = vrot.lane.b32.xlu0 %v1766, 118
          %v1776 = vpop.permute.xlu0 %1775
          %1777 = vrot.lane.b32.xlu0 %v1767, 118
          %v1778 = vpop.permute.xlu0 %1777
          %1779 = vrot.lane.b32.xlu0 %v1768, 118
          %v1780 = vpop.permute.xlu0 %1779
          %vm1781 = vcmask 965632
          %v1782 = vsel %vm1781, %v1774, %v1776
          %v1783 = vsel %vm1781, %v1778, %v1780
          %1786 = vst [vmem:[#allocation4 + $0x150] sm:$0xff] %v1782
          %1787 = vst [vmem:[#allocation4 + $0x168] sm:$0xff] %v1783
          %v1788 = vld [vmem:[#allocation3 + $0x8] sm:$0xff]
          %v1789 = vld [vmem:[#allocation3 + $0x10] sm:$0xff]
          %v1790 = vld [vmem:[#allocation3 + $0x20] sm:$0xff]
          %v1791 = vld [vmem:[#allocation3 + $0x28] sm:$0xff]
          %1796 = vrot.lane.b32.xlu0 %v1788, 117
          %v1797 = vpop.permute.xlu0 %1796
          %1798 = vrot.lane.b32.xlu0 %v1789, 117
          %v1799 = vpop.permute.xlu0 %1798
          %1800 = vrot.lane.b32.xlu0 %v1790, 117
          %v1801 = vpop.permute.xlu0 %1800
          %1802 = vrot.lane.b32.xlu0 %v1791, 117
          %v1803 = vpop.permute.xlu0 %1802
          %vm1804 = vcmask 957440
          %v1805 = vsel %vm1804, %v1797, %v1799
          %v1806 = vsel %vm1804, %v1801, %v1803
          %1809 = vst [vmem:[#allocation4 + $0x180] sm:$0xff] %v1805
          %1810 = vst [vmem:[#allocation4 + $0x198] sm:$0xff] %v1806
          %v1811 = vld [vmem:[#allocation4] sm:$0xff]
          %v1812 = vld [vmem:[#allocation4 + $0x18] sm:$0xff]
          %v1813 = vld [vmem:[#allocation4 + $0x30] sm:$0xff]
          %v1814 = vld [vmem:[#allocation4 + $0x48] sm:$0xff]
          %v1815 = vld [vmem:[#allocation4 + $0x60] sm:$0xff]
          %v1816 = vld [vmem:[#allocation4 + $0x78] sm:$0xff]
          %v1817 = vld [vmem:[#allocation4 + $0x90] sm:$0xff]
          %v1818 = vld [vmem:[#allocation4 + $0xa8] sm:$0xff]
          %v1819 = vld [vmem:[#allocation4 + $0xc0] sm:$0xff]
          %v1820 = vld [vmem:[#allocation4 + $0xd8] sm:$0xff]
          %v1821 = vld [vmem:[#allocation4 + $0xf0] sm:$0xff]
          %v1822 = vld [vmem:[#allocation4 + $0x108] sm:$0xff]
          %v1823 = vld [vmem:[#allocation4 + $0x120] sm:$0xff]
          %v1824 = vld [vmem:[#allocation4 + $0x138] sm:$0xff]
          %v1825 = vld [vmem:[#allocation4 + $0x150] sm:$0xff]
          %v1826 = vld [vmem:[#allocation4 + $0x168] sm:$0xff]
          %v1827 = vld [vmem:[#allocation4 + $0x180] sm:$0xff]
          %v1828 = vld [vmem:[#allocation4 + $0x198] sm:$0xff]
          %v1829 = vld [vmem:[%s4] sm:$0xff]
          %v1830 = vld [vmem:[%s4 + $0x8] sm:$0xff]
          %v1831 = vld [vmem:[%s4 + $0x10] sm:$0xff]
          %v1832 = vld [vmem:[%s4 + $0x18] sm:$0xff]
          %1834 = vset.pattern.permute.xlu0 1
          %1835 = vperm.xlu0 %1834, %v1829
          %v1836 = vpop.permute.xlu0 %1835
          %1839 = vset.pattern.permute.xlu0 1
          %1840 = vperm.xlu0 %1839, %v1830
          %v1841 = vpop.permute.xlu0 %1840
          %1844 = vset.pattern.permute.xlu0 1
          %1845 = vperm.xlu0 %1844, %v1831
          %v1846 = vpop.permute.xlu0 %1845
          %1849 = vset.pattern.permute.xlu0 1
          %1850 = vperm.xlu0 %1849, %v1832
          %v1851 = vpop.permute.xlu0 %1850
          %v1861 = vunpack.c.l.b16 %v1617
          %v1862 = vunpack.c.h.b16 %v1617
          %v1863 = vunpack.c.l.b16 %v1618
          %v1864 = vunpack.c.l.b16 %v1619
          %v1865 = vunpack.c.h.b16 %v1619
          %v1866 = vunpack.c.l.b16 %v1620
          %v1867 = vunpack.c.l.b16 %v1621
          %v1868 = vunpack.c.h.b16 %v1621
          %v1869 = vunpack.c.l.b16 %v1622
          %v1870 = vunpack.c.l.b16 %v1623
          %v1871 = vunpack.c.h.b16 %v1623
          %v1872 = vunpack.c.l.b16 %v1624
          %v1873 = vpack.c.b16 %v1864, %v1861
          %v1874 = vpack.c.b16 %v1865, %v1862
          %v1875 = vpack.c.b16 %v1866, %v1863
          %v1876 = vpack.c.b16 %v1870, %v1867
          %v1877 = vpack.c.b16 %v1871, %v1868
          %v1878 = vpack.c.b16 %v1872, %v1869
          %vm1883 = vcmask 261120
          %v1885 = vsel %vm1883, %v1875, 0
          %v1888 = vsel %vm1883, %v1878, 0
          %1890 = vmatprep.subr.bf16.mxu0 0
          %1891 = vmatpush1.bf16.msra.mxu0 %v1811
          %1892 = vmatprep.subr.bf16.mxu0 0
          %1893 = vmatpush1.bf16.msra.mxu0 %v1812
          %1894 = vmatprep.subr.bf16.mxu0 0
          %1895 = vmatpush1.bf16.msra.mxu0 %v1813
          %1896 = vmatprep.subr.bf16.mxu0 0
          %1897 = vmatpush1.bf16.msra.mxu0 %v1814
          %1898 = vmatprep.subr.bf16.mxu0 0
          %1899 = vmatpush1.bf16.msra.mxu0 %v1815
          %1900 = vmatprep.subr.bf16.mxu0 0
          %1901 = vmatpush1.bf16.msra.mxu0 %v1816
          %1902 = vmatprep.subr.bf16.mxu0 0
          %1903 = vmatpush1.bf16.msra.mxu0 %v1817
          %1904 = vmatprep.subr.bf16.mxu0 0
          %1905 = vmatpush1.bf16.msra.mxu0 %v1818
          %1906 = vmatprep.subr.bf16.mxu0 0
          %1907 = vmatpush1.bf16.msra.mxu0 %v1819
          %1908 = vmatprep.subr.bf16.mxu0 0
          %1909 = vmatpush1.bf16.msra.mxu0 %v1820
          %1910 = vmatprep.subr.bf16.mxu0 0
          %1911 = vmatpush1.bf16.msra.mxu0 %v1821
          %1912 = vmatprep.subr.bf16.mxu0 0
          %1913 = vmatpush1.bf16.msra.mxu0 %v1822
          %1914 = vmatprep.subr.bf16.mxu0 0
          %1915 = vmatpush1.bf16.msra.mxu0 %v1823
          %1916 = vmatprep.subr.bf16.mxu0 0
          %1917 = vmatpush1.bf16.msra.mxu0 %v1824
          %1918 = vmatprep.subr.bf16.mxu0 0
          %1919 = vmatpush1.bf16.msra.mxu0 %v1825
          %1920 = vmatprep.subr.bf16.mxu0 0
          %1921 = vmatpush1.bf16.msra.mxu0 %v1826
          %1922 = vmatprep.mubr.bf16.mxu0 %v1874
          %1923 = vmatmul.mubr.bf16.gmra.mrb[0].mxu0 %v1873
          %v1924 = vpop.f32.mrb[0].mxu0
          %v1925 = vadd.f32 %v1836, %v1924
          %v1926 = vpop.f32.mrb[0].mxu0
          %v1927 = vpop.f32.mrb[0].mxu0
          %v1928 = vadd.f32 %v1841, %v1927
          %v1929 = vpop.f32.mrb[0].mxu0
          %1930 = vmatprep.mubr.bf16.mxu0 %v1877
          %1931 = vmatmul.mubr.bf16.gmra.mrb[0].mxu0 %v1876
          %v1932 = vpop.f32.mrb[0].mxu0
          %v1933 = vadd.f32 %v1846, %v1932
          %v1934 = vpop.f32.mrb[0].mxu0
          %v1935 = vpop.f32.mrb[0].mxu0
          %v1936 = vadd.f32 %v1851, %v1935
          %v1937 = vpop.f32.mrb[0].mxu0
          %1938 = vdwg.mxu0
          %1939 = vmatprep.subr.bf16.mxu0 0
          %1940 = vmatpush1.bf16.msra.mxu0 %v1827
          %1941 = vmatprep.subr.bf16.mxu0 0
          %1942 = vmatpush1.bf16.msra.mxu0 %v1828
          %1943 = vmatprep.subr.bf16.mxu0 0
          %1944 = vmatpush1.bf16.msra.mxu0 0
          %1945 = vmatprep.subr.bf16.mxu0 0
          %1946 = vmatpush1.bf16.msra.mxu0 0
          %1947 = vmatprep.subr.bf16.mxu0 0
          %1948 = vmatpush1.bf16.msra.mxu0 0
          %1949 = vmatprep.subr.bf16.mxu0 0
          %1950 = vmatpush1.bf16.msra.mxu0 0
          %1951 = vmatprep.subr.bf16.mxu0 0
          %1952 = vmatpush1.bf16.msra.mxu0 0
          %1953 = vmatprep.subr.bf16.mxu0 0
          %1954 = vmatpush1.bf16.msra.mxu0 0
          %1955 = vmatprep.subr.bf16.mxu0 0
          %1956 = vmatpush1.bf16.msra.mxu0 0
          %1957 = vmatprep.subr.bf16.mxu0 0
          %1958 = vmatpush1.bf16.msra.mxu0 0
          %1959 = vmatprep.subr.bf16.mxu0 0
          %1960 = vmatpush1.bf16.msra.mxu0 0
          %1961 = vmatprep.subr.bf16.mxu0 0
          %1962 = vmatpush1.bf16.msra.mxu0 0
          %1963 = vmatprep.subr.bf16.mxu0 0
          %1964 = vmatpush1.bf16.msra.mxu0 0
          %1965 = vmatprep.subr.bf16.mxu0 0
          %1966 = vmatpush1.bf16.msra.mxu0 0
          %1967 = vmatprep.subr.bf16.mxu0 0
          %1968 = vmatpush1.bf16.msra.mxu0 0
          %1969 = vmatprep.subr.bf16.mxu0 0
          %1970 = vmatpush1.bf16.msra.mxu0 0
          %1971 = vmatprep.mubr.bf16.mxu0 0
          %1972 = vmatmul.mubr.bf16.gmra.mrb[0].mxu0 %v1885
          %v1973 = vpop.f32.mrb[0].mxu0
          %v1974 = vadd.f32 %v1925, %v1973
          %v1975 = vpop.f32.mrb[0].mxu0
          %v1976 = vpop.f32.mrb[0].mxu0
          %v1977 = vadd.f32 %v1928, %v1976
          %v1978 = vpop.f32.mrb[0].mxu0
          %1979 = vmatprep.mubr.bf16.mxu0 0
          %1980 = vmatmul.mubr.bf16.gmra.mrb[0].mxu0 %v1888
          %v1981 = vpop.f32.mrb[0].mxu0
          %v1982 = vadd.f32 %v1933, %v1981
          %v1983 = vpop.f32.mrb[0].mxu0
          %v1984 = vpop.f32.mrb[0].mxu0
          %v1985 = vadd.f32 %v1936, %v1984
          %v1986 = vpop.f32.mrb[0].mxu0
          %1987 = vdwg.mxu0
          %v1988 = vadd.f32 %v1974, %v1603
          %v1989 = vadd.f32 %v1977, %v1606
          %v1990 = vadd.f32 %v1982, %v1611
          %v1991 = vadd.f32 %v1985, %v1614
          %v1992 = vmax.f32 %v1988, 0.0
          %v1993 = vmax.f32 %v1989, 0.0
          %v1994 = vmax.f32 %v1990, 0.0
          %v1995 = vmax.f32 %v1991, 0.0
          %v1997 = vlaneseq
          %v1998 = vshrl.u32 %v1997, 7
          %v1999 = vsub.s32 0, %v1998
          %v2000 = vrot.slane %v415, %v1999
          %v2002 = vmul.f32 %v1992, %v2000
          %v2003 = vmul.f32 %v1993, %v2000
          %v2004 = vmul.f32 %v1994, %v2000
          %v2005 = vmul.f32 %v1995, %v2000
          %v2006 = vpack.c.bf16 %v2003, %v2002
          %v2007 = vpack.c.bf16 %v2005, %v2004
          %2008 = vst [vmem:[#allocation2 + $0x8] sm:$0xff] %v2006
          %2009 = vst [vmem:[#allocation2 + $0x20] sm:$0xff] %v2007
        $region76: #{resnet56_forward.4} parent=59 // pred_fallthru
          _
        %p2010 = scmp.gt.s32.totalorder %s28, 0
        // Predicated region
        $region77: #{resnet56_forward.4} parent=59 // pred_check
          %p2011 = pneg %p2010
        $region78: #{resnet56_forward.4} parent=59 // pred_check_branch
          %2013 = sbr.rel (%p2011) target = $region80
        $region79: #{resnet56_forward.4} parent=59 // pred_region
          %s2014 = ssub.s32 %s28, 1
          %p2015 = scmp.gt.s32.totalorder %s2014, 0
          %s2016 = scalar_select %p2015, %s2014, 0
          %s2017 = smul.u32 %s2016, 12
          %s2018 = smul.addr %s2017, 4
          %s2019 = scalar_lea.vmem %s6, %s2018
          %v2020 = vld [vmem:[%s2019] sm:$0xff]
          %v2021 = vld [vmem:[%s2019 + $0x8] sm:$0xf]
          %v2022 = vld [vmem:[%s2019 + $0xc] sm:$0xff]
          %v2023 = vld [vmem:[%s2019 + $0x14] sm:$0xf]
          %v2024 = vld [vmem:[%s2019 + $0x18] sm:$0xff]
          %v2025 = vld [vmem:[%s2019 + $0x20] sm:$0xf]
          %v2026 = vld [vmem:[%s2019 + $0x24] sm:$0xff]
          %v2027 = vld [vmem:[%s2019 + $0x2c] sm:$0xf]
          %s2028 = smul.addr %s2017, 4
          %s2029 = scalar_lea.vmem %s7, %s2028
          %v2030 = vld [vmem:[%s2029] sm:$0xff]
          %v2031 = vld [vmem:[%s2029 + $0x8] sm:$0xf]
          %v2032 = vld [vmem:[%s2029 + $0xc] sm:$0xff]
          %v2033 = vld [vmem:[%s2029 + $0x14] sm:$0xf]
          %v2034 = vld [vmem:[%s2029 + $0x18] sm:$0xff]
          %v2035 = vld [vmem:[%s2029 + $0x20] sm:$0xf]
          %v2036 = vld [vmem:[%s2029 + $0x24] sm:$0xff]
          %v2037 = vld [vmem:[%s2029 + $0x2c] sm:$0xf]
          %s2038 = smul.u32 %s2016, 32
          %s2039 = scalar_lea.vmem %s8, %s2038
          %v2040 = vld [vmem:[%s2039] sm:$0xff]
          %v2041 = vld [vmem:[%s2039 + $0x8] sm:$0xff]
          %v2042 = vld [vmem:[%s2039 + $0x10] sm:$0xff]
          %v2043 = vld [vmem:[%s2039 + $0x18] sm:$0xff]
          %v2044 = vld [vmem:[#allocation2] sm:$0xff]
          %v2045 = vld [vmem:[#allocation2 + $0x8] sm:$0xff]
          %v2046 = vld [vmem:[#allocation2 + $0x18] sm:$0xff]
          %v2047 = vld [vmem:[#allocation2 + $0x20] sm:$0xff]
          %2052 = vrot.lane.b32.xlu0 %v2044, 11
          %v2053 = vpop.permute.xlu0 %2052
          %2054 = vrot.lane.b32.xlu0 %v2045, 11
          %v2055 = vpop.permute.xlu0 %2054
          %2056 = vrot.lane.b32.xlu0 %v2046, 11
          %v2057 = vpop.permute.xlu0 %2056
          %2058 = vrot.lane.b32.xlu0 %v2047, 11
          %v2059 = vpop.permute.xlu0 %2058
          %vm2060 = vcmask 89088
          %v2061 = vsel %vm2060, %v2053, %v2055
          %v2062 = vsel %vm2060, %v2057, %v2059
          %2065 = vst [vmem:[#allocation4] sm:$0xff] %v2061
          %2066 = vst [vmem:[#allocation4 + $0x18] sm:$0xff] %v2062
          %v2067 = vld [vmem:[#allocation2] sm:$0xff]
          %v2068 = vld [vmem:[#allocation2 + $0x8] sm:$0xff]
          %v2069 = vld [vmem:[#allocation2 + $0x18] sm:$0xff]
          %v2070 = vld [vmem:[#allocation2 + $0x20] sm:$0xff]
          %2075 = vrot.lane.b32.xlu0 %v2067, 10
          %v2076 = vpop.permute.xlu0 %2075
          %2077 = vrot.lane.b32.xlu0 %v2068, 10
          %v2078 = vpop.permute.xlu0 %2077
          %2079 = vrot.lane.b32.xlu0 %v2069, 10
          %v2080 = vpop.permute.xlu0 %2079
          %2081 = vrot.lane.b32.xlu0 %v2070, 10
          %v2082 = vpop.permute.xlu0 %2081
          %vm2083 = vcmask 80896
          %v2084 = vsel %vm2083, %v2076, %v2078
          %v2085 = vsel %vm2083, %v2080, %v2082
          %2088 = vst [vmem:[#allocation4 + $0x30] sm:$0xff] %v2084
          %2089 = vst [vmem:[#allocation4 + $0x48] sm:$0xff] %v2085
          %v2090 = vld [vmem:[#allocation2] sm:$0xff]
          %v2091 = vld [vmem:[#allocation2 + $0x8] sm:$0xff]
          %v2092 = vld [vmem:[#allocation2 + $0x18] sm:$0xff]
          %v2093 = vld [vmem:[#allocation2 + $0x20] sm:$0xff]
          %2098 = vrot.lane.b32.xlu0 %v2090, 9
          %v2099 = vpop.permute.xlu0 %2098
          %2100 = vrot.lane.b32.xlu0 %v2091, 9
          %v2101 = vpop.permute.xlu0 %2100
          %2102 = vrot.lane.b32.xlu0 %v2092, 9
          %v2103 = vpop.permute.xlu0 %2102
          %2104 = vrot.lane.b32.xlu0 %v2093, 9
          %v2105 = vpop.permute.xlu0 %2104
          %vm2106 = vcmask 72704
          %v2107 = vsel %vm2106, %v2099, %v2101
          %v2108 = vsel %vm2106, %v2103, %v2105
          %2111 = vst [vmem:[#allocation4 + $0x60] sm:$0xff] %v2107
          %2112 = vst [vmem:[#allocation4 + $0x78] sm:$0xff] %v2108
          %v2113 = vld [vmem:[#allocation2] sm:$0xff]
          %v2114 = vld [vmem:[#allocation2 + $0x8] sm:$0xff]
          %v2115 = vld [vmem:[#allocation2 + $0x18] sm:$0xff]
          %v2116 = vld [vmem:[#allocation2 + $0x20] sm:$0xff]
          %2121 = vrot.lane.b32.xlu0 %v2113, 1
          %v2122 = vpop.permute.xlu0 %2121
          %2123 = vrot.lane.b32.xlu0 %v2114, 1
          %v2124 = vpop.permute.xlu0 %2123
          %2125 = vrot.lane.b32.xlu0 %v2115, 1
          %v2126 = vpop.permute.xlu0 %2125
          %2127 = vrot.lane.b32.xlu0 %v2116, 1
          %v2128 = vpop.permute.xlu0 %2127
          %vm2129 = vcmask 7168
          %v2130 = vsel %vm2129, %v2122, %v2124
          %v2131 = vsel %vm2129, %v2126, %v2128
          %2134 = vst [vmem:[#allocation4 + $0x90] sm:$0xff] %v2130
          %2135 = vst [vmem:[#allocation4 + $0xa8] sm:$0xff] %v2131
          %v2136 = vld [vmem:[#allocation2 + $0x8] sm:$0xff]
          %v2137 = vld [vmem:[#allocation2 + $0x20] sm:$0xff]
          %2138 = vst [vmem:[#allocation4 + $0xc0] sm:$0xff] %v2136
          %2139 = vst [vmem:[#allocation4 + $0xd8] sm:$0xff] %v2137
          %v2140 = vld [vmem:[#allocation2 + $0x8] sm:$0xff]
          %v2141 = vld [vmem:[#allocation2 + $0x10] sm:$0xff]
          %v2142 = vld [vmem:[#allocation2 + $0x20] sm:$0xff]
          %v2143 = vld [vmem:[#allocation2 + $0x28] sm:$0xff]
          %2148 = vrot.lane.b32.xlu0 %v2140, 127
          %v2149 = vpop.permute.xlu0 %2148
          %2150 = vrot.lane.b32.xlu0 %v2141, 127
          %v2151 = vpop.permute.xlu0 %2150
          %2152 = vrot.lane.b32.xlu0 %v2142, 127
          %v2153 = vpop.permute.xlu0 %2152
          %2154 = vrot.lane.b32.xlu0 %v2143, 127
          %v2155 = vpop.permute.xlu0 %2154
          %vm2156 = vcmask 1039360
          %v2157 = vsel %vm2156, %v2149, %v2151
          %v2158 = vsel %vm2156, %v2153, %v2155
          %2161 = vst [vmem:[#allocation4 + $0xf0] sm:$0xff] %v2157
          %2162 = vst [vmem:[#allocation4 + $0x108] sm:$0xff] %v2158
          %v2163 = vld [vmem:[#allocation2 + $0x8] sm:$0xff]
          %v2164 = vld [vmem:[#allocation2 + $0x10] sm:$0xff]
          %v2165 = vld [vmem:[#allocation2 + $0x20] sm:$0xff]
          %v2166 = vld [vmem:[#allocation2 + $0x28] sm:$0xff]
          %2171 = vrot.lane.b32.xlu0 %v2163, 119
          %v2172 = vpop.permute.xlu0 %2171
          %2173 = vrot.lane.b32.xlu0 %v2164, 119
          %v2174 = vpop.permute.xlu0 %2173
          %2175 = vrot.lane.b32.xlu0 %v2165, 119
          %v2176 = vpop.permute.xlu0 %2175
          %2177 = vrot.lane.b32.xlu0 %v2166, 119
          %v2178 = vpop.permute.xlu0 %2177
          %vm2179 = vcmask 973824
          %v2180 = vsel %vm2179, %v2172, %v2174
          %v2181 = vsel %vm2179, %v2176, %v2178
          %2184 = vst [vmem:[#allocation4 + $0x120] sm:$0xff] %v2180
          %2185 = vst [vmem:[#allocation4 + $0x138] sm:$0xff] %v2181
          %v2186 = vld [vmem:[#allocation2 + $0x8] sm:$0xff]
          %v2187 = vld [vmem:[#allocation2 + $0x10] sm:$0xff]
          %v2188 = vld [vmem:[#allocation2 + $0x20] sm:$0xff]
          %v2189 = vld [vmem:[#allocation2 + $0x28] sm:$0xff]
          %2194 = vrot.lane.b32.xlu0 %v2186, 118
          %v2195 = vpop.permute.xlu0 %2194
          %2196 = vrot.lane.b32.xlu0 %v2187, 118
          %v2197 = vpop.permute.xlu0 %2196
          %2198 = vrot.lane.b32.xlu0 %v2188, 118
          %v2199 = vpop.permute.xlu0 %2198
          %2200 = vrot.lane.b32.xlu0 %v2189, 118
          %v2201 = vpop.permute.xlu0 %2200
          %vm2202 = vcmask 965632
          %v2203 = vsel %vm2202, %v2195, %v2197
          %v2204 = vsel %vm2202, %v2199, %v2201
          %2207 = vst [vmem:[#allocation4 + $0x150] sm:$0xff] %v2203
          %2208 = vst [vmem:[#allocation4 + $0x168] sm:$0xff] %v2204
          %v2209 = vld [vmem:[#allocation2 + $0x8] sm:$0xff]
          %v2210 = vld [vmem:[#allocation2 + $0x10] sm:$0xff]
          %v2211 = vld [vmem:[#allocation2 + $0x20] sm:$0xff]
          %v2212 = vld [vmem:[#allocation2 + $0x28] sm:$0xff]
          %2217 = vrot.lane.b32.xlu0 %v2209, 117
          %v2218 = vpop.permute.xlu0 %2217
          %2219 = vrot.lane.b32.xlu0 %v2210, 117
          %v2220 = vpop.permute.xlu0 %2219
          %2221 = vrot.lane.b32.xlu0 %v2211, 117
          %v2222 = vpop.permute.xlu0 %2221
          %2223 = vrot.lane.b32.xlu0 %v2212, 117
          %v2224 = vpop.permute.xlu0 %2223
          %vm2225 = vcmask 957440
          %v2226 = vsel %vm2225, %v2218, %v2220
          %v2227 = vsel %vm2225, %v2222, %v2224
          %2230 = vst [vmem:[#allocation4 + $0x180] sm:$0xff] %v2226
          %2231 = vst [vmem:[#allocation4 + $0x198] sm:$0xff] %v2227
          %v2232 = vld [vmem:[#allocation4] sm:$0xff]
          %v2233 = vld [vmem:[#allocation4 + $0x18] sm:$0xff]
          %v2234 = vld [vmem:[#allocation4 + $0x30] sm:$0xff]
          %v2235 = vld [vmem:[#allocation4 + $0x48] sm:$0xff]
          %v2236 = vld [vmem:[#allocation4 + $0x60] sm:$0xff]
          %v2237 = vld [vmem:[#allocation4 + $0x78] sm:$0xff]
          %v2238 = vld [vmem:[#allocation4 + $0x90] sm:$0xff]
          %v2239 = vld [vmem:[#allocation4 + $0xa8] sm:$0xff]
          %v2240 = vld [vmem:[#allocation4 + $0xc0] sm:$0xff]
          %v2241 = vld [vmem:[#allocation4 + $0xd8] sm:$0xff]
          %v2242 = vld [vmem:[#allocation4 + $0xf0] sm:$0xff]
          %v2243 = vld [vmem:[#allocation4 + $0x108] sm:$0xff]
          %v2244 = vld [vmem:[#allocation4 + $0x120] sm:$0xff]
          %v2245 = vld [vmem:[#allocation4 + $0x138] sm:$0xff]
          %v2246 = vld [vmem:[#allocation4 + $0x150] sm:$0xff]
          %v2247 = vld [vmem:[#allocation4 + $0x168] sm:$0xff]
          %v2248 = vld [vmem:[#allocation4 + $0x180] sm:$0xff]
          %v2249 = vld [vmem:[#allocation4 + $0x198] sm:$0xff]
          %2251 = vset.pattern.permute.xlu0 0
          %2252 = vperm.xlu0 %2251, %v2040
          %v2253 = vpop.permute.xlu0 %2252
          %2256 = vset.pattern.permute.xlu0 0
          %2257 = vperm.xlu0 %2256, %v2041
          %v2258 = vpop.permute.xlu0 %2257
          %2261 = vset.pattern.permute.xlu0 0
          %2262 = vperm.xlu0 %2261, %v2042
          %v2263 = vpop.permute.xlu0 %2262
          %2266 = vset.pattern.permute.xlu0 0
          %2267 = vperm.xlu0 %2266, %v2043
          %v2268 = vpop.permute.xlu0 %2267
          %v2278 = vunpack.c.l.b16 %v2020
          %v2279 = vunpack.c.h.b16 %v2020
          %v2280 = vunpack.c.l.b16 %v2021
          %v2281 = vunpack.c.l.b16 %v2022
          %v2282 = vunpack.c.h.b16 %v2022
          %v2283 = vunpack.c.l.b16 %v2023
          %v2284 = vunpack.c.l.b16 %v2024
          %v2285 = vunpack.c.h.b16 %v2024
          %v2286 = vunpack.c.l.b16 %v2025
          %v2287 = vunpack.c.l.b16 %v2026
          %v2288 = vunpack.c.h.b16 %v2026
          %v2289 = vunpack.c.l.b16 %v2027
          %v2290 = vpack.c.b16 %v2281, %v2278
          %v2291 = vpack.c.b16 %v2282, %v2279
          %v2292 = vpack.c.b16 %v2283, %v2280
          %v2293 = vpack.c.b16 %v2287, %v2284
          %v2294 = vpack.c.b16 %v2288, %v2285
          %v2295 = vpack.c.b16 %v2289, %v2286
          %vm2300 = vcmask 261120
          %v2302 = vsel %vm2300, %v2292, 0
          %v2305 = vsel %vm2300, %v2295, 0
          %2307 = vmatprep.subr.bf16.mxu0 0
          %2308 = vmatpush1.bf16.msra.mxu0 %v2232
          %2309 = vmatprep.subr.bf16.mxu0 0
          %2310 = vmatpush1.bf16.msra.mxu0 %v2233
          %2311 = vmatprep.subr.bf16.mxu0 0
          %2312 = vmatpush1.bf16.msra.mxu0 %v2234
          %2313 = vmatprep.subr.bf16.mxu0 0
          %2314 = vmatpush1.bf16.msra.mxu0 %v2235
          %2315 = vmatprep.subr.bf16.mxu0 0
          %2316 = vmatpush1.bf16.msra.mxu0 %v2236
          %2317 = vmatprep.subr.bf16.mxu0 0
          %2318 = vmatpush1.bf16.msra.mxu0 %v2237
          %2319 = vmatprep.subr.bf16.mxu0 0
          %2320 = vmatpush1.bf16.msra.mxu0 %v2238
          %2321 = vmatprep.subr.bf16.mxu0 0
          %2322 = vmatpush1.bf16.msra.mxu0 %v2239
          %2323 = vmatprep.subr.bf16.mxu0 0
          %2324 = vmatpush1.bf16.msra.mxu0 %v2240
          %2325 = vmatprep.subr.bf16.mxu0 0
          %2326 = vmatpush1.bf16.msra.mxu0 %v2241
          %2327 = vmatprep.subr.bf16.mxu0 0
          %2328 = vmatpush1.bf16.msra.mxu0 %v2242
          %2329 = vmatprep.subr.bf16.mxu0 0
          %2330 = vmatpush1.bf16.msra.mxu0 %v2243
          %2331 = vmatprep.subr.bf16.mxu0 0
          %2332 = vmatpush1.bf16.msra.mxu0 %v2244
          %2333 = vmatprep.subr.bf16.mxu0 0
          %2334 = vmatpush1.bf16.msra.mxu0 %v2245
          %2335 = vmatprep.subr.bf16.mxu0 0
          %2336 = vmatpush1.bf16.msra.mxu0 %v2246
          %2337 = vmatprep.subr.bf16.mxu0 0
          %2338 = vmatpush1.bf16.msra.mxu0 %v2247
          %2339 = vmatprep.mubr.bf16.mxu0 %v2291
          %2340 = vmatmul.mubr.bf16.gmra.mrb[0].mxu0 %v2290
          %v2341 = vpop.f32.mrb[0].mxu0
          %v2342 = vadd.f32 %v2253, %v2341
          %v2343 = vpop.f32.mrb[0].mxu0
          %v2344 = vpop.f32.mrb[0].mxu0
          %v2345 = vadd.f32 %v2258, %v2344
          %v2346 = vpop.f32.mrb[0].mxu0
          %2347 = vmatprep.mubr.bf16.mxu0 %v2294
          %2348 = vmatmul.mubr.bf16.gmra.mrb[0].mxu0 %v2293
          %v2349 = vpop.f32.mrb[0].mxu0
          %v2350 = vadd.f32 %v2263, %v2349
          %v2351 = vpop.f32.mrb[0].mxu0
          %v2352 = vpop.f32.mrb[0].mxu0
          %v2353 = vadd.f32 %v2268, %v2352
          %v2354 = vpop.f32.mrb[0].mxu0
          %2355 = vdwg.mxu0
          %2356 = vmatprep.subr.bf16.mxu0 0
          %2357 = vmatpush1.bf16.msra.mxu0 %v2248
          %2358 = vmatprep.subr.bf16.mxu0 0
          %2359 = vmatpush1.bf16.msra.mxu0 %v2249
          %2360 = vmatprep.subr.bf16.mxu0 0
          %2361 = vmatpush1.bf16.msra.mxu0 0
          %2362 = vmatprep.subr.bf16.mxu0 0
          %2363 = vmatpush1.bf16.msra.mxu0 0
          %2364 = vmatprep.subr.bf16.mxu0 0
          %2365 = vmatpush1.bf16.msra.mxu0 0
          %2366 = vmatprep.subr.bf16.mxu0 0
          %2367 = vmatpush1.bf16.msra.mxu0 0
          %2368 = vmatprep.subr.bf16.mxu0 0
          %2369 = vmatpush1.bf16.msra.mxu0 0
          %2370 = vmatprep.subr.bf16.mxu0 0
          %2371 = vmatpush1.bf16.msra.mxu0 0
          %2372 = vmatprep.subr.bf16.mxu0 0
          %2373 = vmatpush1.bf16.msra.mxu0 0
          %2374 = vmatprep.subr.bf16.mxu0 0
          %2375 = vmatpush1.bf16.msra.mxu0 0
          %2376 = vmatprep.subr.bf16.mxu0 0
          %2377 = vmatpush1.bf16.msra.mxu0 0
          %2378 = vmatprep.subr.bf16.mxu0 0
          %2379 = vmatpush1.bf16.msra.mxu0 0
          %2380 = vmatprep.subr.bf16.mxu0 0
          %2381 = vmatpush1.bf16.msra.mxu0 0
          %2382 = vmatprep.subr.bf16.mxu0 0
          %2383 = vmatpush1.bf16.msra.mxu0 0
          %2384 = vmatprep.subr.bf16.mxu0 0
          %2385 = vmatpush1.bf16.msra.mxu0 0
          %2386 = vmatprep.subr.bf16.mxu0 0
          %2387 = vmatpush1.bf16.msra.mxu0 0
          %2388 = vmatprep.mubr.bf16.mxu0 0
          %2389 = vmatmul.mubr.bf16.gmra.mrb[0].mxu0 %v2302
          %v2390 = vpop.f32.mrb[0].mxu0
          %v2391 = vadd.f32 %v2342, %v2390
          %v2392 = vpop.f32.mrb[0].mxu0
          %v2393 = vpop.f32.mrb[0].mxu0
          %v2394 = vadd.f32 %v2345, %v2393
          %v2395 = vpop.f32.mrb[0].mxu0
          %2396 = vmatprep.mubr.bf16.mxu0 0
          %2397 = vmatmul.mubr.bf16.gmra.mrb[0].mxu0 %v2305
          %v2398 = vpop.f32.mrb[0].mxu0
          %v2399 = vadd.f32 %v2350, %v2398
          %v2400 = vpop.f32.mrb[0].mxu0
          %v2401 = vpop.f32.mrb[0].mxu0
          %v2402 = vadd.f32 %v2353, %v2401
          %v2403 = vpop.f32.mrb[0].mxu0
          %2404 = vdwg.mxu0
          %v2405 = vmax.f32 %v2391, 0.0
          %v2406 = vmax.f32 %v2394, 0.0
          %v2407 = vmax.f32 %v2399, 0.0
          %v2408 = vmax.f32 %v2402, 0.0
          %v2410 = vlaneseq
          %v2411 = vshrl.u32 %v2410, 7
          %v2412 = vsub.s32 0, %v2411
          %v2413 = vrot.slane %v415, %v2412
          %v2415 = vmul.f32 %v2405, %v2413
          %v2416 = vmul.f32 %v2406, %v2413
          %v2417 = vmul.f32 %v2407, %v2413
          %v2418 = vmul.f32 %v2408, %v2413
          %v2419 = vpack.c.bf16 %v2416, %v2415
          %v2420 = vpack.c.bf16 %v2418, %v2417
          %2421 = vst [vmem:[#allocation3 + $0x8] sm:$0xff] %v2419
          %2422 = vst [vmem:[#allocation3 + $0x20] sm:$0xff] %v2420
          %v2423 = vld [vmem:[#allocation2 + $0x8] sm:$0xff]
          %v2424 = vld [vmem:[#allocation2 + $0x20] sm:$0xff]
          %v2425 = vunpack.c.l.bf16 %v2423
          %v2426 = vunpack.c.h.bf16 %v2423
          %v2427 = vunpack.c.l.bf16 %v2424
          %v2428 = vunpack.c.h.bf16 %v2424
          %v2429 = vld [vmem:[#allocation3] sm:$0xff]
          %v2430 = vld [vmem:[#allocation3 + $0x8] sm:$0xff]
          %v2431 = vld [vmem:[#allocation3 + $0x18] sm:$0xff]
          %v2432 = vld [vmem:[#allocation3 + $0x20] sm:$0xff]
          %2437 = vrot.lane.b32.xlu0 %v2429, 11
          %v2438 = vpop.permute.xlu0 %2437
          %2439 = vrot.lane.b32.xlu0 %v2430, 11
          %v2440 = vpop.permute.xlu0 %2439
          %2441 = vrot.lane.b32.xlu0 %v2431, 11
          %v2442 = vpop.permute.xlu0 %2441
          %2443 = vrot.lane.b32.xlu0 %v2432, 11
          %v2444 = vpop.permute.xlu0 %2443
          %v2445 = vsel %vm2060, %v2438, %v2440
          %v2446 = vsel %vm2060, %v2442, %v2444
          %2449 = vst [vmem:[#allocation4] sm:$0xff] %v2445
          %2450 = vst [vmem:[#allocation4 + $0x18] sm:$0xff] %v2446
          %v2451 = vld [vmem:[#allocation3] sm:$0xff]
          %v2452 = vld [vmem:[#allocation3 + $0x8] sm:$0xff]
          %v2453 = vld [vmem:[#allocation3 + $0x18] sm:$0xff]
          %v2454 = vld [vmem:[#allocation3 + $0x20] sm:$0xff]
          %2459 = vrot.lane.b32.xlu0 %v2451, 10
          %v2460 = vpop.permute.xlu0 %2459
          %2461 = vrot.lane.b32.xlu0 %v2452, 10
          %v2462 = vpop.permute.xlu0 %2461
          %2463 = vrot.lane.b32.xlu0 %v2453, 10
          %v2464 = vpop.permute.xlu0 %2463
          %2465 = vrot.lane.b32.xlu0 %v2454, 10
          %v2466 = vpop.permute.xlu0 %2465
          %v2467 = vsel %vm2083, %v2460, %v2462
          %v2468 = vsel %vm2083, %v2464, %v2466
          %2471 = vst [vmem:[#allocation4 + $0x30] sm:$0xff] %v2467
          %2472 = vst [vmem:[#allocation4 + $0x48] sm:$0xff] %v2468
          %v2473 = vld [vmem:[#allocation3] sm:$0xff]
          %v2474 = vld [vmem:[#allocation3 + $0x8] sm:$0xff]
          %v2475 = vld [vmem:[#allocation3 + $0x18] sm:$0xff]
          %v2476 = vld [vmem:[#allocation3 + $0x20] sm:$0xff]
          %2481 = vrot.lane.b32.xlu0 %v2473, 9
          %v2482 = vpop.permute.xlu0 %2481
          %2483 = vrot.lane.b32.xlu0 %v2474, 9
          %v2484 = vpop.permute.xlu0 %2483
          %2485 = vrot.lane.b32.xlu0 %v2475, 9
          %v2486 = vpop.permute.xlu0 %2485
          %2487 = vrot.lane.b32.xlu0 %v2476, 9
          %v2488 = vpop.permute.xlu0 %2487
          %v2489 = vsel %vm2106, %v2482, %v2484
          %v2490 = vsel %vm2106, %v2486, %v2488
          %2493 = vst [vmem:[#allocation4 + $0x60] sm:$0xff] %v2489
          %2494 = vst [vmem:[#allocation4 + $0x78] sm:$0xff] %v2490
          %v2495 = vld [vmem:[#allocation3] sm:$0xff]
          %v2496 = vld [vmem:[#allocation3 + $0x8] sm:$0xff]
          %v2497 = vld [vmem:[#allocation3 + $0x18] sm:$0xff]
          %v2498 = vld [vmem:[#allocation3 + $0x20] sm:$0xff]
          %2503 = vrot.lane.b32.xlu0 %v2495, 1
          %v2504 = vpop.permute.xlu0 %2503
          %2505 = vrot.lane.b32.xlu0 %v2496, 1
          %v2506 = vpop.permute.xlu0 %2505
          %2507 = vrot.lane.b32.xlu0 %v2497, 1
          %v2508 = vpop.permute.xlu0 %2507
          %2509 = vrot.lane.b32.xlu0 %v2498, 1
          %v2510 = vpop.permute.xlu0 %2509
          %v2511 = vsel %vm2129, %v2504, %v2506
          %v2512 = vsel %vm2129, %v2508, %v2510
          %2515 = vst [vmem:[#allocation4 + $0x90] sm:$0xff] %v2511
          %2516 = vst [vmem:[#allocation4 + $0xa8] sm:$0xff] %v2512
          %v2517 = vld [vmem:[#allocation3 + $0x8] sm:$0xff]
          %v2518 = vld [vmem:[#allocation3 + $0x20] sm:$0xff]
          %2519 = vst [vmem:[#allocation4 + $0xc0] sm:$0xff] %v2517
          %2520 = vst [vmem:[#allocation4 + $0xd8] sm:$0xff] %v2518
          %v2521 = vld [vmem:[#allocation3 + $0x8] sm:$0xff]
          %v2522 = vld [vmem:[#allocation3 + $0x10] sm:$0xff]
          %v2523 = vld [vmem:[#allocation3 + $0x20] sm:$0xff]
          %v2524 = vld [vmem:[#allocation3 + $0x28] sm:$0xff]
          %2529 = vrot.lane.b32.xlu0 %v2521, 127
          %v2530 = vpop.permute.xlu0 %2529
          %2531 = vrot.lane.b32.xlu0 %v2522, 127
          %v2532 = vpop.permute.xlu0 %2531
          %2533 = vrot.lane.b32.xlu0 %v2523, 127
          %v2534 = vpop.permute.xlu0 %2533
          %2535 = vrot.lane.b32.xlu0 %v2524, 127
          %v2536 = vpop.permute.xlu0 %2535
          %v2537 = vsel %vm2156, %v2530, %v2532
          %v2538 = vsel %vm2156, %v2534, %v2536
          %2541 = vst [vmem:[#allocation4 + $0xf0] sm:$0xff] %v2537
          %2542 = vst [vmem:[#allocation4 + $0x108] sm:$0xff] %v2538
          %v2543 = vld [vmem:[#allocation3 + $0x8] sm:$0xff]
          %v2544 = vld [vmem:[#allocation3 + $0x10] sm:$0xff]
          %v2545 = vld [vmem:[#allocation3 + $0x20] sm:$0xff]
          %v2546 = vld [vmem:[#allocation3 + $0x28] sm:$0xff]
          %2551 = vrot.lane.b32.xlu0 %v2543, 119
          %v2552 = vpop.permute.xlu0 %2551
          %2553 = vrot.lane.b32.xlu0 %v2544, 119
          %v2554 = vpop.permute.xlu0 %2553
          %2555 = vrot.lane.b32.xlu0 %v2545, 119
          %v2556 = vpop.permute.xlu0 %2555
          %2557 = vrot.lane.b32.xlu0 %v2546, 119
          %v2558 = vpop.permute.xlu0 %2557
          %v2559 = vsel %vm2179, %v2552, %v2554
          %v2560 = vsel %vm2179, %v2556, %v2558
          %2563 = vst [vmem:[#allocation4 + $0x120] sm:$0xff] %v2559
          %2564 = vst [vmem:[#allocation4 + $0x138] sm:$0xff] %v2560
          %v2565 = vld [vmem:[#allocation3 + $0x8] sm:$0xff]
          %v2566 = vld [vmem:[#allocation3 + $0x10] sm:$0xff]
          %v2567 = vld [vmem:[#allocation3 + $0x20] sm:$0xff]
          %v2568 = vld [vmem:[#allocation3 + $0x28] sm:$0xff]
          %2573 = vrot.lane.b32.xlu0 %v2565, 118
          %v2574 = vpop.permute.xlu0 %2573
          %2575 = vrot.lane.b32.xlu0 %v2566, 118
          %v2576 = vpop.permute.xlu0 %2575
          %2577 = vrot.lane.b32.xlu0 %v2567, 118
          %v2578 = vpop.permute.xlu0 %2577
          %2579 = vrot.lane.b32.xlu0 %v2568, 118
          %v2580 = vpop.permute.xlu0 %2579
          %v2581 = vsel %vm2202, %v2574, %v2576
          %v2582 = vsel %vm2202, %v2578, %v2580
          %2585 = vst [vmem:[#allocation4 + $0x150] sm:$0xff] %v2581
          %2586 = vst [vmem:[#allocation4 + $0x168] sm:$0xff] %v2582
          %v2587 = vld [vmem:[#allocation3 + $0x8] sm:$0xff]
          %v2588 = vld [vmem:[#allocation3 + $0x10] sm:$0xff]
          %v2589 = vld [vmem:[#allocation3 + $0x20] sm:$0xff]
          %v2590 = vld [vmem:[#allocation3 + $0x28] sm:$0xff]
          %2595 = vrot.lane.b32.xlu0 %v2587, 117
          %v2596 = vpop.permute.xlu0 %2595
          %2597 = vrot.lane.b32.xlu0 %v2588, 117
          %v2598 = vpop.permute.xlu0 %2597
          %2599 = vrot.lane.b32.xlu0 %v2589, 117
          %v2600 = vpop.permute.xlu0 %2599
          %2601 = vrot.lane.b32.xlu0 %v2590, 117
          %v2602 = vpop.permute.xlu0 %2601
          %v2603 = vsel %vm2225, %v2596, %v2598
          %v2604 = vsel %vm2225, %v2600, %v2602
          %2607 = vst [vmem:[#allocation4 + $0x180] sm:$0xff] %v2603
          %2608 = vst [vmem:[#allocation4 + $0x198] sm:$0xff] %v2604
          %v2609 = vld [vmem:[#allocation4] sm:$0xff]
          %v2610 = vld [vmem:[#allocation4 + $0x18] sm:$0xff]
          %v2611 = vld [vmem:[#allocation4 + $0x30] sm:$0xff]
          %v2612 = vld [vmem:[#allocation4 + $0x48] sm:$0xff]
          %v2613 = vld [vmem:[#allocation4 + $0x60] sm:$0xff]
          %v2614 = vld [vmem:[#allocation4 + $0x78] sm:$0xff]
          %v2615 = vld [vmem:[#allocation4 + $0x90] sm:$0xff]
          %v2616 = vld [vmem:[#allocation4 + $0xa8] sm:$0xff]
          %v2617 = vld [vmem:[#allocation4 + $0xc0] sm:$0xff]
          %v2618 = vld [vmem:[#allocation4 + $0xd8] sm:$0xff]
          %v2619 = vld [vmem:[#allocation4 + $0xf0] sm:$0xff]
          %v2620 = vld [vmem:[#allocation4 + $0x108] sm:$0xff]
          %v2621 = vld [vmem:[#allocation4 + $0x120] sm:$0xff]
          %v2622 = vld [vmem:[#allocation4 + $0x138] sm:$0xff]
          %v2623 = vld [vmem:[#allocation4 + $0x150] sm:$0xff]
          %v2624 = vld [vmem:[#allocation4 + $0x168] sm:$0xff]
          %v2625 = vld [vmem:[#allocation4 + $0x180] sm:$0xff]
          %v2626 = vld [vmem:[#allocation4 + $0x198] sm:$0xff]
          %2627 = vset.pattern.permute.xlu0 1
          %2628 = vperm.xlu0 %2627, %v2040
          %v2629 = vpop.permute.xlu0 %2628
          %2631 = vset.pattern.permute.xlu0 1
          %2632 = vperm.xlu0 %2631, %v2041
          %v2633 = vpop.permute.xlu0 %2632
          %2635 = vset.pattern.permute.xlu0 1
          %2636 = vperm.xlu0 %2635, %v2042
          %v2637 = vpop.permute.xlu0 %2636
          %2639 = vset.pattern.permute.xlu0 1
          %2640 = vperm.xlu0 %2639, %v2043
          %v2641 = vpop.permute.xlu0 %2640
          %v2651 = vunpack.c.l.b16 %v2030
          %v2652 = vunpack.c.h.b16 %v2030
          %v2653 = vunpack.c.l.b16 %v2031
          %v2654 = vunpack.c.l.b16 %v2032
          %v2655 = vunpack.c.h.b16 %v2032
          %v2656 = vunpack.c.l.b16 %v2033
          %v2657 = vunpack.c.l.b16 %v2034
          %v2658 = vunpack.c.h.b16 %v2034
          %v2659 = vunpack.c.l.b16 %v2035
          %v2660 = vunpack.c.l.b16 %v2036
          %v2661 = vunpack.c.h.b16 %v2036
          %v2662 = vunpack.c.l.b16 %v2037
          %v2663 = vpack.c.b16 %v2654, %v2651
          %v2664 = vpack.c.b16 %v2655, %v2652
          %v2665 = vpack.c.b16 %v2656, %v2653
          %v2666 = vpack.c.b16 %v2660, %v2657
          %v2667 = vpack.c.b16 %v2661, %v2658
          %v2668 = vpack.c.b16 %v2662, %v2659
          %v2674 = vsel %vm2300, %v2665, 0
          %v2677 = vsel %vm2300, %v2668, 0
          %2679 = vmatprep.subr.bf16.mxu0 0
          %2680 = vmatpush1.bf16.msra.mxu0 %v2609
          %2681 = vmatprep.subr.bf16.mxu0 0
          %2682 = vmatpush1.bf16.msra.mxu0 %v2610
          %2683 = vmatprep.subr.bf16.mxu0 0
          %2684 = vmatpush1.bf16.msra.mxu0 %v2611
          %2685 = vmatprep.subr.bf16.mxu0 0
          %2686 = vmatpush1.bf16.msra.mxu0 %v2612
          %2687 = vmatprep.subr.bf16.mxu0 0
          %2688 = vmatpush1.bf16.msra.mxu0 %v2613
          %2689 = vmatprep.subr.bf16.mxu0 0
          %2690 = vmatpush1.bf16.msra.mxu0 %v2614
          %2691 = vmatprep.subr.bf16.mxu0 0
          %2692 = vmatpush1.bf16.msra.mxu0 %v2615
          %2693 = vmatprep.subr.bf16.mxu0 0
          %2694 = vmatpush1.bf16.msra.mxu0 %v2616
          %2695 = vmatprep.subr.bf16.mxu0 0
          %2696 = vmatpush1.bf16.msra.mxu0 %v2617
          %2697 = vmatprep.subr.bf16.mxu0 0
          %2698 = vmatpush1.bf16.msra.mxu0 %v2618
          %2699 = vmatprep.subr.bf16.mxu0 0
          %2700 = vmatpush1.bf16.msra.mxu0 %v2619
          %2701 = vmatprep.subr.bf16.mxu0 0
          %2702 = vmatpush1.bf16.msra.mxu0 %v2620
          %2703 = vmatprep.subr.bf16.mxu0 0
          %2704 = vmatpush1.bf16.msra.mxu0 %v2621
          %2705 = vmatprep.subr.bf16.mxu0 0
          %2706 = vmatpush1.bf16.msra.mxu0 %v2622
          %2707 = vmatprep.subr.bf16.mxu0 0
          %2708 = vmatpush1.bf16.msra.mxu0 %v2623
          %2709 = vmatprep.subr.bf16.mxu0 0
          %2710 = vmatpush1.bf16.msra.mxu0 %v2624
          %2711 = vmatprep.mubr.bf16.mxu0 %v2664
          %2712 = vmatmul.mubr.bf16.gmra.mrb[0].mxu0 %v2663
          %v2713 = vpop.f32.mrb[0].mxu0
          %v2714 = vadd.f32 %v2629, %v2713
          %v2715 = vpop.f32.mrb[0].mxu0
          %v2716 = vpop.f32.mrb[0].mxu0
          %v2717 = vadd.f32 %v2633, %v2716
          %v2718 = vpop.f32.mrb[0].mxu0
          %2719 = vmatprep.mubr.bf16.mxu0 %v2667
          %2720 = vmatmul.mubr.bf16.gmra.mrb[0].mxu0 %v2666
          %v2721 = vpop.f32.mrb[0].mxu0
          %v2722 = vadd.f32 %v2637, %v2721
          %v2723 = vpop.f32.mrb[0].mxu0
          %v2724 = vpop.f32.mrb[0].mxu0
          %v2725 = vadd.f32 %v2641, %v2724
          %v2726 = vpop.f32.mrb[0].mxu0
          %2727 = vdwg.mxu0
          %2728 = vmatprep.subr.bf16.mxu0 0
          %2729 = vmatpush1.bf16.msra.mxu0 %v2625
          %2730 = vmatprep.subr.bf16.mxu0 0
          %2731 = vmatpush1.bf16.msra.mxu0 %v2626
          %2732 = vmatprep.subr.bf16.mxu0 0
          %2733 = vmatpush1.bf16.msra.mxu0 0
          %2734 = vmatprep.subr.bf16.mxu0 0
          %2735 = vmatpush1.bf16.msra.mxu0 0
          %2736 = vmatprep.subr.bf16.mxu0 0
          %2737 = vmatpush1.bf16.msra.mxu0 0
          %2738 = vmatprep.subr.bf16.mxu0 0
          %2739 = vmatpush1.bf16.msra.mxu0 0
          %2740 = vmatprep.subr.bf16.mxu0 0
          %2741 = vmatpush1.bf16.msra.mxu0 0
          %2742 = vmatprep.subr.bf16.mxu0 0
          %2743 = vmatpush1.bf16.msra.mxu0 0
          %2744 = vmatprep.subr.bf16.mxu0 0
          %2745 = vmatpush1.bf16.msra.mxu0 0
          %2746 = vmatprep.subr.bf16.mxu0 0
          %2747 = vmatpush1.bf16.msra.mxu0 0
          %2748 = vmatprep.subr.bf16.mxu0 0
          %2749 = vmatpush1.bf16.msra.mxu0 0
          %2750 = vmatprep.subr.bf16.mxu0 0
          %2751 = vmatpush1.bf16.msra.mxu0 0
          %2752 = vmatprep.subr.bf16.mxu0 0
          %2753 = vmatpush1.bf16.msra.mxu0 0
          %2754 = vmatprep.subr.bf16.mxu0 0
          %2755 = vmatpush1.bf16.msra.mxu0 0
          %2756 = vmatprep.subr.bf16.mxu0 0
          %2757 = vmatpush1.bf16.msra.mxu0 0
          %2758 = vmatprep.subr.bf16.mxu0 0
          %2759 = vmatpush1.bf16.msra.mxu0 0
          %2760 = vmatprep.mubr.bf16.mxu0 0
          %2761 = vmatmul.mubr.bf16.gmra.mrb[0].mxu0 %v2674
          %v2762 = vpop.f32.mrb[0].mxu0
          %v2763 = vadd.f32 %v2714, %v2762
          %v2764 = vpop.f32.mrb[0].mxu0
          %v2765 = vpop.f32.mrb[0].mxu0
          %v2766 = vadd.f32 %v2717, %v2765
          %v2767 = vpop.f32.mrb[0].mxu0
          %2768 = vmatprep.mubr.bf16.mxu0 0
          %2769 = vmatmul.mubr.bf16.gmra.mrb[0].mxu0 %v2677
          %v2770 = vpop.f32.mrb[0].mxu0
          %v2771 = vadd.f32 %v2722, %v2770
          %v2772 = vpop.f32.mrb[0].mxu0
          %v2773 = vpop.f32.mrb[0].mxu0
          %v2774 = vadd.f32 %v2725, %v2773
          %v2775 = vpop.f32.mrb[0].mxu0
          %2776 = vdwg.mxu0
          %v2777 = vadd.f32 %v2763, %v2425
          %v2778 = vadd.f32 %v2766, %v2426
          %v2779 = vadd.f32 %v2771, %v2427
          %v2780 = vadd.f32 %v2774, %v2428
          %v2781 = vmax.f32 %v2777, 0.0
          %v2782 = vmax.f32 %v2778, 0.0
          %v2783 = vmax.f32 %v2779, 0.0
          %v2784 = vmax.f32 %v2780, 0.0
          %v2785 = vmul.f32 %v2781, %v2413
          %v2786 = vmul.f32 %v2782, %v2413
          %v2787 = vmul.f32 %v2783, %v2413
          %v2788 = vmul.f32 %v2784, %v2413
          %v2789 = vpack.c.bf16 %v2786, %v2785
          %v2790 = vpack.c.bf16 %v2788, %v2787
          %2791 = vst [vmem:[#allocation2 + $0x8] sm:$0xff] %v2789
          %2792 = vst [vmem:[#allocation2 + $0x20] sm:$0xff] %v2790
        $region80: #{resnet56_forward.4} parent=59 // pred_fallthru
          _
        %p2793 = scmp.eq.s32.totalorder %s28, 8
        // Predicated region
        $region81: #{resnet56_forward.4} parent=59 // pred_check
          %p2794 = pneg %p2793
        $region82: #{resnet56_forward.4} parent=59 // pred_check_branch
          %2796 = sbr.rel (%p2794) target = $region84
        $region83: #{resnet56_forward.4} parent=59 // pred_region
          %v2797 = vld [vmem:[#allocation2] sm:$0xff]
          %v2798 = vld [vmem:[#allocation2 + $0x8] sm:$0xff]
          %v2799 = vld [vmem:[#allocation2 + $0x10] sm:$0xff]
          %v2800 = vld [vmem:[#allocation2 + $0x18] sm:$0xff]
          %v2801 = vld [vmem:[#allocation2 + $0x20] sm:$0xff]
          %v2802 = vld [vmem:[#allocation2 + $0x28] sm:$0xff]
          %v2809 = vunpack.c.l.b16 %v2797
          %v2810 = vunpack.c.l.b16 %v2798
          %v2811 = vunpack.c.l.b16 %v2799
          %v2812 = vunpack.c.h.b16 %v2797
          %v2813 = vunpack.c.h.b16 %v2798
          %v2814 = vunpack.c.h.b16 %v2799
          %v2815 = vunpack.c.l.b16 %v2800
          %v2816 = vunpack.c.l.b16 %v2801
          %v2817 = vunpack.c.l.b16 %v2802
          %v2818 = vunpack.c.h.b16 %v2800
          %v2819 = vunpack.c.h.b16 %v2801
          %v2820 = vunpack.c.h.b16 %v2802
          %v2821 = vpack.c.b16 %v2810, %v2809
          %v2822 = vpack.c.b16 %v2811, %v2811
          %v2823 = vpack.c.b16 %v2813, %v2812
          %v2824 = vpack.c.b16 %v2814, %v2814
          %v2825 = vpack.c.b16 %v2816, %v2815
          %v2826 = vpack.c.b16 %v2817, %v2817
          %v2827 = vpack.c.b16 %v2819, %v2818
          %v2828 = vpack.c.b16 %v2820, %v2820
          %2837 = vst [vmem:[%s413] sm:$0xff] %v2821
          %2838 = vst [vmem:[%s413 + $0x8] sm:$0xf] %v2822
          %2839 = vst [vmem:[%s413 + $0xc] sm:$0xff] %v2823
          %2840 = vst [vmem:[%s413 + $0x14] sm:$0xf] %v2824
          %2841 = vst [vmem:[%s413 + $0x18] sm:$0xff] %v2825
          %2842 = vst [vmem:[%s413 + $0x20] sm:$0xf] %v2826
          %2843 = vst [vmem:[%s413 + $0x24] sm:$0xff] %v2827
          %2844 = vst [vmem:[%s413 + $0x2c] sm:$0xf] %v2828
        $region84: #{resnet56_forward.4} parent=59 // pred_fallthru
          _
        %p2845 = scmp.lt.s32.totalorder %s27, 1
        %s2846 = scalar_select %p2845, %s27, 1
        %s2847 = smul.addr %s2846, 12
        %s2848 = smul.addr %s2847, 4
        %s2849 = scalar_lea.vmem %s10, %s2848
        // Predicated region
        $region85: #{resnet56_forward.4} parent=59 // pred_check
          %p2850 = pneg %p268
        $region86: #{resnet56_forward.4} parent=59 // pred_check_branch
          %2852 = sbr.rel (%p2850) target = $region88
        $region87: #{resnet56_forward.4} parent=59 // pred_region
          _
        $region88: #{resnet56_forward.4} parent=59 // pred_fallthru
          _
      $region60: #{resnet56_forward.4} parent=5 // pred_fallthru
        _
      %p2853 = scmp.le.s32.totalorder 2, %s18
      // Predicated region
      $region89: #{resnet56_forward.4} parent=5 // pred_check
        %p2854 = pneg %p2853
      $region90: #{resnet56_forward.4} parent=5 // pred_check_branch
        %2856 = sbr.rel (%p2854) target = $region92
      $region91: #{resnet56_forward.4} parent=5 // pred_region
        %s2857 = ssub.s32 %s18, 2
        // Predicated region
        $region93: #{resnet56_forward.4} parent=91 // pred_check
          %p2858 = pneg %p274
        $region94: #{resnet56_forward.4} parent=91 // pred_check_branch
          %2860 = sbr.rel (%p2858) target = $region96
        $region95: #{resnet56_forward.4} parent=91 // pred_region
          %p2861 = scmp.lt.s32.totalorder %s29, 1
          %s2862 = scalar_select %p2861, %s29, 1
          %s2863 = smul.addr %s2862, 12
          %s2864 = smul.addr %s2863, 4
          %s2865 = scalar_lea.vmem %s10, %s2864
        $region96: #{resnet56_forward.4} parent=91 // pred_fallthru
          _
      $region92: #{resnet56_forward.4} parent=5 // pred_fallthru
        _
    $region6: #{resnet56_forward.4} parent=1 // loop_footer
      %s22 = sadd.s32 1, %s18
    $region7: #{resnet56_forward.4} parent=1 // loop_footer_branch
      %17 = sbr.rel target = $region3
    $region8: #{resnet56_forward.4} parent=1 // loop_exit
      _
    %2866 = vsyncpa [#allocation6], 1
    %s2867 = scalar_lea.sflag [#allocation6], 1
    %2868 = vsyncpa %s2867, 1
    %2869 = vsyncpa [#allocation8], 1

// kernel: resnet56_forward.5
$region0: #{resnet56_forward.5}
  #allocation0 [shape = 'u32[]', space=smem, size = 0x4, offset = 0x4, fixed_abs, tag = 'smem constant byte address 0x4 - core index']
  #allocation1 [shape = 'u32[144,128]{1,0:T(1,128)}', space=vmem, size = 0x12000, scoped, tag = 'internal scratch']
  #allocation2 [shape = 'bf16[64,384]{1,0:T(16,128)(2,1)}', space=vmem, size = 0xc000, scoped, tag = 'scratch operand']
  #allocation3 [shape = 'bf16[64,384]{1,0:T(16,128)(2,1)}', space=vmem, size = 0xc000, scoped, tag = 'scratch operand']
  #allocation4 [shape = 'bf16[576,128]{1,0:T(16,128)(2,1)}', space=vmem, size = 0x24000, scoped, tag = 'scratch operand']
  #allocation5 [shape = 'f32[1,1]{1,0:T(1,128)S(1)}', space=vmem, size = 0x200, scoped, tag = 'scoped memory for resnet56_forward.5']
  %s0 = inlined_call_operand.vmem [shape: bf16[2,32,384], index: 0, kind: input, shape index: {}]
  %s1 = inlined_call_operand.hbm [shape: bf16[64,288], index: 1, kind: input, shape index: {}]
  %s2 = inlined_call_operand.vmem [shape: bf16[64,576], index: 2, kind: input, shape index: {}]
  %s3 = inlined_call_operand.vmem [shape: bf16[64,32], index: 3, kind: input, shape index: {}]
  %s4 = inlined_call_operand.vmem [shape: f32[64,2], index: 4, kind: input, shape index: {}]
  %s5 = inlined_call_operand.vmem [shape: bf16[128,128], index: 5, kind: input, shape index: {}]
  %s6 = inlined_call_operand.vmem [shape: bf16[8,64,576], index: 6, kind: input, shape index: {}]
  %s7 = inlined_call_operand.vmem [shape: bf16[8,64,576], index: 7, kind: input, shape index: {}]
  %s8 = inlined_call_operand.vmem [shape: f32[8,64,2], index: 8, kind: input, shape index: {}]
  %s9 = inlined_call_operand.hbm [shape: f32[1,128], index: 9, kind: input, shape index: {}]
  %s10 = inlined_call_operand.vmem [shape: f32[128,128], index: 10, kind: input, shape index: {}]
  %s11 = inlined_call_operand.hbm [shape: f32[1,64], index: 11, kind: input, shape index: {}]
  %s12 = inlined_call_operand.<no memory space> [shape: f32[1,1], index: 12, kind: input, shape index: {}]
  %s13 = inlined_call_operand.vmem [shape: f32[2,8,128], index: 13, kind: output, shape index: {}]
  %s14 = sld [smem:[#allocation0]]
  $region109: #{resnet56_forward.5} parent=0
    _
  %s16 = ssub.s32 1, %s14
  %s17 = scalar_select 0, %s16, %s14
  %v18 = vstv %s12
  %19 = vst [vmem:[#allocation5] sm:$0x1] %v18
  $region1: #{resnet56_forward.5} parent=0
    #allocation6 [shape = 'u8[49152]{0}', space=vmem, size = 0xc000, scoped, tag = 'input window, operand 1, single buffered']
    #allocation7 [shape = 's32[2]{0}', space=sflag, size = 0x8, scoped, tag = 'scoped memory for resnet56_forward.5']
    #allocation8 [shape = 'u8[512]{0}', space=vmem, size = 0x400, scoped, tag = 'input window, operand 9, single buffered']
    #allocation9 [shape = 's32[1]{0}', space=sflag, size = 0x4, scoped, tag = 'scoped memory for resnet56_forward.5']
    #allocation10 [shape = 'u8[512]{0}', space=vmem, size = 0x400, scoped, tag = 'input window, operand 11, single buffered']
    %20 = vsyncpa [#allocation7], 0
    %21 = vsyncpa [#allocation9], 0
    loop: start=0, step=1, limit=20
    $region2: #{resnet56_forward.5} parent=1 // loop_pre_header
      _
    $region3: #{resnet56_forward.5} parent=1 // loop_header
      %s23 = sphi 0, %s27
      %p24 = scmp.ge.s32.totalorder %s23, 20
      %s30 = sphi 0, %s42
      %s31 = sphi 0, %s38
      %s32 = sphi 0, %s30
      %s33 = sphi 0, %s31
      %s34 = sphi 0, %s32
      %s35 = sphi 0, %s33
      %s45 = sphi 0, %s47
      %s48 = sphi 0, %s45
      %s49 = sphi 0, %s48
      %s65 = sphi 0, %s49
      %s69 = sphi 0, %s69
      %s71 = sphi 0, %s69
      %s72 = sphi 0, %s71
      %s86 = sphi 0, %s72
      %s90 = sphi 0, %s90
      %s92 = sphi 0, %s90
      %s93 = sphi 0, %s92
      %s107 = sphi 0, %s93
      %s111 = sphi 0, %s111
      %s113 = sphi 0, %s111
      %s114 = sphi 0, %s113
      %s128 = sphi 0, %s114
      %s132 = sphi 0, %s132
      %s134 = sphi 0, %s132
      %s135 = sphi 0, %s134
      %s149 = sphi 0, %s135
      %s153 = sphi 0, %s153
      %s155 = sphi 0, %s153
      %s156 = sphi 0, %s155
      %s170 = sphi 0, %s156
      %s174 = sphi 0, %s174
      %s176 = sphi 0, %s174
      %s177 = sphi 0, %s176
      %s191 = sphi 0, %s177
      %s195 = sphi 0, %s195
      %s197 = sphi 0, %s195
      %s198 = sphi 0, %s197
      %s212 = sphi 0, %s198
      %s216 = sphi 0, %s216
      %s218 = sphi 0, %s216
      %s219 = sphi 0, %s218
      %s233 = sphi 0, %s219
      %s237 = sphi 0, %s237
      %s239 = sphi 0, %s237
      %s240 = sphi 0, %s239
      %s254 = sphi 0, %s240
      %s258 = sphi 0, %s258
      %s260 = sphi 0, %s258
      %s261 = sphi 0, %s260
      %s275 = sphi 0, %s261
      %s279 = sphi 0, %s279
      %s281 = sphi 0, %s279
      %s282 = sphi 0, %s281
      %s296 = sphi 0, %s282
      %s300 = sphi 0, %s300
      %s302 = sphi 0, %s300
      %s303 = sphi 0, %s302
      %s317 = sphi 0, %s303
      %s323 = sphi 0, %s325
      %s326 = sphi 0, %s323
      %s327 = sphi 0, %s326
      %s343 = sphi 0, %s327
    $region4: #{resnet56_forward.5} parent=1 // loop_header_branch
      %26 = sbr.rel (%p24) target = $region8
    $region5: #{resnet56_forward.5} parent=1 // loop_body
      %s28 = ssub.s32 %s23, 1
      %s29 = ssub.s32 %s23, 2
      %s36 = sadd.s32 1, %s31
      %p37 = scmp.ge.s32.totalorder %s36, 9
      %s38 = scalar_select %p37, 0, %s36
      %s39 = sadd.s32 1, %s30
      %s40 = scalar_select %p37, %s39, %s30
      %p41 = scmp.ge.s32.totalorder %s40, 2
      %s42 = scalar_select %p41, 0, %s40
      %s43 = ssub.s32 %s30, %s42
      %p44 = scmp.eq.s32.totalorder %s43, 0
      %s46 = sadd.s32 %s45, 1
      %s47 = scalar_select %p44, %s45, %s46
      %p50 = pneg %p44
      %p51 = scmp.eq.s32.totalorder %s23, 17
      %p52 = por %p50, %p51
      %p53 = scmp.ne.s32.totalorder %s45, %s48
      %p54 = scmp.eq.s32.totalorder %s23, 0
      %p55 = por %p53, %p54
      %p56 = scmp.ne.s32.totalorder %s45, %s48
      %p57 = scmp.eq.s32.totalorder %s28, 17
      %p58 = por %p56, %p57
      %p59 = scmp.ne.s32.totalorder %s48, %s49
      %p60 = scmp.eq.s32.totalorder %s28, 0
      %p61 = por %p59, %p60
      %p62 = scmp.ne.s32.totalorder %s48, %s49
      %p63 = scmp.eq.s32.totalorder %s29, 17
      %p64 = por %p62, %p63
      %p66 = scmp.ne.s32.totalorder %s49, %s65
      %p67 = scmp.eq.s32.totalorder %s29, 0
      %p68 = por %p66, %p67
      %s70 = sadd.s32 %s69, 1
      %p73 = scmp.eq.s32.totalorder %s23, 17
      %p74 = scmp.ne.s32.totalorder %s69, %s71
      %p75 = scmp.eq.s32.totalorder %s23, 0
      %p76 = por %p74, %p75
      %p77 = scmp.ne.s32.totalorder %s69, %s71
      %p78 = scmp.eq.s32.totalorder %s28, 17
      %p79 = por %p77, %p78
      %p80 = scmp.ne.s32.totalorder %s71, %s72
      %p81 = scmp.eq.s32.totalorder %s28, 0
      %p82 = por %p80, %p81
      %p83 = scmp.ne.s32.totalorder %s71, %s72
      %p84 = scmp.eq.s32.totalorder %s29, 17
      %p85 = por %p83, %p84
      %p87 = scmp.ne.s32.totalorder %s72, %s86
      %p88 = scmp.eq.s32.totalorder %s29, 0
      %p89 = por %p87, %p88
      %s91 = sadd.s32 %s90, 1
      %p94 = scmp.eq.s32.totalorder %s23, 17
      %p95 = scmp.ne.s32.totalorder %s90, %s92
      %p96 = scmp.eq.s32.totalorder %s23, 0
      %p97 = por %p95, %p96
      %p98 = scmp.ne.s32.totalorder %s90, %s92
      %p99 = scmp.eq.s32.totalorder %s28, 17
      %p100 = por %p98, %p99
      %p101 = scmp.ne.s32.totalorder %s92, %s93
      %p102 = scmp.eq.s32.totalorder %s28, 0
      %p103 = por %p101, %p102
      %p104 = scmp.ne.s32.totalorder %s92, %s93
      %p105 = scmp.eq.s32.totalorder %s29, 17
      %p106 = por %p104, %p105
      %p108 = scmp.ne.s32.totalorder %s93, %s107
      %p109 = scmp.eq.s32.totalorder %s29, 0
      %p110 = por %p108, %p109
      %s112 = sadd.s32 %s111, 1
      %p115 = scmp.eq.s32.totalorder %s23, 17
      %p116 = scmp.ne.s32.totalorder %s111, %s113
      %p117 = scmp.eq.s32.totalorder %s23, 0
      %p118 = por %p116, %p117
      %p119 = scmp.ne.s32.totalorder %s111, %s113
      %p120 = scmp.eq.s32.totalorder %s28, 17
      %p121 = por %p119, %p120
      %p122 = scmp.ne.s32.totalorder %s113, %s114
      %p123 = scmp.eq.s32.totalorder %s28, 0
      %p124 = por %p122, %p123
      %p125 = scmp.ne.s32.totalorder %s113, %s114
      %p126 = scmp.eq.s32.totalorder %s29, 17
      %p127 = por %p125, %p126
      %p129 = scmp.ne.s32.totalorder %s114, %s128
      %p130 = scmp.eq.s32.totalorder %s29, 0
      %p131 = por %p129, %p130
      %s133 = sadd.s32 %s132, 1
      %p136 = scmp.eq.s32.totalorder %s23, 17
      %p137 = scmp.ne.s32.totalorder %s132, %s134
      %p138 = scmp.eq.s32.totalorder %s23, 0
      %p139 = por %p137, %p138
      %p140 = scmp.ne.s32.totalorder %s132, %s134
      %p141 = scmp.eq.s32.totalorder %s28, 17
      %p142 = por %p140, %p141
      %p143 = scmp.ne.s32.totalorder %s134, %s135
      %p144 = scmp.eq.s32.totalorder %s28, 0
      %p145 = por %p143, %p144
      %p146 = scmp.ne.s32.totalorder %s134, %s135
      %p147 = scmp.eq.s32.totalorder %s29, 17
      %p148 = por %p146, %p147
      %p150 = scmp.ne.s32.totalorder %s135, %s149
      %p151 = scmp.eq.s32.totalorder %s29, 0
      %p152 = por %p150, %p151
      %s154 = sadd.s32 %s153, 1
      %p157 = scmp.eq.s32.totalorder %s23, 17
      %p158 = scmp.ne.s32.totalorder %s153, %s155
      %p159 = scmp.eq.s32.totalorder %s23, 0
      %p160 = por %p158, %p159
      %p161 = scmp.ne.s32.totalorder %s153, %s155
      %p162 = scmp.eq.s32.totalorder %s28, 17
      %p163 = por %p161, %p162
      %p164 = scmp.ne.s32.totalorder %s155, %s156
      %p165 = scmp.eq.s32.totalorder %s28, 0
      %p166 = por %p164, %p165
      %p167 = scmp.ne.s32.totalorder %s155, %s156
      %p168 = scmp.eq.s32.totalorder %s29, 17
      %p169 = por %p167, %p168
      %p171 = scmp.ne.s32.totalorder %s156, %s170
      %p172 = scmp.eq.s32.totalorder %s29, 0
      %p173 = por %p171, %p172
      %s175 = sadd.s32 %s174, 1
      %p178 = scmp.eq.s32.totalorder %s23, 17
      %p179 = scmp.ne.s32.totalorder %s174, %s176
      %p180 = scmp.eq.s32.totalorder %s23, 0
      %p181 = por %p179, %p180
      %p182 = scmp.ne.s32.totalorder %s174, %s176
      %p183 = scmp.eq.s32.totalorder %s28, 17
      %p184 = por %p182, %p183
      %p185 = scmp.ne.s32.totalorder %s176, %s177
      %p186 = scmp.eq.s32.totalorder %s28, 0
      %p187 = por %p185, %p186
      %p188 = scmp.ne.s32.totalorder %s176, %s177
      %p189 = scmp.eq.s32.totalorder %s29, 17
      %p190 = por %p188, %p189
      %p192 = scmp.ne.s32.totalorder %s177, %s191
      %p193 = scmp.eq.s32.totalorder %s29, 0
      %p194 = por %p192, %p193
      %s196 = sadd.s32 %s195, 1
      %p199 = scmp.eq.s32.totalorder %s23, 17
      %p200 = scmp.ne.s32.totalorder %s195, %s197
      %p201 = scmp.eq.s32.totalorder %s23, 0
      %p202 = por %p200, %p201
      %p203 = scmp.ne.s32.totalorder %s195, %s197
      %p204 = scmp.eq.s32.totalorder %s28, 17
      %p205 = por %p203, %p204
      %p206 = scmp.ne.s32.totalorder %s197, %s198
      %p207 = scmp.eq.s32.totalorder %s28, 0
      %p208 = por %p206, %p207
      %p209 = scmp.ne.s32.totalorder %s197, %s198
      %p210 = scmp.eq.s32.totalorder %s29, 17
      %p211 = por %p209, %p210
      %p213 = scmp.ne.s32.totalorder %s198, %s212
      %p214 = scmp.eq.s32.totalorder %s29, 0
      %p215 = por %p213, %p214
      %s217 = sadd.s32 %s216, 1
      %p220 = scmp.eq.s32.totalorder %s23, 17
      %p221 = scmp.ne.s32.totalorder %s216, %s218
      %p222 = scmp.eq.s32.totalorder %s23, 0
      %p223 = por %p221, %p222
      %p224 = scmp.ne.s32.totalorder %s216, %s218
      %p225 = scmp.eq.s32.totalorder %s28, 17
      %p226 = por %p224, %p225
      %p227 = scmp.ne.s32.totalorder %s218, %s219
      %p228 = scmp.eq.s32.totalorder %s28, 0
      %p229 = por %p227, %p228
      %p230 = scmp.ne.s32.totalorder %s218, %s219
      %p231 = scmp.eq.s32.totalorder %s29, 17
      %p232 = por %p230, %p231
      %p234 = scmp.ne.s32.totalorder %s219, %s233
      %p235 = scmp.eq.s32.totalorder %s29, 0
      %p236 = por %p234, %p235
      %s238 = sadd.s32 %s237, 1
      %p241 = scmp.eq.s32.totalorder %s23, 17
      %p242 = scmp.ne.s32.totalorder %s237, %s239
      %p243 = scmp.eq.s32.totalorder %s23, 0
      %p244 = por %p242, %p243
      %p245 = scmp.ne.s32.totalorder %s237, %s239
      %p246 = scmp.eq.s32.totalorder %s28, 17
      %p247 = por %p245, %p246
      %p248 = scmp.ne.s32.totalorder %s239, %s240
      %p249 = scmp.eq.s32.totalorder %s28, 0
      %p250 = por %p248, %p249
      %p251 = scmp.ne.s32.totalorder %s239, %s240
      %p252 = scmp.eq.s32.totalorder %s29, 17
      %p253 = por %p251, %p252
      %p255 = scmp.ne.s32.totalorder %s240, %s254
      %p256 = scmp.eq.s32.totalorder %s29, 0
      %p257 = por %p255, %p256
      %s259 = sadd.s32 %s258, 1
      %p262 = scmp.eq.s32.totalorder %s23, 17
      %p263 = scmp.ne.s32.totalorder %s258, %s260
      %p264 = scmp.eq.s32.totalorder %s23, 0
      %p265 = por %p263, %p264
      %p266 = scmp.ne.s32.totalorder %s258, %s260
      %p267 = scmp.eq.s32.totalorder %s28, 17
      %p268 = por %p266, %p267
      %p269 = scmp.ne.s32.totalorder %s260, %s261
      %p270 = scmp.eq.s32.totalorder %s28, 0
      %p271 = por %p269, %p270
      %p272 = scmp.ne.s32.totalorder %s260, %s261
      %p273 = scmp.eq.s32.totalorder %s29, 17
      %p274 = por %p272, %p273
      %p276 = scmp.ne.s32.totalorder %s261, %s275
      %p277 = scmp.eq.s32.totalorder %s29, 0
      %p278 = por %p276, %p277
      %s280 = sadd.s32 %s279, 1
      %p283 = scmp.eq.s32.totalorder %s23, 17
      %p284 = scmp.ne.s32.totalorder %s279, %s281
      %p285 = scmp.eq.s32.totalorder %s23, 0
      %p286 = por %p284, %p285
      %p287 = scmp.ne.s32.totalorder %s279, %s281
      %p288 = scmp.eq.s32.totalorder %s28, 17
      %p289 = por %p287, %p288
      %p290 = scmp.ne.s32.totalorder %s281, %s282
      %p291 = scmp.eq.s32.totalorder %s28, 0
      %p292 = por %p290, %p291
      %p293 = scmp.ne.s32.totalorder %s281, %s282
      %p294 = scmp.eq.s32.totalorder %s29, 17
      %p295 = por %p293, %p294
      %p297 = scmp.ne.s32.totalorder %s282, %s296
      %p298 = scmp.eq.s32.totalorder %s29, 0
      %p299 = por %p297, %p298
      %s301 = sadd.s32 %s300, 1
      %p304 = scmp.eq.s32.totalorder %s23, 17
      %p305 = scmp.ne.s32.totalorder %s300, %s302
      %p306 = scmp.eq.s32.totalorder %s23, 0
      %p307 = por %p305, %p306
      %p308 = scmp.ne.s32.totalorder %s300, %s302
      %p309 = scmp.eq.s32.totalorder %s28, 17
      %p310 = por %p308, %p309
      %p311 = scmp.ne.s32.totalorder %s302, %s303
      %p312 = scmp.eq.s32.totalorder %s28, 0
      %p313 = por %p311, %p312
      %p314 = scmp.ne.s32.totalorder %s302, %s303
      %p315 = scmp.eq.s32.totalorder %s29, 17
      %p316 = por %p314, %p315
      %p318 = scmp.ne.s32.totalorder %s303, %s317
      %p319 = scmp.eq.s32.totalorder %s29, 0
      %p320 = por %p318, %p319
      %s321 = ssub.s32 %s30, %s42
      %p322 = scmp.eq.s32.totalorder %s321, 0
      %s324 = sadd.s32 %s323, 1
      %s325 = scalar_select %p322, %s323, %s324
      %p328 = pneg %p322
      %p329 = scmp.eq.s32.totalorder %s23, 17
      %p330 = por %p328, %p329
      %p331 = scmp.ne.s32.totalorder %s323, %s326
      %p332 = scmp.eq.s32.totalorder %s23, 0
      %p333 = por %p331, %p332
      %p334 = scmp.ne.s32.totalorder %s323, %s326
      %p335 = scmp.eq.s32.totalorder %s28, 17
      %p336 = por %p334, %p335
      %p337 = scmp.ne.s32.totalorder %s326, %s327
      %p338 = scmp.eq.s32.totalorder %s28, 0
      %p339 = por %p337, %p338
      %p340 = scmp.ne.s32.totalorder %s326, %s327
      %p341 = scmp.eq.s32.totalorder %s29, 17
      %p342 = por %p340, %p341
      %p344 = scmp.ne.s32.totalorder %s327, %s343
      %p345 = scmp.eq.s32.totalorder %s29, 0
      %p346 = por %p344, %p345
      %p347 = scmp.le.s32.totalorder 1, %s23
      %p348 = scmp.lt.s32.totalorder %s23, 19
      %p349 = pnand %p347, %p348
      %p350 = pneg %p349
      // Predicated region
      $region9: #{resnet56_forward.5} parent=5 // pred_check
        _
      $region10: #{resnet56_forward.5} parent=5 // pred_check_branch
        %352 = sbr.rel (%p349) target = $region12
      $region11: #{resnet56_forward.5} parent=5 // pred_region
        %s353 = ssub.s32 %s23, 1
        // Predicated region
        $region13: #{resnet56_forward.5} parent=11 // pred_check
          %p354 = pneg %p82
        $region14: #{resnet56_forward.5} parent=11 // pred_check_branch
          %356 = sbr.rel (%p354) target = $region16
        $region15: #{resnet56_forward.5} parent=11 // pred_region
          %s358 = ssub.s32 1536, 1536
          %359 = vsyncadd [#allocation7], %s358
          %s360 = sshll.u32 [#allocation6], 4
          %s361 = int_to_ptr.vmem [resolvable:$true] %s360
          %366 = dma.hbm_to_vmem [thread:$0]  %s1, 1536, %s361, [#allocation7], 192, 192, 12
        $region16: #{resnet56_forward.5} parent=11 // pred_fallthru
          _
        // Predicated region
        $region17: #{resnet56_forward.5} parent=11 // pred_check
          %p367 = pneg %p103
        $region18: #{resnet56_forward.5} parent=11 // pred_check_branch
          %369 = sbr.rel (%p367) target = $region20
        $region19: #{resnet56_forward.5} parent=11 // pred_region
          _
        $region20: #{resnet56_forward.5} parent=11 // pred_fallthru
          _
        // Predicated region
        $region21: #{resnet56_forward.5} parent=11 // pred_check
          %p370 = pneg %p124
        $region22: #{resnet56_forward.5} parent=11 // pred_check_branch
          %372 = sbr.rel (%p370) target = $region24
        $region23: #{resnet56_forward.5} parent=11 // pred_region
          _
        $region24: #{resnet56_forward.5} parent=11 // pred_fallthru
          _
        // Predicated region
        $region25: #{resnet56_forward.5} parent=11 // pred_check
          %p373 = pneg %p145
        $region26: #{resnet56_forward.5} parent=11 // pred_check_branch
          %375 = sbr.rel (%p373) target = $region28
        $region27: #{resnet56_forward.5} parent=11 // pred_region
          _
        $region28: #{resnet56_forward.5} parent=11 // pred_fallthru
          _
        // Predicated region
        $region29: #{resnet56_forward.5} parent=11 // pred_check
          %p376 = pneg %p166
        $region30: #{resnet56_forward.5} parent=11 // pred_check_branch
          %378 = sbr.rel (%p376) target = $region32
        $region31: #{resnet56_forward.5} parent=11 // pred_region
          _
        $region32: #{resnet56_forward.5} parent=11 // pred_fallthru
          _
        // Predicated region
        $region33: #{resnet56_forward.5} parent=11 // pred_check
          %p379 = pneg %p187
        $region34: #{resnet56_forward.5} parent=11 // pred_check_branch
          %381 = sbr.rel (%p379) target = $region36
        $region35: #{resnet56_forward.5} parent=11 // pred_region
          _
        $region36: #{resnet56_forward.5} parent=11 // pred_fallthru
          _
        // Predicated region
        $region37: #{resnet56_forward.5} parent=11 // pred_check
          %p382 = pneg %p208
        $region38: #{resnet56_forward.5} parent=11 // pred_check_branch
          %384 = sbr.rel (%p382) target = $region40
        $region39: #{resnet56_forward.5} parent=11 // pred_region
          _
        $region40: #{resnet56_forward.5} parent=11 // pred_fallthru
          _
        // Predicated region
        $region41: #{resnet56_forward.5} parent=11 // pred_check
          %p385 = pneg %p229
        $region42: #{resnet56_forward.5} parent=11 // pred_check_branch
          %387 = sbr.rel (%p385) target = $region44
        $region43: #{resnet56_forward.5} parent=11 // pred_region
          _
        $region44: #{resnet56_forward.5} parent=11 // pred_fallthru
          _
        // Predicated region
        $region45: #{resnet56_forward.5} parent=11 // pred_check
          %p388 = pneg %p250
        $region46: #{resnet56_forward.5} parent=11 // pred_check_branch
          %390 = sbr.rel (%p388) target = $region48
        $region47: #{resnet56_forward.5} parent=11 // pred_region
          %s392 = ssub.s32 16, 16
          %393 = vsyncadd [#allocation9], %s392
          %s395 = sshll.u32 [#allocation8], 4
          %s396 = int_to_ptr.vmem [resolvable:$true] %s395
          %398 = dma.hbm_to_vmem [thread:$0]  %s9, 16, %s396, [#allocation9]
        $region48: #{resnet56_forward.5} parent=11 // pred_fallthru
          _
        // Predicated region
        $region49: #{resnet56_forward.5} parent=11 // pred_check
          %p399 = pneg %p271
        $region50: #{resnet56_forward.5} parent=11 // pred_check_branch
          %401 = sbr.rel (%p399) target = $region52
        $region51: #{resnet56_forward.5} parent=11 // pred_region
          _
        $region52: #{resnet56_forward.5} parent=11 // pred_fallthru
          _
        // Predicated region
        $region53: #{resnet56_forward.5} parent=11 // pred_check
          %p402 = pneg %p292
        $region54: #{resnet56_forward.5} parent=11 // pred_check_branch
          %404 = sbr.rel (%p402) target = $region56
        $region55: #{resnet56_forward.5} parent=11 // pred_region
          %s406 = ssub.s32 16, 16
          %407 = vsyncadd [#allocation9], %s406
          %s409 = sshll.u32 [#allocation10], 4
          %s410 = int_to_ptr.vmem [resolvable:$true] %s409
          %412 = dma.hbm_to_vmem [thread:$0]  %s11, 16, %s410, [#allocation9]
        $region56: #{resnet56_forward.5} parent=11 // pred_fallthru
          _
        // Predicated region
        $region57: #{resnet56_forward.5} parent=11 // pred_check
          %p413 = pneg %p313
        $region58: #{resnet56_forward.5} parent=11 // pred_check_branch
          %415 = sbr.rel (%p413) target = $region60
        $region59: #{resnet56_forward.5} parent=11 // pred_region
          _
        $region60: #{resnet56_forward.5} parent=11 // pred_fallthru
          _
      $region12: #{resnet56_forward.5} parent=5 // pred_fallthru
        _
      %p416 = scmp.lt.s32.totalorder %s23, 18
      // Predicated region
      $region61: #{resnet56_forward.5} parent=5 // pred_check
        %p417 = pneg %p416
      $region62: #{resnet56_forward.5} parent=5 // pred_check_branch
        %419 = sbr.rel (%p417) target = $region64
      $region63: #{resnet56_forward.5} parent=5 // pred_region
        // Predicated region
        $region65: #{resnet56_forward.5} parent=63 // pred_check
          %p420 = pneg %p55
        $region66: #{resnet56_forward.5} parent=63 // pred_check_branch
          %422 = sbr.rel (%p420) target = $region68
        $region67: #{resnet56_forward.5} parent=63 // pred_region
          %p423 = scmp.lt.s32.totalorder %s30, 1
          %s424 = scalar_select %p423, %s30, 1
          %s425 = smul.addr %s424, 12
          %s426 = smul.addr %s425, 4
          %s427 = scalar_lea.vmem %s0, %s426
        $region68: #{resnet56_forward.5} parent=63 // pred_fallthru
          _
      $region64: #{resnet56_forward.5} parent=5 // pred_fallthru
        _
      %p428 = scmp.le.s32.totalorder 1, %s23
      %p429 = scmp.lt.s32.totalorder %s23, 19
      %p430 = pnand %p428, %p429
      %p431 = pneg %p430
      // Predicated region
      $region69: #{resnet56_forward.5} parent=5 // pred_check
        _
      $region70: #{resnet56_forward.5} parent=5 // pred_check_branch
        %433 = sbr.rel (%p430) target = $region72
      $region71: #{resnet56_forward.5} parent=5 // pred_region
        %s434 = ssub.s32 %s23, 1
        // Predicated region
        $region73: #{resnet56_forward.5} parent=71 // pred_check
          %p435 = pneg %p82
        $region74: #{resnet56_forward.5} parent=71 // pred_check_branch
          %437 = sbr.rel (%p435) target = $region76
        $region75: #{resnet56_forward.5} parent=71 // pred_region
          %438 = dma.done [#allocation7], 1536
        $region76: #{resnet56_forward.5} parent=71 // pred_fallthru
          _
        // Predicated region
        $region77: #{resnet56_forward.5} parent=71 // pred_check
          %p439 = pneg %p250
        $region78: #{resnet56_forward.5} parent=71 // pred_check_branch
          %441 = sbr.rel (%p439) target = $region80
        $region79: #{resnet56_forward.5} parent=71 // pred_region
          %442 = dma.done [#allocation9], 16
        $region80: #{resnet56_forward.5} parent=71 // pred_fallthru
          _
        // Predicated region
        $region81: #{resnet56_forward.5} parent=71 // pred_check
          %p443 = pneg %p292
        $region82: #{resnet56_forward.5} parent=71 // pred_check_branch
          %445 = sbr.rel (%p443) target = $region84
        $region83: #{resnet56_forward.5} parent=71 // pred_region
          %446 = dma.done [#allocation9], 16
        $region84: #{resnet56_forward.5} parent=71 // pred_fallthru
          _
        %p447 = scmp.lt.s32.totalorder %s32, 1
        %s448 = scalar_select %p447, %s32, 1
        %s449 = smul.addr %s448, 12
        %s450 = smul.addr %s449, 4
        %s451 = scalar_lea.vmem %s0, %s450
        %p452 = pneg %p61
        %p453 = pneg %p58
        %p454 = pneg %p82
        %p455 = pneg %p79
        %p456 = pneg %p103
        %p457 = pneg %p100
        %p458 = pneg %p124
        %p459 = pneg %p121
        %p460 = pneg %p145
        %p461 = pneg %p142
        %p462 = pneg %p166
        %p463 = pneg %p163
        %p464 = pneg %p187
        %p465 = pneg %p184
        %p466 = pneg %p208
        %p467 = pneg %p205
        %p468 = pneg %p229
        %p469 = pneg %p226
        %p470 = pneg %p250
        %p471 = pneg %p247
        %p472 = pneg %p271
        %p473 = pneg %p268
        %p474 = pneg %p292
        %p475 = pneg %p289
        %p476 = pneg %p313
        %p477 = pneg %p310
        %p478 = pneg %p339
        %p479 = pneg %p336
        %p480 = scmp.lt.s32.totalorder %s32, 1
        %s481 = scalar_select %p480, %s32, 1
        %s482 = smul.addr %s481, 8
        %s483 = scalar_lea.vmem %s13, %s482
        %p484 = scmp.lt.s32.totalorder %s32, 1
        %s485 = scalar_select %p484, %s32, 1
        %s486 = smul.addr %s485, 12
        %s487 = smul.addr %s486, 4
        %s488 = scalar_lea.vmem %s0, %s487
        %p489 = scmp.lt.s32.totalorder %s32, 1
        %s490 = scalar_select %p489, %s32, 1
        %s491 = smul.addr %s490, 8
        %s492 = scalar_lea.vmem %s13, %s491
        %v494 = vld [vmem:[#allocation8] sm:$0x1]
        %p495 = scmp.eq.s32.totalorder %s33, 0
        // Predicated region
        $region85: #{resnet56_forward.5} parent=71 // pred_check
          %p496 = pneg %p495
        $region86: #{resnet56_forward.5} parent=71 // pred_check_branch
          %498 = sbr.rel (%p496) target = $region88
        $region87: #{resnet56_forward.5} parent=71 // pred_region
          %499 = vst [vmem:[#allocation2] sm:$0xff] 0
          %500 = vst [vmem:[#allocation2 + $0x8] sm:$0xff] 0
          %501 = vst [vmem:[#allocation2 + $0x10] sm:$0xff] 0
          %502 = vst [vmem:[#allocation2 + $0x18] sm:$0xff] 0
          %503 = vst [vmem:[#allocation2 + $0x20] sm:$0xff] 0
          %504 = vst [vmem:[#allocation2 + $0x28] sm:$0xff] 0
          %505 = vst [vmem:[#allocation2 + $0x30] sm:$0xff] 0
          %506 = vst [vmem:[#allocation2 + $0x38] sm:$0xff] 0
          %507 = vst [vmem:[#allocation2 + $0x40] sm:$0xff] 0
          %508 = vst [vmem:[#allocation2 + $0x48] sm:$0xff] 0
          %509 = vst [vmem:[#allocation2 + $0x50] sm:$0xff] 0
          %510 = vst [vmem:[#allocation2 + $0x58] sm:$0xff] 0
          %511 = vst [vmem:[#allocation3] sm:$0xff] 0
          %512 = vst [vmem:[#allocation3 + $0x8] sm:$0xff] 0
          %513 = vst [vmem:[#allocation3 + $0x10] sm:$0xff] 0
          %514 = vst [vmem:[#allocation3 + $0x18] sm:$0xff] 0
          %515 = vst [vmem:[#allocation3 + $0x20] sm:$0xff] 0
          %516 = vst [vmem:[#allocation3 + $0x28] sm:$0xff] 0
          %517 = vst [vmem:[#allocation3 + $0x30] sm:$0xff] 0
          %518 = vst [vmem:[#allocation3 + $0x38] sm:$0xff] 0
          %519 = vst [vmem:[#allocation3 + $0x40] sm:$0xff] 0
          %520 = vst [vmem:[#allocation3 + $0x48] sm:$0xff] 0
          %521 = vst [vmem:[#allocation3 + $0x50] sm:$0xff] 0
          %522 = vst [vmem:[#allocation3 + $0x58] sm:$0xff] 0
          %v523 = vld [vmem:[#allocation6] sm:$0xff]
          %v524 = vld [vmem:[#allocation6 + $0x8] sm:$0xf]
          %v525 = vld [vmem:[#allocation6 + $0xc] sm:$0xff]
          %v526 = vld [vmem:[#allocation6 + $0x14] sm:$0xf]
          %v527 = vld [vmem:[#allocation6 + $0x18] sm:$0xff]
          %v528 = vld [vmem:[#allocation6 + $0x20] sm:$0xf]
          %v529 = vld [vmem:[#allocation6 + $0x24] sm:$0xff]
          %v530 = vld [vmem:[#allocation6 + $0x2c] sm:$0xf]
          %v531 = vld [vmem:[#allocation6 + $0x30] sm:$0xff]
          %v532 = vld [vmem:[#allocation6 + $0x38] sm:$0xf]
          %v533 = vld [vmem:[#allocation6 + $0x3c] sm:$0xff]
          %v534 = vld [vmem:[#allocation6 + $0x44] sm:$0xf]
          %v535 = vld [vmem:[#allocation6 + $0x48] sm:$0xff]
          %v536 = vld [vmem:[#allocation6 + $0x50] sm:$0xf]
          %v537 = vld [vmem:[#allocation6 + $0x54] sm:$0xff]
          %v538 = vld [vmem:[#allocation6 + $0x5c] sm:$0xf]
          %v539 = vld [vmem:[%s488] sm:$0xff]
          %v540 = vld [vmem:[%s488 + $0xc] sm:$0xff]
          %v541 = vld [vmem:[%s488 + $0x18] sm:$0xff]
          %v542 = vld [vmem:[%s488 + $0x24] sm:$0xff]
          %v547 = vunpack.c.l.b16 %v539
          %v548 = vunpack.c.h.b16 %v539
          %v549 = vunpack.c.l.b16 %v540
          %v550 = vunpack.c.h.b16 %v540
          %v551 = vunpack.c.l.b16 %v541
          %v552 = vunpack.c.h.b16 %v541
          %v553 = vunpack.c.l.b16 %v542
          %v554 = vunpack.c.h.b16 %v542
          %v555 = vpack.c.b16 %v549, %v547
          %v556 = vpack.c.b16 %v550, %v548
          %v557 = vpack.c.b16 %v553, %v551
          %v558 = vpack.c.b16 %v554, %v552
          %559 = vrot.lane.b32.xlu0 %v555, 11
          %v560 = vpop.permute.xlu0 %559
          %561 = vrot.lane.b32.xlu0 %v556, 11
          %v562 = vpop.permute.xlu0 %561
          %563 = vrot.lane.b32.xlu0 %v557, 11
          %v564 = vpop.permute.xlu0 %563
          %565 = vrot.lane.b32.xlu0 %v558, 11
          %v566 = vpop.permute.xlu0 %565
          %vm567 = vcmask 89088
          %v568 = vsel %vm567, %v560, %v562
          %v569 = vsel %vm567, %v564, %v566
          %572 = vst [vmem:[#allocation4] sm:$0xff] %v568
          %573 = vst [vmem:[#allocation4 + $0x8] sm:$0xff] %v569
          %v574 = vld [vmem:[%s488] sm:$0xff]
          %v575 = vld [vmem:[%s488 + $0xc] sm:$0xff]
          %v576 = vld [vmem:[%s488 + $0x18] sm:$0xff]
          %v577 = vld [vmem:[%s488 + $0x24] sm:$0xff]
          %v582 = vunpack.c.l.b16 %v574
          %v583 = vunpack.c.h.b16 %v574
          %v584 = vunpack.c.l.b16 %v575
          %v585 = vunpack.c.h.b16 %v575
          %v586 = vunpack.c.l.b16 %v576
          %v587 = vunpack.c.h.b16 %v576
          %v588 = vunpack.c.l.b16 %v577
          %v589 = vunpack.c.h.b16 %v577
          %v590 = vpack.c.b16 %v584, %v582
          %v591 = vpack.c.b16 %v585, %v583
          %v592 = vpack.c.b16 %v588, %v586
          %v593 = vpack.c.b16 %v589, %v587
          %594 = vrot.lane.b32.xlu0 %v590, 10
          %v595 = vpop.permute.xlu0 %594
          %596 = vrot.lane.b32.xlu0 %v591, 10
          %v597 = vpop.permute.xlu0 %596
          %598 = vrot.lane.b32.xlu0 %v592, 10
          %v599 = vpop.permute.xlu0 %598
          %600 = vrot.lane.b32.xlu0 %v593, 10
          %v601 = vpop.permute.xlu0 %600
          %vm602 = vcmask 80896
          %v603 = vsel %vm602, %v595, %v597
          %v604 = vsel %vm602, %v599, %v601
          %607 = vst [vmem:[#allocation4 + $0x10] sm:$0xff] %v603
          %608 = vst [vmem:[#allocation4 + $0x18] sm:$0xff] %v604
          %v609 = vld [vmem:[%s488] sm:$0xff]
          %v610 = vld [vmem:[%s488 + $0xc] sm:$0xff]
          %v611 = vld [vmem:[%s488 + $0x18] sm:$0xff]
          %v612 = vld [vmem:[%s488 + $0x24] sm:$0xff]
          %v617 = vunpack.c.l.b16 %v609
          %v618 = vunpack.c.h.b16 %v609
          %v619 = vunpack.c.l.b16 %v610
          %v620 = vunpack.c.h.b16 %v610
          %v621 = vunpack.c.l.b16 %v611
          %v622 = vunpack.c.h.b16 %v611
          %v623 = vunpack.c.l.b16 %v612
          %v624 = vunpack.c.h.b16 %v612
          %v625 = vpack.c.b16 %v619, %v617
          %v626 = vpack.c.b16 %v620, %v618
          %v627 = vpack.c.b16 %v623, %v621
          %v628 = vpack.c.b16 %v624, %v622
          %629 = vrot.lane.b32.xlu0 %v625, 9
          %v630 = vpop.permute.xlu0 %629
          %631 = vrot.lane.b32.xlu0 %v626, 9
          %v632 = vpop.permute.xlu0 %631
          %633 = vrot.lane.b32.xlu0 %v627, 9
          %v634 = vpop.permute.xlu0 %633
          %635 = vrot.lane.b32.xlu0 %v628, 9
          %v636 = vpop.permute.xlu0 %635
          %vm637 = vcmask 72704
          %v638 = vsel %vm637, %v630, %v632
          %v639 = vsel %vm637, %v634, %v636
          %642 = vst [vmem:[#allocation4 + $0x20] sm:$0xff] %v638
          %643 = vst [vmem:[#allocation4 + $0x28] sm:$0xff] %v639
          %v644 = vld [vmem:[%s488] sm:$0xff]
          %v645 = vld [vmem:[%s488 + $0xc] sm:$0xff]
          %v646 = vld [vmem:[%s488 + $0x18] sm:$0xff]
          %v647 = vld [vmem:[%s488 + $0x24] sm:$0xff]
          %v652 = vunpack.c.l.b16 %v644
          %v653 = vunpack.c.h.b16 %v644
          %v654 = vunpack.c.l.b16 %v645
          %v655 = vunpack.c.h.b16 %v645
          %v656 = vunpack.c.l.b16 %v646
          %v657 = vunpack.c.h.b16 %v646
          %v658 = vunpack.c.l.b16 %v647
          %v659 = vunpack.c.h.b16 %v647
          %v660 = vpack.c.b16 %v654, %v652
          %v661 = vpack.c.b16 %v655, %v653
          %v662 = vpack.c.b16 %v658, %v656
          %v663 = vpack.c.b16 %v659, %v657
          %664 = vrot.lane.b32.xlu0 %v660, 1
          %v665 = vpop.permute.xlu0 %664
          %666 = vrot.lane.b32.xlu0 %v661, 1
          %v667 = vpop.permute.xlu0 %666
          %668 = vrot.lane.b32.xlu0 %v662, 1
          %v669 = vpop.permute.xlu0 %668
          %670 = vrot.lane.b32.xlu0 %v663, 1
          %v671 = vpop.permute.xlu0 %670
          %vm672 = vcmask 7168
          %v673 = vsel %vm672, %v665, %v667
          %v674 = vsel %vm672, %v669, %v671
          %677 = vst [vmem:[#allocation4 + $0x30] sm:$0xff] %v673
          %678 = vst [vmem:[#allocation4 + $0x38] sm:$0xff] %v674
          %v679 = vld [vmem:[%s488 + $0x4] sm:$0xf]
          %v680 = vld [vmem:[%s488 + $0x10] sm:$0xf]
          %v681 = vld [vmem:[%s488 + $0x1c] sm:$0xf]
          %v682 = vld [vmem:[%s488 + $0x28] sm:$0xf]
          %v687 = vunpack.c.l.b16 %v679
          %v688 = vunpack.c.l.b16 %v680
          %v689 = vunpack.c.l.b16 %v681
          %v690 = vunpack.c.l.b16 %v682
          %v691 = vpack.c.b16 %v688, %v687
          %v692 = vpack.c.b16 %v690, %v689
          %695 = vst [vmem:[#allocation4 + $0x40] sm:$0xff] %v691
          %696 = vst [vmem:[#allocation4 + $0x48] sm:$0xff] %v692
          %v697 = vld [vmem:[%s488 + $0x4] sm:$0xff]
          %v698 = vld [vmem:[%s488 + $0x10] sm:$0xff]
          %v699 = vld [vmem:[%s488 + $0x1c] sm:$0xff]
          %v700 = vld [vmem:[%s488 + $0x28] sm:$0xff]
          %v705 = vunpack.c.l.b16 %v697
          %v706 = vunpack.c.h.b16 %v697
          %v707 = vunpack.c.l.b16 %v698
          %v708 = vunpack.c.h.b16 %v698
          %v709 = vunpack.c.l.b16 %v699
          %v710 = vunpack.c.h.b16 %v699
          %v711 = vunpack.c.l.b16 %v700
          %v712 = vunpack.c.h.b16 %v700
          %v713 = vpack.c.b16 %v707, %v705
          %v714 = vpack.c.b16 %v708, %v706
          %v715 = vpack.c.b16 %v711, %v709
          %v716 = vpack.c.b16 %v712, %v710
          %717 = vrot.lane.b32.xlu0 %v713, 127
          %v718 = vpop.permute.xlu0 %717
          %719 = vrot.lane.b32.xlu0 %v714, 127
          %v720 = vpop.permute.xlu0 %719
          %721 = vrot.lane.b32.xlu0 %v715, 127
          %v722 = vpop.permute.xlu0 %721
          %723 = vrot.lane.b32.xlu0 %v716, 127
          %v724 = vpop.permute.xlu0 %723
          %vm725 = vcmask 1039360
          %v726 = vsel %vm725, %v718, %v720
          %v727 = vsel %vm725, %v722, %v724
          %730 = vst [vmem:[#allocation4 + $0x50] sm:$0xff] %v726
          %731 = vst [vmem:[#allocation4 + $0x58] sm:$0xff] %v727
          %v732 = vld [vmem:[%s488 + $0x4] sm:$0xff]
          %v733 = vld [vmem:[%s488 + $0x10] sm:$0xff]
          %v734 = vld [vmem:[%s488 + $0x1c] sm:$0xff]
          %v735 = vld [vmem:[%s488 + $0x28] sm:$0xff]
          %v740 = vunpack.c.l.b16 %v732
          %v741 = vunpack.c.h.b16 %v732
          %v742 = vunpack.c.l.b16 %v733
          %v743 = vunpack.c.h.b16 %v733
          %v744 = vunpack.c.l.b16 %v734
          %v745 = vunpack.c.h.b16 %v734
          %v746 = vunpack.c.l.b16 %v735
          %v747 = vunpack.c.h.b16 %v735
          %v748 = vpack.c.b16 %v742, %v740
          %v749 = vpack.c.b16 %v743, %v741
          %v750 = vpack.c.b16 %v746, %v744
          %v751 = vpack.c.b16 %v747, %v745
          %752 = vrot.lane.b32.xlu0 %v748, 119
          %v753 = vpop.permute.xlu0 %752
          %754 = vrot.lane.b32.xlu0 %v749, 119
          %v755 = vpop.permute.xlu0 %754
          %756 = vrot.lane.b32.xlu0 %v750, 119
          %v757 = vpop.permute.xlu0 %756
          %758 = vrot.lane.b32.xlu0 %v751, 119
          %v759 = vpop.permute.xlu0 %758
          %vm760 = vcmask 973824
          %v761 = vsel %vm760, %v753, %v755
          %v762 = vsel %vm760, %v757, %v759
          %765 = vst [vmem:[#allocation4 + $0x60] sm:$0xff] %v761
          %766 = vst [vmem:[#allocation4 + $0x68] sm:$0xff] %v762
          %v767 = vld [vmem:[%s488 + $0x4] sm:$0xff]
          %v768 = vld [vmem:[%s488 + $0x10] sm:$0xff]
          %v769 = vld [vmem:[%s488 + $0x1c] sm:$0xff]
          %v770 = vld [vmem:[%s488 + $0x28] sm:$0xff]
          %v775 = vunpack.c.l.b16 %v767
          %v776 = vunpack.c.h.b16 %v767
          %v777 = vunpack.c.l.b16 %v768
          %v778 = vunpack.c.h.b16 %v768
          %v779 = vunpack.c.l.b16 %v769
          %v780 = vunpack.c.h.b16 %v769
          %v781 = vunpack.c.l.b16 %v770
          %v782 = vunpack.c.h.b16 %v770
          %v783 = vpack.c.b16 %v777, %v775
          %v784 = vpack.c.b16 %v778, %v776
          %v785 = vpack.c.b16 %v781, %v779
          %v786 = vpack.c.b16 %v782, %v780
          %787 = vrot.lane.b32.xlu0 %v783, 118
          %v788 = vpop.permute.xlu0 %787
          %789 = vrot.lane.b32.xlu0 %v784, 118
          %v790 = vpop.permute.xlu0 %789
          %791 = vrot.lane.b32.xlu0 %v785, 118
          %v792 = vpop.permute.xlu0 %791
          %793 = vrot.lane.b32.xlu0 %v786, 118
          %v794 = vpop.permute.xlu0 %793
          %vm795 = vcmask 965632
          %v796 = vsel %vm795, %v788, %v790
          %v797 = vsel %vm795, %v792, %v794
          %800 = vst [vmem:[#allocation4 + $0x70] sm:$0xff] %v796
          %801 = vst [vmem:[#allocation4 + $0x78] sm:$0xff] %v797
          %v802 = vld [vmem:[%s488 + $0x4] sm:$0xff]
          %v803 = vld [vmem:[%s488 + $0x10] sm:$0xff]
          %v804 = vld [vmem:[%s488 + $0x1c] sm:$0xff]
          %v805 = vld [vmem:[%s488 + $0x28] sm:$0xff]
          %v810 = vunpack.c.l.b16 %v802
          %v811 = vunpack.c.h.b16 %v802
          %v812 = vunpack.c.l.b16 %v803
          %v813 = vunpack.c.h.b16 %v803
          %v814 = vunpack.c.l.b16 %v804
          %v815 = vunpack.c.h.b16 %v804
          %v816 = vunpack.c.l.b16 %v805
          %v817 = vunpack.c.h.b16 %v805
          %v818 = vpack.c.b16 %v812, %v810
          %v819 = vpack.c.b16 %v813, %v811
          %v820 = vpack.c.b16 %v816, %v814
          %v821 = vpack.c.b16 %v817, %v815
          %822 = vrot.lane.b32.xlu0 %v818, 117
          %v823 = vpop.permute.xlu0 %822
          %824 = vrot.lane.b32.xlu0 %v819, 117
          %v825 = vpop.permute.xlu0 %824
          %826 = vrot.lane.b32.xlu0 %v820, 117
          %v827 = vpop.permute.xlu0 %826
          %828 = vrot.lane.b32.xlu0 %v821, 117
          %v829 = vpop.permute.xlu0 %828
          %vm830 = vcmask 957440
          %v831 = vsel %vm830, %v823, %v825
          %v832 = vsel %vm830, %v827, %v829
          %835 = vst [vmem:[#allocation4 + $0x80] sm:$0xff] %v831
          %836 = vst [vmem:[#allocation4 + $0x88] sm:$0xff] %v832
          %v837 = vld [vmem:[#allocation4] sm:$0xff]
          %v838 = vld [vmem:[#allocation4 + $0x8] sm:$0xff]
          %v839 = vld [vmem:[#allocation4 + $0x10] sm:$0xff]
          %v840 = vld [vmem:[#allocation4 + $0x18] sm:$0xff]
          %v841 = vld [vmem:[#allocation4 + $0x20] sm:$0xff]
          %v842 = vld [vmem:[#allocation4 + $0x28] sm:$0xff]
          %v843 = vld [vmem:[#allocation4 + $0x30] sm:$0xff]
          %v844 = vld [vmem:[#allocation4 + $0x38] sm:$0xff]
          %v845 = vld [vmem:[#allocation4 + $0x40] sm:$0xff]
          %v846 = vld [vmem:[#allocation4 + $0x48] sm:$0xff]
          %v847 = vld [vmem:[#allocation4 + $0x50] sm:$0xff]
          %v848 = vld [vmem:[#allocation4 + $0x58] sm:$0xff]
          %v849 = vld [vmem:[#allocation4 + $0x60] sm:$0xff]
          %v850 = vld [vmem:[#allocation4 + $0x68] sm:$0xff]
          %v851 = vld [vmem:[#allocation4 + $0x70] sm:$0xff]
          %v852 = vld [vmem:[#allocation4 + $0x78] sm:$0xff]
          %v853 = vld [vmem:[#allocation4 + $0x80] sm:$0xff]
          %v854 = vld [vmem:[#allocation4 + $0x88] sm:$0xff]
          %v855 = vld [vmem:[%s4] sm:$0xff]
          %v856 = vld [vmem:[%s4 + $0x8] sm:$0xff]
          %v857 = vld [vmem:[%s4 + $0x10] sm:$0xff]
          %v858 = vld [vmem:[%s4 + $0x18] sm:$0xff]
          %v859 = vld [vmem:[%s4 + $0x20] sm:$0xff]
          %v860 = vld [vmem:[%s4 + $0x28] sm:$0xff]
          %v861 = vld [vmem:[%s4 + $0x30] sm:$0xff]
          %v862 = vld [vmem:[%s4 + $0x38] sm:$0xff]
          %864 = vset.pattern.permute.xlu0 0
          %865 = vperm.xlu0 %864, %v855
          %v866 = vpop.permute.xlu0 %865
          %869 = vset.pattern.permute.xlu0 0
          %870 = vperm.xlu0 %869, %v856
          %v871 = vpop.permute.xlu0 %870
          %874 = vset.pattern.permute.xlu0 0
          %875 = vperm.xlu0 %874, %v857
          %v876 = vpop.permute.xlu0 %875
          %879 = vset.pattern.permute.xlu0 0
          %880 = vperm.xlu0 %879, %v858
          %v881 = vpop.permute.xlu0 %880
          %884 = vset.pattern.permute.xlu0 0
          %885 = vperm.xlu0 %884, %v859
          %v886 = vpop.permute.xlu0 %885
          %889 = vset.pattern.permute.xlu0 0
          %890 = vperm.xlu0 %889, %v860
          %v891 = vpop.permute.xlu0 %890
          %894 = vset.pattern.permute.xlu0 0
          %895 = vperm.xlu0 %894, %v861
          %v896 = vpop.permute.xlu0 %895
          %899 = vset.pattern.permute.xlu0 0
          %900 = vperm.xlu0 %899, %v862
          %v901 = vpop.permute.xlu0 %900
          %v919 = vunpack.c.l.b16 %v523
          %v920 = vunpack.c.h.b16 %v523
          %v921 = vunpack.c.l.b16 %v524
          %v922 = vunpack.c.l.b16 %v525
          %v923 = vunpack.c.h.b16 %v525
          %v924 = vunpack.c.l.b16 %v526
          %v925 = vunpack.c.l.b16 %v527
          %v926 = vunpack.c.h.b16 %v527
          %v927 = vunpack.c.l.b16 %v528
          %v928 = vunpack.c.l.b16 %v529
          %v929 = vunpack.c.h.b16 %v529
          %v930 = vunpack.c.l.b16 %v530
          %v931 = vunpack.c.l.b16 %v531
          %v932 = vunpack.c.h.b16 %v531
          %v933 = vunpack.c.l.b16 %v532
          %v934 = vunpack.c.l.b16 %v533
          %v935 = vunpack.c.h.b16 %v533
          %v936 = vunpack.c.l.b16 %v534
          %v937 = vunpack.c.l.b16 %v535
          %v938 = vunpack.c.h.b16 %v535
          %v939 = vunpack.c.l.b16 %v536
          %v940 = vunpack.c.l.b16 %v537
          %v941 = vunpack.c.h.b16 %v537
          %v942 = vunpack.c.l.b16 %v538
          %v943 = vpack.c.b16 %v922, %v919
          %v944 = vpack.c.b16 %v923, %v920
          %v945 = vpack.c.b16 %v924, %v921
          %v946 = vpack.c.b16 %v928, %v925
          %v947 = vpack.c.b16 %v929, %v926
          %v948 = vpack.c.b16 %v930, %v927
          %v949 = vpack.c.b16 %v934, %v931
          %v950 = vpack.c.b16 %v935, %v932
          %v951 = vpack.c.b16 %v936, %v933
          %v952 = vpack.c.b16 %v940, %v937
          %v953 = vpack.c.b16 %v941, %v938
          %v954 = vpack.c.b16 %v942, %v939
          %vm963 = vcmask 261120
          %v965 = vsel %vm963, %v945, 0
          %v968 = vsel %vm963, %v948, 0
          %v971 = vsel %vm963, %v951, 0
          %v974 = vsel %vm963, %v954, 0
          %976 = vmatprep.subr.bf16.mxu0 0
          %977 = vmatpush1.bf16.msra.mxu0 %v837
          %978 = vmatprep.subr.bf16.mxu0 0
          %979 = vmatpush1.bf16.msra.mxu0 %v838
          %980 = vmatprep.subr.bf16.mxu0 0
          %981 = vmatpush1.bf16.msra.mxu0 %v839
          %982 = vmatprep.subr.bf16.mxu0 0
          %983 = vmatpush1.bf16.msra.mxu0 %v840
          %984 = vmatprep.subr.bf16.mxu0 0
          %985 = vmatpush1.bf16.msra.mxu0 %v841
          %986 = vmatprep.subr.bf16.mxu0 0
          %987 = vmatpush1.bf16.msra.mxu0 %v842
          %988 = vmatprep.subr.bf16.mxu0 0
          %989 = vmatpush1.bf16.msra.mxu0 %v843
          %990 = vmatprep.subr.bf16.mxu0 0
          %991 = vmatpush1.bf16.msra.mxu0 %v844
          %992 = vmatprep.subr.bf16.mxu0 0
          %993 = vmatpush1.bf16.msra.mxu0 %v845
          %994 = vmatprep.subr.bf16.mxu0 0
          %995 = vmatpush1.bf16.msra.mxu0 %v846
          %996 = vmatprep.subr.bf16.mxu0 0
          %997 = vmatpush1.bf16.msra.mxu0 %v847
          %998 = vmatprep.subr.bf16.mxu0 0
          %999 = vmatpush1.bf16.msra.mxu0 %v848
          %1000 = vmatprep.subr.bf16.mxu0 0
          %1001 = vmatpush1.bf16.msra.mxu0 %v849
          %1002 = vmatprep.subr.bf16.mxu0 0
          %1003 = vmatpush1.bf16.msra.mxu0 %v850
          %1004 = vmatprep.subr.bf16.mxu0 0
          %1005 = vmatpush1.bf16.msra.mxu0 %v851
          %1006 = vmatprep.subr.bf16.mxu0 0
          %1007 = vmatpush1.bf16.msra.mxu0 %v852
          %1008 = vmatprep.mubr.bf16.mxu0 %v944
          %1009 = vmatmul.mubr.bf16.gmra.mrb[0].mxu0 %v943
          %v1010 = vpop.f32.mrb[0].mxu0
          %v1011 = vadd.f32 %v866, %v1010
          %v1012 = vpop.f32.mrb[0].mxu0
          %v1013 = vpop.f32.mrb[0].mxu0
          %v1014 = vadd.f32 %v871, %v1013
          %v1015 = vpop.f32.mrb[0].mxu0
          %1016 = vmatprep.mubr.bf16.mxu0 %v947
          %1017 = vmatmul.mubr.bf16.gmra.mrb[0].mxu0 %v946
          %v1018 = vpop.f32.mrb[0].mxu0
          %v1019 = vadd.f32 %v876, %v1018
          %v1020 = vpop.f32.mrb[0].mxu0
          %v1021 = vpop.f32.mrb[0].mxu0
          %v1022 = vadd.f32 %v881, %v1021
          %v1023 = vpop.f32.mrb[0].mxu0
          %1024 = vmatprep.mubr.bf16.mxu0 %v950
          %1025 = vmatmul.mubr.bf16.gmra.mrb[0].mxu0 %v949
          %v1026 = vpop.f32.mrb[0].mxu0
          %v1027 = vadd.f32 %v886, %v1026
          %v1028 = vpop.f32.mrb[0].mxu0
          %v1029 = vpop.f32.mrb[0].mxu0
          %v1030 = vadd.f32 %v891, %v1029
          %v1031 = vpop.f32.mrb[0].mxu0
          %1032 = vmatprep.mubr.bf16.mxu0 %v953
          %1033 = vmatmul.mubr.bf16.gmra.mrb[0].mxu0 %v952
          %v1034 = vpop.f32.mrb[0].mxu0
          %v1035 = vadd.f32 %v896, %v1034
          %v1036 = vpop.f32.mrb[0].mxu0
          %v1037 = vpop.f32.mrb[0].mxu0
          %v1038 = vadd.f32 %v901, %v1037
          %v1039 = vpop.f32.mrb[0].mxu0
          %1040 = vdwg.mxu0
          %1041 = vmatprep.subr.bf16.mxu0 0
          %1042 = vmatpush1.bf16.msra.mxu0 %v853
          %1043 = vmatprep.subr.bf16.mxu0 0
          %1044 = vmatpush1.bf16.msra.mxu0 %v854
          %1045 = vmatprep.subr.bf16.mxu0 0
          %1046 = vmatpush1.bf16.msra.mxu0 0
          %1047 = vmatprep.subr.bf16.mxu0 0
          %1048 = vmatpush1.bf16.msra.mxu0 0
          %1049 = vmatprep.subr.bf16.mxu0 0
          %1050 = vmatpush1.bf16.msra.mxu0 0
          %1051 = vmatprep.subr.bf16.mxu0 0
          %1052 = vmatpush1.bf16.msra.mxu0 0
          %1053 = vmatprep.subr.bf16.mxu0 0
          %1054 = vmatpush1.bf16.msra.mxu0 0
          %1055 = vmatprep.subr.bf16.mxu0 0
          %1056 = vmatpush1.bf16.msra.mxu0 0
          %1057 = vmatprep.subr.bf16.mxu0 0
          %1058 = vmatpush1.bf16.msra.mxu0 0
          %1059 = vmatprep.subr.bf16.mxu0 0
          %1060 = vmatpush1.bf16.msra.mxu0 0
          %1061 = vmatprep.subr.bf16.mxu0 0
          %1062 = vmatpush1.bf16.msra.mxu0 0
          %1063 = vmatprep.subr.bf16.mxu0 0
          %1064 = vmatpush1.bf16.msra.mxu0 0
          %1065 = vmatprep.subr.bf16.mxu0 0
          %1066 = vmatpush1.bf16.msra.mxu0 0
          %1067 = vmatprep.subr.bf16.mxu0 0
          %1068 = vmatpush1.bf16.msra.mxu0 0
          %1069 = vmatprep.subr.bf16.mxu0 0
          %1070 = vmatpush1.bf16.msra.mxu0 0
          %1071 = vmatprep.subr.bf16.mxu0 0
          %1072 = vmatpush1.bf16.msra.mxu0 0
          %1073 = vmatprep.mubr.bf16.mxu0 0
          %1074 = vmatmul.mubr.bf16.gmra.mrb[0].mxu0 %v965
          %v1075 = vpop.f32.mrb[0].mxu0
          %v1076 = vadd.f32 %v1011, %v1075
          %v1077 = vpop.f32.mrb[0].mxu0
          %v1078 = vpop.f32.mrb[0].mxu0
          %v1079 = vadd.f32 %v1014, %v1078
          %v1080 = vpop.f32.mrb[0].mxu0
          %1081 = vmatprep.mubr.bf16.mxu0 0
          %1082 = vmatmul.mubr.bf16.gmra.mrb[0].mxu0 %v968
          %v1083 = vpop.f32.mrb[0].mxu0
          %v1084 = vadd.f32 %v1019, %v1083
          %v1085 = vpop.f32.mrb[0].mxu0
          %v1086 = vpop.f32.mrb[0].mxu0
          %v1087 = vadd.f32 %v1022, %v1086
          %v1088 = vpop.f32.mrb[0].mxu0
          %1089 = vmatprep.mubr.bf16.mxu0 0
          %1090 = vmatmul.mubr.bf16.gmra.mrb[0].mxu0 %v971
          %v1091 = vpop.f32.mrb[0].mxu0
          %v1092 = vadd.f32 %v1027, %v1091
          %v1093 = vpop.f32.mrb[0].mxu0
          %v1094 = vpop.f32.mrb[0].mxu0
          %v1095 = vadd.f32 %v1030, %v1094
          %v1096 = vpop.f32.mrb[0].mxu0
          %1097 = vmatprep.mubr.bf16.mxu0 0
          %1098 = vmatmul.mubr.bf16.gmra.mrb[0].mxu0 %v974
          %v1099 = vpop.f32.mrb[0].mxu0
          %v1100 = vadd.f32 %v1035, %v1099
          %v1101 = vpop.f32.mrb[0].mxu0
          %v1102 = vpop.f32.mrb[0].mxu0
          %v1103 = vadd.f32 %v1038, %v1102
          %v1104 = vpop.f32.mrb[0].mxu0
          %1105 = vdwg.mxu0
          %v1106 = vmax.f32 %v1076, 0.0
          %v1107 = vmax.f32 %v1079, 0.0
          %v1108 = vmax.f32 %v1084, 0.0
          %v1109 = vmax.f32 %v1087, 0.0
          %v1110 = vmax.f32 %v1092, 0.0
          %v1111 = vmax.f32 %v1095, 0.0
          %v1112 = vmax.f32 %v1100, 0.0
          %v1113 = vmax.f32 %v1103, 0.0
          %v1114 = vpack.c.bf16 %v1107, %v1106
          %v1115 = vpack.c.bf16 %v1109, %v1108
          %v1116 = vpack.c.bf16 %v1111, %v1110
          %v1117 = vpack.c.bf16 %v1113, %v1112
          %v1118 = vld [vmem:[%s5] sm:$0xf]
          %v1119 = vld [vmem:[%s5 + $0x4] sm:$0xf]
          %v1120 = vld [vmem:[%s5 + $0x8] sm:$0xf]
          %v1121 = vld [vmem:[%s5 + $0xc] sm:$0xf]
          %v1122 = vld [vmem:[%s5 + $0x10] sm:$0xf]
          %v1123 = vld [vmem:[%s5 + $0x14] sm:$0xf]
          %v1124 = vld [vmem:[%s5 + $0x18] sm:$0xf]
          %v1125 = vld [vmem:[%s5 + $0x1c] sm:$0xf]
          %v1126 = vld [vmem:[%s5 + $0x20] sm:$0xf]
          %v1127 = vld [vmem:[%s5 + $0x24] sm:$0xf]
          %v1128 = vld [vmem:[%s5 + $0x28] sm:$0xf]
          %v1129 = vld [vmem:[%s5 + $0x2c] sm:$0xf]
          %v1130 = vld [vmem:[%s5 + $0x30] sm:$0xf]
          %v1131 = vld [vmem:[%s5 + $0x34] sm:$0xf]
          %v1132 = vld [vmem:[%s5 + $0x38] sm:$0xf]
          %v1133 = vld [vmem:[%s5 + $0x3c] sm:$0xf]
          %v1150 = vunpack.c.l.b16 %v1118
          %v1151 = vunpack.c.l.b16 %v1119
          %v1152 = vunpack.c.l.b16 %v1120
          %v1153 = vunpack.c.l.b16 %v1121
          %v1154 = vunpack.c.l.b16 %v1122
          %v1155 = vunpack.c.l.b16 %v1123
          %v1156 = vunpack.c.l.b16 %v1124
          %v1157 = vunpack.c.l.b16 %v1125
          %v1158 = vunpack.c.l.b16 %v1126
          %v1159 = vunpack.c.l.b16 %v1127
          %v1160 = vunpack.c.l.b16 %v1128
          %v1161 = vunpack.c.l.b16 %v1129
          %v1162 = vunpack.c.l.b16 %v1130
          %v1163 = vunpack.c.l.b16 %v1131
          %v1164 = vunpack.c.l.b16 %v1132
          %v1165 = vunpack.c.l.b16 %v1133
          %v1166 = vpack.c.b16 %v1151, %v1150
          %v1167 = vpack.c.b16 %v1153, %v1152
          %v1168 = vpack.c.b16 %v1155, %v1154
          %v1169 = vpack.c.b16 %v1157, %v1156
          %v1170 = vpack.c.b16 %v1159, %v1158
          %v1171 = vpack.c.b16 %v1161, %v1160
          %v1172 = vpack.c.b16 %v1163, %v1162
          %v1173 = vpack.c.b16 %v1165, %v1164
          %1182 = vmatprep.subr.bf16.mxu0 0
          %1183 = vmatpush1.bf16.msra.mxu0 %v1166
          %1184 = vmatprep.subr.bf16.mxu0 0
          %1185 = vmatpush1.bf16.msra.mxu0 %v1167
          %1186 = vmatprep.subr.bf16.mxu0 0
          %1187 = vmatpush1.bf16.msra.mxu0 %v1168
          %1188 = vmatprep.subr.bf16.mxu0 0
          %1189 = vmatpush1.bf16.msra.mxu0 %v1169
          %1190 = vmatprep.subr.bf16.mxu0 0
          %1191 = vmatpush1.bf16.msra.mxu0 %v1170
          %1192 = vmatprep.subr.bf16.mxu0 0
          %1193 = vmatpush1.bf16.msra.mxu0 %v1171
          %1194 = vmatprep.subr.bf16.mxu0 0
          %1195 = vmatpush1.bf16.msra.mxu0 %v1172
          %1196 = vmatprep.subr.bf16.mxu0 0
          %1197 = vmatpush1.bf16.msra.mxu0 %v1173
          %1198 = vmatprep.subr.bf16.mxu0 0
          %1199 = vmatpush1.bf16.msra.mxu0 0
          %1200 = vmatprep.subr.bf16.mxu0 0
          %1201 = vmatpush1.bf16.msra.mxu0 0
          %1202 = vmatprep.subr.bf16.mxu0 0
          %1203 = vmatpush1.bf16.msra.mxu0 0
          %1204 = vmatprep.subr.bf16.mxu0 0
          %1205 = vmatpush1.bf16.msra.mxu0 0
          %1206 = vmatprep.subr.bf16.mxu0 0
          %1207 = vmatpush1.bf16.msra.mxu0 0
          %1208 = vmatprep.subr.bf16.mxu0 0
          %1209 = vmatpush1.bf16.msra.mxu0 0
          %1210 = vmatprep.subr.bf16.mxu0 0
          %1211 = vmatpush1.bf16.msra.mxu0 0
          %1212 = vmatprep.subr.bf16.mxu0 0
          %1213 = vmatpush1.bf16.msra.mxu0 0
          %1214 = vmatprep.mubr.bf16.mxu0 0
          %1215 = vmatmul.mubr.bf16.gmra.mrb[0].mxu0 %v1114
          %v1216 = vpop.f32.mrb[0].mxu0
          %v1217 = vadd.f32 0.0, %v1216
          %v1218 = vpop.f32.mrb[0].mxu0
          %v1219 = vpop.f32.mrb[0].mxu0
          %v1220 = vadd.f32 0.0, %v1219
          %v1221 = vpop.f32.mrb[0].mxu0
          %1222 = vmatprep.mubr.bf16.mxu0 0
          %1223 = vmatmul.mubr.bf16.gmra.mrb[0].mxu0 %v1115
          %v1224 = vpop.f32.mrb[0].mxu0
          %v1225 = vadd.f32 0.0, %v1224
          %v1226 = vpop.f32.mrb[0].mxu0
          %v1227 = vpop.f32.mrb[0].mxu0
          %v1228 = vadd.f32 0.0, %v1227
          %v1229 = vpop.f32.mrb[0].mxu0
          %1230 = vmatprep.mubr.bf16.mxu0 0
          %1231 = vmatmul.mubr.bf16.gmra.mrb[0].mxu0 %v1116
          %v1232 = vpop.f32.mrb[0].mxu0
          %v1233 = vadd.f32 0.0, %v1232
          %v1234 = vpop.f32.mrb[0].mxu0
          %v1235 = vpop.f32.mrb[0].mxu0
          %v1236 = vadd.f32 0.0, %v1235
          %v1237 = vpop.f32.mrb[0].mxu0
          %1238 = vmatprep.mubr.bf16.mxu0 0
          %1239 = vmatmul.mubr.bf16.gmra.mrb[0].mxu0 %v1117
          %v1240 = vpop.f32.mrb[0].mxu0
          %v1241 = vadd.f32 0.0, %v1240
          %v1242 = vpop.f32.mrb[0].mxu0
          %v1243 = vpop.f32.mrb[0].mxu0
          %v1244 = vadd.f32 0.0, %v1243
          %v1245 = vpop.f32.mrb[0].mxu0
          %1246 = vdwg.mxu0
          %v1247 = vpack.c.bf16 %v1220, %v1217
          %v1248 = vpack.c.bf16 %v1228, %v1225
          %v1249 = vpack.c.bf16 %v1236, %v1233
          %v1250 = vpack.c.bf16 %v1244, %v1241
          %1251 = vst [vmem:[#allocation3 + $0x8] sm:$0xff] %v1247
          %1252 = vst [vmem:[#allocation3 + $0x20] sm:$0xff] %v1248
          %1253 = vst [vmem:[#allocation3 + $0x38] sm:$0xff] %v1249
          %1254 = vst [vmem:[#allocation3 + $0x50] sm:$0xff] %v1250
          %v1255 = vld [vmem:[%s488 + $0x4] sm:$0xf]
          %v1256 = vld [vmem:[%s488 + $0x10] sm:$0xf]
          %v1257 = vld [vmem:[%s488 + $0x1c] sm:$0xf]
          %v1258 = vld [vmem:[%s488 + $0x28] sm:$0xf]
          %v1259 = vld [vmem:[%s5] sm:$0xf]
          %v1260 = vld [vmem:[%s5 + $0x4] sm:$0xf]
          %v1261 = vld [vmem:[%s5 + $0x8] sm:$0xf]
          %v1262 = vld [vmem:[%s5 + $0xc] sm:$0xf]
          %v1263 = vld [vmem:[%s5 + $0x10] sm:$0xf]
          %v1264 = vld [vmem:[%s5 + $0x14] sm:$0xf]
          %v1265 = vld [vmem:[%s5 + $0x18] sm:$0xf]
          %v1266 = vld [vmem:[%s5 + $0x1c] sm:$0xf]
          %v1267 = vld [vmem:[%s5 + $0x20] sm:$0xf]
          %v1268 = vld [vmem:[%s5 + $0x24] sm:$0xf]
          %v1269 = vld [vmem:[%s5 + $0x28] sm:$0xf]
          %v1270 = vld [vmem:[%s5 + $0x2c] sm:$0xf]
          %v1271 = vld [vmem:[%s5 + $0x30] sm:$0xf]
          %v1272 = vld [vmem:[%s5 + $0x34] sm:$0xf]
          %v1273 = vld [vmem:[%s5 + $0x38] sm:$0xf]
          %v1274 = vld [vmem:[%s5 + $0x3c] sm:$0xf]
          %v1279 = vunpack.c.l.b16 %v1255
          %v1280 = vunpack.c.l.b16 %v1256
          %v1281 = vunpack.c.l.b16 %v1257
          %v1282 = vunpack.c.l.b16 %v1258
          %v1283 = vpack.c.b16 %v1280, %v1279
          %v1284 = vpack.c.b16 %v1282, %v1281
          %v1303 = vunpack.c.l.b16 %v1259
          %v1304 = vunpack.c.l.b16 %v1260
          %v1305 = vunpack.c.l.b16 %v1261
          %v1306 = vunpack.c.l.b16 %v1262
          %v1307 = vunpack.c.l.b16 %v1263
          %v1308 = vunpack.c.l.b16 %v1264
          %v1309 = vunpack.c.l.b16 %v1265
          %v1310 = vunpack.c.l.b16 %v1266
          %v1311 = vunpack.c.l.b16 %v1267
          %v1312 = vunpack.c.l.b16 %v1268
          %v1313 = vunpack.c.l.b16 %v1269
          %v1314 = vunpack.c.l.b16 %v1270
          %v1315 = vunpack.c.l.b16 %v1271
          %v1316 = vunpack.c.l.b16 %v1272
          %v1317 = vunpack.c.l.b16 %v1273
          %v1318 = vunpack.c.l.b16 %v1274
          %v1319 = vpack.c.b16 %v1304, %v1303
          %v1320 = vpack.c.b16 %v1306, %v1305
          %v1321 = vpack.c.b16 %v1308, %v1307
          %v1322 = vpack.c.b16 %v1310, %v1309
          %v1323 = vpack.c.b16 %v1312, %v1311
          %v1324 = vpack.c.b16 %v1314, %v1313
          %v1325 = vpack.c.b16 %v1316, %v1315
          %v1326 = vpack.c.b16 %v1318, %v1317
          %1335 = vmatprep.subr.bf16.mxu0 0
          %1336 = vmatpush1.bf16.msra.mxu0 %v1319
          %1337 = vmatprep.subr.bf16.mxu0 0
          %1338 = vmatpush1.bf16.msra.mxu0 %v1320
          %1339 = vmatprep.subr.bf16.mxu0 0
          %1340 = vmatpush1.bf16.msra.mxu0 %v1321
          %1341 = vmatprep.subr.bf16.mxu0 0
          %1342 = vmatpush1.bf16.msra.mxu0 %v1322
          %1343 = vmatprep.subr.bf16.mxu0 0
          %1344 = vmatpush1.bf16.msra.mxu0 %v1323
          %1345 = vmatprep.subr.bf16.mxu0 0
          %1346 = vmatpush1.bf16.msra.mxu0 %v1324
          %1347 = vmatprep.subr.bf16.mxu0 0
          %1348 = vmatpush1.bf16.msra.mxu0 %v1325
          %1349 = vmatprep.subr.bf16.mxu0 0
          %1350 = vmatpush1.bf16.msra.mxu0 %v1326
          %1351 = vmatprep.subr.bf16.mxu0 0
          %1352 = vmatpush1.bf16.msra.mxu0 0
          %1353 = vmatprep.subr.bf16.mxu0 0
          %1354 = vmatpush1.bf16.msra.mxu0 0
          %1355 = vmatprep.subr.bf16.mxu0 0
          %1356 = vmatpush1.bf16.msra.mxu0 0
          %1357 = vmatprep.subr.bf16.mxu0 0
          %1358 = vmatpush1.bf16.msra.mxu0 0
          %1359 = vmatprep.subr.bf16.mxu0 0
          %1360 = vmatpush1.bf16.msra.mxu0 0
          %1361 = vmatprep.subr.bf16.mxu0 0
          %1362 = vmatpush1.bf16.msra.mxu0 0
          %1363 = vmatprep.subr.bf16.mxu0 0
          %1364 = vmatpush1.bf16.msra.mxu0 0
          %1365 = vmatprep.subr.bf16.mxu0 0
          %1366 = vmatpush1.bf16.msra.mxu0 0
          %1367 = vmatprep.mubr.bf16.mxu0 0
          %1368 = vmatmul.mubr.bf16.gmra.mrb[0].mxu0 %v1283
          %v1369 = vpop.f32.mrb[0].mxu0
          %v1370 = vadd.f32 0.0, %v1369
          %v1371 = vpop.f32.mrb[0].mxu0
          %v1372 = vpop.f32.mrb[0].mxu0
          %v1373 = vadd.f32 0.0, %v1372
          %v1374 = vpop.f32.mrb[0].mxu0
          %1375 = vmatprep.mubr.bf16.mxu0 0
          %1376 = vmatmul.mubr.bf16.gmra.mrb[0].mxu0 %v1284
          %v1377 = vpop.f32.mrb[0].mxu0
          %v1378 = vadd.f32 0.0, %v1377
          %v1379 = vpop.f32.mrb[0].mxu0
          %v1380 = vpop.f32.mrb[0].mxu0
          %v1381 = vadd.f32 0.0, %v1380
          %v1382 = vpop.f32.mrb[0].mxu0
          %1383 = vdwg.mxu0
          %v1384 = vld [vmem:[%s3] sm:$0xf]
          %v1385 = vld [vmem:[%s3 + $0x4] sm:$0xf]
          %v1386 = vld [vmem:[%s3 + $0x8] sm:$0xf]
          %v1387 = vld [vmem:[%s3 + $0xc] sm:$0xf]
          %v1388 = vld [vmem:[%s3 + $0x10] sm:$0xf]
          %v1389 = vld [vmem:[%s3 + $0x14] sm:$0xf]
          %v1390 = vld [vmem:[%s3 + $0x18] sm:$0xf]
          %v1391 = vld [vmem:[%s3 + $0x1c] sm:$0xf]
          %v1392 = vpack.c.bf16 %v1373, %v1370
          %v1393 = vpack.c.bf16 %v1381, %v1378
          %v1402 = vunpack.c.l.b16 %v1384
          %v1403 = vunpack.c.l.b16 %v1385
          %v1404 = vunpack.c.l.b16 %v1386
          %v1405 = vunpack.c.l.b16 %v1387
          %v1406 = vunpack.c.l.b16 %v1388
          %v1407 = vunpack.c.l.b16 %v1389
          %v1408 = vunpack.c.l.b16 %v1390
          %v1409 = vunpack.c.l.b16 %v1391
          %v1410 = vpack.c.b16 %v1403, %v1402
          %v1411 = vpack.c.b16 %v1405, %v1404
          %v1412 = vpack.c.b16 %v1407, %v1406
          %v1413 = vpack.c.b16 %v1409, %v1408
          %v1415 = vsel %vm963, %v1410, 0
          %v1418 = vsel %vm963, %v1411, 0
          %v1421 = vsel %vm963, %v1412, 0
          %v1424 = vsel %vm963, %v1413, 0
          %1426 = vmatprep.subr.bf16.mxu0 0
          %1427 = vmatpush1.bf16.msra.mxu0 %v1392
          %1428 = vmatprep.subr.bf16.mxu0 0
          %1429 = vmatpush1.bf16.msra.mxu0 %v1393
          %1430 = vmatprep.subr.bf16.mxu0 0
          %1431 = vmatpush1.bf16.msra.mxu0 0
          %1432 = vmatprep.subr.bf16.mxu0 0
          %1433 = vmatpush1.bf16.msra.mxu0 0
          %1434 = vmatprep.subr.bf16.mxu0 0
          %1435 = vmatpush1.bf16.msra.mxu0 0
          %1436 = vmatprep.subr.bf16.mxu0 0
          %1437 = vmatpush1.bf16.msra.mxu0 0
          %1438 = vmatprep.subr.bf16.mxu0 0
          %1439 = vmatpush1.bf16.msra.mxu0 0
          %1440 = vmatprep.subr.bf16.mxu0 0
          %1441 = vmatpush1.bf16.msra.mxu0 0
          %1442 = vmatprep.subr.bf16.mxu0 0
          %1443 = vmatpush1.bf16.msra.mxu0 0
          %1444 = vmatprep.subr.bf16.mxu0 0
          %1445 = vmatpush1.bf16.msra.mxu0 0
          %1446 = vmatprep.subr.bf16.mxu0 0
          %1447 = vmatpush1.bf16.msra.mxu0 0
          %1448 = vmatprep.subr.bf16.mxu0 0
          %1449 = vmatpush1.bf16.msra.mxu0 0
          %1450 = vmatprep.subr.bf16.mxu0 0
          %1451 = vmatpush1.bf16.msra.mxu0 0
          %1452 = vmatprep.subr.bf16.mxu0 0
          %1453 = vmatpush1.bf16.msra.mxu0 0
          %1454 = vmatprep.subr.bf16.mxu0 0
          %1455 = vmatpush1.bf16.msra.mxu0 0
          %1456 = vmatprep.subr.bf16.mxu0 0
          %1457 = vmatpush1.bf16.msra.mxu0 0
          %1458 = vmatprep.mubr.bf16.mxu0 0
          %1459 = vmatmul.mubr.bf16.gmra.mrb[0].mxu0 %v1415
          %v1460 = vpop.f32.mrb[0].mxu0
          %v1461 = vadd.f32 0.0, %v1460
          %v1462 = vpop.f32.mrb[0].mxu0
          %v1463 = vpop.f32.mrb[0].mxu0
          %v1464 = vadd.f32 0.0, %v1463
          %v1465 = vpop.f32.mrb[0].mxu0
          %1466 = vmatprep.mubr.bf16.mxu0 0
          %1467 = vmatmul.mubr.bf16.gmra.mrb[0].mxu0 %v1418
          %v1468 = vpop.f32.mrb[0].mxu0
          %v1469 = vadd.f32 0.0, %v1468
          %v1470 = vpop.f32.mrb[0].mxu0
          %v1471 = vpop.f32.mrb[0].mxu0
          %v1472 = vadd.f32 0.0, %v1471
          %v1473 = vpop.f32.mrb[0].mxu0
          %1474 = vmatprep.mubr.bf16.mxu0 0
          %1475 = vmatmul.mubr.bf16.gmra.mrb[0].mxu0 %v1421
          %v1476 = vpop.f32.mrb[0].mxu0
          %v1477 = vadd.f32 0.0, %v1476
          %v1478 = vpop.f32.mrb[0].mxu0
          %v1479 = vpop.f32.mrb[0].mxu0
          %v1480 = vadd.f32 0.0, %v1479
          %v1481 = vpop.f32.mrb[0].mxu0
          %1482 = vmatprep.mubr.bf16.mxu0 0
          %1483 = vmatmul.mubr.bf16.gmra.mrb[0].mxu0 %v1424
          %v1484 = vpop.f32.mrb[0].mxu0
          %v1485 = vadd.f32 0.0, %v1484
          %v1486 = vpop.f32.mrb[0].mxu0
          %v1487 = vpop.f32.mrb[0].mxu0
          %v1488 = vadd.f32 0.0, %v1487
          %v1489 = vpop.f32.mrb[0].mxu0
          %1490 = vdwg.mxu0
          %v1491 = vld [vmem:[%s2] sm:$0xff]
          %v1492 = vld [vmem:[%s2 + $0x8] sm:$0xff]
          %v1493 = vld [vmem:[%s2 + $0x10] sm:$0xf]
          %v1494 = vld [vmem:[%s2 + $0x14] sm:$0xff]
          %v1495 = vld [vmem:[%s2 + $0x1c] sm:$0xff]
          %v1496 = vld [vmem:[%s2 + $0x24] sm:$0xf]
          %v1497 = vld [vmem:[%s2 + $0x28] sm:$0xff]
          %v1498 = vld [vmem:[%s2 + $0x30] sm:$0xff]
          %v1499 = vld [vmem:[%s2 + $0x38] sm:$0xf]
          %v1500 = vld [vmem:[%s2 + $0x3c] sm:$0xff]
          %v1501 = vld [vmem:[%s2 + $0x44] sm:$0xff]
          %v1502 = vld [vmem:[%s2 + $0x4c] sm:$0xf]
          %v1503 = vld [vmem:[%s2 + $0x50] sm:$0xff]
          %v1504 = vld [vmem:[%s2 + $0x58] sm:$0xff]
          %v1505 = vld [vmem:[%s2 + $0x60] sm:$0xf]
          %v1506 = vld [vmem:[%s2 + $0x64] sm:$0xff]
          %v1507 = vld [vmem:[%s2 + $0x6c] sm:$0xff]
          %v1508 = vld [vmem:[%s2 + $0x74] sm:$0xf]
          %v1509 = vld [vmem:[%s2 + $0x78] sm:$0xff]
          %v1510 = vld [vmem:[%s2 + $0x80] sm:$0xff]
          %v1511 = vld [vmem:[%s2 + $0x88] sm:$0xf]
          %v1512 = vld [vmem:[%s2 + $0x8c] sm:$0xff]
          %v1513 = vld [vmem:[%s2 + $0x94] sm:$0xff]
          %v1514 = vld [vmem:[%s2 + $0x9c] sm:$0xf]
          %v1515 = vld [vmem:[#allocation3] sm:$0xff]
          %v1516 = vld [vmem:[#allocation3 + $0x8] sm:$0xff]
          %v1517 = vld [vmem:[#allocation3 + $0x18] sm:$0xff]
          %v1518 = vld [vmem:[#allocation3 + $0x20] sm:$0xff]
          %v1519 = vld [vmem:[#allocation3 + $0x30] sm:$0xff]
          %v1520 = vld [vmem:[#allocation3 + $0x38] sm:$0xff]
          %v1521 = vld [vmem:[#allocation3 + $0x48] sm:$0xff]
          %v1522 = vld [vmem:[#allocation3 + $0x50] sm:$0xff]
          %1531 = vrot.lane.b32.xlu0 %v1515, 7
          %v1532 = vpop.permute.xlu0 %1531
          %1533 = vrot.lane.b32.xlu0 %v1516, 7
          %v1534 = vpop.permute.xlu0 %1533
          %1535 = vrot.lane.b32.xlu0 %v1517, 7
          %v1536 = vpop.permute.xlu0 %1535
          %1537 = vrot.lane.b32.xlu0 %v1518, 7
          %v1538 = vpop.permute.xlu0 %1537
          %1539 = vrot.lane.b32.xlu0 %v1519, 7
          %v1540 = vpop.permute.xlu0 %1539
          %1541 = vrot.lane.b32.xlu0 %v1520, 7
          %v1542 = vpop.permute.xlu0 %1541
          %1543 = vrot.lane.b32.xlu0 %v1521, 7
          %v1544 = vpop.permute.xlu0 %1543
          %1545 = vrot.lane.b32.xlu0 %v1522, 7
          %v1546 = vpop.permute.xlu0 %1545
          %vm1547 = vcmask 56320
          %v1548 = vsel %vm1547, %v1532, %v1534
          %v1549 = vsel %vm1547, %v1536, %v1538
          %v1550 = vsel %vm1547, %v1540, %v1542
          %v1551 = vsel %vm1547, %v1544, %v1546
          %1556 = vst [vmem:[#allocation4] sm:$0xff] %v1548
          %1557 = vst [vmem:[#allocation4 + $0x8] sm:$0xff] %v1549
          %1558 = vst [vmem:[#allocation4 + $0x10] sm:$0xff] %v1550
          %1559 = vst [vmem:[#allocation4 + $0x18] sm:$0xff] %v1551
          %v1560 = vld [vmem:[#allocation3] sm:$0xff]
          %v1561 = vld [vmem:[#allocation3 + $0x8] sm:$0xff]
          %v1562 = vld [vmem:[#allocation3 + $0x18] sm:$0xff]
          %v1563 = vld [vmem:[#allocation3 + $0x20] sm:$0xff]
          %v1564 = vld [vmem:[#allocation3 + $0x30] sm:$0xff]
          %v1565 = vld [vmem:[#allocation3 + $0x38] sm:$0xff]
          %v1566 = vld [vmem:[#allocation3 + $0x48] sm:$0xff]
          %v1567 = vld [vmem:[#allocation3 + $0x50] sm:$0xff]
          %1576 = vrot.lane.b32.xlu0 %v1560, 6
          %v1577 = vpop.permute.xlu0 %1576
          %1578 = vrot.lane.b32.xlu0 %v1561, 6
          %v1579 = vpop.permute.xlu0 %1578
          %1580 = vrot.lane.b32.xlu0 %v1562, 6
          %v1581 = vpop.permute.xlu0 %1580
          %1582 = vrot.lane.b32.xlu0 %v1563, 6
          %v1583 = vpop.permute.xlu0 %1582
          %1584 = vrot.lane.b32.xlu0 %v1564, 6
          %v1585 = vpop.permute.xlu0 %1584
          %1586 = vrot.lane.b32.xlu0 %v1565, 6
          %v1587 = vpop.permute.xlu0 %1586
          %1588 = vrot.lane.b32.xlu0 %v1566, 6
          %v1589 = vpop.permute.xlu0 %1588
          %1590 = vrot.lane.b32.xlu0 %v1567, 6
          %v1591 = vpop.permute.xlu0 %1590
          %vm1592 = vcmask 48128
          %v1593 = vsel %vm1592, %v1577, %v1579
          %v1594 = vsel %vm1592, %v1581, %v1583
          %v1595 = vsel %vm1592, %v1585, %v1587
          %v1596 = vsel %vm1592, %v1589, %v1591
          %1601 = vst [vmem:[#allocation4 + $0x20] sm:$0xff] %v1593
          %1602 = vst [vmem:[#allocation4 + $0x28] sm:$0xff] %v1594
          %1603 = vst [vmem:[#allocation4 + $0x30] sm:$0xff] %v1595
          %1604 = vst [vmem:[#allocation4 + $0x38] sm:$0xff] %v1596
          %v1605 = vld [vmem:[#allocation3] sm:$0xff]
          %v1606 = vld [vmem:[#allocation3 + $0x8] sm:$0xff]
          %v1607 = vld [vmem:[#allocation3 + $0x18] sm:$0xff]
          %v1608 = vld [vmem:[#allocation3 + $0x20] sm:$0xff]
          %v1609 = vld [vmem:[#allocation3 + $0x30] sm:$0xff]
          %v1610 = vld [vmem:[#allocation3 + $0x38] sm:$0xff]
          %v1611 = vld [vmem:[#allocation3 + $0x48] sm:$0xff]
          %v1612 = vld [vmem:[#allocation3 + $0x50] sm:$0xff]
          %1621 = vrot.lane.b32.xlu0 %v1605, 5
          %v1622 = vpop.permute.xlu0 %1621
          %1623 = vrot.lane.b32.xlu0 %v1606, 5
          %v1624 = vpop.permute.xlu0 %1623
          %1625 = vrot.lane.b32.xlu0 %v1607, 5
          %v1626 = vpop.permute.xlu0 %1625
          %1627 = vrot.lane.b32.xlu0 %v1608, 5
          %v1628 = vpop.permute.xlu0 %1627
          %1629 = vrot.lane.b32.xlu0 %v1609, 5
          %v1630 = vpop.permute.xlu0 %1629
          %1631 = vrot.lane.b32.xlu0 %v1610, 5
          %v1632 = vpop.permute.xlu0 %1631
          %1633 = vrot.lane.b32.xlu0 %v1611, 5
          %v1634 = vpop.permute.xlu0 %1633
          %1635 = vrot.lane.b32.xlu0 %v1612, 5
          %v1636 = vpop.permute.xlu0 %1635
          %vm1637 = vcmask 39936
          %v1638 = vsel %vm1637, %v1622, %v1624
          %v1639 = vsel %vm1637, %v1626, %v1628
          %v1640 = vsel %vm1637, %v1630, %v1632
          %v1641 = vsel %vm1637, %v1634, %v1636
          %1646 = vst [vmem:[#allocation4 + $0x40] sm:$0xff] %v1638
          %1647 = vst [vmem:[#allocation4 + $0x48] sm:$0xff] %v1639
          %1648 = vst [vmem:[#allocation4 + $0x50] sm:$0xff] %v1640
          %1649 = vst [vmem:[#allocation4 + $0x58] sm:$0xff] %v1641
          %v1650 = vld [vmem:[#allocation3] sm:$0xff]
          %v1651 = vld [vmem:[#allocation3 + $0x8] sm:$0xff]
          %v1652 = vld [vmem:[#allocation3 + $0x18] sm:$0xff]
          %v1653 = vld [vmem:[#allocation3 + $0x20] sm:$0xff]
          %v1654 = vld [vmem:[#allocation3 + $0x30] sm:$0xff]
          %v1655 = vld [vmem:[#allocation3 + $0x38] sm:$0xff]
          %v1656 = vld [vmem:[#allocation3 + $0x48] sm:$0xff]
          %v1657 = vld [vmem:[#allocation3 + $0x50] sm:$0xff]
          %1666 = vrot.lane.b32.xlu0 %v1650, 1
          %v1667 = vpop.permute.xlu0 %1666
          %1668 = vrot.lane.b32.xlu0 %v1651, 1
          %v1669 = vpop.permute.xlu0 %1668
          %1670 = vrot.lane.b32.xlu0 %v1652, 1
          %v1671 = vpop.permute.xlu0 %1670
          %1672 = vrot.lane.b32.xlu0 %v1653, 1
          %v1673 = vpop.permute.xlu0 %1672
          %1674 = vrot.lane.b32.xlu0 %v1654, 1
          %v1675 = vpop.permute.xlu0 %1674
          %1676 = vrot.lane.b32.xlu0 %v1655, 1
          %v1677 = vpop.permute.xlu0 %1676
          %1678 = vrot.lane.b32.xlu0 %v1656, 1
          %v1679 = vpop.permute.xlu0 %1678
          %1680 = vrot.lane.b32.xlu0 %v1657, 1
          %v1681 = vpop.permute.xlu0 %1680
          %v1682 = vsel %vm672, %v1667, %v1669
          %v1683 = vsel %vm672, %v1671, %v1673
          %v1684 = vsel %vm672, %v1675, %v1677
          %v1685 = vsel %vm672, %v1679, %v1681
          %1690 = vst [vmem:[#allocation4 + $0x60] sm:$0xff] %v1682
          %1691 = vst [vmem:[#allocation4 + $0x68] sm:$0xff] %v1683
          %1692 = vst [vmem:[#allocation4 + $0x70] sm:$0xff] %v1684
          %1693 = vst [vmem:[#allocation4 + $0x78] sm:$0xff] %v1685
          %v1694 = vld [vmem:[#allocation3 + $0x8] sm:$0xff]
          %v1695 = vld [vmem:[#allocation3 + $0x20] sm:$0xff]
          %v1696 = vld [vmem:[#allocation3 + $0x38] sm:$0xff]
          %v1697 = vld [vmem:[#allocation3 + $0x50] sm:$0xff]
          %1698 = vst [vmem:[#allocation4 + $0x80] sm:$0xff] %v1694
          %1699 = vst [vmem:[#allocation4 + $0x88] sm:$0xff] %v1695
          %1700 = vst [vmem:[#allocation4 + $0x90] sm:$0xff] %v1696
          %1701 = vst [vmem:[#allocation4 + $0x98] sm:$0xff] %v1697
          %v1702 = vld [vmem:[#allocation3 + $0x8] sm:$0xff]
          %v1703 = vld [vmem:[#allocation3 + $0x10] sm:$0xff]
          %v1704 = vld [vmem:[#allocation3 + $0x20] sm:$0xff]
          %v1705 = vld [vmem:[#allocation3 + $0x28] sm:$0xff]
          %v1706 = vld [vmem:[#allocation3 + $0x38] sm:$0xff]
          %v1707 = vld [vmem:[#allocation3 + $0x40] sm:$0xff]
          %v1708 = vld [vmem:[#allocation3 + $0x50] sm:$0xff]
          %v1709 = vld [vmem:[#allocation3 + $0x58] sm:$0xff]
          %1718 = vrot.lane.b32.xlu0 %v1702, 127
          %v1719 = vpop.permute.xlu0 %1718
          %1720 = vrot.lane.b32.xlu0 %v1703, 127
          %v1721 = vpop.permute.xlu0 %1720
          %1722 = vrot.lane.b32.xlu0 %v1704, 127
          %v1723 = vpop.permute.xlu0 %1722
          %1724 = vrot.lane.b32.xlu0 %v1705, 127
          %v1725 = vpop.permute.xlu0 %1724
          %1726 = vrot.lane.b32.xlu0 %v1706, 127
          %v1727 = vpop.permute.xlu0 %1726
          %1728 = vrot.lane.b32.xlu0 %v1707, 127
          %v1729 = vpop.permute.xlu0 %1728
          %1730 = vrot.lane.b32.xlu0 %v1708, 127
          %v1731 = vpop.permute.xlu0 %1730
          %1732 = vrot.lane.b32.xlu0 %v1709, 127
          %v1733 = vpop.permute.xlu0 %1732
          %v1734 = vsel %vm725, %v1719, %v1721
          %v1735 = vsel %vm725, %v1723, %v1725
          %v1736 = vsel %vm725, %v1727, %v1729
          %v1737 = vsel %vm725, %v1731, %v1733
          %1742 = vst [vmem:[#allocation4 + $0xa0] sm:$0xff] %v1734
          %1743 = vst [vmem:[#allocation4 + $0xa8] sm:$0xff] %v1735
          %1744 = vst [vmem:[#allocation4 + $0xb0] sm:$0xff] %v1736
          %1745 = vst [vmem:[#allocation4 + $0xb8] sm:$0xff] %v1737
          %v1746 = vld [vmem:[#allocation3 + $0x8] sm:$0xff]
          %v1747 = vld [vmem:[#allocation3 + $0x10] sm:$0xff]
          %v1748 = vld [vmem:[#allocation3 + $0x20] sm:$0xff]
          %v1749 = vld [vmem:[#allocation3 + $0x28] sm:$0xff]
          %v1750 = vld [vmem:[#allocation3 + $0x38] sm:$0xff]
          %v1751 = vld [vmem:[#allocation3 + $0x40] sm:$0xff]
          %v1752 = vld [vmem:[#allocation3 + $0x50] sm:$0xff]
          %v1753 = vld [vmem:[#allocation3 + $0x58] sm:$0xff]
          %1762 = vrot.lane.b32.xlu0 %v1746, 123
          %v1763 = vpop.permute.xlu0 %1762
          %1764 = vrot.lane.b32.xlu0 %v1747, 123
          %v1765 = vpop.permute.xlu0 %1764
          %1766 = vrot.lane.b32.xlu0 %v1748, 123
          %v1767 = vpop.permute.xlu0 %1766
          %1768 = vrot.lane.b32.xlu0 %v1749, 123
          %v1769 = vpop.permute.xlu0 %1768
          %1770 = vrot.lane.b32.xlu0 %v1750, 123
          %v1771 = vpop.permute.xlu0 %1770
          %1772 = vrot.lane.b32.xlu0 %v1751, 123
          %v1773 = vpop.permute.xlu0 %1772
          %1774 = vrot.lane.b32.xlu0 %v1752, 123
          %v1775 = vpop.permute.xlu0 %1774
          %1776 = vrot.lane.b32.xlu0 %v1753, 123
          %v1777 = vpop.permute.xlu0 %1776
          %vm1778 = vcmask 1006592
          %v1779 = vsel %vm1778, %v1763, %v1765
          %v1780 = vsel %vm1778, %v1767, %v1769
          %v1781 = vsel %vm1778, %v1771, %v1773
          %v1782 = vsel %vm1778, %v1775, %v1777
          %1787 = vst [vmem:[#allocation4 + $0xc0] sm:$0xff] %v1779
          %1788 = vst [vmem:[#allocation4 + $0xc8] sm:$0xff] %v1780
          %1789 = vst [vmem:[#allocation4 + $0xd0] sm:$0xff] %v1781
          %1790 = vst [vmem:[#allocation4 + $0xd8] sm:$0xff] %v1782
          %v1791 = vld [vmem:[#allocation3 + $0x8] sm:$0xff]
          %v1792 = vld [vmem:[#allocation3 + $0x10] sm:$0xff]
          %v1793 = vld [vmem:[#allocation3 + $0x20] sm:$0xff]
          %v1794 = vld [vmem:[#allocation3 + $0x28] sm:$0xff]
          %v1795 = vld [vmem:[#allocation3 + $0x38] sm:$0xff]
          %v1796 = vld [vmem:[#allocation3 + $0x40] sm:$0xff]
          %v1797 = vld [vmem:[#allocation3 + $0x50] sm:$0xff]
          %v1798 = vld [vmem:[#allocation3 + $0x58] sm:$0xff]
          %1807 = vrot.lane.b32.xlu0 %v1791, 122
          %v1808 = vpop.permute.xlu0 %1807
          %1809 = vrot.lane.b32.xlu0 %v1792, 122
          %v1810 = vpop.permute.xlu0 %1809
          %1811 = vrot.lane.b32.xlu0 %v1793, 122
          %v1812 = vpop.permute.xlu0 %1811
          %1813 = vrot.lane.b32.xlu0 %v1794, 122
          %v1814 = vpop.permute.xlu0 %1813
          %1815 = vrot.lane.b32.xlu0 %v1795, 122
          %v1816 = vpop.permute.xlu0 %1815
          %1817 = vrot.lane.b32.xlu0 %v1796, 122
          %v1818 = vpop.permute.xlu0 %1817
          %1819 = vrot.lane.b32.xlu0 %v1797, 122
          %v1820 = vpop.permute.xlu0 %1819
          %1821 = vrot.lane.b32.xlu0 %v1798, 122
          %v1822 = vpop.permute.xlu0 %1821
          %vm1823 = vcmask 998400
          %v1824 = vsel %vm1823, %v1808, %v1810
          %v1825 = vsel %vm1823, %v1812, %v1814
          %v1826 = vsel %vm1823, %v1816, %v1818
          %v1827 = vsel %vm1823, %v1820, %v1822
          %1832 = vst [vmem:[#allocation4 + $0xe0] sm:$0xff] %v1824
          %1833 = vst [vmem:[#allocation4 + $0xe8] sm:$0xff] %v1825
          %1834 = vst [vmem:[#allocation4 + $0xf0] sm:$0xff] %v1826
          %1835 = vst [vmem:[#allocation4 + $0xf8] sm:$0xff] %v1827
          %v1836 = vld [vmem:[#allocation3 + $0x8] sm:$0xff]
          %v1837 = vld [vmem:[#allocation3 + $0x10] sm:$0xff]
          %v1838 = vld [vmem:[#allocation3 + $0x20] sm:$0xff]
          %v1839 = vld [vmem:[#allocation3 + $0x28] sm:$0xff]
          %v1840 = vld [vmem:[#allocation3 + $0x38] sm:$0xff]
          %v1841 = vld [vmem:[#allocation3 + $0x40] sm:$0xff]
          %v1842 = vld [vmem:[#allocation3 + $0x50] sm:$0xff]
          %v1843 = vld [vmem:[#allocation3 + $0x58] sm:$0xff]
          %1852 = vrot.lane.b32.xlu0 %v1836, 121
          %v1853 = vpop.permute.xlu0 %1852
          %1854 = vrot.lane.b32.xlu0 %v1837, 121
          %v1855 = vpop.permute.xlu0 %1854
          %1856 = vrot.lane.b32.xlu0 %v1838, 121
          %v1857 = vpop.permute.xlu0 %1856
          %1858 = vrot.lane.b32.xlu0 %v1839, 121
          %v1859 = vpop.permute.xlu0 %1858
          %1860 = vrot.lane.b32.xlu0 %v1840, 121
          %v1861 = vpop.permute.xlu0 %1860
          %1862 = vrot.lane.b32.xlu0 %v1841, 121
          %v1863 = vpop.permute.xlu0 %1862
          %1864 = vrot.lane.b32.xlu0 %v1842, 121
          %v1865 = vpop.permute.xlu0 %1864
          %1866 = vrot.lane.b32.xlu0 %v1843, 121
          %v1867 = vpop.permute.xlu0 %1866
          %vm1868 = vcmask 990208
          %v1869 = vsel %vm1868, %v1853, %v1855
          %v1870 = vsel %vm1868, %v1857, %v1859
          %v1871 = vsel %vm1868, %v1861, %v1863
          %v1872 = vsel %vm1868, %v1865, %v1867
          %1877 = vst [vmem:[#allocation4 + $0x100] sm:$0xff] %v1869
          %1878 = vst [vmem:[#allocation4 + $0x108] sm:$0xff] %v1870
          %1879 = vst [vmem:[#allocation4 + $0x110] sm:$0xff] %v1871
          %1880 = vst [vmem:[#allocation4 + $0x118] sm:$0xff] %v1872
          %v1881 = vld [vmem:[#allocation4] sm:$0xff]
          %v1882 = vld [vmem:[#allocation4 + $0x8] sm:$0xff]
          %v1883 = vld [vmem:[#allocation4 + $0x10] sm:$0xff]
          %v1884 = vld [vmem:[#allocation4 + $0x18] sm:$0xff]
          %v1885 = vld [vmem:[#allocation4 + $0x20] sm:$0xff]
          %v1886 = vld [vmem:[#allocation4 + $0x28] sm:$0xff]
          %v1887 = vld [vmem:[#allocation4 + $0x30] sm:$0xff]
          %v1888 = vld [vmem:[#allocation4 + $0x38] sm:$0xff]
          %v1889 = vld [vmem:[#allocation4 + $0x40] sm:$0xff]
          %v1890 = vld [vmem:[#allocation4 + $0x48] sm:$0xff]
          %v1891 = vld [vmem:[#allocation4 + $0x50] sm:$0xff]
          %v1892 = vld [vmem:[#allocation4 + $0x58] sm:$0xff]
          %v1893 = vld [vmem:[#allocation4 + $0x60] sm:$0xff]
          %v1894 = vld [vmem:[#allocation4 + $0x68] sm:$0xff]
          %v1895 = vld [vmem:[#allocation4 + $0x70] sm:$0xff]
          %v1896 = vld [vmem:[#allocation4 + $0x78] sm:$0xff]
          %v1897 = vld [vmem:[#allocation4 + $0x80] sm:$0xff]
          %v1898 = vld [vmem:[#allocation4 + $0x88] sm:$0xff]
          %v1899 = vld [vmem:[#allocation4 + $0x90] sm:$0xff]
          %v1900 = vld [vmem:[#allocation4 + $0x98] sm:$0xff]
          %v1901 = vld [vmem:[#allocation4 + $0xa0] sm:$0xff]
          %v1902 = vld [vmem:[#allocation4 + $0xa8] sm:$0xff]
          %v1903 = vld [vmem:[#allocation4 + $0xb0] sm:$0xff]
          %v1904 = vld [vmem:[#allocation4 + $0xb8] sm:$0xff]
          %v1905 = vld [vmem:[#allocation4 + $0xc0] sm:$0xff]
          %v1906 = vld [vmem:[#allocation4 + $0xc8] sm:$0xff]
          %v1907 = vld [vmem:[#allocation4 + $0xd0] sm:$0xff]
          %v1908 = vld [vmem:[#allocation4 + $0xd8] sm:$0xff]
          %v1909 = vld [vmem:[#allocation4 + $0xe0] sm:$0xff]
          %v1910 = vld [vmem:[#allocation4 + $0xe8] sm:$0xff]
          %v1911 = vld [vmem:[#allocation4 + $0xf0] sm:$0xff]
          %v1912 = vld [vmem:[#allocation4 + $0xf8] sm:$0xff]
          %v1913 = vld [vmem:[#allocation4 + $0x100] sm:$0xff]
          %v1914 = vld [vmem:[#allocation4 + $0x108] sm:$0xff]
          %v1915 = vld [vmem:[#allocation4 + $0x110] sm:$0xff]
          %v1916 = vld [vmem:[#allocation4 + $0x118] sm:$0xff]
          %v1917 = vld [vmem:[%s4] sm:$0xff]
          %v1918 = vld [vmem:[%s4 + $0x8] sm:$0xff]
          %v1919 = vld [vmem:[%s4 + $0x10] sm:$0xff]
          %v1920 = vld [vmem:[%s4 + $0x18] sm:$0xff]
          %v1921 = vld [vmem:[%s4 + $0x20] sm:$0xff]
          %v1922 = vld [vmem:[%s4 + $0x28] sm:$0xff]
          %v1923 = vld [vmem:[%s4 + $0x30] sm:$0xff]
          %v1924 = vld [vmem:[%s4 + $0x38] sm:$0xff]
          %1926 = vset.pattern.permute.xlu0 1
          %1927 = vperm.xlu0 %1926, %v1917
          %v1928 = vpop.permute.xlu0 %1927
          %1931 = vset.pattern.permute.xlu0 1
          %1932 = vperm.xlu0 %1931, %v1918
          %v1933 = vpop.permute.xlu0 %1932
          %1936 = vset.pattern.permute.xlu0 1
          %1937 = vperm.xlu0 %1936, %v1919
          %v1938 = vpop.permute.xlu0 %1937
          %1941 = vset.pattern.permute.xlu0 1
          %1942 = vperm.xlu0 %1941, %v1920
          %v1943 = vpop.permute.xlu0 %1942
          %1946 = vset.pattern.permute.xlu0 1
          %1947 = vperm.xlu0 %1946, %v1921
          %v1948 = vpop.permute.xlu0 %1947
          %1951 = vset.pattern.permute.xlu0 1
          %1952 = vperm.xlu0 %1951, %v1922
          %v1953 = vpop.permute.xlu0 %1952
          %1956 = vset.pattern.permute.xlu0 1
          %1957 = vperm.xlu0 %1956, %v1923
          %v1958 = vpop.permute.xlu0 %1957
          %1961 = vset.pattern.permute.xlu0 1
          %1962 = vperm.xlu0 %1961, %v1924
          %v1963 = vpop.permute.xlu0 %1962
          %v1989 = vunpack.c.l.b16 %v1491
          %v1990 = vunpack.c.h.b16 %v1491
          %v1991 = vunpack.c.l.b16 %v1492
          %v1992 = vunpack.c.h.b16 %v1492
          %v1993 = vunpack.c.l.b16 %v1493
          %v1994 = vunpack.c.l.b16 %v1494
          %v1995 = vunpack.c.h.b16 %v1494
          %v1996 = vunpack.c.l.b16 %v1495
          %v1997 = vunpack.c.h.b16 %v1495
          %v1998 = vunpack.c.l.b16 %v1496
          %v1999 = vunpack.c.l.b16 %v1497
          %v2000 = vunpack.c.h.b16 %v1497
          %v2001 = vunpack.c.l.b16 %v1498
          %v2002 = vunpack.c.h.b16 %v1498
          %v2003 = vunpack.c.l.b16 %v1499
          %v2004 = vunpack.c.l.b16 %v1500
          %v2005 = vunpack.c.h.b16 %v1500
          %v2006 = vunpack.c.l.b16 %v1501
          %v2007 = vunpack.c.h.b16 %v1501
          %v2008 = vunpack.c.l.b16 %v1502
          %v2009 = vunpack.c.l.b16 %v1503
          %v2010 = vunpack.c.h.b16 %v1503
          %v2011 = vunpack.c.l.b16 %v1504
          %v2012 = vunpack.c.h.b16 %v1504
          %v2013 = vunpack.c.l.b16 %v1505
          %v2014 = vunpack.c.l.b16 %v1506
          %v2015 = vunpack.c.h.b16 %v1506
          %v2016 = vunpack.c.l.b16 %v1507
          %v2017 = vunpack.c.h.b16 %v1507
          %v2018 = vunpack.c.l.b16 %v1508
          %v2019 = vunpack.c.l.b16 %v1509
          %v2020 = vunpack.c.h.b16 %v1509
          %v2021 = vunpack.c.l.b16 %v1510
          %v2022 = vunpack.c.h.b16 %v1510
          %v2023 = vunpack.c.l.b16 %v1511
          %v2024 = vunpack.c.l.b16 %v1512
          %v2025 = vunpack.c.h.b16 %v1512
          %v2026 = vunpack.c.l.b16 %v1513
          %v2027 = vunpack.c.h.b16 %v1513
          %v2028 = vunpack.c.l.b16 %v1514
          %v2029 = vpack.c.b16 %v1994, %v1989
          %v2030 = vpack.c.b16 %v1995, %v1990
          %v2031 = vpack.c.b16 %v1996, %v1991
          %v2032 = vpack.c.b16 %v1997, %v1992
          %v2033 = vpack.c.b16 %v1998, %v1993
          %v2034 = vpack.c.b16 %v2004, %v1999
          %v2035 = vpack.c.b16 %v2005, %v2000
          %v2036 = vpack.c.b16 %v2006, %v2001
          %v2037 = vpack.c.b16 %v2007, %v2002
          %v2038 = vpack.c.b16 %v2008, %v2003
          %v2039 = vpack.c.b16 %v2014, %v2009
          %v2040 = vpack.c.b16 %v2015, %v2010
          %v2041 = vpack.c.b16 %v2016, %v2011
          %v2042 = vpack.c.b16 %v2017, %v2012
          %v2043 = vpack.c.b16 %v2018, %v2013
          %v2044 = vpack.c.b16 %v2024, %v2019
          %v2045 = vpack.c.b16 %v2025, %v2020
          %v2046 = vpack.c.b16 %v2026, %v2021
          %v2047 = vpack.c.b16 %v2027, %v2022
          %v2048 = vpack.c.b16 %v2028, %v2023
          %vm2065 = vcmask 523264
          %v2067 = vsel %vm2065, %v2033, 0
          %v2070 = vsel %vm2065, %v2038, 0
          %v2073 = vsel %vm2065, %v2043, 0
          %v2076 = vsel %vm2065, %v2048, 0
          %2078 = vmatprep.subr.bf16.mxu0 0
          %2079 = vmatpush1.bf16.msra.mxu0 %v1881
          %2080 = vmatprep.subr.bf16.mxu0 0
          %2081 = vmatpush1.bf16.msra.mxu0 %v1882
          %2082 = vmatprep.subr.bf16.mxu0 0
          %2083 = vmatpush1.bf16.msra.mxu0 %v1883
          %2084 = vmatprep.subr.bf16.mxu0 0
          %2085 = vmatpush1.bf16.msra.mxu0 %v1884
          %2086 = vmatprep.subr.bf16.mxu0 0
          %2087 = vmatpush1.bf16.msra.mxu0 %v1885
          %2088 = vmatprep.subr.bf16.mxu0 0
          %2089 = vmatpush1.bf16.msra.mxu0 %v1886
          %2090 = vmatprep.subr.bf16.mxu0 0
          %2091 = vmatpush1.bf16.msra.mxu0 %v1887
          %2092 = vmatprep.subr.bf16.mxu0 0
          %2093 = vmatpush1.bf16.msra.mxu0 %v1888
          %2094 = vmatprep.subr.bf16.mxu0 0
          %2095 = vmatpush1.bf16.msra.mxu0 %v1889
          %2096 = vmatprep.subr.bf16.mxu0 0
          %2097 = vmatpush1.bf16.msra.mxu0 %v1890
          %2098 = vmatprep.subr.bf16.mxu0 0
          %2099 = vmatpush1.bf16.msra.mxu0 %v1891
          %2100 = vmatprep.subr.bf16.mxu0 0
          %2101 = vmatpush1.bf16.msra.mxu0 %v1892
          %2102 = vmatprep.subr.bf16.mxu0 0
          %2103 = vmatpush1.bf16.msra.mxu0 %v1893
          %2104 = vmatprep.subr.bf16.mxu0 0
          %2105 = vmatpush1.bf16.msra.mxu0 %v1894
          %2106 = vmatprep.subr.bf16.mxu0 0
          %2107 = vmatpush1.bf16.msra.mxu0 %v1895
          %2108 = vmatprep.subr.bf16.mxu0 0
          %2109 = vmatpush1.bf16.msra.mxu0 %v1896
          %2110 = vmatprep.mubr.bf16.mxu0 %v2030
          %2111 = vmatmul.mubr.bf16.gmra.mrb[0].mxu0 %v2029
          %v2112 = vpop.f32.mrb[0].mxu0
          %v2113 = vadd.f32 %v1928, %v2112
          %v2114 = vpop.f32.mrb[0].mxu0
          %v2115 = vpop.f32.mrb[0].mxu0
          %v2116 = vadd.f32 %v1933, %v2115
          %v2117 = vpop.f32.mrb[0].mxu0
          %2118 = vmatprep.mubr.bf16.mxu0 %v2035
          %2119 = vmatmul.mubr.bf16.gmra.mrb[0].mxu0 %v2034
          %v2120 = vpop.f32.mrb[0].mxu0
          %v2121 = vadd.f32 %v1938, %v2120
          %v2122 = vpop.f32.mrb[0].mxu0
          %v2123 = vpop.f32.mrb[0].mxu0
          %v2124 = vadd.f32 %v1943, %v2123
          %v2125 = vpop.f32.mrb[0].mxu0
          %2126 = vmatprep.mubr.bf16.mxu0 %v2040
          %2127 = vmatmul.mubr.bf16.gmra.mrb[0].mxu0 %v2039
          %v2128 = vpop.f32.mrb[0].mxu0
          %v2129 = vadd.f32 %v1948, %v2128
          %v2130 = vpop.f32.mrb[0].mxu0
          %v2131 = vpop.f32.mrb[0].mxu0
          %v2132 = vadd.f32 %v1953, %v2131
          %v2133 = vpop.f32.mrb[0].mxu0
          %2134 = vmatprep.mubr.bf16.mxu0 %v2045
          %2135 = vmatmul.mubr.bf16.gmra.mrb[0].mxu0 %v2044
          %v2136 = vpop.f32.mrb[0].mxu0
          %v2137 = vadd.f32 %v1958, %v2136
          %v2138 = vpop.f32.mrb[0].mxu0
          %v2139 = vpop.f32.mrb[0].mxu0
          %v2140 = vadd.f32 %v1963, %v2139
          %v2141 = vpop.f32.mrb[0].mxu0
          %2142 = vdwg.mxu0
          %2143 = vmatprep.subr.bf16.mxu0 0
          %2144 = vmatpush1.bf16.msra.mxu0 %v1897
          %2145 = vmatprep.subr.bf16.mxu0 0
          %2146 = vmatpush1.bf16.msra.mxu0 %v1898
          %2147 = vmatprep.subr.bf16.mxu0 0
          %2148 = vmatpush1.bf16.msra.mxu0 %v1899
          %2149 = vmatprep.subr.bf16.mxu0 0
          %2150 = vmatpush1.bf16.msra.mxu0 %v1900
          %2151 = vmatprep.subr.bf16.mxu0 0
          %2152 = vmatpush1.bf16.msra.mxu0 %v1901
          %2153 = vmatprep.subr.bf16.mxu0 0
          %2154 = vmatpush1.bf16.msra.mxu0 %v1902
          %2155 = vmatprep.subr.bf16.mxu0 0
          %2156 = vmatpush1.bf16.msra.mxu0 %v1903
          %2157 = vmatprep.subr.bf16.mxu0 0
          %2158 = vmatpush1.bf16.msra.mxu0 %v1904
          %2159 = vmatprep.subr.bf16.mxu0 0
          %2160 = vmatpush1.bf16.msra.mxu0 %v1905
          %2161 = vmatprep.subr.bf16.mxu0 0
          %2162 = vmatpush1.bf16.msra.mxu0 %v1906
          %2163 = vmatprep.subr.bf16.mxu0 0
          %2164 = vmatpush1.bf16.msra.mxu0 %v1907
          %2165 = vmatprep.subr.bf16.mxu0 0
          %2166 = vmatpush1.bf16.msra.mxu0 %v1908
          %2167 = vmatprep.subr.bf16.mxu0 0
          %2168 = vmatpush1.bf16.msra.mxu0 %v1909
          %2169 = vmatprep.subr.bf16.mxu0 0
          %2170 = vmatpush1.bf16.msra.mxu0 %v1910
          %2171 = vmatprep.subr.bf16.mxu0 0
          %2172 = vmatpush1.bf16.msra.mxu0 %v1911
          %2173 = vmatprep.subr.bf16.mxu0 0
          %2174 = vmatpush1.bf16.msra.mxu0 %v1912
          %2175 = vmatprep.mubr.bf16.mxu0 %v2032
          %2176 = vmatmul.mubr.bf16.gmra.mrb[0].mxu0 %v2031
          %v2177 = vpop.f32.mrb[0].mxu0
          %v2178 = vadd.f32 %v2113, %v2177
          %v2179 = vpop.f32.mrb[0].mxu0
          %v2180 = vpop.f32.mrb[0].mxu0
          %v2181 = vadd.f32 %v2116, %v2180
          %v2182 = vpop.f32.mrb[0].mxu0
          %2183 = vmatprep.mubr.bf16.mxu0 %v2037
          %2184 = vmatmul.mubr.bf16.gmra.mrb[0].mxu0 %v2036
          %v2185 = vpop.f32.mrb[0].mxu0
          %v2186 = vadd.f32 %v2121, %v2185
          %v2187 = vpop.f32.mrb[0].mxu0
          %v2188 = vpop.f32.mrb[0].mxu0
          %v2189 = vadd.f32 %v2124, %v2188
          %v2190 = vpop.f32.mrb[0].mxu0
          %2191 = vmatprep.mubr.bf16.mxu0 %v2042
          %2192 = vmatmul.mubr.bf16.gmra.mrb[0].mxu0 %v2041
          %v2193 = vpop.f32.mrb[0].mxu0
          %v2194 = vadd.f32 %v2129, %v2193
          %v2195 = vpop.f32.mrb[0].mxu0
          %v2196 = vpop.f32.mrb[0].mxu0
          %v2197 = vadd.f32 %v2132, %v2196
          %v2198 = vpop.f32.mrb[0].mxu0
          %2199 = vmatprep.mubr.bf16.mxu0 %v2047
          %2200 = vmatmul.mubr.bf16.gmra.mrb[0].mxu0 %v2046
          %v2201 = vpop.f32.mrb[0].mxu0
          %v2202 = vadd.f32 %v2137, %v2201
          %v2203 = vpop.f32.mrb[0].mxu0
          %v2204 = vpop.f32.mrb[0].mxu0
          %v2205 = vadd.f32 %v2140, %v2204
          %v2206 = vpop.f32.mrb[0].mxu0
          %2207 = vdwg.mxu0
          %2208 = vmatprep.subr.bf16.mxu0 0
          %2209 = vmatpush1.bf16.msra.mxu0 %v1913
          %2210 = vmatprep.subr.bf16.mxu0 0
          %2211 = vmatpush1.bf16.msra.mxu0 %v1914
          %2212 = vmatprep.subr.bf16.mxu0 0
          %2213 = vmatpush1.bf16.msra.mxu0 %v1915
          %2214 = vmatprep.subr.bf16.mxu0 0
          %2215 = vmatpush1.bf16.msra.mxu0 %v1916
          %2216 = vmatprep.subr.bf16.mxu0 0
          %2217 = vmatpush1.bf16.msra.mxu0 0
          %2218 = vmatprep.subr.bf16.mxu0 0
          %2219 = vmatpush1.bf16.msra.mxu0 0
          %2220 = vmatprep.subr.bf16.mxu0 0
          %2221 = vmatpush1.bf16.msra.mxu0 0
          %2222 = vmatprep.subr.bf16.mxu0 0
          %2223 = vmatpush1.bf16.msra.mxu0 0
          %2224 = vmatprep.subr.bf16.mxu0 0
          %2225 = vmatpush1.bf16.msra.mxu0 0
          %2226 = vmatprep.subr.bf16.mxu0 0
          %2227 = vmatpush1.bf16.msra.mxu0 0
          %2228 = vmatprep.subr.bf16.mxu0 0
          %2229 = vmatpush1.bf16.msra.mxu0 0
          %2230 = vmatprep.subr.bf16.mxu0 0
          %2231 = vmatpush1.bf16.msra.mxu0 0
          %2232 = vmatprep.subr.bf16.mxu0 0
          %2233 = vmatpush1.bf16.msra.mxu0 0
          %2234 = vmatprep.subr.bf16.mxu0 0
          %2235 = vmatpush1.bf16.msra.mxu0 0
          %2236 = vmatprep.subr.bf16.mxu0 0
          %2237 = vmatpush1.bf16.msra.mxu0 0
          %2238 = vmatprep.subr.bf16.mxu0 0
          %2239 = vmatpush1.bf16.msra.mxu0 0
          %2240 = vmatprep.mubr.bf16.mxu0 0
          %2241 = vmatmul.mubr.bf16.gmra.mrb[0].mxu0 %v2067
          %v2242 = vpop.f32.mrb[0].mxu0
          %v2243 = vadd.f32 %v2178, %v2242
          %v2244 = vpop.f32.mrb[0].mxu0
          %v2245 = vpop.f32.mrb[0].mxu0
          %v2246 = vadd.f32 %v2181, %v2245
          %v2247 = vpop.f32.mrb[0].mxu0
          %2248 = vmatprep.mubr.bf16.mxu0 0
          %2249 = vmatmul.mubr.bf16.gmra.mrb[0].mxu0 %v2070
          %v2250 = vpop.f32.mrb[0].mxu0
          %v2251 = vadd.f32 %v2186, %v2250
          %v2252 = vpop.f32.mrb[0].mxu0
          %v2253 = vpop.f32.mrb[0].mxu0
          %v2254 = vadd.f32 %v2189, %v2253
          %v2255 = vpop.f32.mrb[0].mxu0
          %2256 = vmatprep.mubr.bf16.mxu0 0
          %2257 = vmatmul.mubr.bf16.gmra.mrb[0].mxu0 %v2073
          %v2258 = vpop.f32.mrb[0].mxu0
          %v2259 = vadd.f32 %v2194, %v2258
          %v2260 = vpop.f32.mrb[0].mxu0
          %v2261 = vpop.f32.mrb[0].mxu0
          %v2262 = vadd.f32 %v2197, %v2261
          %v2263 = vpop.f32.mrb[0].mxu0
          %2264 = vmatprep.mubr.bf16.mxu0 0
          %2265 = vmatmul.mubr.bf16.gmra.mrb[0].mxu0 %v2076
          %v2266 = vpop.f32.mrb[0].mxu0
          %v2267 = vadd.f32 %v2202, %v2266
          %v2268 = vpop.f32.mrb[0].mxu0
          %v2269 = vpop.f32.mrb[0].mxu0
          %v2270 = vadd.f32 %v2205, %v2269
          %v2271 = vpop.f32.mrb[0].mxu0
          %2272 = vdwg.mxu0
          %v2273 = vadd.f32 %v2243, %v1461
          %v2274 = vadd.f32 %v2246, %v1464
          %v2275 = vadd.f32 %v2251, %v1469
          %v2276 = vadd.f32 %v2254, %v1472
          %v2277 = vadd.f32 %v2259, %v1477
          %v2278 = vadd.f32 %v2262, %v1480
          %v2279 = vadd.f32 %v2267, %v1485
          %v2280 = vadd.f32 %v2270, %v1488
          %v2281 = vmax.f32 %v2273, 0.0
          %v2282 = vmax.f32 %v2274, 0.0
          %v2283 = vmax.f32 %v2275, 0.0
          %v2284 = vmax.f32 %v2276, 0.0
          %v2285 = vmax.f32 %v2277, 0.0
          %v2286 = vmax.f32 %v2278, 0.0
          %v2287 = vmax.f32 %v2279, 0.0
          %v2288 = vmax.f32 %v2280, 0.0
          %v2290 = vlaneseq
          %v2291 = vshrl.u32 %v2290, 7
          %v2292 = vsub.s32 0, %v2291
          %v2293 = vrot.slane %v494, %v2292
          %v2295 = vmul.f32 %v2281, %v2293
          %v2296 = vmul.f32 %v2282, %v2293
          %v2297 = vmul.f32 %v2283, %v2293
          %v2298 = vmul.f32 %v2284, %v2293
          %v2299 = vmul.f32 %v2285, %v2293
          %v2300 = vmul.f32 %v2286, %v2293
          %v2301 = vmul.f32 %v2287, %v2293
          %v2302 = vmul.f32 %v2288, %v2293
          %v2303 = vpack.c.bf16 %v2296, %v2295
          %v2304 = vpack.c.bf16 %v2298, %v2297
          %v2305 = vpack.c.bf16 %v2300, %v2299
          %v2306 = vpack.c.bf16 %v2302, %v2301
          %2307 = vst [vmem:[#allocation2 + $0x8] sm:$0xff] %v2303
          %2308 = vst [vmem:[#allocation2 + $0x20] sm:$0xff] %v2304
          %2309 = vst [vmem:[#allocation2 + $0x38] sm:$0xff] %v2305
          %2310 = vst [vmem:[#allocation2 + $0x50] sm:$0xff] %v2306
        $region88: #{resnet56_forward.5} parent=71 // pred_fallthru
          _
        %p2311 = scmp.gt.s32.totalorder %s33, 0
        // Predicated region
        $region89: #{resnet56_forward.5} parent=71 // pred_check
          %p2312 = pneg %p2311
        $region90: #{resnet56_forward.5} parent=71 // pred_check_branch
          %2314 = sbr.rel (%p2312) target = $region92
        $region91: #{resnet56_forward.5} parent=71 // pred_region
          %s2315 = ssub.s32 %s33, 1
          %p2316 = scmp.gt.s32.totalorder %s2315, 0
          %s2317 = scalar_select %p2316, %s2315, 0
          %s2318 = smul.u32 %s2317, 40
          %s2319 = smul.addr %s2318, 4
          %s2320 = scalar_lea.vmem %s6, %s2319
          %v2321 = vld [vmem:[%s2320] sm:$0xff]
          %v2322 = vld [vmem:[%s2320 + $0x8] sm:$0xff]
          %v2323 = vld [vmem:[%s2320 + $0x10] sm:$0xf]
          %v2324 = vld [vmem:[%s2320 + $0x14] sm:$0xff]
          %v2325 = vld [vmem:[%s2320 + $0x1c] sm:$0xff]
          %v2326 = vld [vmem:[%s2320 + $0x24] sm:$0xf]
          %v2327 = vld [vmem:[%s2320 + $0x28] sm:$0xff]
          %v2328 = vld [vmem:[%s2320 + $0x30] sm:$0xff]
          %v2329 = vld [vmem:[%s2320 + $0x38] sm:$0xf]
          %v2330 = vld [vmem:[%s2320 + $0x3c] sm:$0xff]
          %v2331 = vld [vmem:[%s2320 + $0x44] sm:$0xff]
          %v2332 = vld [vmem:[%s2320 + $0x4c] sm:$0xf]
          %v2333 = vld [vmem:[%s2320 + $0x50] sm:$0xff]
          %v2334 = vld [vmem:[%s2320 + $0x58] sm:$0xff]
          %v2335 = vld [vmem:[%s2320 + $0x60] sm:$0xf]
          %v2336 = vld [vmem:[%s2320 + $0x64] sm:$0xff]
          %v2337 = vld [vmem:[%s2320 + $0x6c] sm:$0xff]
          %v2338 = vld [vmem:[%s2320 + $0x74] sm:$0xf]
          %v2339 = vld [vmem:[%s2320 + $0x78] sm:$0xff]
          %v2340 = vld [vmem:[%s2320 + $0x80] sm:$0xff]
          %v2341 = vld [vmem:[%s2320 + $0x88] sm:$0xf]
          %v2342 = vld [vmem:[%s2320 + $0x8c] sm:$0xff]
          %v2343 = vld [vmem:[%s2320 + $0x94] sm:$0xff]
          %v2344 = vld [vmem:[%s2320 + $0x9c] sm:$0xf]
          %s2345 = smul.addr %s2318, 4
          %s2346 = scalar_lea.vmem %s7, %s2345
          %v2347 = vld [vmem:[%s2346] sm:$0xff]
          %v2348 = vld [vmem:[%s2346 + $0x8] sm:$0xff]
          %v2349 = vld [vmem:[%s2346 + $0x10] sm:$0xf]
          %v2350 = vld [vmem:[%s2346 + $0x14] sm:$0xff]
          %v2351 = vld [vmem:[%s2346 + $0x1c] sm:$0xff]
          %v2352 = vld [vmem:[%s2346 + $0x24] sm:$0xf]
          %v2353 = vld [vmem:[%s2346 + $0x28] sm:$0xff]
          %v2354 = vld [vmem:[%s2346 + $0x30] sm:$0xff]
          %v2355 = vld [vmem:[%s2346 + $0x38] sm:$0xf]
          %v2356 = vld [vmem:[%s2346 + $0x3c] sm:$0xff]
          %v2357 = vld [vmem:[%s2346 + $0x44] sm:$0xff]
          %v2358 = vld [vmem:[%s2346 + $0x4c] sm:$0xf]
          %v2359 = vld [vmem:[%s2346 + $0x50] sm:$0xff]
          %v2360 = vld [vmem:[%s2346 + $0x58] sm:$0xff]
          %v2361 = vld [vmem:[%s2346 + $0x60] sm:$0xf]
          %v2362 = vld [vmem:[%s2346 + $0x64] sm:$0xff]
          %v2363 = vld [vmem:[%s2346 + $0x6c] sm:$0xff]
          %v2364 = vld [vmem:[%s2346 + $0x74] sm:$0xf]
          %v2365 = vld [vmem:[%s2346 + $0x78] sm:$0xff]
          %v2366 = vld [vmem:[%s2346 + $0x80] sm:$0xff]
          %v2367 = vld [vmem:[%s2346 + $0x88] sm:$0xf]
          %v2368 = vld [vmem:[%s2346 + $0x8c] sm:$0xff]
          %v2369 = vld [vmem:[%s2346 + $0x94] sm:$0xff]
          %v2370 = vld [vmem:[%s2346 + $0x9c] sm:$0xf]
          %s2371 = smul.u32 %s2317, 64
          %s2372 = scalar_lea.vmem %s8, %s2371
          %v2373 = vld [vmem:[%s2372] sm:$0xff]
          %v2374 = vld [vmem:[%s2372 + $0x8] sm:$0xff]
          %v2375 = vld [vmem:[%s2372 + $0x10] sm:$0xff]
          %v2376 = vld [vmem:[%s2372 + $0x18] sm:$0xff]
          %v2377 = vld [vmem:[%s2372 + $0x20] sm:$0xff]
          %v2378 = vld [vmem:[%s2372 + $0x28] sm:$0xff]
          %v2379 = vld [vmem:[%s2372 + $0x30] sm:$0xff]
          %v2380 = vld [vmem:[%s2372 + $0x38] sm:$0xff]
          %v2381 = vld [vmem:[#allocation2] sm:$0xff]
          %v2382 = vld [vmem:[#allocation2 + $0x8] sm:$0xff]
          %v2383 = vld [vmem:[#allocation2 + $0x18] sm:$0xff]
          %v2384 = vld [vmem:[#allocation2 + $0x20] sm:$0xff]
          %v2385 = vld [vmem:[#allocation2 + $0x30] sm:$0xff]
          %v2386 = vld [vmem:[#allocation2 + $0x38] sm:$0xff]
          %v2387 = vld [vmem:[#allocation2 + $0x48] sm:$0xff]
          %v2388 = vld [vmem:[#allocation2 + $0x50] sm:$0xff]
          %2397 = vrot.lane.b32.xlu0 %v2381, 7
          %v2398 = vpop.permute.xlu0 %2397
          %2399 = vrot.lane.b32.xlu0 %v2382, 7
          %v2400 = vpop.permute.xlu0 %2399
          %2401 = vrot.lane.b32.xlu0 %v2383, 7
          %v2402 = vpop.permute.xlu0 %2401
          %2403 = vrot.lane.b32.xlu0 %v2384, 7
          %v2404 = vpop.permute.xlu0 %2403
          %2405 = vrot.lane.b32.xlu0 %v2385, 7
          %v2406 = vpop.permute.xlu0 %2405
          %2407 = vrot.lane.b32.xlu0 %v2386, 7
          %v2408 = vpop.permute.xlu0 %2407
          %2409 = vrot.lane.b32.xlu0 %v2387, 7
          %v2410 = vpop.permute.xlu0 %2409
          %2411 = vrot.lane.b32.xlu0 %v2388, 7
          %v2412 = vpop.permute.xlu0 %2411
          %vm2413 = vcmask 56320
          %v2414 = vsel %vm2413, %v2398, %v2400
          %v2415 = vsel %vm2413, %v2402, %v2404
          %v2416 = vsel %vm2413, %v2406, %v2408
          %v2417 = vsel %vm2413, %v2410, %v2412
          %2422 = vst [vmem:[#allocation4] sm:$0xff] %v2414
          %2423 = vst [vmem:[#allocation4 + $0x8] sm:$0xff] %v2415
          %2424 = vst [vmem:[#allocation4 + $0x10] sm:$0xff] %v2416
          %2425 = vst [vmem:[#allocation4 + $0x18] sm:$0xff] %v2417
          %v2426 = vld [vmem:[#allocation2] sm:$0xff]
          %v2427 = vld [vmem:[#allocation2 + $0x8] sm:$0xff]
          %v2428 = vld [vmem:[#allocation2 + $0x18] sm:$0xff]
          %v2429 = vld [vmem:[#allocation2 + $0x20] sm:$0xff]
          %v2430 = vld [vmem:[#allocation2 + $0x30] sm:$0xff]
          %v2431 = vld [vmem:[#allocation2 + $0x38] sm:$0xff]
          %v2432 = vld [vmem:[#allocation2 + $0x48] sm:$0xff]
          %v2433 = vld [vmem:[#allocation2 + $0x50] sm:$0xff]
          %2442 = vrot.lane.b32.xlu0 %v2426, 6
          %v2443 = vpop.permute.xlu0 %2442
          %2444 = vrot.lane.b32.xlu0 %v2427, 6
          %v2445 = vpop.permute.xlu0 %2444
          %2446 = vrot.lane.b32.xlu0 %v2428, 6
          %v2447 = vpop.permute.xlu0 %2446
          %2448 = vrot.lane.b32.xlu0 %v2429, 6
          %v2449 = vpop.permute.xlu0 %2448
          %2450 = vrot.lane.b32.xlu0 %v2430, 6
          %v2451 = vpop.permute.xlu0 %2450
          %2452 = vrot.lane.b32.xlu0 %v2431, 6
          %v2453 = vpop.permute.xlu0 %2452
          %2454 = vrot.lane.b32.xlu0 %v2432, 6
          %v2455 = vpop.permute.xlu0 %2454
          %2456 = vrot.lane.b32.xlu0 %v2433, 6
          %v2457 = vpop.permute.xlu0 %2456
          %vm2458 = vcmask 48128
          %v2459 = vsel %vm2458, %v2443, %v2445
          %v2460 = vsel %vm2458, %v2447, %v2449
          %v2461 = vsel %vm2458, %v2451, %v2453
          %v2462 = vsel %vm2458, %v2455, %v2457
          %2467 = vst [vmem:[#allocation4 + $0x20] sm:$0xff] %v2459
          %2468 = vst [vmem:[#allocation4 + $0x28] sm:$0xff] %v2460
          %2469 = vst [vmem:[#allocation4 + $0x30] sm:$0xff] %v2461
          %2470 = vst [vmem:[#allocation4 + $0x38] sm:$0xff] %v2462
          %v2471 = vld [vmem:[#allocation2] sm:$0xff]
          %v2472 = vld [vmem:[#allocation2 + $0x8] sm:$0xff]
          %v2473 = vld [vmem:[#allocation2 + $0x18] sm:$0xff]
          %v2474 = vld [vmem:[#allocation2 + $0x20] sm:$0xff]
          %v2475 = vld [vmem:[#allocation2 + $0x30] sm:$0xff]
          %v2476 = vld [vmem:[#allocation2 + $0x38] sm:$0xff]
          %v2477 = vld [vmem:[#allocation2 + $0x48] sm:$0xff]
          %v2478 = vld [vmem:[#allocation2 + $0x50] sm:$0xff]
          %2487 = vrot.lane.b32.xlu0 %v2471, 5
          %v2488 = vpop.permute.xlu0 %2487
          %2489 = vrot.lane.b32.xlu0 %v2472, 5
          %v2490 = vpop.permute.xlu0 %2489
          %2491 = vrot.lane.b32.xlu0 %v2473, 5
          %v2492 = vpop.permute.xlu0 %2491
          %2493 = vrot.lane.b32.xlu0 %v2474, 5
          %v2494 = vpop.permute.xlu0 %2493
          %2495 = vrot.lane.b32.xlu0 %v2475, 5
          %v2496 = vpop.permute.xlu0 %2495
          %2497 = vrot.lane.b32.xlu0 %v2476, 5
          %v2498 = vpop.permute.xlu0 %2497
          %2499 = vrot.lane.b32.xlu0 %v2477, 5
          %v2500 = vpop.permute.xlu0 %2499
          %2501 = vrot.lane.b32.xlu0 %v2478, 5
          %v2502 = vpop.permute.xlu0 %2501
          %vm2503 = vcmask 39936
          %v2504 = vsel %vm2503, %v2488, %v2490
          %v2505 = vsel %vm2503, %v2492, %v2494
          %v2506 = vsel %vm2503, %v2496, %v2498
          %v2507 = vsel %vm2503, %v2500, %v2502
          %2512 = vst [vmem:[#allocation4 + $0x40] sm:$0xff] %v2504
          %2513 = vst [vmem:[#allocation4 + $0x48] sm:$0xff] %v2505
          %2514 = vst [vmem:[#allocation4 + $0x50] sm:$0xff] %v2506
          %2515 = vst [vmem:[#allocation4 + $0x58] sm:$0xff] %v2507
          %v2516 = vld [vmem:[#allocation2] sm:$0xff]
          %v2517 = vld [vmem:[#allocation2 + $0x8] sm:$0xff]
          %v2518 = vld [vmem:[#allocation2 + $0x18] sm:$0xff]
          %v2519 = vld [vmem:[#allocation2 + $0x20] sm:$0xff]
          %v2520 = vld [vmem:[#allocation2 + $0x30] sm:$0xff]
          %v2521 = vld [vmem:[#allocation2 + $0x38] sm:$0xff]
          %v2522 = vld [vmem:[#allocation2 + $0x48] sm:$0xff]
          %v2523 = vld [vmem:[#allocation2 + $0x50] sm:$0xff]
          %2532 = vrot.lane.b32.xlu0 %v2516, 1
          %v2533 = vpop.permute.xlu0 %2532
          %2534 = vrot.lane.b32.xlu0 %v2517, 1
          %v2535 = vpop.permute.xlu0 %2534
          %2536 = vrot.lane.b32.xlu0 %v2518, 1
          %v2537 = vpop.permute.xlu0 %2536
          %2538 = vrot.lane.b32.xlu0 %v2519, 1
          %v2539 = vpop.permute.xlu0 %2538
          %2540 = vrot.lane.b32.xlu0 %v2520, 1
          %v2541 = vpop.permute.xlu0 %2540
          %2542 = vrot.lane.b32.xlu0 %v2521, 1
          %v2543 = vpop.permute.xlu0 %2542
          %2544 = vrot.lane.b32.xlu0 %v2522, 1
          %v2545 = vpop.permute.xlu0 %2544
          %2546 = vrot.lane.b32.xlu0 %v2523, 1
          %v2547 = vpop.permute.xlu0 %2546
          %vm2548 = vcmask 7168
          %v2549 = vsel %vm2548, %v2533, %v2535
          %v2550 = vsel %vm2548, %v2537, %v2539
          %v2551 = vsel %vm2548, %v2541, %v2543
          %v2552 = vsel %vm2548, %v2545, %v2547
          %2557 = vst [vmem:[#allocation4 + $0x60] sm:$0xff] %v2549
          %2558 = vst [vmem:[#allocation4 + $0x68] sm:$0xff] %v2550
          %2559 = vst [vmem:[#allocation4 + $0x70] sm:$0xff] %v2551
          %2560 = vst [vmem:[#allocation4 + $0x78] sm:$0xff] %v2552
          %v2561 = vld [vmem:[#allocation2 + $0x8] sm:$0xff]
          %v2562 = vld [vmem:[#allocation2 + $0x20] sm:$0xff]
          %v2563 = vld [vmem:[#allocation2 + $0x38] sm:$0xff]
          %v2564 = vld [vmem:[#allocation2 + $0x50] sm:$0xff]
          %2565 = vst [vmem:[#allocation4 + $0x80] sm:$0xff] %v2561
          %2566 = vst [vmem:[#allocation4 + $0x88] sm:$0xff] %v2562
          %2567 = vst [vmem:[#allocation4 + $0x90] sm:$0xff] %v2563
          %2568 = vst [vmem:[#allocation4 + $0x98] sm:$0xff] %v2564
          %v2569 = vld [vmem:[#allocation2 + $0x8] sm:$0xff]
          %v2570 = vld [vmem:[#allocation2 + $0x10] sm:$0xff]
          %v2571 = vld [vmem:[#allocation2 + $0x20] sm:$0xff]
          %v2572 = vld [vmem:[#allocation2 + $0x28] sm:$0xff]
          %v2573 = vld [vmem:[#allocation2 + $0x38] sm:$0xff]
          %v2574 = vld [vmem:[#allocation2 + $0x40] sm:$0xff]
          %v2575 = vld [vmem:[#allocation2 + $0x50] sm:$0xff]
          %v2576 = vld [vmem:[#allocation2 + $0x58] sm:$0xff]
          %2585 = vrot.lane.b32.xlu0 %v2569, 127
          %v2586 = vpop.permute.xlu0 %2585
          %2587 = vrot.lane.b32.xlu0 %v2570, 127
          %v2588 = vpop.permute.xlu0 %2587
          %2589 = vrot.lane.b32.xlu0 %v2571, 127
          %v2590 = vpop.permute.xlu0 %2589
          %2591 = vrot.lane.b32.xlu0 %v2572, 127
          %v2592 = vpop.permute.xlu0 %2591
          %2593 = vrot.lane.b32.xlu0 %v2573, 127
          %v2594 = vpop.permute.xlu0 %2593
          %2595 = vrot.lane.b32.xlu0 %v2574, 127
          %v2596 = vpop.permute.xlu0 %2595
          %2597 = vrot.lane.b32.xlu0 %v2575, 127
          %v2598 = vpop.permute.xlu0 %2597
          %2599 = vrot.lane.b32.xlu0 %v2576, 127
          %v2600 = vpop.permute.xlu0 %2599
          %vm2601 = vcmask 1039360
          %v2602 = vsel %vm2601, %v2586, %v2588
          %v2603 = vsel %vm2601, %v2590, %v2592
          %v2604 = vsel %vm2601, %v2594, %v2596
          %v2605 = vsel %vm2601, %v2598, %v2600
          %2610 = vst [vmem:[#allocation4 + $0xa0] sm:$0xff] %v2602
          %2611 = vst [vmem:[#allocation4 + $0xa8] sm:$0xff] %v2603
          %2612 = vst [vmem:[#allocation4 + $0xb0] sm:$0xff] %v2604
          %2613 = vst [vmem:[#allocation4 + $0xb8] sm:$0xff] %v2605
          %v2614 = vld [vmem:[#allocation2 + $0x8] sm:$0xff]
          %v2615 = vld [vmem:[#allocation2 + $0x10] sm:$0xff]
          %v2616 = vld [vmem:[#allocation2 + $0x20] sm:$0xff]
          %v2617 = vld [vmem:[#allocation2 + $0x28] sm:$0xff]
          %v2618 = vld [vmem:[#allocation2 + $0x38] sm:$0xff]
          %v2619 = vld [vmem:[#allocation2 + $0x40] sm:$0xff]
          %v2620 = vld [vmem:[#allocation2 + $0x50] sm:$0xff]
          %v2621 = vld [vmem:[#allocation2 + $0x58] sm:$0xff]
          %2630 = vrot.lane.b32.xlu0 %v2614, 123
          %v2631 = vpop.permute.xlu0 %2630
          %2632 = vrot.lane.b32.xlu0 %v2615, 123
          %v2633 = vpop.permute.xlu0 %2632
          %2634 = vrot.lane.b32.xlu0 %v2616, 123
          %v2635 = vpop.permute.xlu0 %2634
          %2636 = vrot.lane.b32.xlu0 %v2617, 123
          %v2637 = vpop.permute.xlu0 %2636
          %2638 = vrot.lane.b32.xlu0 %v2618, 123
          %v2639 = vpop.permute.xlu0 %2638
          %2640 = vrot.lane.b32.xlu0 %v2619, 123
          %v2641 = vpop.permute.xlu0 %2640
          %2642 = vrot.lane.b32.xlu0 %v2620, 123
          %v2643 = vpop.permute.xlu0 %2642
          %2644 = vrot.lane.b32.xlu0 %v2621, 123
          %v2645 = vpop.permute.xlu0 %2644
          %vm2646 = vcmask 1006592
          %v2647 = vsel %vm2646, %v2631, %v2633
          %v2648 = vsel %vm2646, %v2635, %v2637
          %v2649 = vsel %vm2646, %v2639, %v2641
          %v2650 = vsel %vm2646, %v2643, %v2645
          %2655 = vst [vmem:[#allocation4 + $0xc0] sm:$0xff] %v2647
          %2656 = vst [vmem:[#allocation4 + $0xc8] sm:$0xff] %v2648
          %2657 = vst [vmem:[#allocation4 + $0xd0] sm:$0xff] %v2649
          %2658 = vst [vmem:[#allocation4 + $0xd8] sm:$0xff] %v2650
          %v2659 = vld [vmem:[#allocation2 + $0x8] sm:$0xff]
          %v2660 = vld [vmem:[#allocation2 + $0x10] sm:$0xff]
          %v2661 = vld [vmem:[#allocation2 + $0x20] sm:$0xff]
          %v2662 = vld [vmem:[#allocation2 + $0x28] sm:$0xff]
          %v2663 = vld [vmem:[#allocation2 + $0x38] sm:$0xff]
          %v2664 = vld [vmem:[#allocation2 + $0x40] sm:$0xff]
          %v2665 = vld [vmem:[#allocation2 + $0x50] sm:$0xff]
          %v2666 = vld [vmem:[#allocation2 + $0x58] sm:$0xff]
          %2675 = vrot.lane.b32.xlu0 %v2659, 122
          %v2676 = vpop.permute.xlu0 %2675
          %2677 = vrot.lane.b32.xlu0 %v2660, 122
          %v2678 = vpop.permute.xlu0 %2677
          %2679 = vrot.lane.b32.xlu0 %v2661, 122
          %v2680 = vpop.permute.xlu0 %2679
          %2681 = vrot.lane.b32.xlu0 %v2662, 122
          %v2682 = vpop.permute.xlu0 %2681
          %2683 = vrot.lane.b32.xlu0 %v2663, 122
          %v2684 = vpop.permute.xlu0 %2683
          %2685 = vrot.lane.b32.xlu0 %v2664, 122
          %v2686 = vpop.permute.xlu0 %2685
          %2687 = vrot.lane.b32.xlu0 %v2665, 122
          %v2688 = vpop.permute.xlu0 %2687
          %2689 = vrot.lane.b32.xlu0 %v2666, 122
          %v2690 = vpop.permute.xlu0 %2689
          %vm2691 = vcmask 998400
          %v2692 = vsel %vm2691, %v2676, %v2678
          %v2693 = vsel %vm2691, %v2680, %v2682
          %v2694 = vsel %vm2691, %v2684, %v2686
          %v2695 = vsel %vm2691, %v2688, %v2690
          %2700 = vst [vmem:[#allocation4 + $0xe0] sm:$0xff] %v2692
          %2701 = vst [vmem:[#allocation4 + $0xe8] sm:$0xff] %v2693
          %2702 = vst [vmem:[#allocation4 + $0xf0] sm:$0xff] %v2694
          %2703 = vst [vmem:[#allocation4 + $0xf8] sm:$0xff] %v2695
          %v2704 = vld [vmem:[#allocation2 + $0x8] sm:$0xff]
          %v2705 = vld [vmem:[#allocation2 + $0x10] sm:$0xff]
          %v2706 = vld [vmem:[#allocation2 + $0x20] sm:$0xff]
          %v2707 = vld [vmem:[#allocation2 + $0x28] sm:$0xff]
          %v2708 = vld [vmem:[#allocation2 + $0x38] sm:$0xff]
          %v2709 = vld [vmem:[#allocation2 + $0x40] sm:$0xff]
          %v2710 = vld [vmem:[#allocation2 + $0x50] sm:$0xff]
          %v2711 = vld [vmem:[#allocation2 + $0x58] sm:$0xff]
          %2720 = vrot.lane.b32.xlu0 %v2704, 121
          %v2721 = vpop.permute.xlu0 %2720
          %2722 = vrot.lane.b32.xlu0 %v2705, 121
          %v2723 = vpop.permute.xlu0 %2722
          %2724 = vrot.lane.b32.xlu0 %v2706, 121
          %v2725 = vpop.permute.xlu0 %2724
          %2726 = vrot.lane.b32.xlu0 %v2707, 121
          %v2727 = vpop.permute.xlu0 %2726
          %2728 = vrot.lane.b32.xlu0 %v2708, 121
          %v2729 = vpop.permute.xlu0 %2728
          %2730 = vrot.lane.b32.xlu0 %v2709, 121
          %v2731 = vpop.permute.xlu0 %2730
          %2732 = vrot.lane.b32.xlu0 %v2710, 121
          %v2733 = vpop.permute.xlu0 %2732
          %2734 = vrot.lane.b32.xlu0 %v2711, 121
          %v2735 = vpop.permute.xlu0 %2734
          %vm2736 = vcmask 990208
          %v2737 = vsel %vm2736, %v2721, %v2723
          %v2738 = vsel %vm2736, %v2725, %v2727
          %v2739 = vsel %vm2736, %v2729, %v2731
          %v2740 = vsel %vm2736, %v2733, %v2735
          %2745 = vst [vmem:[#allocation4 + $0x100] sm:$0xff] %v2737
          %2746 = vst [vmem:[#allocation4 + $0x108] sm:$0xff] %v2738
          %2747 = vst [vmem:[#allocation4 + $0x110] sm:$0xff] %v2739
          %2748 = vst [vmem:[#allocation4 + $0x118] sm:$0xff] %v2740
          %v2749 = vld [vmem:[#allocation4] sm:$0xff]
          %v2750 = vld [vmem:[#allocation4 + $0x8] sm:$0xff]
          %v2751 = vld [vmem:[#allocation4 + $0x10] sm:$0xff]
          %v2752 = vld [vmem:[#allocation4 + $0x18] sm:$0xff]
          %v2753 = vld [vmem:[#allocation4 + $0x20] sm:$0xff]
          %v2754 = vld [vmem:[#allocation4 + $0x28] sm:$0xff]
          %v2755 = vld [vmem:[#allocation4 + $0x30] sm:$0xff]
          %v2756 = vld [vmem:[#allocation4 + $0x38] sm:$0xff]
          %v2757 = vld [vmem:[#allocation4 + $0x40] sm:$0xff]
          %v2758 = vld [vmem:[#allocation4 + $0x48] sm:$0xff]
          %v2759 = vld [vmem:[#allocation4 + $0x50] sm:$0xff]
          %v2760 = vld [vmem:[#allocation4 + $0x58] sm:$0xff]
          %v2761 = vld [vmem:[#allocation4 + $0x60] sm:$0xff]
          %v2762 = vld [vmem:[#allocation4 + $0x68] sm:$0xff]
          %v2763 = vld [vmem:[#allocation4 + $0x70] sm:$0xff]
          %v2764 = vld [vmem:[#allocation4 + $0x78] sm:$0xff]
          %v2765 = vld [vmem:[#allocation4 + $0x80] sm:$0xff]
          %v2766 = vld [vmem:[#allocation4 + $0x88] sm:$0xff]
          %v2767 = vld [vmem:[#allocation4 + $0x90] sm:$0xff]
          %v2768 = vld [vmem:[#allocation4 + $0x98] sm:$0xff]
          %v2769 = vld [vmem:[#allocation4 + $0xa0] sm:$0xff]
          %v2770 = vld [vmem:[#allocation4 + $0xa8] sm:$0xff]
          %v2771 = vld [vmem:[#allocation4 + $0xb0] sm:$0xff]
          %v2772 = vld [vmem:[#allocation4 + $0xb8] sm:$0xff]
          %v2773 = vld [vmem:[#allocation4 + $0xc0] sm:$0xff]
          %v2774 = vld [vmem:[#allocation4 + $0xc8] sm:$0xff]
          %v2775 = vld [vmem:[#allocation4 + $0xd0] sm:$0xff]
          %v2776 = vld [vmem:[#allocation4 + $0xd8] sm:$0xff]
          %v2777 = vld [vmem:[#allocation4 + $0xe0] sm:$0xff]
          %v2778 = vld [vmem:[#allocation4 + $0xe8] sm:$0xff]
          %v2779 = vld [vmem:[#allocation4 + $0xf0] sm:$0xff]
          %v2780 = vld [vmem:[#allocation4 + $0xf8] sm:$0xff]
          %v2781 = vld [vmem:[#allocation4 + $0x100] sm:$0xff]
          %v2782 = vld [vmem:[#allocation4 + $0x108] sm:$0xff]
          %v2783 = vld [vmem:[#allocation4 + $0x110] sm:$0xff]
          %v2784 = vld [vmem:[#allocation4 + $0x118] sm:$0xff]
          %2786 = vset.pattern.permute.xlu0 0
          %2787 = vperm.xlu0 %2786, %v2373
          %v2788 = vpop.permute.xlu0 %2787
          %2791 = vset.pattern.permute.xlu0 0
          %2792 = vperm.xlu0 %2791, %v2374
          %v2793 = vpop.permute.xlu0 %2792
          %2796 = vset.pattern.permute.xlu0 0
          %2797 = vperm.xlu0 %2796, %v2375
          %v2798 = vpop.permute.xlu0 %2797
          %2801 = vset.pattern.permute.xlu0 0
          %2802 = vperm.xlu0 %2801, %v2376
          %v2803 = vpop.permute.xlu0 %2802
          %2806 = vset.pattern.permute.xlu0 0
          %2807 = vperm.xlu0 %2806, %v2377
          %v2808 = vpop.permute.xlu0 %2807
          %2811 = vset.pattern.permute.xlu0 0
          %2812 = vperm.xlu0 %2811, %v2378
          %v2813 = vpop.permute.xlu0 %2812
          %2816 = vset.pattern.permute.xlu0 0
          %2817 = vperm.xlu0 %2816, %v2379
          %v2818 = vpop.permute.xlu0 %2817
          %2821 = vset.pattern.permute.xlu0 0
          %2822 = vperm.xlu0 %2821, %v2380
          %v2823 = vpop.permute.xlu0 %2822
          %v2849 = vunpack.c.l.b16 %v2321
          %v2850 = vunpack.c.h.b16 %v2321
          %v2851 = vunpack.c.l.b16 %v2322
          %v2852 = vunpack.c.h.b16 %v2322
          %v2853 = vunpack.c.l.b16 %v2323
          %v2854 = vunpack.c.l.b16 %v2324
          %v2855 = vunpack.c.h.b16 %v2324
          %v2856 = vunpack.c.l.b16 %v2325
          %v2857 = vunpack.c.h.b16 %v2325
          %v2858 = vunpack.c.l.b16 %v2326
          %v2859 = vunpack.c.l.b16 %v2327
          %v2860 = vunpack.c.h.b16 %v2327
          %v2861 = vunpack.c.l.b16 %v2328
          %v2862 = vunpack.c.h.b16 %v2328
          %v2863 = vunpack.c.l.b16 %v2329
          %v2864 = vunpack.c.l.b16 %v2330
          %v2865 = vunpack.c.h.b16 %v2330
          %v2866 = vunpack.c.l.b16 %v2331
          %v2867 = vunpack.c.h.b16 %v2331
          %v2868 = vunpack.c.l.b16 %v2332
          %v2869 = vunpack.c.l.b16 %v2333
          %v2870 = vunpack.c.h.b16 %v2333
          %v2871 = vunpack.c.l.b16 %v2334
          %v2872 = vunpack.c.h.b16 %v2334
          %v2873 = vunpack.c.l.b16 %v2335
          %v2874 = vunpack.c.l.b16 %v2336
          %v2875 = vunpack.c.h.b16 %v2336
          %v2876 = vunpack.c.l.b16 %v2337
          %v2877 = vunpack.c.h.b16 %v2337
          %v2878 = vunpack.c.l.b16 %v2338
          %v2879 = vunpack.c.l.b16 %v2339
          %v2880 = vunpack.c.h.b16 %v2339
          %v2881 = vunpack.c.l.b16 %v2340
          %v2882 = vunpack.c.h.b16 %v2340
          %v2883 = vunpack.c.l.b16 %v2341
          %v2884 = vunpack.c.l.b16 %v2342
          %v2885 = vunpack.c.h.b16 %v2342
          %v2886 = vunpack.c.l.b16 %v2343
          %v2887 = vunpack.c.h.b16 %v2343
          %v2888 = vunpack.c.l.b16 %v2344
          %v2889 = vpack.c.b16 %v2854, %v2849
          %v2890 = vpack.c.b16 %v2855, %v2850
          %v2891 = vpack.c.b16 %v2856, %v2851
          %v2892 = vpack.c.b16 %v2857, %v2852
          %v2893 = vpack.c.b16 %v2858, %v2853
          %v2894 = vpack.c.b16 %v2864, %v2859
          %v2895 = vpack.c.b16 %v2865, %v2860
          %v2896 = vpack.c.b16 %v2866, %v2861
          %v2897 = vpack.c.b16 %v2867, %v2862
          %v2898 = vpack.c.b16 %v2868, %v2863
          %v2899 = vpack.c.b16 %v2874, %v2869
          %v2900 = vpack.c.b16 %v2875, %v2870
          %v2901 = vpack.c.b16 %v2876, %v2871
          %v2902 = vpack.c.b16 %v2877, %v2872
          %v2903 = vpack.c.b16 %v2878, %v2873
          %v2904 = vpack.c.b16 %v2884, %v2879
          %v2905 = vpack.c.b16 %v2885, %v2880
          %v2906 = vpack.c.b16 %v2886, %v2881
          %v2907 = vpack.c.b16 %v2887, %v2882
          %v2908 = vpack.c.b16 %v2888, %v2883
          %vm2925 = vcmask 523264
          %v2927 = vsel %vm2925, %v2893, 0
          %v2930 = vsel %vm2925, %v2898, 0
          %v2933 = vsel %vm2925, %v2903, 0
          %v2936 = vsel %vm2925, %v2908, 0
          %2938 = vmatprep.subr.bf16.mxu0 0
          %2939 = vmatpush1.bf16.msra.mxu0 %v2749
          %2940 = vmatprep.subr.bf16.mxu0 0
          %2941 = vmatpush1.bf16.msra.mxu0 %v2750
          %2942 = vmatprep.subr.bf16.mxu0 0
          %2943 = vmatpush1.bf16.msra.mxu0 %v2751
          %2944 = vmatprep.subr.bf16.mxu0 0
          %2945 = vmatpush1.bf16.msra.mxu0 %v2752
          %2946 = vmatprep.subr.bf16.mxu0 0
          %2947 = vmatpush1.bf16.msra.mxu0 %v2753
          %2948 = vmatprep.subr.bf16.mxu0 0
          %2949 = vmatpush1.bf16.msra.mxu0 %v2754
          %2950 = vmatprep.subr.bf16.mxu0 0
          %2951 = vmatpush1.bf16.msra.mxu0 %v2755
          %2952 = vmatprep.subr.bf16.mxu0 0
          %2953 = vmatpush1.bf16.msra.mxu0 %v2756
          %2954 = vmatprep.subr.bf16.mxu0 0
          %2955 = vmatpush1.bf16.msra.mxu0 %v2757
          %2956 = vmatprep.subr.bf16.mxu0 0
          %2957 = vmatpush1.bf16.msra.mxu0 %v2758
          %2958 = vmatprep.subr.bf16.mxu0 0
          %2959 = vmatpush1.bf16.msra.mxu0 %v2759
          %2960 = vmatprep.subr.bf16.mxu0 0
          %2961 = vmatpush1.bf16.msra.mxu0 %v2760
          %2962 = vmatprep.subr.bf16.mxu0 0
          %2963 = vmatpush1.bf16.msra.mxu0 %v2761
          %2964 = vmatprep.subr.bf16.mxu0 0
          %2965 = vmatpush1.bf16.msra.mxu0 %v2762
          %2966 = vmatprep.subr.bf16.mxu0 0
          %2967 = vmatpush1.bf16.msra.mxu0 %v2763
          %2968 = vmatprep.subr.bf16.mxu0 0
          %2969 = vmatpush1.bf16.msra.mxu0 %v2764
          %2970 = vmatprep.mubr.bf16.mxu0 %v2890
          %2971 = vmatmul.mubr.bf16.gmra.mrb[0].mxu0 %v2889
          %v2972 = vpop.f32.mrb[0].mxu0
          %v2973 = vadd.f32 %v2788, %v2972
          %v2974 = vpop.f32.mrb[0].mxu0
          %v2975 = vpop.f32.mrb[0].mxu0
          %v2976 = vadd.f32 %v2793, %v2975
          %v2977 = vpop.f32.mrb[0].mxu0
          %2978 = vmatprep.mubr.bf16.mxu0 %v2895
          %2979 = vmatmul.mubr.bf16.gmra.mrb[0].mxu0 %v2894
          %v2980 = vpop.f32.mrb[0].mxu0
          %v2981 = vadd.f32 %v2798, %v2980
          %v2982 = vpop.f32.mrb[0].mxu0
          %v2983 = vpop.f32.mrb[0].mxu0
          %v2984 = vadd.f32 %v2803, %v2983
          %v2985 = vpop.f32.mrb[0].mxu0
          %2986 = vmatprep.mubr.bf16.mxu0 %v2900
          %2987 = vmatmul.mubr.bf16.gmra.mrb[0].mxu0 %v2899
          %v2988 = vpop.f32.mrb[0].mxu0
          %v2989 = vadd.f32 %v2808, %v2988
          %v2990 = vpop.f32.mrb[0].mxu0
          %v2991 = vpop.f32.mrb[0].mxu0
          %v2992 = vadd.f32 %v2813, %v2991
          %v2993 = vpop.f32.mrb[0].mxu0
          %2994 = vmatprep.mubr.bf16.mxu0 %v2905
          %2995 = vmatmul.mubr.bf16.gmra.mrb[0].mxu0 %v2904
          %v2996 = vpop.f32.mrb[0].mxu0
          %v2997 = vadd.f32 %v2818, %v2996
          %v2998 = vpop.f32.mrb[0].mxu0
          %v2999 = vpop.f32.mrb[0].mxu0
          %v3000 = vadd.f32 %v2823, %v2999
          %v3001 = vpop.f32.mrb[0].mxu0
          %3002 = vdwg.mxu0
          %3003 = vmatprep.subr.bf16.mxu0 0
          %3004 = vmatpush1.bf16.msra.mxu0 %v2765
          %3005 = vmatprep.subr.bf16.mxu0 0
          %3006 = vmatpush1.bf16.msra.mxu0 %v2766
          %3007 = vmatprep.subr.bf16.mxu0 0
          %3008 = vmatpush1.bf16.msra.mxu0 %v2767
          %3009 = vmatprep.subr.bf16.mxu0 0
          %3010 = vmatpush1.bf16.msra.mxu0 %v2768
          %3011 = vmatprep.subr.bf16.mxu0 0
          %3012 = vmatpush1.bf16.msra.mxu0 %v2769
          %3013 = vmatprep.subr.bf16.mxu0 0
          %3014 = vmatpush1.bf16.msra.mxu0 %v2770
          %3015 = vmatprep.subr.bf16.mxu0 0
          %3016 = vmatpush1.bf16.msra.mxu0 %v2771
          %3017 = vmatprep.subr.bf16.mxu0 0
          %3018 = vmatpush1.bf16.msra.mxu0 %v2772
          %3019 = vmatprep.subr.bf16.mxu0 0
          %3020 = vmatpush1.bf16.msra.mxu0 %v2773
          %3021 = vmatprep.subr.bf16.mxu0 0
          %3022 = vmatpush1.bf16.msra.mxu0 %v2774
          %3023 = vmatprep.subr.bf16.mxu0 0
          %3024 = vmatpush1.bf16.msra.mxu0 %v2775
          %3025 = vmatprep.subr.bf16.mxu0 0
          %3026 = vmatpush1.bf16.msra.mxu0 %v2776
          %3027 = vmatprep.subr.bf16.mxu0 0
          %3028 = vmatpush1.bf16.msra.mxu0 %v2777
          %3029 = vmatprep.subr.bf16.mxu0 0
          %3030 = vmatpush1.bf16.msra.mxu0 %v2778
          %3031 = vmatprep.subr.bf16.mxu0 0
          %3032 = vmatpush1.bf16.msra.mxu0 %v2779
          %3033 = vmatprep.subr.bf16.mxu0 0
          %3034 = vmatpush1.bf16.msra.mxu0 %v2780
          %3035 = vmatprep.mubr.bf16.mxu0 %v2892
          %3036 = vmatmul.mubr.bf16.gmra.mrb[0].mxu0 %v2891
          %v3037 = vpop.f32.mrb[0].mxu0
          %v3038 = vadd.f32 %v2973, %v3037
          %v3039 = vpop.f32.mrb[0].mxu0
          %v3040 = vpop.f32.mrb[0].mxu0
          %v3041 = vadd.f32 %v2976, %v3040
          %v3042 = vpop.f32.mrb[0].mxu0
          %3043 = vmatprep.mubr.bf16.mxu0 %v2897
          %3044 = vmatmul.mubr.bf16.gmra.mrb[0].mxu0 %v2896
          %v3045 = vpop.f32.mrb[0].mxu0
          %v3046 = vadd.f32 %v2981, %v3045
          %v3047 = vpop.f32.mrb[0].mxu0
          %v3048 = vpop.f32.mrb[0].mxu0
          %v3049 = vadd.f32 %v2984, %v3048
          %v3050 = vpop.f32.mrb[0].mxu0
          %3051 = vmatprep.mubr.bf16.mxu0 %v2902
          %3052 = vmatmul.mubr.bf16.gmra.mrb[0].mxu0 %v2901
          %v3053 = vpop.f32.mrb[0].mxu0
          %v3054 = vadd.f32 %v2989, %v3053
          %v3055 = vpop.f32.mrb[0].mxu0
          %v3056 = vpop.f32.mrb[0].mxu0
          %v3057 = vadd.f32 %v2992, %v3056
          %v3058 = vpop.f32.mrb[0].mxu0
          %3059 = vmatprep.mubr.bf16.mxu0 %v2907
          %3060 = vmatmul.mubr.bf16.gmra.mrb[0].mxu0 %v2906
          %v3061 = vpop.f32.mrb[0].mxu0
          %v3062 = vadd.f32 %v2997, %v3061
          %v3063 = vpop.f32.mrb[0].mxu0
          %v3064 = vpop.f32.mrb[0].mxu0
          %v3065 = vadd.f32 %v3000, %v3064
          %v3066 = vpop.f32.mrb[0].mxu0
          %3067 = vdwg.mxu0
          %3068 = vmatprep.subr.bf16.mxu0 0
          %3069 = vmatpush1.bf16.msra.mxu0 %v2781
          %3070 = vmatprep.subr.bf16.mxu0 0
          %3071 = vmatpush1.bf16.msra.mxu0 %v2782
          %3072 = vmatprep.subr.bf16.mxu0 0
          %3073 = vmatpush1.bf16.msra.mxu0 %v2783
          %3074 = vmatprep.subr.bf16.mxu0 0
          %3075 = vmatpush1.bf16.msra.mxu0 %v2784
          %3076 = vmatprep.subr.bf16.mxu0 0
          %3077 = vmatpush1.bf16.msra.mxu0 0
          %3078 = vmatprep.subr.bf16.mxu0 0
          %3079 = vmatpush1.bf16.msra.mxu0 0
          %3080 = vmatprep.subr.bf16.mxu0 0
          %3081 = vmatpush1.bf16.msra.mxu0 0
          %3082 = vmatprep.subr.bf16.mxu0 0
          %3083 = vmatpush1.bf16.msra.mxu0 0
          %3084 = vmatprep.subr.bf16.mxu0 0
          %3085 = vmatpush1.bf16.msra.mxu0 0
          %3086 = vmatprep.subr.bf16.mxu0 0
          %3087 = vmatpush1.bf16.msra.mxu0 0
          %3088 = vmatprep.subr.bf16.mxu0 0
          %3089 = vmatpush1.bf16.msra.mxu0 0
          %3090 = vmatprep.subr.bf16.mxu0 0
          %3091 = vmatpush1.bf16.msra.mxu0 0
          %3092 = vmatprep.subr.bf16.mxu0 0
          %3093 = vmatpush1.bf16.msra.mxu0 0
          %3094 = vmatprep.subr.bf16.mxu0 0
          %3095 = vmatpush1.bf16.msra.mxu0 0
          %3096 = vmatprep.subr.bf16.mxu0 0
          %3097 = vmatpush1.bf16.msra.mxu0 0
          %3098 = vmatprep.subr.bf16.mxu0 0
          %3099 = vmatpush1.bf16.msra.mxu0 0
          %3100 = vmatprep.mubr.bf16.mxu0 0
          %3101 = vmatmul.mubr.bf16.gmra.mrb[0].mxu0 %v2927
          %v3102 = vpop.f32.mrb[0].mxu0
          %v3103 = vadd.f32 %v3038, %v3102
          %v3104 = vpop.f32.mrb[0].mxu0
          %v3105 = vpop.f32.mrb[0].mxu0
          %v3106 = vadd.f32 %v3041, %v3105
          %v3107 = vpop.f32.mrb[0].mxu0
          %3108 = vmatprep.mubr.bf16.mxu0 0
          %3109 = vmatmul.mubr.bf16.gmra.mrb[0].mxu0 %v2930
          %v3110 = vpop.f32.mrb[0].mxu0
          %v3111 = vadd.f32 %v3046, %v3110
          %v3112 = vpop.f32.mrb[0].mxu0
          %v3113 = vpop.f32.mrb[0].mxu0
          %v3114 = vadd.f32 %v3049, %v3113
          %v3115 = vpop.f32.mrb[0].mxu0
          %3116 = vmatprep.mubr.bf16.mxu0 0
          %3117 = vmatmul.mubr.bf16.gmra.mrb[0].mxu0 %v2933
          %v3118 = vpop.f32.mrb[0].mxu0
          %v3119 = vadd.f32 %v3054, %v3118
          %v3120 = vpop.f32.mrb[0].mxu0
          %v3121 = vpop.f32.mrb[0].mxu0
          %v3122 = vadd.f32 %v3057, %v3121
          %v3123 = vpop.f32.mrb[0].mxu0
          %3124 = vmatprep.mubr.bf16.mxu0 0
          %3125 = vmatmul.mubr.bf16.gmra.mrb[0].mxu0 %v2936
          %v3126 = vpop.f32.mrb[0].mxu0
          %v3127 = vadd.f32 %v3062, %v3126
          %v3128 = vpop.f32.mrb[0].mxu0
          %v3129 = vpop.f32.mrb[0].mxu0
          %v3130 = vadd.f32 %v3065, %v3129
          %v3131 = vpop.f32.mrb[0].mxu0
          %3132 = vdwg.mxu0
          %v3133 = vmax.f32 %v3103, 0.0
          %v3134 = vmax.f32 %v3106, 0.0
          %v3135 = vmax.f32 %v3111, 0.0
          %v3136 = vmax.f32 %v3114, 0.0
          %v3137 = vmax.f32 %v3119, 0.0
          %v3138 = vmax.f32 %v3122, 0.0
          %v3139 = vmax.f32 %v3127, 0.0
          %v3140 = vmax.f32 %v3130, 0.0
          %v3142 = vlaneseq
          %v3143 = vshrl.u32 %v3142, 7
          %v3144 = vsub.s32 0, %v3143
          %v3145 = vrot.slane %v494, %v3144
          %v3147 = vmul.f32 %v3133, %v3145
          %v3148 = vmul.f32 %v3134, %v3145
          %v3149 = vmul.f32 %v3135, %v3145
          %v3150 = vmul.f32 %v3136, %v3145
          %v3151 = vmul.f32 %v3137, %v3145
          %v3152 = vmul.f32 %v3138, %v3145
          %v3153 = vmul.f32 %v3139, %v3145
          %v3154 = vmul.f32 %v3140, %v3145
          %v3155 = vpack.c.bf16 %v3148, %v3147
          %v3156 = vpack.c.bf16 %v3150, %v3149
          %v3157 = vpack.c.bf16 %v3152, %v3151
          %v3158 = vpack.c.bf16 %v3154, %v3153
          %3159 = vst [vmem:[#allocation3 + $0x8] sm:$0xff] %v3155
          %3160 = vst [vmem:[#allocation3 + $0x20] sm:$0xff] %v3156
          %3161 = vst [vmem:[#allocation3 + $0x38] sm:$0xff] %v3157
          %3162 = vst [vmem:[#allocation3 + $0x50] sm:$0xff] %v3158
          %v3163 = vld [vmem:[#allocation2 + $0x8] sm:$0xff]
          %v3164 = vld [vmem:[#allocation2 + $0x20] sm:$0xff]
          %v3165 = vld [vmem:[#allocation2 + $0x38] sm:$0xff]
          %v3166 = vld [vmem:[#allocation2 + $0x50] sm:$0xff]
          %v3167 = vunpack.c.l.bf16 %v3163
          %v3168 = vunpack.c.h.bf16 %v3163
          %v3169 = vunpack.c.l.bf16 %v3164
          %v3170 = vunpack.c.h.bf16 %v3164
          %v3171 = vunpack.c.l.bf16 %v3165
          %v3172 = vunpack.c.h.bf16 %v3165
          %v3173 = vunpack.c.l.bf16 %v3166
          %v3174 = vunpack.c.h.bf16 %v3166
          %v3175 = vld [vmem:[#allocation3] sm:$0xff]
          %v3176 = vld [vmem:[#allocation3 + $0x8] sm:$0xff]
          %v3177 = vld [vmem:[#allocation3 + $0x18] sm:$0xff]
          %v3178 = vld [vmem:[#allocation3 + $0x20] sm:$0xff]
          %v3179 = vld [vmem:[#allocation3 + $0x30] sm:$0xff]
          %v3180 = vld [vmem:[#allocation3 + $0x38] sm:$0xff]
          %v3181 = vld [vmem:[#allocation3 + $0x48] sm:$0xff]
          %v3182 = vld [vmem:[#allocation3 + $0x50] sm:$0xff]
          %3191 = vrot.lane.b32.xlu0 %v3175, 7
          %v3192 = vpop.permute.xlu0 %3191
          %3193 = vrot.lane.b32.xlu0 %v3176, 7
          %v3194 = vpop.permute.xlu0 %3193
          %3195 = vrot.lane.b32.xlu0 %v3177, 7
          %v3196 = vpop.permute.xlu0 %3195
          %3197 = vrot.lane.b32.xlu0 %v3178, 7
          %v3198 = vpop.permute.xlu0 %3197
          %3199 = vrot.lane.b32.xlu0 %v3179, 7
          %v3200 = vpop.permute.xlu0 %3199
          %3201 = vrot.lane.b32.xlu0 %v3180, 7
          %v3202 = vpop.permute.xlu0 %3201
          %3203 = vrot.lane.b32.xlu0 %v3181, 7
          %v3204 = vpop.permute.xlu0 %3203
          %3205 = vrot.lane.b32.xlu0 %v3182, 7
          %v3206 = vpop.permute.xlu0 %3205
          %v3207 = vsel %vm2413, %v3192, %v3194
          %v3208 = vsel %vm2413, %v3196, %v3198
          %v3209 = vsel %vm2413, %v3200, %v3202
          %v3210 = vsel %vm2413, %v3204, %v3206
          %3215 = vst [vmem:[#allocation4] sm:$0xff] %v3207
          %3216 = vst [vmem:[#allocation4 + $0x8] sm:$0xff] %v3208
          %3217 = vst [vmem:[#allocation4 + $0x10] sm:$0xff] %v3209
          %3218 = vst [vmem:[#allocation4 + $0x18] sm:$0xff] %v3210
          %v3219 = vld [vmem:[#allocation3] sm:$0xff]
          %v3220 = vld [vmem:[#allocation3 + $0x8] sm:$0xff]
          %v3221 = vld [vmem:[#allocation3 + $0x18] sm:$0xff]
          %v3222 = vld [vmem:[#allocation3 + $0x20] sm:$0xff]
          %v3223 = vld [vmem:[#allocation3 + $0x30] sm:$0xff]
          %v3224 = vld [vmem:[#allocation3 + $0x38] sm:$0xff]
          %v3225 = vld [vmem:[#allocation3 + $0x48] sm:$0xff]
          %v3226 = vld [vmem:[#allocation3 + $0x50] sm:$0xff]
          %3235 = vrot.lane.b32.xlu0 %v3219, 6
          %v3236 = vpop.permute.xlu0 %3235
          %3237 = vrot.lane.b32.xlu0 %v3220, 6
          %v3238 = vpop.permute.xlu0 %3237
          %3239 = vrot.lane.b32.xlu0 %v3221, 6
          %v3240 = vpop.permute.xlu0 %3239
          %3241 = vrot.lane.b32.xlu0 %v3222, 6
          %v3242 = vpop.permute.xlu0 %3241
          %3243 = vrot.lane.b32.xlu0 %v3223, 6
          %v3244 = vpop.permute.xlu0 %3243
          %3245 = vrot.lane.b32.xlu0 %v3224, 6
          %v3246 = vpop.permute.xlu0 %3245
          %3247 = vrot.lane.b32.xlu0 %v3225, 6
          %v3248 = vpop.permute.xlu0 %3247
          %3249 = vrot.lane.b32.xlu0 %v3226, 6
          %v3250 = vpop.permute.xlu0 %3249
          %v3251 = vsel %vm2458, %v3236, %v3238
          %v3252 = vsel %vm2458, %v3240, %v3242
          %v3253 = vsel %vm2458, %v3244, %v3246
          %v3254 = vsel %vm2458, %v3248, %v3250
          %3259 = vst [vmem:[#allocation4 + $0x20] sm:$0xff] %v3251
          %3260 = vst [vmem:[#allocation4 + $0x28] sm:$0xff] %v3252
          %3261 = vst [vmem:[#allocation4 + $0x30] sm:$0xff] %v3253
          %3262 = vst [vmem:[#allocation4 + $0x38] sm:$0xff] %v3254
          %v3263 = vld [vmem:[#allocation3] sm:$0xff]
          %v3264 = vld [vmem:[#allocation3 + $0x8] sm:$0xff]
          %v3265 = vld [vmem:[#allocation3 + $0x18] sm:$0xff]
          %v3266 = vld [vmem:[#allocation3 + $0x20] sm:$0xff]
          %v3267 = vld [vmem:[#allocation3 + $0x30] sm:$0xff]
          %v3268 = vld [vmem:[#allocation3 + $0x38] sm:$0xff]
          %v3269 = vld [vmem:[#allocation3 + $0x48] sm:$0xff]
          %v3270 = vld [vmem:[#allocation3 + $0x50] sm:$0xff]
          %3279 = vrot.lane.b32.xlu0 %v3263, 5
          %v3280 = vpop.permute.xlu0 %3279
          %3281 = vrot.lane.b32.xlu0 %v3264, 5
          %v3282 = vpop.permute.xlu0 %3281
          %3283 = vrot.lane.b32.xlu0 %v3265, 5
          %v3284 = vpop.permute.xlu0 %3283
          %3285 = vrot.lane.b32.xlu0 %v3266, 5
          %v3286 = vpop.permute.xlu0 %3285
          %3287 = vrot.lane.b32.xlu0 %v3267, 5
          %v3288 = vpop.permute.xlu0 %3287
          %3289 = vrot.lane.b32.xlu0 %v3268, 5
          %v3290 = vpop.permute.xlu0 %3289
          %3291 = vrot.lane.b32.xlu0 %v3269, 5
          %v3292 = vpop.permute.xlu0 %3291
          %3293 = vrot.lane.b32.xlu0 %v3270, 5
          %v3294 = vpop.permute.xlu0 %3293
          %v3295 = vsel %vm2503, %v3280, %v3282
          %v3296 = vsel %vm2503, %v3284, %v3286
          %v3297 = vsel %vm2503, %v3288, %v3290
          %v3298 = vsel %vm2503, %v3292, %v3294
          %3303 = vst [vmem:[#allocation4 + $0x40] sm:$0xff] %v3295
          %3304 = vst [vmem:[#allocation4 + $0x48] sm:$0xff] %v3296
          %3305 = vst [vmem:[#allocation4 + $0x50] sm:$0xff] %v3297
          %3306 = vst [vmem:[#allocation4 + $0x58] sm:$0xff] %v3298
          %v3307 = vld [vmem:[#allocation3] sm:$0xff]
          %v3308 = vld [vmem:[#allocation3 + $0x8] sm:$0xff]
          %v3309 = vld [vmem:[#allocation3 + $0x18] sm:$0xff]
          %v3310 = vld [vmem:[#allocation3 + $0x20] sm:$0xff]
          %v3311 = vld [vmem:[#allocation3 + $0x30] sm:$0xff]
          %v3312 = vld [vmem:[#allocation3 + $0x38] sm:$0xff]
          %v3313 = vld [vmem:[#allocation3 + $0x48] sm:$0xff]
          %v3314 = vld [vmem:[#allocation3 + $0x50] sm:$0xff]
          %3323 = vrot.lane.b32.xlu0 %v3307, 1
          %v3324 = vpop.permute.xlu0 %3323
          %3325 = vrot.lane.b32.xlu0 %v3308, 1
          %v3326 = vpop.permute.xlu0 %3325
          %3327 = vrot.lane.b32.xlu0 %v3309, 1
          %v3328 = vpop.permute.xlu0 %3327
          %3329 = vrot.lane.b32.xlu0 %v3310, 1
          %v3330 = vpop.permute.xlu0 %3329
          %3331 = vrot.lane.b32.xlu0 %v3311, 1
          %v3332 = vpop.permute.xlu0 %3331
          %3333 = vrot.lane.b32.xlu0 %v3312, 1
          %v3334 = vpop.permute.xlu0 %3333
          %3335 = vrot.lane.b32.xlu0 %v3313, 1
          %v3336 = vpop.permute.xlu0 %3335
          %3337 = vrot.lane.b32.xlu0 %v3314, 1
          %v3338 = vpop.permute.xlu0 %3337
          %v3339 = vsel %vm2548, %v3324, %v3326
          %v3340 = vsel %vm2548, %v3328, %v3330
          %v3341 = vsel %vm2548, %v3332, %v3334
          %v3342 = vsel %vm2548, %v3336, %v3338
          %3347 = vst [vmem:[#allocation4 + $0x60] sm:$0xff] %v3339
          %3348 = vst [vmem:[#allocation4 + $0x68] sm:$0xff] %v3340
          %3349 = vst [vmem:[#allocation4 + $0x70] sm:$0xff] %v3341
          %3350 = vst [vmem:[#allocation4 + $0x78] sm:$0xff] %v3342
          %v3351 = vld [vmem:[#allocation3 + $0x8] sm:$0xff]
          %v3352 = vld [vmem:[#allocation3 + $0x20] sm:$0xff]
          %v3353 = vld [vmem:[#allocation3 + $0x38] sm:$0xff]
          %v3354 = vld [vmem:[#allocation3 + $0x50] sm:$0xff]
          %3355 = vst [vmem:[#allocation4 + $0x80] sm:$0xff] %v3351
          %3356 = vst [vmem:[#allocation4 + $0x88] sm:$0xff] %v3352
          %3357 = vst [vmem:[#allocation4 + $0x90] sm:$0xff] %v3353
          %3358 = vst [vmem:[#allocation4 + $0x98] sm:$0xff] %v3354
          %v3359 = vld [vmem:[#allocation3 + $0x8] sm:$0xff]
          %v3360 = vld [vmem:[#allocation3 + $0x10] sm:$0xff]
          %v3361 = vld [vmem:[#allocation3 + $0x20] sm:$0xff]
          %v3362 = vld [vmem:[#allocation3 + $0x28] sm:$0xff]
          %v3363 = vld [vmem:[#allocation3 + $0x38] sm:$0xff]
          %v3364 = vld [vmem:[#allocation3 + $0x40] sm:$0xff]
          %v3365 = vld [vmem:[#allocation3 + $0x50] sm:$0xff]
          %v3366 = vld [vmem:[#allocation3 + $0x58] sm:$0xff]
          %3375 = vrot.lane.b32.xlu0 %v3359, 127
          %v3376 = vpop.permute.xlu0 %3375
          %3377 = vrot.lane.b32.xlu0 %v3360, 127
          %v3378 = vpop.permute.xlu0 %3377
          %3379 = vrot.lane.b32.xlu0 %v3361, 127
          %v3380 = vpop.permute.xlu0 %3379
          %3381 = vrot.lane.b32.xlu0 %v3362, 127
          %v3382 = vpop.permute.xlu0 %3381
          %3383 = vrot.lane.b32.xlu0 %v3363, 127
          %v3384 = vpop.permute.xlu0 %3383
          %3385 = vrot.lane.b32.xlu0 %v3364, 127
          %v3386 = vpop.permute.xlu0 %3385
          %3387 = vrot.lane.b32.xlu0 %v3365, 127
          %v3388 = vpop.permute.xlu0 %3387
          %3389 = vrot.lane.b32.xlu0 %v3366, 127
          %v3390 = vpop.permute.xlu0 %3389
          %v3391 = vsel %vm2601, %v3376, %v3378
          %v3392 = vsel %vm2601, %v3380, %v3382
          %v3393 = vsel %vm2601, %v3384, %v3386
          %v3394 = vsel %vm2601, %v3388, %v3390
          %3399 = vst [vmem:[#allocation4 + $0xa0] sm:$0xff] %v3391
          %3400 = vst [vmem:[#allocation4 + $0xa8] sm:$0xff] %v3392
          %3401 = vst [vmem:[#allocation4 + $0xb0] sm:$0xff] %v3393
          %3402 = vst [vmem:[#allocation4 + $0xb8] sm:$0xff] %v3394
          %v3403 = vld [vmem:[#allocation3 + $0x8] sm:$0xff]
          %v3404 = vld [vmem:[#allocation3 + $0x10] sm:$0xff]
          %v3405 = vld [vmem:[#allocation3 + $0x20] sm:$0xff]
          %v3406 = vld [vmem:[#allocation3 + $0x28] sm:$0xff]
          %v3407 = vld [vmem:[#allocation3 + $0x38] sm:$0xff]
          %v3408 = vld [vmem:[#allocation3 + $0x40] sm:$0xff]
          %v3409 = vld [vmem:[#allocation3 + $0x50] sm:$0xff]
          %v3410 = vld [vmem:[#allocation3 + $0x58] sm:$0xff]
          %3419 = vrot.lane.b32.xlu0 %v3403, 123
          %v3420 = vpop.permute.xlu0 %3419
          %3421 = vrot.lane.b32.xlu0 %v3404, 123
          %v3422 = vpop.permute.xlu0 %3421
          %3423 = vrot.lane.b32.xlu0 %v3405, 123
          %v3424 = vpop.permute.xlu0 %3423
          %3425 = vrot.lane.b32.xlu0 %v3406, 123
          %v3426 = vpop.permute.xlu0 %3425
          %3427 = vrot.lane.b32.xlu0 %v3407, 123
          %v3428 = vpop.permute.xlu0 %3427
          %3429 = vrot.lane.b32.xlu0 %v3408, 123
          %v3430 = vpop.permute.xlu0 %3429
          %3431 = vrot.lane.b32.xlu0 %v3409, 123
          %v3432 = vpop.permute.xlu0 %3431
          %3433 = vrot.lane.b32.xlu0 %v3410, 123
          %v3434 = vpop.permute.xlu0 %3433
          %v3435 = vsel %vm2646, %v3420, %v3422
          %v3436 = vsel %vm2646, %v3424, %v3426
          %v3437 = vsel %vm2646, %v3428, %v3430
          %v3438 = vsel %vm2646, %v3432, %v3434
          %3443 = vst [vmem:[#allocation4 + $0xc0] sm:$0xff] %v3435
          %3444 = vst [vmem:[#allocation4 + $0xc8] sm:$0xff] %v3436
          %3445 = vst [vmem:[#allocation4 + $0xd0] sm:$0xff] %v3437
          %3446 = vst [vmem:[#allocation4 + $0xd8] sm:$0xff] %v3438
          %v3447 = vld [vmem:[#allocation3 + $0x8] sm:$0xff]
          %v3448 = vld [vmem:[#allocation3 + $0x10] sm:$0xff]
          %v3449 = vld [vmem:[#allocation3 + $0x20] sm:$0xff]
          %v3450 = vld [vmem:[#allocation3 + $0x28] sm:$0xff]
          %v3451 = vld [vmem:[#allocation3 + $0x38] sm:$0xff]
          %v3452 = vld [vmem:[#allocation3 + $0x40] sm:$0xff]
          %v3453 = vld [vmem:[#allocation3 + $0x50] sm:$0xff]
          %v3454 = vld [vmem:[#allocation3 + $0x58] sm:$0xff]
          %3463 = vrot.lane.b32.xlu0 %v3447, 122
          %v3464 = vpop.permute.xlu0 %3463
          %3465 = vrot.lane.b32.xlu0 %v3448, 122
          %v3466 = vpop.permute.xlu0 %3465
          %3467 = vrot.lane.b32.xlu0 %v3449, 122
          %v3468 = vpop.permute.xlu0 %3467
          %3469 = vrot.lane.b32.xlu0 %v3450, 122
          %v3470 = vpop.permute.xlu0 %3469
          %3471 = vrot.lane.b32.xlu0 %v3451, 122
          %v3472 = vpop.permute.xlu0 %3471
          %3473 = vrot.lane.b32.xlu0 %v3452, 122
          %v3474 = vpop.permute.xlu0 %3473
          %3475 = vrot.lane.b32.xlu0 %v3453, 122
          %v3476 = vpop.permute.xlu0 %3475
          %3477 = vrot.lane.b32.xlu0 %v3454, 122
          %v3478 = vpop.permute.xlu0 %3477
          %v3479 = vsel %vm2691, %v3464, %v3466
          %v3480 = vsel %vm2691, %v3468, %v3470
          %v3481 = vsel %vm2691, %v3472, %v3474
          %v3482 = vsel %vm2691, %v3476, %v3478
          %3487 = vst [vmem:[#allocation4 + $0xe0] sm:$0xff] %v3479
          %3488 = vst [vmem:[#allocation4 + $0xe8] sm:$0xff] %v3480
          %3489 = vst [vmem:[#allocation4 + $0xf0] sm:$0xff] %v3481
          %3490 = vst [vmem:[#allocation4 + $0xf8] sm:$0xff] %v3482
          %v3491 = vld [vmem:[#allocation3 + $0x8] sm:$0xff]
          %v3492 = vld [vmem:[#allocation3 + $0x10] sm:$0xff]
          %v3493 = vld [vmem:[#allocation3 + $0x20] sm:$0xff]
          %v3494 = vld [vmem:[#allocation3 + $0x28] sm:$0xff]
          %v3495 = vld [vmem:[#allocation3 + $0x38] sm:$0xff]
          %v3496 = vld [vmem:[#allocation3 + $0x40] sm:$0xff]
          %v3497 = vld [vmem:[#allocation3 + $0x50] sm:$0xff]
          %v3498 = vld [vmem:[#allocation3 + $0x58] sm:$0xff]
          %3507 = vrot.lane.b32.xlu0 %v3491, 121
          %v3508 = vpop.permute.xlu0 %3507
          %3509 = vrot.lane.b32.xlu0 %v3492, 121
          %v3510 = vpop.permute.xlu0 %3509
          %3511 = vrot.lane.b32.xlu0 %v3493, 121
          %v3512 = vpop.permute.xlu0 %3511
          %3513 = vrot.lane.b32.xlu0 %v3494, 121
          %v3514 = vpop.permute.xlu0 %3513
          %3515 = vrot.lane.b32.xlu0 %v3495, 121
          %v3516 = vpop.permute.xlu0 %3515
          %3517 = vrot.lane.b32.xlu0 %v3496, 121
          %v3518 = vpop.permute.xlu0 %3517
          %3519 = vrot.lane.b32.xlu0 %v3497, 121
          %v3520 = vpop.permute.xlu0 %3519
          %3521 = vrot.lane.b32.xlu0 %v3498, 121
          %v3522 = vpop.permute.xlu0 %3521
          %v3523 = vsel %vm2736, %v3508, %v3510
          %v3524 = vsel %vm2736, %v3512, %v3514
          %v3525 = vsel %vm2736, %v3516, %v3518
          %v3526 = vsel %vm2736, %v3520, %v3522
          %3531 = vst [vmem:[#allocation4 + $0x100] sm:$0xff] %v3523
          %3532 = vst [vmem:[#allocation4 + $0x108] sm:$0xff] %v3524
          %3533 = vst [vmem:[#allocation4 + $0x110] sm:$0xff] %v3525
          %3534 = vst [vmem:[#allocation4 + $0x118] sm:$0xff] %v3526
          %v3535 = vld [vmem:[#allocation4] sm:$0xff]
          %v3536 = vld [vmem:[#allocation4 + $0x8] sm:$0xff]
          %v3537 = vld [vmem:[#allocation4 + $0x10] sm:$0xff]
          %v3538 = vld [vmem:[#allocation4 + $0x18] sm:$0xff]
          %v3539 = vld [vmem:[#allocation4 + $0x20] sm:$0xff]
          %v3540 = vld [vmem:[#allocation4 + $0x28] sm:$0xff]
          %v3541 = vld [vmem:[#allocation4 + $0x30] sm:$0xff]
          %v3542 = vld [vmem:[#allocation4 + $0x38] sm:$0xff]
          %v3543 = vld [vmem:[#allocation4 + $0x40] sm:$0xff]
          %v3544 = vld [vmem:[#allocation4 + $0x48] sm:$0xff]
          %v3545 = vld [vmem:[#allocation4 + $0x50] sm:$0xff]
          %v3546 = vld [vmem:[#allocation4 + $0x58] sm:$0xff]
          %v3547 = vld [vmem:[#allocation4 + $0x60] sm:$0xff]
          %v3548 = vld [vmem:[#allocation4 + $0x68] sm:$0xff]
          %v3549 = vld [vmem:[#allocation4 + $0x70] sm:$0xff]
          %v3550 = vld [vmem:[#allocation4 + $0x78] sm:$0xff]
          %v3551 = vld [vmem:[#allocation4 + $0x80] sm:$0xff]
          %v3552 = vld [vmem:[#allocation4 + $0x88] sm:$0xff]
          %v3553 = vld [vmem:[#allocation4 + $0x90] sm:$0xff]
          %v3554 = vld [vmem:[#allocation4 + $0x98] sm:$0xff]
          %v3555 = vld [vmem:[#allocation4 + $0xa0] sm:$0xff]
          %v3556 = vld [vmem:[#allocation4 + $0xa8] sm:$0xff]
          %v3557 = vld [vmem:[#allocation4 + $0xb0] sm:$0xff]
          %v3558 = vld [vmem:[#allocation4 + $0xb8] sm:$0xff]
          %v3559 = vld [vmem:[#allocation4 + $0xc0] sm:$0xff]
          %v3560 = vld [vmem:[#allocation4 + $0xc8] sm:$0xff]
          %v3561 = vld [vmem:[#allocation4 + $0xd0] sm:$0xff]
          %v3562 = vld [vmem:[#allocation4 + $0xd8] sm:$0xff]
          %v3563 = vld [vmem:[#allocation4 + $0xe0] sm:$0xff]
          %v3564 = vld [vmem:[#allocation4 + $0xe8] sm:$0xff]
          %v3565 = vld [vmem:[#allocation4 + $0xf0] sm:$0xff]
          %v3566 = vld [vmem:[#allocation4 + $0xf8] sm:$0xff]
          %v3567 = vld [vmem:[#allocation4 + $0x100] sm:$0xff]
          %v3568 = vld [vmem:[#allocation4 + $0x108] sm:$0xff]
          %v3569 = vld [vmem:[#allocation4 + $0x110] sm:$0xff]
          %v3570 = vld [vmem:[#allocation4 + $0x118] sm:$0xff]
          %3571 = vset.pattern.permute.xlu0 1
          %3572 = vperm.xlu0 %3571, %v2373
          %v3573 = vpop.permute.xlu0 %3572
          %3575 = vset.pattern.permute.xlu0 1
          %3576 = vperm.xlu0 %3575, %v2374
          %v3577 = vpop.permute.xlu0 %3576
          %3579 = vset.pattern.permute.xlu0 1
          %3580 = vperm.xlu0 %3579, %v2375
          %v3581 = vpop.permute.xlu0 %3580
          %3583 = vset.pattern.permute.xlu0 1
          %3584 = vperm.xlu0 %3583, %v2376
          %v3585 = vpop.permute.xlu0 %3584
          %3587 = vset.pattern.permute.xlu0 1
          %3588 = vperm.xlu0 %3587, %v2377
          %v3589 = vpop.permute.xlu0 %3588
          %3591 = vset.pattern.permute.xlu0 1
          %3592 = vperm.xlu0 %3591, %v2378
          %v3593 = vpop.permute.xlu0 %3592
          %3595 = vset.pattern.permute.xlu0 1
          %3596 = vperm.xlu0 %3595, %v2379
          %v3597 = vpop.permute.xlu0 %3596
          %3599 = vset.pattern.permute.xlu0 1
          %3600 = vperm.xlu0 %3599, %v2380
          %v3601 = vpop.permute.xlu0 %3600
          %v3627 = vunpack.c.l.b16 %v2347
          %v3628 = vunpack.c.h.b16 %v2347
          %v3629 = vunpack.c.l.b16 %v2348
          %v3630 = vunpack.c.h.b16 %v2348
          %v3631 = vunpack.c.l.b16 %v2349
          %v3632 = vunpack.c.l.b16 %v2350
          %v3633 = vunpack.c.h.b16 %v2350
          %v3634 = vunpack.c.l.b16 %v2351
          %v3635 = vunpack.c.h.b16 %v2351
          %v3636 = vunpack.c.l.b16 %v2352
          %v3637 = vunpack.c.l.b16 %v2353
          %v3638 = vunpack.c.h.b16 %v2353
          %v3639 = vunpack.c.l.b16 %v2354
          %v3640 = vunpack.c.h.b16 %v2354
          %v3641 = vunpack.c.l.b16 %v2355
          %v3642 = vunpack.c.l.b16 %v2356
          %v3643 = vunpack.c.h.b16 %v2356
          %v3644 = vunpack.c.l.b16 %v2357
          %v3645 = vunpack.c.h.b16 %v2357
          %v3646 = vunpack.c.l.b16 %v2358
          %v3647 = vunpack.c.l.b16 %v2359
          %v3648 = vunpack.c.h.b16 %v2359
          %v3649 = vunpack.c.l.b16 %v2360
          %v3650 = vunpack.c.h.b16 %v2360
          %v3651 = vunpack.c.l.b16 %v2361
          %v3652 = vunpack.c.l.b16 %v2362
          %v3653 = vunpack.c.h.b16 %v2362
          %v3654 = vunpack.c.l.b16 %v2363
          %v3655 = vunpack.c.h.b16 %v2363
          %v3656 = vunpack.c.l.b16 %v2364
          %v3657 = vunpack.c.l.b16 %v2365
          %v3658 = vunpack.c.h.b16 %v2365
          %v3659 = vunpack.c.l.b16 %v2366
          %v3660 = vunpack.c.h.b16 %v2366
          %v3661 = vunpack.c.l.b16 %v2367
          %v3662 = vunpack.c.l.b16 %v2368
          %v3663 = vunpack.c.h.b16 %v2368
          %v3664 = vunpack.c.l.b16 %v2369
          %v3665 = vunpack.c.h.b16 %v2369
          %v3666 = vunpack.c.l.b16 %v2370
          %v3667 = vpack.c.b16 %v3632, %v3627
          %v3668 = vpack.c.b16 %v3633, %v3628
          %v3669 = vpack.c.b16 %v3634, %v3629
          %v3670 = vpack.c.b16 %v3635, %v3630
          %v3671 = vpack.c.b16 %v3636, %v3631
          %v3672 = vpack.c.b16 %v3642, %v3637
          %v3673 = vpack.c.b16 %v3643, %v3638
          %v3674 = vpack.c.b16 %v3644, %v3639
          %v3675 = vpack.c.b16 %v3645, %v3640
          %v3676 = vpack.c.b16 %v3646, %v3641
          %v3677 = vpack.c.b16 %v3652, %v3647
          %v3678 = vpack.c.b16 %v3653, %v3648
          %v3679 = vpack.c.b16 %v3654, %v3649
          %v3680 = vpack.c.b16 %v3655, %v3650
          %v3681 = vpack.c.b16 %v3656, %v3651
          %v3682 = vpack.c.b16 %v3662, %v3657
          %v3683 = vpack.c.b16 %v3663, %v3658
          %v3684 = vpack.c.b16 %v3664, %v3659
          %v3685 = vpack.c.b16 %v3665, %v3660
          %v3686 = vpack.c.b16 %v3666, %v3661
          %v3704 = vsel %vm2925, %v3671, 0
          %v3707 = vsel %vm2925, %v3676, 0
          %v3710 = vsel %vm2925, %v3681, 0
          %v3713 = vsel %vm2925, %v3686, 0
          %3715 = vmatprep.subr.bf16.mxu0 0
          %3716 = vmatpush1.bf16.msra.mxu0 %v3535
          %3717 = vmatprep.subr.bf16.mxu0 0
          %3718 = vmatpush1.bf16.msra.mxu0 %v3536
          %3719 = vmatprep.subr.bf16.mxu0 0
          %3720 = vmatpush1.bf16.msra.mxu0 %v3537
          %3721 = vmatprep.subr.bf16.mxu0 0
          %3722 = vmatpush1.bf16.msra.mxu0 %v3538
          %3723 = vmatprep.subr.bf16.mxu0 0
          %3724 = vmatpush1.bf16.msra.mxu0 %v3539
          %3725 = vmatprep.subr.bf16.mxu0 0
          %3726 = vmatpush1.bf16.msra.mxu0 %v3540
          %3727 = vmatprep.subr.bf16.mxu0 0
          %3728 = vmatpush1.bf16.msra.mxu0 %v3541
          %3729 = vmatprep.subr.bf16.mxu0 0
          %3730 = vmatpush1.bf16.msra.mxu0 %v3542
          %3731 = vmatprep.subr.bf16.mxu0 0
          %3732 = vmatpush1.bf16.msra.mxu0 %v3543
          %3733 = vmatprep.subr.bf16.mxu0 0
          %3734 = vmatpush1.bf16.msra.mxu0 %v3544
          %3735 = vmatprep.subr.bf16.mxu0 0
          %3736 = vmatpush1.bf16.msra.mxu0 %v3545
          %3737 = vmatprep.subr.bf16.mxu0 0
          %3738 = vmatpush1.bf16.msra.mxu0 %v3546
          %3739 = vmatprep.subr.bf16.mxu0 0
          %3740 = vmatpush1.bf16.msra.mxu0 %v3547
          %3741 = vmatprep.subr.bf16.mxu0 0
          %3742 = vmatpush1.bf16.msra.mxu0 %v3548
          %3743 = vmatprep.subr.bf16.mxu0 0
          %3744 = vmatpush1.bf16.msra.mxu0 %v3549
          %3745 = vmatprep.subr.bf16.mxu0 0
          %3746 = vmatpush1.bf16.msra.mxu0 %v3550
          %3747 = vmatprep.mubr.bf16.mxu0 %v3668
          %3748 = vmatmul.mubr.bf16.gmra.mrb[0].mxu0 %v3667
          %v3749 = vpop.f32.mrb[0].mxu0
          %v3750 = vadd.f32 %v3573, %v3749
          %v3751 = vpop.f32.mrb[0].mxu0
          %v3752 = vpop.f32.mrb[0].mxu0
          %v3753 = vadd.f32 %v3577, %v3752
          %v3754 = vpop.f32.mrb[0].mxu0
          %3755 = vmatprep.mubr.bf16.mxu0 %v3673
          %3756 = vmatmul.mubr.bf16.gmra.mrb[0].mxu0 %v3672
          %v3757 = vpop.f32.mrb[0].mxu0
          %v3758 = vadd.f32 %v3581, %v3757
          %v3759 = vpop.f32.mrb[0].mxu0
          %v3760 = vpop.f32.mrb[0].mxu0
          %v3761 = vadd.f32 %v3585, %v3760
          %v3762 = vpop.f32.mrb[0].mxu0
          %3763 = vmatprep.mubr.bf16.mxu0 %v3678
          %3764 = vmatmul.mubr.bf16.gmra.mrb[0].mxu0 %v3677
          %v3765 = vpop.f32.mrb[0].mxu0
          %v3766 = vadd.f32 %v3589, %v3765
          %v3767 = vpop.f32.mrb[0].mxu0
          %v3768 = vpop.f32.mrb[0].mxu0
          %v3769 = vadd.f32 %v3593, %v3768
          %v3770 = vpop.f32.mrb[0].mxu0
          %3771 = vmatprep.mubr.bf16.mxu0 %v3683
          %3772 = vmatmul.mubr.bf16.gmra.mrb[0].mxu0 %v3682
          %v3773 = vpop.f32.mrb[0].mxu0
          %v3774 = vadd.f32 %v3597, %v3773
          %v3775 = vpop.f32.mrb[0].mxu0
          %v3776 = vpop.f32.mrb[0].mxu0
          %v3777 = vadd.f32 %v3601, %v3776
          %v3778 = vpop.f32.mrb[0].mxu0
          %3779 = vdwg.mxu0
          %3780 = vmatprep.subr.bf16.mxu0 0
          %3781 = vmatpush1.bf16.msra.mxu0 %v3551
          %3782 = vmatprep.subr.bf16.mxu0 0
          %3783 = vmatpush1.bf16.msra.mxu0 %v3552
          %3784 = vmatprep.subr.bf16.mxu0 0
          %3785 = vmatpush1.bf16.msra.mxu0 %v3553
          %3786 = vmatprep.subr.bf16.mxu0 0
          %3787 = vmatpush1.bf16.msra.mxu0 %v3554
          %3788 = vmatprep.subr.bf16.mxu0 0
          %3789 = vmatpush1.bf16.msra.mxu0 %v3555
          %3790 = vmatprep.subr.bf16.mxu0 0
          %3791 = vmatpush1.bf16.msra.mxu0 %v3556
          %3792 = vmatprep.subr.bf16.mxu0 0
          %3793 = vmatpush1.bf16.msra.mxu0 %v3557
          %3794 = vmatprep.subr.bf16.mxu0 0
          %3795 = vmatpush1.bf16.msra.mxu0 %v3558
          %3796 = vmatprep.subr.bf16.mxu0 0
          %3797 = vmatpush1.bf16.msra.mxu0 %v3559
          %3798 = vmatprep.subr.bf16.mxu0 0
          %3799 = vmatpush1.bf16.msra.mxu0 %v3560
          %3800 = vmatprep.subr.bf16.mxu0 0
          %3801 = vmatpush1.bf16.msra.mxu0 %v3561
          %3802 = vmatprep.subr.bf16.mxu0 0
          %3803 = vmatpush1.bf16.msra.mxu0 %v3562
          %3804 = vmatprep.subr.bf16.mxu0 0
          %3805 = vmatpush1.bf16.msra.mxu0 %v3563
          %3806 = vmatprep.subr.bf16.mxu0 0
          %3807 = vmatpush1.bf16.msra.mxu0 %v3564
          %3808 = vmatprep.subr.bf16.mxu0 0
          %3809 = vmatpush1.bf16.msra.mxu0 %v3565
          %3810 = vmatprep.subr.bf16.mxu0 0
          %3811 = vmatpush1.bf16.msra.mxu0 %v3566
          %3812 = vmatprep.mubr.bf16.mxu0 %v3670
          %3813 = vmatmul.mubr.bf16.gmra.mrb[0].mxu0 %v3669
          %v3814 = vpop.f32.mrb[0].mxu0
          %v3815 = vadd.f32 %v3750, %v3814
          %v3816 = vpop.f32.mrb[0].mxu0
          %v3817 = vpop.f32.mrb[0].mxu0
          %v3818 = vadd.f32 %v3753, %v3817
          %v3819 = vpop.f32.mrb[0].mxu0
          %3820 = vmatprep.mubr.bf16.mxu0 %v3675
          %3821 = vmatmul.mubr.bf16.gmra.mrb[0].mxu0 %v3674
          %v3822 = vpop.f32.mrb[0].mxu0
          %v3823 = vadd.f32 %v3758, %v3822
          %v3824 = vpop.f32.mrb[0].mxu0
          %v3825 = vpop.f32.mrb[0].mxu0
          %v3826 = vadd.f32 %v3761, %v3825
          %v3827 = vpop.f32.mrb[0].mxu0
          %3828 = vmatprep.mubr.bf16.mxu0 %v3680
          %3829 = vmatmul.mubr.bf16.gmra.mrb[0].mxu0 %v3679
          %v3830 = vpop.f32.mrb[0].mxu0
          %v3831 = vadd.f32 %v3766, %v3830
          %v3832 = vpop.f32.mrb[0].mxu0
          %v3833 = vpop.f32.mrb[0].mxu0
          %v3834 = vadd.f32 %v3769, %v3833
          %v3835 = vpop.f32.mrb[0].mxu0
          %3836 = vmatprep.mubr.bf16.mxu0 %v3685
          %3837 = vmatmul.mubr.bf16.gmra.mrb[0].mxu0 %v3684
          %v3838 = vpop.f32.mrb[0].mxu0
          %v3839 = vadd.f32 %v3774, %v3838
          %v3840 = vpop.f32.mrb[0].mxu0
          %v3841 = vpop.f32.mrb[0].mxu0
          %v3842 = vadd.f32 %v3777, %v3841
          %v3843 = vpop.f32.mrb[0].mxu0
          %3844 = vdwg.mxu0
          %3845 = vmatprep.subr.bf16.mxu0 0
          %3846 = vmatpush1.bf16.msra.mxu0 %v3567
          %3847 = vmatprep.subr.bf16.mxu0 0
          %3848 = vmatpush1.bf16.msra.mxu0 %v3568
          %3849 = vmatprep.subr.bf16.mxu0 0
          %3850 = vmatpush1.bf16.msra.mxu0 %v3569
          %3851 = vmatprep.subr.bf16.mxu0 0
          %3852 = vmatpush1.bf16.msra.mxu0 %v3570
          %3853 = vmatprep.subr.bf16.mxu0 0
          %3854 = vmatpush1.bf16.msra.mxu0 0
          %3855 = vmatprep.subr.bf16.mxu0 0
          %3856 = vmatpush1.bf16.msra.mxu0 0
          %3857 = vmatprep.subr.bf16.mxu0 0
          %3858 = vmatpush1.bf16.msra.mxu0 0
          %3859 = vmatprep.subr.bf16.mxu0 0
          %3860 = vmatpush1.bf16.msra.mxu0 0
          %3861 = vmatprep.subr.bf16.mxu0 0
          %3862 = vmatpush1.bf16.msra.mxu0 0
          %3863 = vmatprep.subr.bf16.mxu0 0
          %3864 = vmatpush1.bf16.msra.mxu0 0
          %3865 = vmatprep.subr.bf16.mxu0 0
          %3866 = vmatpush1.bf16.msra.mxu0 0
          %3867 = vmatprep.subr.bf16.mxu0 0
          %3868 = vmatpush1.bf16.msra.mxu0 0
          %3869 = vmatprep.subr.bf16.mxu0 0
          %3870 = vmatpush1.bf16.msra.mxu0 0
          %3871 = vmatprep.subr.bf16.mxu0 0
          %3872 = vmatpush1.bf16.msra.mxu0 0
          %3873 = vmatprep.subr.bf16.mxu0 0
          %3874 = vmatpush1.bf16.msra.mxu0 0
          %3875 = vmatprep.subr.bf16.mxu0 0
          %3876 = vmatpush1.bf16.msra.mxu0 0
          %3877 = vmatprep.mubr.bf16.mxu0 0
          %3878 = vmatmul.mubr.bf16.gmra.mrb[0].mxu0 %v3704
          %v3879 = vpop.f32.mrb[0].mxu0
          %v3880 = vadd.f32 %v3815, %v3879
          %v3881 = vpop.f32.mrb[0].mxu0
          %v3882 = vpop.f32.mrb[0].mxu0
          %v3883 = vadd.f32 %v3818, %v3882
          %v3884 = vpop.f32.mrb[0].mxu0
          %3885 = vmatprep.mubr.bf16.mxu0 0
          %3886 = vmatmul.mubr.bf16.gmra.mrb[0].mxu0 %v3707
          %v3887 = vpop.f32.mrb[0].mxu0
          %v3888 = vadd.f32 %v3823, %v3887
          %v3889 = vpop.f32.mrb[0].mxu0
          %v3890 = vpop.f32.mrb[0].mxu0
          %v3891 = vadd.f32 %v3826, %v3890
          %v3892 = vpop.f32.mrb[0].mxu0
          %3893 = vmatprep.mubr.bf16.mxu0 0
          %3894 = vmatmul.mubr.bf16.gmra.mrb[0].mxu0 %v3710
          %v3895 = vpop.f32.mrb[0].mxu0
          %v3896 = vadd.f32 %v3831, %v3895
          %v3897 = vpop.f32.mrb[0].mxu0
          %v3898 = vpop.f32.mrb[0].mxu0
          %v3899 = vadd.f32 %v3834, %v3898
          %v3900 = vpop.f32.mrb[0].mxu0
          %3901 = vmatprep.mubr.bf16.mxu0 0
          %3902 = vmatmul.mubr.bf16.gmra.mrb[0].mxu0 %v3713
          %v3903 = vpop.f32.mrb[0].mxu0
          %v3904 = vadd.f32 %v3839, %v3903
          %v3905 = vpop.f32.mrb[0].mxu0
          %v3906 = vpop.f32.mrb[0].mxu0
          %v3907 = vadd.f32 %v3842, %v3906
          %v3908 = vpop.f32.mrb[0].mxu0
          %3909 = vdwg.mxu0
          %v3910 = vadd.f32 %v3880, %v3167
          %v3911 = vadd.f32 %v3883, %v3168
          %v3912 = vadd.f32 %v3888, %v3169
          %v3913 = vadd.f32 %v3891, %v3170
          %v3914 = vadd.f32 %v3896, %v3171
          %v3915 = vadd.f32 %v3899, %v3172
          %v3916 = vadd.f32 %v3904, %v3173
          %v3917 = vadd.f32 %v3907, %v3174
          %v3918 = vmax.f32 %v3910, 0.0
          %v3919 = vmax.f32 %v3911, 0.0
          %v3920 = vmax.f32 %v3912, 0.0
          %v3921 = vmax.f32 %v3913, 0.0
          %v3922 = vmax.f32 %v3914, 0.0
          %v3923 = vmax.f32 %v3915, 0.0
          %v3924 = vmax.f32 %v3916, 0.0
          %v3925 = vmax.f32 %v3917, 0.0
          %v3926 = vmul.f32 %v3918, %v3145
          %v3927 = vmul.f32 %v3919, %v3145
          %v3928 = vmul.f32 %v3920, %v3145
          %v3929 = vmul.f32 %v3921, %v3145
          %v3930 = vmul.f32 %v3922, %v3145
          %v3931 = vmul.f32 %v3923, %v3145
          %v3932 = vmul.f32 %v3924, %v3145
          %v3933 = vmul.f32 %v3925, %v3145
          %v3934 = vpack.c.bf16 %v3927, %v3926
          %v3935 = vpack.c.bf16 %v3929, %v3928
          %v3936 = vpack.c.bf16 %v3931, %v3930
          %v3937 = vpack.c.bf16 %v3933, %v3932
          %3938 = vst [vmem:[#allocation2 + $0x8] sm:$0xff] %v3934
          %3939 = vst [vmem:[#allocation2 + $0x20] sm:$0xff] %v3935
          %3940 = vst [vmem:[#allocation2 + $0x38] sm:$0xff] %v3936
          %3941 = vst [vmem:[#allocation2 + $0x50] sm:$0xff] %v3937
        $region92: #{resnet56_forward.5} parent=71 // pred_fallthru
          _
        %p3942 = scmp.eq.s32.totalorder %s33, 8
        // Predicated region
        $region93: #{resnet56_forward.5} parent=71 // pred_check
          %p3943 = pneg %p3942
        $region94: #{resnet56_forward.5} parent=71 // pred_check_branch
          %3945 = sbr.rel (%p3943) target = $region96
        $region95: #{resnet56_forward.5} parent=71 // pred_region
          %v3946 = vld [vmem:[#allocation2 + $0x8] sm:$0xff]
          %v3947 = vld [vmem:[#allocation2 + $0x20] sm:$0xff]
          %v3948 = vld [vmem:[#allocation2 + $0x38] sm:$0xff]
          %v3949 = vld [vmem:[#allocation2 + $0x50] sm:$0xff]
          %v3950 = vunpack.c.l.bf16 %v3946
          %v3951 = vunpack.c.h.bf16 %v3946
          %v3952 = vunpack.c.l.bf16 %v3947
          %v3953 = vunpack.c.h.bf16 %v3947
          %v3954 = vunpack.c.l.bf16 %v3948
          %v3955 = vunpack.c.h.bf16 %v3948
          %v3956 = vunpack.c.l.bf16 %v3949
          %v3957 = vunpack.c.h.bf16 %v3949
          %v3958 = vld [vmem:[%s10] sm:$0xff]
          %v3959 = vld [vmem:[%s10 + $0x8] sm:$0xff]
          %v3960 = vld [vmem:[%s10 + $0x10] sm:$0xff]
          %v3961 = vld [vmem:[%s10 + $0x18] sm:$0xff]
          %v3962 = vld [vmem:[%s10 + $0x20] sm:$0xff]
          %v3963 = vld [vmem:[%s10 + $0x28] sm:$0xff]
          %v3964 = vld [vmem:[%s10 + $0x30] sm:$0xff]
          %v3965 = vld [vmem:[%s10 + $0x38] sm:$0xff]
          %v3966 = vld [vmem:[%s10 + $0x40] sm:$0xff]
          %v3967 = vld [vmem:[%s10 + $0x48] sm:$0xff]
          %v3968 = vld [vmem:[%s10 + $0x50] sm:$0xff]
          %v3969 = vld [vmem:[%s10 + $0x58] sm:$0xff]
          %v3970 = vld [vmem:[%s10 + $0x60] sm:$0xff]
          %v3971 = vld [vmem:[%s10 + $0x68] sm:$0xff]
          %v3972 = vld [vmem:[%s10 + $0x70] sm:$0xff]
          %v3973 = vld [vmem:[%s10 + $0x78] sm:$0xff]
          %3974 = vmatprep.subr.mxu0 0.0
          %3975 = vmatpush1.msra.mxu0 %v3958
          %3976 = vmatprep.subr.mxu0 0.0
          %3977 = vmatpush1.msra.mxu0 %v3959
          %3978 = vmatprep.subr.mxu0 0.0
          %3979 = vmatpush1.msra.mxu0 %v3960
          %3980 = vmatprep.subr.mxu0 0.0
          %3981 = vmatpush1.msra.mxu0 %v3961
          %3982 = vmatprep.subr.mxu0 0.0
          %3983 = vmatpush1.msra.mxu0 %v3962
          %3984 = vmatprep.subr.mxu0 0.0
          %3985 = vmatpush1.msra.mxu0 %v3963
          %3986 = vmatprep.subr.mxu0 0.0
          %3987 = vmatpush1.msra.mxu0 %v3964
          %3988 = vmatprep.subr.mxu0 0.0
          %3989 = vmatpush1.msra.mxu0 %v3965
          %3990 = vmatprep.subr.mxu0 0.0
          %3991 = vmatpush1.msra.mxu0 %v3966
          %3992 = vmatprep.subr.mxu0 0.0
          %3993 = vmatpush1.msra.mxu0 %v3967
          %3994 = vmatprep.subr.mxu0 0.0
          %3995 = vmatpush1.msra.mxu0 %v3968
          %3996 = vmatprep.subr.mxu0 0.0
          %3997 = vmatpush1.msra.mxu0 %v3969
          %3998 = vmatprep.subr.mxu0 0.0
          %3999 = vmatpush1.msra.mxu0 %v3970
          %4000 = vmatprep.subr.mxu0 0.0
          %4001 = vmatpush1.msra.mxu0 %v3971
          %4002 = vmatprep.subr.mxu0 0.0
          %4003 = vmatpush1.msra.mxu0 %v3972
          %4004 = vmatprep.subr.mxu0 0.0
          %4005 = vmatpush1.msra.mxu0 %v3973
          %4006 = vmatprep.subr.mxu0 0.0
          %4007 = vmatpush1.msra.mxu0 0.0
          %4008 = vmatprep.subr.mxu0 0.0
          %4009 = vmatpush1.msra.mxu0 0.0
          %4010 = vmatprep.subr.mxu0 0.0
          %4011 = vmatpush1.msra.mxu0 0.0
          %4012 = vmatprep.subr.mxu0 0.0
          %4013 = vmatpush1.msra.mxu0 0.0
          %4014 = vmatprep.subr.mxu0 0.0
          %4015 = vmatpush1.msra.mxu0 0.0
          %4016 = vmatprep.subr.mxu0 0.0
          %4017 = vmatpush1.msra.mxu0 0.0
          %4018 = vmatprep.subr.mxu0 0.0
          %4019 = vmatpush1.msra.mxu0 0.0
          %4020 = vmatprep.subr.mxu0 0.0
          %4021 = vmatpush1.msra.mxu0 0.0
          %4022 = vmatprep.subr.mxu0 0.0
          %4023 = vmatpush1.msra.mxu0 0.0
          %4024 = vmatprep.subr.mxu0 0.0
          %4025 = vmatpush1.msra.mxu0 0.0
          %4026 = vmatprep.subr.mxu0 0.0
          %4027 = vmatpush1.msra.mxu0 0.0
          %4028 = vmatprep.subr.mxu0 0.0
          %4029 = vmatpush1.msra.mxu0 0.0
          %4030 = vmatprep.subr.mxu0 0.0
          %4031 = vmatpush1.msra.mxu0 0.0
          %4032 = vmatprep.subr.mxu0 0.0
          %4033 = vmatpush1.msra.mxu0 0.0
          %4034 = vmatprep.subr.mxu0 0.0
          %4035 = vmatpush1.msra.mxu0 0.0
          %4036 = vmatprep.subr.mxu0 0.0
          %4037 = vmatpush1.msra.mxu0 0.0
          %4038 = vmatprep.mubr.f32.mxu0 0.0
          %4039 = vmatmul.mubr.f32.gmra.mrb[0].mxu0 %v3950
          %v4040 = vpop.f32.mrb[0].mxu0
          %v4041 = vadd.f32 0.0, %v4040
          %v4042 = vpop.f32.mrb[0].mxu0
          %4043 = vmatprep.mubr.f32.mxu0 0.0
          %4044 = vmatmul.mubr.f32.gmra.mrb[0].mxu0 %v3951
          %v4045 = vpop.f32.mrb[0].mxu0
          %v4046 = vadd.f32 0.0, %v4045
          %v4047 = vpop.f32.mrb[0].mxu0
          %4048 = vmatprep.mubr.f32.mxu0 0.0
          %4049 = vmatmul.mubr.f32.gmra.mrb[0].mxu0 %v3952
          %v4050 = vpop.f32.mrb[0].mxu0
          %v4051 = vadd.f32 0.0, %v4050
          %v4052 = vpop.f32.mrb[0].mxu0
          %4053 = vmatprep.mubr.f32.mxu0 0.0
          %4054 = vmatmul.mubr.f32.gmra.mrb[0].mxu0 %v3953
          %v4055 = vpop.f32.mrb[0].mxu0
          %v4056 = vadd.f32 0.0, %v4055
          %v4057 = vpop.f32.mrb[0].mxu0
          %4058 = vmatprep.mubr.f32.mxu0 0.0
          %4059 = vmatmul.mubr.f32.gmra.mrb[0].mxu0 %v3954
          %v4060 = vpop.f32.mrb[0].mxu0
          %v4061 = vadd.f32 0.0, %v4060
          %v4062 = vpop.f32.mrb[0].mxu0
          %4063 = vmatprep.mubr.f32.mxu0 0.0
          %4064 = vmatmul.mubr.f32.gmra.mrb[0].mxu0 %v3955
          %v4065 = vpop.f32.mrb[0].mxu0
          %v4066 = vadd.f32 0.0, %v4065
          %v4067 = vpop.f32.mrb[0].mxu0
          %4068 = vmatprep.mubr.f32.mxu0 0.0
          %4069 = vmatmul.mubr.f32.gmra.mrb[0].mxu0 %v3956
          %v4070 = vpop.f32.mrb[0].mxu0
          %v4071 = vadd.f32 0.0, %v4070
          %v4072 = vpop.f32.mrb[0].mxu0
          %4073 = vmatprep.mubr.f32.mxu0 0.0
          %4074 = vmatmul.mubr.f32.gmra.mrb[0].mxu0 %v3957
          %v4075 = vpop.f32.mrb[0].mxu0
          %v4076 = vadd.f32 0.0, %v4075
          %v4077 = vpop.f32.mrb[0].mxu0
          %4078 = vdwg.mxu0
          %v4079 = vld [vmem:[#allocation10] sm:$0x1]
          %v4080 = vld [vmem:[#allocation5] sm:$0x1]
          %4082 = vset.pattern.permute.xlu0 0
          %4083 = vperm.xlu0 %4082, %v4080
          %v4084 = vpop.permute.xlu0 %4083
          %v4086 = vlaneseq
          %v4087 = vshrl.u32 %v4086, 7
          %v4088 = vsub.s32 0, %v4087
          %v4089 = vrot.slane %v4084, %v4088
          %vm4090 = vcmask 523264
          %v4092 = vsel %vm4090, %v4079, 0
          %4094 = vmatprep.subr.mxu0 0.0
          %4095 = vmatpush1.msra.mxu0 %v4041
          %4096 = vmatprep.subr.mxu0 0.0
          %4097 = vmatpush1.msra.mxu0 %v4046
          %4098 = vmatprep.subr.mxu0 0.0
          %4099 = vmatpush1.msra.mxu0 %v4051
          %4100 = vmatprep.subr.mxu0 0.0
          %4101 = vmatpush1.msra.mxu0 %v4056
          %4102 = vmatprep.subr.mxu0 0.0
          %4103 = vmatpush1.msra.mxu0 %v4061
          %4104 = vmatprep.subr.mxu0 0.0
          %4105 = vmatpush1.msra.mxu0 %v4066
          %4106 = vmatprep.subr.mxu0 0.0
          %4107 = vmatpush1.msra.mxu0 %v4071
          %4108 = vmatprep.subr.mxu0 0.0
          %4109 = vmatpush1.msra.mxu0 %v4076
          %4110 = vmatprep.subr.mxu0 0.0
          %4111 = vmatpush1.msra.mxu0 0.0
          %4112 = vmatprep.subr.mxu0 0.0
          %4113 = vmatpush1.msra.mxu0 0.0
          %4114 = vmatprep.subr.mxu0 0.0
          %4115 = vmatpush1.msra.mxu0 0.0
          %4116 = vmatprep.subr.mxu0 0.0
          %4117 = vmatpush1.msra.mxu0 0.0
          %4118 = vmatprep.subr.mxu0 0.0
          %4119 = vmatpush1.msra.mxu0 0.0
          %4120 = vmatprep.subr.mxu0 0.0
          %4121 = vmatpush1.msra.mxu0 0.0
          %4122 = vmatprep.subr.mxu0 0.0
          %4123 = vmatpush1.msra.mxu0 0.0
          %4124 = vmatprep.subr.mxu0 0.0
          %4125 = vmatpush1.msra.mxu0 0.0
          %4126 = vmatprep.subr.mxu0 0.0
          %4127 = vmatpush1.msra.mxu0 0.0
          %4128 = vmatprep.subr.mxu0 0.0
          %4129 = vmatpush1.msra.mxu0 0.0
          %4130 = vmatprep.subr.mxu0 0.0
          %4131 = vmatpush1.msra.mxu0 0.0
          %4132 = vmatprep.subr.mxu0 0.0
          %4133 = vmatpush1.msra.mxu0 0.0
          %4134 = vmatprep.subr.mxu0 0.0
          %4135 = vmatpush1.msra.mxu0 0.0
          %4136 = vmatprep.subr.mxu0 0.0
          %4137 = vmatpush1.msra.mxu0 0.0
          %4138 = vmatprep.subr.mxu0 0.0
          %4139 = vmatpush1.msra.mxu0 0.0
          %4140 = vmatprep.subr.mxu0 0.0
          %4141 = vmatpush1.msra.mxu0 0.0
          %4142 = vmatprep.subr.mxu0 0.0
          %4143 = vmatpush1.msra.mxu0 0.0
          %4144 = vmatprep.subr.mxu0 0.0
          %4145 = vmatpush1.msra.mxu0 0.0
          %4146 = vmatprep.subr.mxu0 0.0
          %4147 = vmatpush1.msra.mxu0 0.0
          %4148 = vmatprep.subr.mxu0 0.0
          %4149 = vmatpush1.msra.mxu0 0.0
          %4150 = vmatprep.subr.mxu0 0.0
          %4151 = vmatpush1.msra.mxu0 0.0
          %4152 = vmatprep.subr.mxu0 0.0
          %4153 = vmatpush1.msra.mxu0 0.0
          %4154 = vmatprep.subr.mxu0 0.0
          %4155 = vmatpush1.msra.mxu0 0.0
          %4156 = vmatprep.subr.mxu0 0.0
          %4157 = vmatpush1.msra.mxu0 0.0
          %4158 = vmatprep.mubr.f32.mxu0 0.0
          %4159 = vmatmul.mubr.f32.gmra.mrb[0].mxu0 %v4092
          %v4160 = vpop.f32.mrb[0].mxu0
          %v4161 = vadd.f32 %v4089, %v4160
          %v4162 = vpop.f32.mrb[0].mxu0
          %4163 = vdwg.mxu0
          %v4164 = vlaneseq
          %v4165 = vshrl.u32 %v4164, 7
          %v4166 = vsub.s32 0, %v4165
          %v4167 = vrot.slane %v4161, %v4166
          %4168 = vst [vmem:[%s492] sm:$0xff] %v4167
        $region96: #{resnet56_forward.5} parent=71 // pred_fallthru
          _
        %p4169 = scmp.lt.s32.totalorder %s32, 1
        %s4170 = scalar_select %p4169, %s32, 1
        %s4171 = smul.addr %s4170, 8
        %s4172 = scalar_lea.vmem %s13, %s4171
        // Predicated region
        $region97: #{resnet56_forward.5} parent=71 // pred_check
          %p4173 = pneg %p336
        $region98: #{resnet56_forward.5} parent=71 // pred_check_branch
          %4175 = sbr.rel (%p4173) target = $region100
        $region99: #{resnet56_forward.5} parent=71 // pred_region
          _
        $region100: #{resnet56_forward.5} parent=71 // pred_fallthru
          _
      $region72: #{resnet56_forward.5} parent=5 // pred_fallthru
        _
      %p4176 = scmp.le.s32.totalorder 2, %s23
      // Predicated region
      $region101: #{resnet56_forward.5} parent=5 // pred_check
        %p4177 = pneg %p4176
      $region102: #{resnet56_forward.5} parent=5 // pred_check_branch
        %4179 = sbr.rel (%p4177) target = $region104
      $region103: #{resnet56_forward.5} parent=5 // pred_region
        %s4180 = ssub.s32 %s23, 2
        // Predicated region
        $region105: #{resnet56_forward.5} parent=103 // pred_check
          %p4181 = pneg %p342
        $region106: #{resnet56_forward.5} parent=103 // pred_check_branch
          %4183 = sbr.rel (%p4181) target = $region108
        $region107: #{resnet56_forward.5} parent=103 // pred_region
          %p4184 = scmp.lt.s32.totalorder %s34, 1
          %s4185 = scalar_select %p4184, %s34, 1
          %s4186 = smul.addr %s4185, 8
          %s4187 = scalar_lea.vmem %s13, %s4186
        $region108: #{resnet56_forward.5} parent=103 // pred_fallthru
          _
      $region104: #{resnet56_forward.5} parent=5 // pred_fallthru
        _
    $region6: #{resnet56_forward.5} parent=1 // loop_footer
      %s27 = sadd.s32 1, %s23
    $region7: #{resnet56_forward.5} parent=1 // loop_footer_branch
      %22 = sbr.rel target = $region3
    $region8: #{resnet56_forward.5} parent=1 // loop_exit
      _
    %4188 = vsyncpa [#allocation7], 1
    %s4189 = scalar_lea.sflag [#allocation7], 1
    %4190 = vsyncpa %s4189, 1
    %4191 = vsyncpa [#allocation9], 1

</llo_original>
